<compile_context>
chip_gen: v7x
topology: tpu7x:2x2x1
jax: 0.10.0
libtpu: 0.0.40
codegen_flags: <defaults>
</compile_context>

<pallas_src>
import functools
import math

import numpy as np

import jax
import jax.numpy as jnp
from jax.experimental import pallas as pl
from jax.experimental.pallas import tpu as pltpu


# ---------------------------------------------------------------------------
# In-kernel helpers
# ---------------------------------------------------------------------------

def _im2col9(xp, H, W):
    """Halo-padded (H+2, W+2, C) value -> (H*W, 9*C) im2col slab.

    K ordering is (kh-major, kw, cin), matching the weight packing below.
    """
    C = xp.shape[-1]
    cols = [xp[kh:kh + H, kw:kw + W, :] for kh in range(3) for kw in range(3)]
    return jnp.concatenate(cols, axis=-1).reshape(H * W, 9 * C)


def _decoder_kernel(x_ref, w1_ref, b1_ref, wr1_ref, wr2_ref,
                    w2_ref, b2_ref, w3_ref, b3_ref,
                    o_ref, pad_in, pad_h, pad_q, *, n_res_layers):
    """Full Decoder forward for one sample, entirely in VMEM.

    x_ref  : (H, W, in_dim)        input sample (NHWC)
    w1/b1  : (9*in_dim, h)/(1, h)  ConvT(k3,s1,p1) as 3x3 'same' conv
    wr1    : (9*h, R)              residual 3x3 conv (no bias)
    wr2    : (R, h)                residual 1x1 conv (no bias)
    w2/b2  : (9*h, 4*h2)/(1, 4*h2) ConvT(k4,s2,p1) polyphase, phase-major out
    w3/b3  : (36*h2, 48)/(1, 48)   ConvT(k4,s2,p1) folded onto ct2's phases
    o_ref  : (H*W, 48)             final output, phase-major (sh*4+sw)*3 + c
    pad_*  : VMEM halo-padded scratch activations
    """
    H, W, _ = x_ref.shape
    Ch = pad_h.shape[-1]
    Cq = pad_q.shape[-1]
    f32 = jnp.float32

    # ---- stage 0: halo-pad the input inside VMEM (no jnp.pad round trip) ---
    pad_in[...] = jnp.zeros(pad_in.shape, f32)
    pad_in[1:H + 1, 1:W + 1, :] = x_ref[...]

    # ---- stage 1: ConvTranspose2d(in_dim, h_dim, k=3, s=1, p=1) ------------
    h = jnp.dot(_im2col9(pad_in[...], H, W), w1_ref[...],
                preferred_element_type=f32) + b1_ref[...]
    if n_res_layers == 0:                      # empty stack still applies ReLU
        h = jnp.maximum(h, 0.0)

    pad_h[...] = jnp.zeros(pad_h.shape, f32)
    pad_h[1:H + 1, 1:W + 1, :] = h.reshape(H, W, Ch)

    # ---- stage 2: ResidualStack (shared weights) + fused tail ReLU ---------
    for i in range(n_res_layers):
        xp = pad_h[...]                        # pre-ReLU activation (padded)
        slab = _im2col9(jnp.maximum(xp, 0.0), H, W)
        t = jnp.maximum(
            jnp.dot(slab, wr1_ref[...], preferred_element_type=f32), 0.0)
        v = jnp.dot(t, wr2_ref[...], preferred_element_type=f32)
        y = xp[1:H + 1, 1:W + 1, :].reshape(H * W, Ch) + v   # residual skip
        if i == n_res_layers - 1:
            y = jnp.maximum(y, 0.0)            # ResidualStack trailing F.relu
        pad_h[1:H + 1, 1:W + 1, :] = y.reshape(H, W, Ch)

    # ---- stage 3: ConvT(h, h//2, k=4, s=2, p=1) + ReLU, phase-major --------
    q = jnp.dot(_im2col9(pad_h[...], H, W), w2_ref[...],
                preferred_element_type=f32) + b2_ref[...]
    q = jnp.maximum(q, 0.0)                    # ReLU commutes with the phase
    pad_q[...] = jnp.zeros(pad_q.shape, f32)   # rearrangement (pointwise)
    pad_q[1:H + 1, 1:W + 1, :] = q.reshape(H, W, Cq)

    # ---- stage 4: ConvT(h//2, 3, k=4, s=2, p=1), interleave folded in w3 ---
    y = jnp.dot(_im2col9(pad_q[...], H, W), w3_ref[...],
                preferred_element_type=f32) + b3_ref[...]
    o_ref[...] = y                             # (H*W, 16*3) phase-major


# ---------------------------------------------------------------------------
# One-time host-side weight repacking (hoisted out of the jitted forward)
# ---------------------------------------------------------------------------

# ConvT(k=4, s=2, p=1): output parity r, input offset d -> kernel tap index.
_KH_SEL = ((3, 1), (2, 0))


def _polyphase_ct2_weight(w_pt):
    """(Cin, Cout, 4, 4) ConvT weight -> (9*Cin, 4*Cout) 3x3 'same' conv weight
    at the coarse resolution, phase-major (rh*2+rw) output channels."""
    Cin, Cout = w_pt.shape[0], w_pt.shape[1]
    k = np.zeros((3, 3, Cin, 4, Cout), np.float32)
    for rh in range(2):
        for rw in range(2):
            p = rh * 2 + rw
            for dh in range(2):
                for dw in range(2):
                    k[rh + dh, rw + dw, :, p, :] = w_pt[
                        :, :, _KH_SEL[rh][dh], _KH_SEL[rw][dw]]
    return k.reshape(9 * Cin, 4 * Cout)


# Final output phase s (mod 4) of the composed x4 upsample ->
# (coarse tap offset d, ct2 phase a of the input, ct3 kernel tap k).
_PHASE_TAPS = (
    ((0, 0, 1), (-1, 1, 3)),   # s = 0
    ((0, 0, 2), (0, 1, 0)),    # s = 1
    ((0, 1, 1), (0, 0, 3)),    # s = 2
    ((0, 1, 2), (1, 0, 0)),    # s = 3
)


def _folded_ct3_weight(w_pt):
    """Fold ConvT(k4,s2,p1) so it consumes ct2's phase-major coarse output
    directly: (Cin, 3, 4, 4) -> (9*4*Cin, 16*3)."""
    Cin, Cout = w_pt.shape[0], w_pt.shape[1]
    k = np.zeros((3, 3, 4 * Cin, 16 * Cout), np.float32)
    for sh in range(4):
        for sw in range(4):
            s = sh * 4 + sw
            for dh, ah, kh in _PHASE_TAPS[sh]:
                for dw, aw, kw in _PHASE_TAPS[sw]:
                    pin = ah * 2 + aw
                    k[dh + 1, dw + 1,
                      pin * Cin:(pin + 1) * Cin,
                      s * Cout:(s + 1) * Cout] = w_pt[:, :, kh, kw]
    return k.reshape(9 * 4 * Cin, 16 * Cout)


def prepare_params(params):
    """One-time weight repacking; run ONCE outside the per-step jit."""
    p = {k: np.asarray(v) for k, v in params.items()}
    in_dim, h_dim = p["ct1_w"].shape[0], p["ct1_w"].shape[1]
    res_h_dim = p["res_w1"].shape[0]
    half = h_dim // 2

    # ConvT(k3,s1,p1) == 3x3 'same' conv with a spatially flipped kernel.
    k1 = np.transpose(p["ct1_w"][:, :, ::-1, ::-1], (2, 3, 0, 1))

    prepped = {
        "w1": k1.reshape(9 * in_dim, h_dim),
        "b1": p["ct1_b"].reshape(1, h_dim),
        "wr1": np.transpose(p["res_w1"], (2, 3, 1, 0)).reshape(9 * h_dim,
                                                               res_h_dim),
        "wr2": p["res_w2"][:, :, 0, 0].T,                      # (R, h_dim)
        "w2": _polyphase_ct2_weight(p["ct2_w"]),               # (9h, 4*half)
        "b2": np.tile(p["ct2_b"], 4).reshape(1, 4 * half),
        "w3": _folded_ct3_weight(p["ct3_w"]),                  # (36*half, 48)
        "b3": np.tile(p["ct3_b"], 16).reshape(1, 48),
    }
    return {k: jnp.asarray(v, jnp.float32) for k, v in prepped.items()}


# ---------------------------------------------------------------------------
# Fused Decoder forward (one pallas_call)
# ---------------------------------------------------------------------------

@functools.partial(jax.jit, static_argnames=("n_res_layers",))
def decoder_forward(x_nchw, prepped, n_res_layers):
    N, Cin, H, W = x_nchw.shape
    h_dim = prepped["w1"].shape[-1]
    c_q = prepped["w2"].shape[-1]          # 4 * (h_dim // 2)
    c_out = prepped["w3"].shape[-1]        # 16 * 3

    x = jnp.transpose(x_nchw, (0, 2, 3, 1))                 # NCHW -> NHWC (4ch)

    out_flat = pl.pallas_call(
        functools.partial(_decoder_kernel, n_res_layers=n_res_layers),
        out_shape=jax.ShapeDtypeStruct((N, H * W, c_out), jnp.float32),
        grid=(N,),
        in_specs=[
            pl.BlockSpec((None, H, W, Cin), lambda n: (n, 0, 0, 0)),
            pl.BlockSpec(prepped["w1"].shape, lambda n: (0, 0)),
            pl.BlockSpec(prepped["b1"].shape, lambda n: (0, 0)),
            pl.BlockSpec(prepped["wr1"].shape, lambda n: (0, 0)),
            pl.BlockSpec(prepped["wr2"].shape, lambda n: (0, 0)),
            pl.BlockSpec(prepped["w2"].shape, lambda n: (0, 0)),
            pl.BlockSpec(prepped["b2"].shape, lambda n: (0, 0)),
            pl.BlockSpec(prepped["w3"].shape, lambda n: (0, 0)),
            pl.BlockSpec(prepped["b3"].shape, lambda n: (0, 0)),
        ],
        out_specs=pl.BlockSpec((None, H * W, c_out), lambda n: (n, 0, 0)),
        scratch_shapes=[
            pltpu.VMEM((H + 2, W + 2, Cin), jnp.float32),    # padded input
            pltpu.VMEM((H + 2, W + 2, h_dim), jnp.float32),  # padded h activ.
            pltpu.VMEM((H + 2, W + 2, c_q), jnp.float32),    # padded ct2 out
        ],
        compiler_params=pltpu.CompilerParams(
            dimension_semantics=("parallel",)),
    )(x, prepped["w1"], prepped["b1"], prepped["wr1"], prepped["wr2"],
      prepped["w2"], prepped["b2"], prepped["w3"], prepped["b3"])

    # Single XLA op: 4x4 polyphase interleave fused with NHWC -> NCHW.
    y = out_flat.reshape(N, H, W, 4, 4, 3)
    y = jnp.transpose(y, (0, 5, 1, 3, 2, 4))
    return y.reshape(N, 3, 4 * H, 4 * W)


# ---------------------------------------------------------------------------
# Pure-JAX reference (mirrors the PyTorch module, high precision)
# ---------------------------------------------------------------------------

def _ref_conv_transpose(x, w_pt, b, stride, padding):
    k = w_pt.shape[-1]
    rhs = jnp.transpose(w_pt[:, :, ::-1, ::-1], (1, 0, 2, 3))   # (Cout,Cin,k,k)
    p = k - 1 - padding
    y = jax.lax.conv_general_dilated(
        x, rhs, window_strides=(1, 1), padding=[(p, p), (p, p)],
        lhs_dilation=(stride, stride), rhs_dilation=(1, 1),
        dimension_numbers=("NCHW", "OIHW", "NCHW"),
        precision=jax.lax.Precision.HIGHEST)
    return y + b.reshape(1, -1, 1, 1)


def _ref_conv(x, w_pt, padding):
    return jax.lax.conv_general_dilated(
        x, w_pt, window_strides=(1, 1),
        padding=[(padding, padding), (padding, padding)],
        dimension_numbers=("NCHW", "OIHW", "NCHW"),
        precision=jax.lax.Precision.HIGHEST)


def decoder_reference(x, params, n_res_layers):
    h = _ref_conv_transpose(x, params["ct1_w"], params["ct1_b"], 1, 1)
    for _ in range(n_res_layers):
        t = _ref_conv(jax.nn.relu(h), params["res_w1"], 1)
        t = _ref_conv(jax.nn.relu(t), params["res_w2"], 0)
        h = h + t
    h = jax.nn.relu(h)
    h = jax.nn.relu(_ref_conv_transpose(h, params["ct2_w"], params["ct2_b"], 2, 1))
    h = _ref_conv_transpose(h, params["ct3_w"], params["ct3_b"], 2, 1)
    return h


# ---------------------------------------------------------------------------
# Deterministic parameter init (shapes follow Decoder.__init__)
# ---------------------------------------------------------------------------

def init_params(key, in_dim, h_dim, res_h_dim):
    ks = jax.random.split(key, 8)

    def w(k, shape, fan_in):
        return (1.0 / math.sqrt(fan_in)) * jax.random.normal(k, shape, jnp.float32)

    return {
        "ct1_w": w(ks[0], (in_dim, h_dim, 3, 3), in_dim * 9),
        "ct1_b": 0.3 * jax.random.normal(ks[1], (h_dim,), jnp.float32),
        "res_w1": w(ks[2], (res_h_dim, h_dim, 3, 3), h_dim * 9),     # bias=False
        "res_w2": w(ks[3], (h_dim, res_h_dim, 1, 1), res_h_dim),     # bias=False
        "ct2_w": w(ks[4], (h_dim, h_dim // 2, 4, 4), h_dim * 16),
        "ct2_b": 0.3 * jax.random.normal(ks[5], (h_dim // 2,), jnp.float32),
        "ct3_w": w(ks[6], (h_dim // 2, 3, 4, 4), (h_dim // 2) * 16),
        "ct3_b": 0.3 * jax.random.normal(ks[7], (3,), jnp.float32),
    }


if __name__ == "__main__":
    in_dim, h_dim, res_h_dim, n_res_layers = 4, 32, 16, 2
    batch, spatial = 2, 16

    key = jax.random.PRNGKey(0)
    kp, kx = jax.random.split(key)
    params = init_params(kp, in_dim, h_dim, res_h_dim)
    x = jax.random.normal(kx, (batch, in_dim, spatial, spatial), jnp.float32)

    # One-time weight repacking, hoisted out of the jitted per-step forward.
    prepped = prepare_params(params)

    out = decoder_forward(x, prepped, n_res_layers=n_res_layers)
    out = jax.block_until_ready(out)

    assert out.shape == (batch, 3, 4 * spatial, 4 * spatial), out.shape
    assert bool(jnp.all(jnp.isfinite(out)))

    ref = jax.block_until_ready(decoder_reference(x, params, n_res_layers))
    rel_err = float(jnp.max(jnp.abs(out - ref)) / (jnp.max(jnp.abs(ref)) + 1e-6))
    assert rel_err < 1e-4, f"mismatch vs reference: rel_err={rel_err}"

    print("KERNEL_OK")
</pallas_src>

<mosaic_0001>
module attributes {stable_mosaic.version = 11 : i64} {
  func.func @_decoder_kernel(%arg0: i32, %arg1: memref<1x16x16x4xf32, #tpu.memory_space<vmem>>, %arg2: memref<36x32xf32, #tpu.memory_space<vmem>>, %arg3: memref<1x32xf32, #tpu.memory_space<vmem>>, %arg4: memref<288x16xf32, #tpu.memory_space<vmem>>, %arg5: memref<16x32xf32, #tpu.memory_space<vmem>>, %arg6: memref<288x64xf32, #tpu.memory_space<vmem>>, %arg7: memref<1x64xf32, #tpu.memory_space<vmem>>, %arg8: memref<576x48xf32, #tpu.memory_space<vmem>>, %arg9: memref<1x48xf32, #tpu.memory_space<vmem>>, %arg10: memref<1x256x48xf32, #tpu.memory_space<vmem>>, %arg11: memref<18x18x4xf32, #tpu.memory_space<vmem>>, %arg12: memref<18x18x32xf32, #tpu.memory_space<vmem>>, %arg13: memref<18x18x64xf32, #tpu.memory_space<vmem>>) attributes {dimension_semantics = [#tpu.dimension_semantics<parallel>], iteration_bounds = array<i64: 2>, scalar_prefetch = 0 : i64, scratch_operands = 3 : i64, tpu.core_type = #tpu.core_type<tc>, window_params = [{transform_indices = @transform_0, window_bounds = array<i64: 1, 16, 16, 4>}, {pipeline_mode = #tpu.pipeline_mode<synchronous>, transform_indices = @transform_1, window_bounds = array<i64: 36, 32>}, {pipeline_mode = #tpu.pipeline_mode<synchronous>, transform_indices = @transform_2, window_bounds = array<i64: 1, 32>}, {pipeline_mode = #tpu.pipeline_mode<synchronous>, transform_indices = @transform_3, window_bounds = array<i64: 288, 16>}, {pipeline_mode = #tpu.pipeline_mode<synchronous>, transform_indices = @transform_4, window_bounds = array<i64: 16, 32>}, {pipeline_mode = #tpu.pipeline_mode<synchronous>, transform_indices = @transform_5, window_bounds = array<i64: 288, 64>}, {pipeline_mode = #tpu.pipeline_mode<synchronous>, transform_indices = @transform_6, window_bounds = array<i64: 1, 64>}, {pipeline_mode = #tpu.pipeline_mode<synchronous>, transform_indices = @transform_7, window_bounds = array<i64: 576, 48>}, {pipeline_mode = #tpu.pipeline_mode<synchronous>, transform_indices = @transform_8, window_bounds = array<i64: 1, 48>}, {transform_indices = @transform_9, window_bounds = array<i64: 1, 256, 48>}]} {
    %cst = arith.constant 0.000000e+00 : f32
    %0 = vector.broadcast %cst : f32 to vector<18x18x4xf32>
    %c0 = arith.constant 0 : index
    %c0_0 = arith.constant 0 : index
    %c0_1 = arith.constant 0 : index
    %1 = vector.load %arg11[%c0, %c0_0, %c0_1] : memref<18x18x4xf32, #tpu.memory_space<vmem>>, vector<18x18x4xf32>
    tpu.vector_store %arg11[%c0, %c0_0, %c0_1], %0 {strides = array<i32>} : memref<18x18x4xf32, #tpu.memory_space<vmem>>, vector<18x18x4xf32>,
    %c0_2 = arith.constant 0 : index
    %c0_3 = arith.constant 0 : index
    %c0_4 = arith.constant 0 : index
    %c0_5 = arith.constant 0 : index
    %2 = vector.load %arg1[%c0_2, %c0_3, %c0_4, %c0_5] : memref<1x16x16x4xf32, #tpu.memory_space<vmem>>, vector<1x16x16x4xf32>
    %3 = vector.shape_cast %2 : vector<1x16x16x4xf32> to vector<16x16x4xf32>
    %c1 = arith.constant 1 : index
    %c1_6 = arith.constant 1 : index
    %c0_7 = arith.constant 0 : index
    %4 = vector.load %arg11[%c1, %c1_6, %c0_7] : memref<18x18x4xf32, #tpu.memory_space<vmem>>, vector<16x16x4xf32>
    tpu.vector_store %arg11[%c1, %c1_6, %c0_7], %3 {strides = array<i32>} : memref<18x18x4xf32, #tpu.memory_space<vmem>>, vector<16x16x4xf32>,
    %c0_8 = arith.constant 0 : index
    %c0_9 = arith.constant 0 : index
    %c0_10 = arith.constant 0 : index
    %5 = vector.load %arg11[%c0_8, %c0_9, %c0_10] : memref<18x18x4xf32, #tpu.memory_space<vmem>>, vector<18x18x4xf32>
    %6 = vector.extract_strided_slice %5 {offsets = [0, 0, 0], sizes = [16, 16, 4], strides = [1, 1, 1]} : vector<18x18x4xf32> to vector<16x16x4xf32>
    %7 = vector.extract_strided_slice %5 {offsets = [0, 1, 0], sizes = [16, 16, 4], strides = [1, 1, 1]} : vector<18x18x4xf32> to vector<16x16x4xf32>
    %8 = vector.extract_strided_slice %5 {offsets = [0, 2, 0], sizes = [16, 16, 4], strides = [1, 1, 1]} : vector<18x18x4xf32> to vector<16x16x4xf32>
    %9 = vector.extract_strided_slice %5 {offsets = [1, 0, 0], sizes = [16, 16, 4], strides = [1, 1, 1]} : vector<18x18x4xf32> to vector<16x16x4xf32>
    %10 = vector.extract_strided_slice %5 {offsets = [1, 1, 0], sizes = [16, 16, 4], strides = [1, 1, 1]} : vector<18x18x4xf32> to vector<16x16x4xf32>
    %11 = vector.extract_strided_slice %5 {offsets = [1, 2, 0], sizes = [16, 16, 4], strides = [1, 1, 1]} : vector<18x18x4xf32> to vector<16x16x4xf32>
    %12 = vector.extract_strided_slice %5 {offsets = [2, 0, 0], sizes = [16, 16, 4], strides = [1, 1, 1]} : vector<18x18x4xf32> to vector<16x16x4xf32>
    %13 = vector.extract_strided_slice %5 {offsets = [2, 1, 0], sizes = [16, 16, 4], strides = [1, 1, 1]} : vector<18x18x4xf32> to vector<16x16x4xf32>
    %14 = vector.extract_strided_slice %5 {offsets = [2, 2, 0], sizes = [16, 16, 4], strides = [1, 1, 1]} : vector<18x18x4xf32> to vector<16x16x4xf32>
    %15 = tpu.concatenate %6, %7, %8, %9, %10, %11, %12, %13, %14 in 2 : vector<16x16x4xf32>, vector<16x16x4xf32>, vector<16x16x4xf32>, vector<16x16x4xf32>, vector<16x16x4xf32>, vector<16x16x4xf32>, vector<16x16x4xf32>, vector<16x16x4xf32>, vector<16x16x4xf32> -> vector<16x16x36xf32>
    %16 = vector.shape_cast %15 : vector<16x16x36xf32> to vector<256x36xf32>
    %c0_11 = arith.constant 0 : index
    %c0_12 = arith.constant 0 : index
    %17 = vector.load %arg2[%c0_11, %c0_12] : memref<36x32xf32, #tpu.memory_space<vmem>>, vector<36x32xf32>
    %cst_13 = arith.constant dense<0.000000e+00> : vector<256x32xf32>
    %18 = tpu.matmul %16, %17, %cst_13 {dimension_numbers = #tpu.dot_dimension_numbers<[1], [0], [0], [1], [0, 0, 1, 1], [], []>} : vector<256x36xf32>, vector<36x32xf32>, vector<256x32xf32> -> vector<256x32xf32>
    %c0_14 = arith.constant 0 : index
    %c0_15 = arith.constant 0 : index
    %19 = vector.load %arg3[%c0_14, %c0_15] : memref<1x32xf32, #tpu.memory_space<vmem>>, vector<1x32xf32>
    %20 = vector.broadcast %19 : vector<1x32xf32> to vector<256x32xf32>
    %21 = arith.addf %18, %20 : vector<256x32xf32>
    %cst_16 = arith.constant 0.000000e+00 : f32
    %22 = vector.broadcast %cst_16 : f32 to vector<18x18x32xf32>
    %c0_17 = arith.constant 0 : index
    %c0_18 = arith.constant 0 : index
    %c0_19 = arith.constant 0 : index
    %23 = vector.load %arg12[%c0_17, %c0_18, %c0_19] : memref<18x18x32xf32, #tpu.memory_space<vmem>>, vector<18x18x32xf32>
    tpu.vector_store %arg12[%c0_17, %c0_18, %c0_19], %22 {strides = array<i32>} : memref<18x18x32xf32, #tpu.memory_space<vmem>>, vector<18x18x32xf32>,
    %24 = vector.shape_cast %21 : vector<256x32xf32> to vector<16x16x32xf32>
    %c1_20 = arith.constant 1 : index
    %c1_21 = arith.constant 1 : index
    %c0_22 = arith.constant 0 : index
    %25 = vector.load %arg12[%c1_20, %c1_21, %c0_22] : memref<18x18x32xf32, #tpu.memory_space<vmem>>, vector<16x16x32xf32>
    tpu.vector_store %arg12[%c1_20, %c1_21, %c0_22], %24 {strides = array<i32>} : memref<18x18x32xf32, #tpu.memory_space<vmem>>, vector<16x16x32xf32>,
    %c0_23 = arith.constant 0 : index
    %c0_24 = arith.constant 0 : index
    %c0_25 = arith.constant 0 : index
    %26 = vector.load %arg12[%c0_23, %c0_24, %c0_25] : memref<18x18x32xf32, #tpu.memory_space<vmem>>, vector<18x18x32xf32>
    %cst_26 = arith.constant 0.000000e+00 : f32
    %27 = vector.broadcast %cst_26 : f32 to vector<18x18x32xf32>
    %28 = arith.maximumf %26, %27 : vector<18x18x32xf32>
    %29 = vector.extract_strided_slice %28 {offsets = [0, 0, 0], sizes = [16, 16, 32], strides = [1, 1, 1]} : vector<18x18x32xf32> to vector<16x16x32xf32>
    %30 = vector.extract_strided_slice %28 {offsets = [0, 1, 0], sizes = [16, 16, 32], strides = [1, 1, 1]} : vector<18x18x32xf32> to vector<16x16x32xf32>
    %31 = vector.extract_strided_slice %28 {offsets = [0, 2, 0], sizes = [16, 16, 32], strides = [1, 1, 1]} : vector<18x18x32xf32> to vector<16x16x32xf32>
    %32 = vector.extract_strided_slice %28 {offsets = [1, 0, 0], sizes = [16, 16, 32], strides = [1, 1, 1]} : vector<18x18x32xf32> to vector<16x16x32xf32>
    %33 = vector.extract_strided_slice %28 {offsets = [1, 1, 0], sizes = [16, 16, 32], strides = [1, 1, 1]} : vector<18x18x32xf32> to vector<16x16x32xf32>
    %34 = vector.extract_strided_slice %28 {offsets = [1, 2, 0], sizes = [16, 16, 32], strides = [1, 1, 1]} : vector<18x18x32xf32> to vector<16x16x32xf32>
    %35 = vector.extract_strided_slice %28 {offsets = [2, 0, 0], sizes = [16, 16, 32], strides = [1, 1, 1]} : vector<18x18x32xf32> to vector<16x16x32xf32>
    %36 = vector.extract_strided_slice %28 {offsets = [2, 1, 0], sizes = [16, 16, 32], strides = [1, 1, 1]} : vector<18x18x32xf32> to vector<16x16x32xf32>
    %37 = vector.extract_strided_slice %28 {offsets = [2, 2, 0], sizes = [16, 16, 32], strides = [1, 1, 1]} : vector<18x18x32xf32> to vector<16x16x32xf32>
    %38 = tpu.concatenate %29, %30, %31, %32, %33, %34, %35, %36, %37 in 2 : vector<16x16x32xf32>, vector<16x16x32xf32>, vector<16x16x32xf32>, vector<16x16x32xf32>, vector<16x16x32xf32>, vector<16x16x32xf32>, vector<16x16x32xf32>, vector<16x16x32xf32>, vector<16x16x32xf32> -> vector<16x16x288xf32>
    %39 = vector.shape_cast %38 : vector<16x16x288xf32> to vector<256x288xf32>
    %c0_27 = arith.constant 0 : index
    %c0_28 = arith.constant 0 : index
    %40 = vector.load %arg4[%c0_27, %c0_28] : memref<288x16xf32, #tpu.memory_space<vmem>>, vector<288x16xf32>
    %cst_29 = arith.constant dense<0.000000e+00> : vector<256x16xf32>
    %41 = tpu.matmul %39, %40, %cst_29 {dimension_numbers = #tpu.dot_dimension_numbers<[1], [0], [0], [1], [0, 0, 1, 1], [], []>} : vector<256x288xf32>, vector<288x16xf32>, vector<256x16xf32> -> vector<256x16xf32>
    %cst_30 = arith.constant 0.000000e+00 : f32
    %42 = vector.broadcast %cst_30 : f32 to vector<256x16xf32>
    %43 = arith.maximumf %41, %42 : vector<256x16xf32>
    %c0_31 = arith.constant 0 : index
    %c0_32 = arith.constant 0 : index
    %44 = vector.load %arg5[%c0_31, %c0_32] : memref<16x32xf32, #tpu.memory_space<vmem>>, vector<16x32xf32>
    %cst_33 = arith.constant dense<0.000000e+00> : vector<256x32xf32>
    %45 = tpu.matmul %43, %44, %cst_33 {dimension_numbers = #tpu.dot_dimension_numbers<[1], [0], [0], [1], [0, 0, 1, 1], [], []>} : vector<256x16xf32>, vector<16x32xf32>, vector<256x32xf32> -> vector<256x32xf32>
    %46 = vector.extract_strided_slice %26 {offsets = [1, 1, 0], sizes = [16, 16, 32], strides = [1, 1, 1]} : vector<18x18x32xf32> to vector<16x16x32xf32>
    %47 = vector.shape_cast %46 : vector<16x16x32xf32> to vector<256x32xf32>
    %48 = arith.addf %47, %45 : vector<256x32xf32>
    %49 = vector.shape_cast %48 : vector<256x32xf32> to vector<16x16x32xf32>
    %c1_34 = arith.constant 1 : index
    %c1_35 = arith.constant 1 : index
    %c0_36 = arith.constant 0 : index
    %50 = vector.load %arg12[%c1_34, %c1_35, %c0_36] : memref<18x18x32xf32, #tpu.memory_space<vmem>>, vector<16x16x32xf32>
    tpu.vector_store %arg12[%c1_34, %c1_35, %c0_36], %49 {strides = array<i32>} : memref<18x18x32xf32, #tpu.memory_space<vmem>>, vector<16x16x32xf32>,
    %c0_37 = arith.constant 0 : index
    %c0_38 = arith.constant 0 : index
    %c0_39 = arith.constant 0 : index
    %51 = vector.load %arg12[%c0_37, %c0_38, %c0_39] : memref<18x18x32xf32, #tpu.memory_space<vmem>>, vector<18x18x32xf32>
    %cst_40 = arith.constant 0.000000e+00 : f32
    %52 = vector.broadcast %cst_40 : f32 to vector<18x18x32xf32>
    %53 = arith.maximumf %51, %52 : vector<18x18x32xf32>
    %54 = vector.extract_strided_slice %53 {offsets = [0, 0, 0], sizes = [16, 16, 32], strides = [1, 1, 1]} : vector<18x18x32xf32> to vector<16x16x32xf32>
    %55 = vector.extract_strided_slice %53 {offsets = [0, 1, 0], sizes = [16, 16, 32], strides = [1, 1, 1]} : vector<18x18x32xf32> to vector<16x16x32xf32>
    %56 = vector.extract_strided_slice %53 {offsets = [0, 2, 0], sizes = [16, 16, 32], strides = [1, 1, 1]} : vector<18x18x32xf32> to vector<16x16x32xf32>
    %57 = vector.extract_strided_slice %53 {offsets = [1, 0, 0], sizes = [16, 16, 32], strides = [1, 1, 1]} : vector<18x18x32xf32> to vector<16x16x32xf32>
    %58 = vector.extract_strided_slice %53 {offsets = [1, 1, 0], sizes = [16, 16, 32], strides = [1, 1, 1]} : vector<18x18x32xf32> to vector<16x16x32xf32>
    %59 = vector.extract_strided_slice %53 {offsets = [1, 2, 0], sizes = [16, 16, 32], strides = [1, 1, 1]} : vector<18x18x32xf32> to vector<16x16x32xf32>
    %60 = vector.extract_strided_slice %53 {offsets = [2, 0, 0], sizes = [16, 16, 32], strides = [1, 1, 1]} : vector<18x18x32xf32> to vector<16x16x32xf32>
    %61 = vector.extract_strided_slice %53 {offsets = [2, 1, 0], sizes = [16, 16, 32], strides = [1, 1, 1]} : vector<18x18x32xf32> to vector<16x16x32xf32>
    %62 = vector.extract_strided_slice %53 {offsets = [2, 2, 0], sizes = [16, 16, 32], strides = [1, 1, 1]} : vector<18x18x32xf32> to vector<16x16x32xf32>
    %63 = tpu.concatenate %54, %55, %56, %57, %58, %59, %60, %61, %62 in 2 : vector<16x16x32xf32>, vector<16x16x32xf32>, vector<16x16x32xf32>, vector<16x16x32xf32>, vector<16x16x32xf32>, vector<16x16x32xf32>, vector<16x16x32xf32>, vector<16x16x32xf32>, vector<16x16x32xf32> -> vector<16x16x288xf32>
    %64 = vector.shape_cast %63 : vector<16x16x288xf32> to vector<256x288xf32>
    %c0_41 = arith.constant 0 : index
    %c0_42 = arith.constant 0 : index
    %65 = vector.load %arg4[%c0_41, %c0_42] : memref<288x16xf32, #tpu.memory_space<vmem>>, vector<288x16xf32>
    %cst_43 = arith.constant dense<0.000000e+00> : vector<256x16xf32>
    %66 = tpu.matmul %64, %65, %cst_43 {dimension_numbers = #tpu.dot_dimension_numbers<[1], [0], [0], [1], [0, 0, 1, 1], [], []>} : vector<256x288xf32>, vector<288x16xf32>, vector<256x16xf32> -> vector<256x16xf32>
    %cst_44 = arith.constant 0.000000e+00 : f32
    %67 = vector.broadcast %cst_44 : f32 to vector<256x16xf32>
    %68 = arith.maximumf %66, %67 : vector<256x16xf32>
    %c0_45 = arith.constant 0 : index
    %c0_46 = arith.constant 0 : index
    %69 = vector.load %arg5[%c0_45, %c0_46] : memref<16x32xf32, #tpu.memory_space<vmem>>, vector<16x32xf32>
    %cst_47 = arith.constant dense<0.000000e+00> : vector<256x32xf32>
    %70 = tpu.matmul %68, %69, %cst_47 {dimension_numbers = #tpu.dot_dimension_numbers<[1], [0], [0], [1], [0, 0, 1, 1], [], []>} : vector<256x16xf32>, vector<16x32xf32>, vector<256x32xf32> -> vector<256x32xf32>
    %71 = vector.extract_strided_slice %51 {offsets = [1, 1, 0], sizes = [16, 16, 32], strides = [1, 1, 1]} : vector<18x18x32xf32> to vector<16x16x32xf32>
    %72 = vector.shape_cast %71 : vector<16x16x32xf32> to vector<256x32xf32>
    %73 = arith.addf %72, %70 : vector<256x32xf32>
    %cst_48 = arith.constant 0.000000e+00 : f32
    %74 = vector.broadcast %cst_48 : f32 to vector<256x32xf32>
    %75 = arith.maximumf %73, %74 : vector<256x32xf32>
    %76 = vector.shape_cast %75 : vector<256x32xf32> to vector<16x16x32xf32>
    %c1_49 = arith.constant 1 : index
    %c1_50 = arith.constant 1 : index
    %c0_51 = arith.constant 0 : index
    %77 = vector.load %arg12[%c1_49, %c1_50, %c0_51] : memref<18x18x32xf32, #tpu.memory_space<vmem>>, vector<16x16x32xf32>
    tpu.vector_store %arg12[%c1_49, %c1_50, %c0_51], %76 {strides = array<i32>} : memref<18x18x32xf32, #tpu.memory_space<vmem>>, vector<16x16x32xf32>,
    %c0_52 = arith.constant 0 : index
    %c0_53 = arith.constant 0 : index
    %c0_54 = arith.constant 0 : index
    %78 = vector.load %arg12[%c0_52, %c0_53, %c0_54] : memref<18x18x32xf32, #tpu.memory_space<vmem>>, vector<18x18x32xf32>
    %79 = vector.extract_strided_slice %78 {offsets = [0, 0, 0], sizes = [16, 16, 32], strides = [1, 1, 1]} : vector<18x18x32xf32> to vector<16x16x32xf32>
    %80 = vector.extract_strided_slice %78 {offsets = [0, 1, 0], sizes = [16, 16, 32], strides = [1, 1, 1]} : vector<18x18x32xf32> to vector<16x16x32xf32>
    %81 = vector.extract_strided_slice %78 {offsets = [0, 2, 0], sizes = [16, 16, 32], strides = [1, 1, 1]} : vector<18x18x32xf32> to vector<16x16x32xf32>
    %82 = vector.extract_strided_slice %78 {offsets = [1, 0, 0], sizes = [16, 16, 32], strides = [1, 1, 1]} : vector<18x18x32xf32> to vector<16x16x32xf32>
    %83 = vector.extract_strided_slice %78 {offsets = [1, 1, 0], sizes = [16, 16, 32], strides = [1, 1, 1]} : vector<18x18x32xf32> to vector<16x16x32xf32>
    %84 = vector.extract_strided_slice %78 {offsets = [1, 2, 0], sizes = [16, 16, 32], strides = [1, 1, 1]} : vector<18x18x32xf32> to vector<16x16x32xf32>
    %85 = vector.extract_strided_slice %78 {offsets = [2, 0, 0], sizes = [16, 16, 32], strides = [1, 1, 1]} : vector<18x18x32xf32> to vector<16x16x32xf32>
    %86 = vector.extract_strided_slice %78 {offsets = [2, 1, 0], sizes = [16, 16, 32], strides = [1, 1, 1]} : vector<18x18x32xf32> to vector<16x16x32xf32>
    %87 = vector.extract_strided_slice %78 {offsets = [2, 2, 0], sizes = [16, 16, 32], strides = [1, 1, 1]} : vector<18x18x32xf32> to vector<16x16x32xf32>
    %88 = tpu.concatenate %79, %80, %81, %82, %83, %84, %85, %86, %87 in 2 : vector<16x16x32xf32>, vector<16x16x32xf32>, vector<16x16x32xf32>, vector<16x16x32xf32>, vector<16x16x32xf32>, vector<16x16x32xf32>, vector<16x16x32xf32>, vector<16x16x32xf32>, vector<16x16x32xf32> -> vector<16x16x288xf32>
    %89 = vector.shape_cast %88 : vector<16x16x288xf32> to vector<256x288xf32>
    %c0_55 = arith.constant 0 : index
    %c0_56 = arith.constant 0 : index
    %90 = vector.load %arg6[%c0_55, %c0_56] : memref<288x64xf32, #tpu.memory_space<vmem>>, vector<288x64xf32>
    %cst_57 = arith.constant dense<0.000000e+00> : vector<256x64xf32>
    %91 = tpu.matmul %89, %90, %cst_57 {dimension_numbers = #tpu.dot_dimension_numbers<[1], [0], [0], [1], [0, 0, 1, 1], [], []>} : vector<256x288xf32>, vector<288x64xf32>, vector<256x64xf32> -> vector<256x64xf32>
    %c0_58 = arith.constant 0 : index
    %c0_59 = arith.constant 0 : index
    %92 = vector.load %arg7[%c0_58, %c0_59] : memref<1x64xf32, #tpu.memory_space<vmem>>, vector<1x64xf32>
    %93 = vector.broadcast %92 : vector<1x64xf32> to vector<256x64xf32>
    %94 = arith.addf %91, %93 : vector<256x64xf32>
    %cst_60 = arith.constant 0.000000e+00 : f32
    %95 = vector.broadcast %cst_60 : f32 to vector<256x64xf32>
    %96 = arith.maximumf %94, %95 : vector<256x64xf32>
    %cst_61 = arith.constant 0.000000e+00 : f32
    %97 = vector.broadcast %cst_61 : f32 to vector<18x18x64xf32>
    %c0_62 = arith.constant 0 : index
    %c0_63 = arith.constant 0 : index
    %c0_64 = arith.constant 0 : index
    %98 = vector.load %arg13[%c0_62, %c0_63, %c0_64] : memref<18x18x64xf32, #tpu.memory_space<vmem>>, vector<18x18x64xf32>
    tpu.vector_store %arg13[%c0_62, %c0_63, %c0_64], %97 {strides = array<i32>} : memref<18x18x64xf32, #tpu.memory_space<vmem>>, vector<18x18x64xf32>,
    %99 = vector.shape_cast %96 : vector<256x64xf32> to vector<16x16x64xf32>
    %c1_65 = arith.constant 1 : index
    %c1_66 = arith.constant 1 : index
    %c0_67 = arith.constant 0 : index
    %100 = vector.load %arg13[%c1_65, %c1_66, %c0_67] : memref<18x18x64xf32, #tpu.memory_space<vmem>>, vector<16x16x64xf32>
    tpu.vector_store %arg13[%c1_65, %c1_66, %c0_67], %99 {strides = array<i32>} : memref<18x18x64xf32, #tpu.memory_space<vmem>>, vector<16x16x64xf32>,
    %c0_68 = arith.constant 0 : index
    %c0_69 = arith.constant 0 : index
    %c0_70 = arith.constant 0 : index
    %101 = vector.load %arg13[%c0_68, %c0_69, %c0_70] : memref<18x18x64xf32, #tpu.memory_space<vmem>>, vector<18x18x64xf32>
    %102 = vector.extract_strided_slice %101 {offsets = [0, 0, 0], sizes = [16, 16, 64], strides = [1, 1, 1]} : vector<18x18x64xf32> to vector<16x16x64xf32>
    %103 = vector.extract_strided_slice %101 {offsets = [0, 1, 0], sizes = [16, 16, 64], strides = [1, 1, 1]} : vector<18x18x64xf32> to vector<16x16x64xf32>
    %104 = vector.extract_strided_slice %101 {offsets = [0, 2, 0], sizes = [16, 16, 64], strides = [1, 1, 1]} : vector<18x18x64xf32> to vector<16x16x64xf32>
    %105 = vector.extract_strided_slice %101 {offsets = [1, 0, 0], sizes = [16, 16, 64], strides = [1, 1, 1]} : vector<18x18x64xf32> to vector<16x16x64xf32>
    %106 = vector.extract_strided_slice %101 {offsets = [1, 1, 0], sizes = [16, 16, 64], strides = [1, 1, 1]} : vector<18x18x64xf32> to vector<16x16x64xf32>
    %107 = vector.extract_strided_slice %101 {offsets = [1, 2, 0], sizes = [16, 16, 64], strides = [1, 1, 1]} : vector<18x18x64xf32> to vector<16x16x64xf32>
    %108 = vector.extract_strided_slice %101 {offsets = [2, 0, 0], sizes = [16, 16, 64], strides = [1, 1, 1]} : vector<18x18x64xf32> to vector<16x16x64xf32>
    %109 = vector.extract_strided_slice %101 {offsets = [2, 1, 0], sizes = [16, 16, 64], strides = [1, 1, 1]} : vector<18x18x64xf32> to vector<16x16x64xf32>
    %110 = vector.extract_strided_slice %101 {offsets = [2, 2, 0], sizes = [16, 16, 64], strides = [1, 1, 1]} : vector<18x18x64xf32> to vector<16x16x64xf32>
    %111 = tpu.concatenate %102, %103, %104, %105, %106, %107, %108, %109, %110 in 2 : vector<16x16x64xf32>, vector<16x16x64xf32>, vector<16x16x64xf32>, vector<16x16x64xf32>, vector<16x16x64xf32>, vector<16x16x64xf32>, vector<16x16x64xf32>, vector<16x16x64xf32>, vector<16x16x64xf32> -> vector<16x16x576xf32>
    %112 = vector.shape_cast %111 : vector<16x16x576xf32> to vector<256x576xf32>
    %c0_71 = arith.constant 0 : index
    %c0_72 = arith.constant 0 : index
    %113 = vector.load %arg8[%c0_71, %c0_72] : memref<576x48xf32, #tpu.memory_space<vmem>>, vector<576x48xf32>
    %cst_73 = arith.constant dense<0.000000e+00> : vector<256x48xf32>
    %114 = tpu.matmul %112, %113, %cst_73 {dimension_numbers = #tpu.dot_dimension_numbers<[1], [0], [0], [1], [0, 0, 1, 1], [], []>} : vector<256x576xf32>, vector<576x48xf32>, vector<256x48xf32> -> vector<256x48xf32>
    %c0_74 = arith.constant 0 : index
    %c0_75 = arith.constant 0 : index
    %115 = vector.load %arg9[%c0_74, %c0_75] : memref<1x48xf32, #tpu.memory_space<vmem>>, vector<1x48xf32>
    %116 = vector.broadcast %115 : vector<1x48xf32> to vector<256x48xf32>
    %117 = arith.addf %114, %116 : vector<256x48xf32>
    %c0_76 = arith.constant 0 : index
    %c0_77 = arith.constant 0 : index
    %c0_78 = arith.constant 0 : index
    %118 = vector.load %arg10[%c0_76, %c0_77, %c0_78] : memref<1x256x48xf32, #tpu.memory_space<vmem>>, vector<1x256x48xf32>
    %119 = vector.shape_cast %118 : vector<1x256x48xf32> to vector<256x48xf32>
    %120 = vector.shape_cast %117 : vector<256x48xf32> to vector<1x256x48xf32>
    tpu.vector_store %arg10[%c0_76, %c0_77, %c0_78], %120 {strides = array<i32>} : memref<1x256x48xf32, #tpu.memory_space<vmem>>, vector<1x256x48xf32>,
    return
  }
  func.func @transform_0(%arg0: i32) -> (i32, i32, i32, i32) {
    %c0_i32 = arith.constant 0 : i32
    %c0_i32_0 = arith.constant 0 : i32
    %c0_i32_1 = arith.constant 0 : i32
    %c0_i32_2 = arith.constant 0 : i32
    return %arg0, %c0_i32, %c0_i32_0, %c0_i32_1 : i32, i32, i32, i32
  }
  func.func @transform_1(%arg0: i32) -> (i32, i32) {
    %c0_i32 = arith.constant 0 : i32
    %c0_i32_0 = arith.constant 0 : i32
    %c0_i32_1 = arith.constant 0 : i32
    return %c0_i32, %c0_i32_0 : i32, i32
  }
  func.func @transform_2(%arg0: i32) -> (i32, i32) {
    %c0_i32 = arith.constant 0 : i32
    %c0_i32_0 = arith.constant 0 : i32
    %c0_i32_1 = arith.constant 0 : i32
    return %c0_i32, %c0_i32_0 : i32, i32
  }
  func.func @transform_3(%arg0: i32) -> (i32, i32) {
    %c0_i32 = arith.constant 0 : i32
    %c0_i32_0 = arith.constant 0 : i32
    %c0_i32_1 = arith.constant 0 : i32
    return %c0_i32, %c0_i32_0 : i32, i32
  }
  func.func @transform_4(%arg0: i32) -> (i32, i32) {
    %c0_i32 = arith.constant 0 : i32
    %c0_i32_0 = arith.constant 0 : i32
    %c0_i32_1 = arith.constant 0 : i32
    return %c0_i32, %c0_i32_0 : i32, i32
  }
  func.func @transform_5(%arg0: i32) -> (i32, i32) {
    %c0_i32 = arith.constant 0 : i32
    %c0_i32_0 = arith.constant 0 : i32
    %c0_i32_1 = arith.constant 0 : i32
    return %c0_i32, %c0_i32_0 : i32, i32
  }
  func.func @transform_6(%arg0: i32) -> (i32, i32) {
    %c0_i32 = arith.constant 0 : i32
    %c0_i32_0 = arith.constant 0 : i32
    %c0_i32_1 = arith.constant 0 : i32
    return %c0_i32, %c0_i32_0 : i32, i32
  }
  func.func @transform_7(%arg0: i32) -> (i32, i32) {
    %c0_i32 = arith.constant 0 : i32
    %c0_i32_0 = arith.constant 0 : i32
    %c0_i32_1 = arith.constant 0 : i32
    return %c0_i32, %c0_i32_0 : i32, i32
  }
  func.func @transform_8(%arg0: i32) -> (i32, i32) {
    %c0_i32 = arith.constant 0 : i32
    %c0_i32_0 = arith.constant 0 : i32
    %c0_i32_1 = arith.constant 0 : i32
    return %c0_i32, %c0_i32_0 : i32, i32
  }
  func.func @transform_9(%arg0: i32) -> (i32, i32, i32) {
    %c0_i32 = arith.constant 0 : i32
    %c0_i32_0 = arith.constant 0 : i32
    %c0_i32_1 = arith.constant 0 : i32
    return %arg0, %c0_i32, %c0_i32_0 : i32, i32, i32
  }
}

</mosaic_0001>

<llo_original>
// kernel: decoder_forward.1
$region0: #{decoder_forward.1}
  #allocation0 [shape = 'u32[]', space=smem, size = 0x4, offset = 0x4, fixed_abs, tag = 'smem constant byte address 0x4 - core index']
  #allocation1 [shape = 'u32[144,128]{1,0:T(1,128)}', space=vmem, size = 0x12000, scoped, tag = 'internal scratch']
  #allocation2 [shape = 'f32[18,18,4]{2,1,0:T(8,128)}', space=vmem, size = 0x36000, scoped, tag = 'scratch operand']
  #allocation3 [shape = 'f32[18,18,32]{2,1,0:T(8,128)}', space=vmem, size = 0x36000, scoped, tag = 'scratch operand']
  #allocation4 [shape = 'f32[18,18,64]{2,1,0:T(8,128)}', space=vmem, size = 0x36000, scoped, tag = 'scratch operand']
  %s0 = inlined_call_operand.vmem [shape: f32[2,16,16,4], index: 0, kind: input, shape index: {}]
  %s1 = inlined_call_operand.vmem [shape: f32[36,32], index: 1, kind: input, shape index: {}]
  %s2 = inlined_call_operand.hbm [shape: f32[1,32], index: 2, kind: input, shape index: {}]
  %s3 = inlined_call_operand.vmem [shape: f32[288,16], index: 3, kind: input, shape index: {}]
  %s4 = inlined_call_operand.hbm [shape: f32[16,32], index: 4, kind: input, shape index: {}]
  %s5 = inlined_call_operand.vmem [shape: f32[288,64], index: 5, kind: input, shape index: {}]
  %s6 = inlined_call_operand.hbm [shape: f32[1,64], index: 6, kind: input, shape index: {}]
  %s7 = inlined_call_operand.vmem [shape: f32[576,48], index: 7, kind: input, shape index: {}]
  %s8 = inlined_call_operand.hbm [shape: f32[1,48], index: 8, kind: input, shape index: {}]
  %s9 = inlined_call_operand.vmem [shape: f32[2,256,48], index: 9, kind: output, shape index: {}]
  %s10 = sld [smem:[#allocation0]]
  $region85: #{decoder_forward.1} parent=0
    _
  %s12 = ssub.s32 1, %s10
  %s13 = scalar_select 0, %s12, %s10
  $region1: #{decoder_forward.1} parent=0
    #allocation5 [shape = 'u8[512]{0}', space=vmem, size = 0x400, scoped, tag = 'input window, operand 2, single buffered']
    #allocation6 [shape = 's32[2]{0}', space=sflag, size = 0x8, scoped, tag = 'scoped memory for decoder_forward.1']
    #allocation7 [shape = 'u8[8192]{0}', space=vmem, size = 0x2000, scoped, tag = 'input window, operand 4, single buffered']
    #allocation8 [shape = 's32[1]{0}', space=sflag, size = 0x4, scoped, tag = 'scoped memory for decoder_forward.1']
    #allocation9 [shape = 'u8[512]{0}', space=vmem, size = 0x400, scoped, tag = 'input window, operand 6, single buffered']
    #allocation10 [shape = 'u8[512]{0}', space=vmem, size = 0x400, scoped, tag = 'input window, operand 8, single buffered']
    #allocation11 [shape = 's32[1]{0}', space=sflag, size = 0x4, scoped, tag = 'scoped memory for decoder_forward.1']
    %14 = vsyncpa [#allocation6], 0
    %15 = vsyncpa [#allocation8], 0
    %16 = vsyncpa [#allocation11], 0
    loop: start=0, step=1, limit=4
    $region2: #{decoder_forward.1} parent=1 // loop_pre_header
      _
    $region3: #{decoder_forward.1} parent=1 // loop_header
      %s18 = sphi 0, %s22
      %p19 = scmp.ge.s32.totalorder %s18, 4
      %s28 = sphi 0, %s30
      %s31 = sphi 0, %s28
      %s32 = sphi 0, %s31
      %s48 = sphi 0, %s32
      %s52 = sphi 0, %s52
      %s54 = sphi 0, %s52
      %s55 = sphi 0, %s54
      %s69 = sphi 0, %s55
      %s73 = sphi 0, %s73
      %s75 = sphi 0, %s73
      %s76 = sphi 0, %s75
      %s90 = sphi 0, %s76
      %s94 = sphi 0, %s94
      %s96 = sphi 0, %s94
      %s97 = sphi 0, %s96
      %s111 = sphi 0, %s97
      %s115 = sphi 0, %s115
      %s117 = sphi 0, %s115
      %s118 = sphi 0, %s117
      %s132 = sphi 0, %s118
      %s136 = sphi 0, %s136
      %s138 = sphi 0, %s136
      %s139 = sphi 0, %s138
      %s153 = sphi 0, %s139
      %s157 = sphi 0, %s157
      %s159 = sphi 0, %s157
      %s160 = sphi 0, %s159
      %s174 = sphi 0, %s160
      %s178 = sphi 0, %s178
      %s180 = sphi 0, %s178
      %s181 = sphi 0, %s180
      %s195 = sphi 0, %s181
      %s199 = sphi 0, %s199
      %s201 = sphi 0, %s199
      %s202 = sphi 0, %s201
      %s216 = sphi 0, %s202
      %s222 = sphi 0, %s224
      %s225 = sphi 0, %s222
      %s226 = sphi 0, %s225
      %s242 = sphi 0, %s226
    $region4: #{decoder_forward.1} parent=1 // loop_header_branch
      %21 = sbr.rel (%p19) target = $region8
    $region5: #{decoder_forward.1} parent=1 // loop_body
      %s23 = ssub.s32 %s18, 1
      %s24 = ssub.s32 %s18, 2
      %s25 = sadd.s32 %s18, 1
      %s26 = ssub.s32 %s18, %s25
      %p27 = scmp.eq.s32.totalorder %s26, 0
      %s29 = sadd.s32 %s28, 1
      %s30 = scalar_select %p27, %s28, %s29
      %p33 = pneg %p27
      %p34 = scmp.eq.s32.totalorder %s18, 1
      %p35 = por %p33, %p34
      %p36 = scmp.ne.s32.totalorder %s28, %s31
      %p37 = scmp.eq.s32.totalorder %s18, 0
      %p38 = por %p36, %p37
      %p39 = scmp.ne.s32.totalorder %s28, %s31
      %p40 = scmp.eq.s32.totalorder %s23, 1
      %p41 = por %p39, %p40
      %p42 = scmp.ne.s32.totalorder %s31, %s32
      %p43 = scmp.eq.s32.totalorder %s23, 0
      %p44 = por %p42, %p43
      %p45 = scmp.ne.s32.totalorder %s31, %s32
      %p46 = scmp.eq.s32.totalorder %s24, 1
      %p47 = por %p45, %p46
      %p49 = scmp.ne.s32.totalorder %s32, %s48
      %p50 = scmp.eq.s32.totalorder %s24, 0
      %p51 = por %p49, %p50
      %s53 = sadd.s32 %s52, 1
      %p56 = scmp.eq.s32.totalorder %s18, 1
      %p57 = scmp.ne.s32.totalorder %s52, %s54
      %p58 = scmp.eq.s32.totalorder %s18, 0
      %p59 = por %p57, %p58
      %p60 = scmp.ne.s32.totalorder %s52, %s54
      %p61 = scmp.eq.s32.totalorder %s23, 1
      %p62 = por %p60, %p61
      %p63 = scmp.ne.s32.totalorder %s54, %s55
      %p64 = scmp.eq.s32.totalorder %s23, 0
      %p65 = por %p63, %p64
      %p66 = scmp.ne.s32.totalorder %s54, %s55
      %p67 = scmp.eq.s32.totalorder %s24, 1
      %p68 = por %p66, %p67
      %p70 = scmp.ne.s32.totalorder %s55, %s69
      %p71 = scmp.eq.s32.totalorder %s24, 0
      %p72 = por %p70, %p71
      %s74 = sadd.s32 %s73, 1
      %p77 = scmp.eq.s32.totalorder %s18, 1
      %p78 = scmp.ne.s32.totalorder %s73, %s75
      %p79 = scmp.eq.s32.totalorder %s18, 0
      %p80 = por %p78, %p79
      %p81 = scmp.ne.s32.totalorder %s73, %s75
      %p82 = scmp.eq.s32.totalorder %s23, 1
      %p83 = por %p81, %p82
      %p84 = scmp.ne.s32.totalorder %s75, %s76
      %p85 = scmp.eq.s32.totalorder %s23, 0
      %p86 = por %p84, %p85
      %p87 = scmp.ne.s32.totalorder %s75, %s76
      %p88 = scmp.eq.s32.totalorder %s24, 1
      %p89 = por %p87, %p88
      %p91 = scmp.ne.s32.totalorder %s76, %s90
      %p92 = scmp.eq.s32.totalorder %s24, 0
      %p93 = por %p91, %p92
      %s95 = sadd.s32 %s94, 1
      %p98 = scmp.eq.s32.totalorder %s18, 1
      %p99 = scmp.ne.s32.totalorder %s94, %s96
      %p100 = scmp.eq.s32.totalorder %s18, 0
      %p101 = por %p99, %p100
      %p102 = scmp.ne.s32.totalorder %s94, %s96
      %p103 = scmp.eq.s32.totalorder %s23, 1
      %p104 = por %p102, %p103
      %p105 = scmp.ne.s32.totalorder %s96, %s97
      %p106 = scmp.eq.s32.totalorder %s23, 0
      %p107 = por %p105, %p106
      %p108 = scmp.ne.s32.totalorder %s96, %s97
      %p109 = scmp.eq.s32.totalorder %s24, 1
      %p110 = por %p108, %p109
      %p112 = scmp.ne.s32.totalorder %s97, %s111
      %p113 = scmp.eq.s32.totalorder %s24, 0
      %p114 = por %p112, %p113
      %s116 = sadd.s32 %s115, 1
      %p119 = scmp.eq.s32.totalorder %s18, 1
      %p120 = scmp.ne.s32.totalorder %s115, %s117
      %p121 = scmp.eq.s32.totalorder %s18, 0
      %p122 = por %p120, %p121
      %p123 = scmp.ne.s32.totalorder %s115, %s117
      %p124 = scmp.eq.s32.totalorder %s23, 1
      %p125 = por %p123, %p124
      %p126 = scmp.ne.s32.totalorder %s117, %s118
      %p127 = scmp.eq.s32.totalorder %s23, 0
      %p128 = por %p126, %p127
      %p129 = scmp.ne.s32.totalorder %s117, %s118
      %p130 = scmp.eq.s32.totalorder %s24, 1
      %p131 = por %p129, %p130
      %p133 = scmp.ne.s32.totalorder %s118, %s132
      %p134 = scmp.eq.s32.totalorder %s24, 0
      %p135 = por %p133, %p134
      %s137 = sadd.s32 %s136, 1
      %p140 = scmp.eq.s32.totalorder %s18, 1
      %p141 = scmp.ne.s32.totalorder %s136, %s138
      %p142 = scmp.eq.s32.totalorder %s18, 0
      %p143 = por %p141, %p142
      %p144 = scmp.ne.s32.totalorder %s136, %s138
      %p145 = scmp.eq.s32.totalorder %s23, 1
      %p146 = por %p144, %p145
      %p147 = scmp.ne.s32.totalorder %s138, %s139
      %p148 = scmp.eq.s32.totalorder %s23, 0
      %p149 = por %p147, %p148
      %p150 = scmp.ne.s32.totalorder %s138, %s139
      %p151 = scmp.eq.s32.totalorder %s24, 1
      %p152 = por %p150, %p151
      %p154 = scmp.ne.s32.totalorder %s139, %s153
      %p155 = scmp.eq.s32.totalorder %s24, 0
      %p156 = por %p154, %p155
      %s158 = sadd.s32 %s157, 1
      %p161 = scmp.eq.s32.totalorder %s18, 1
      %p162 = scmp.ne.s32.totalorder %s157, %s159
      %p163 = scmp.eq.s32.totalorder %s18, 0
      %p164 = por %p162, %p163
      %p165 = scmp.ne.s32.totalorder %s157, %s159
      %p166 = scmp.eq.s32.totalorder %s23, 1
      %p167 = por %p165, %p166
      %p168 = scmp.ne.s32.totalorder %s159, %s160
      %p169 = scmp.eq.s32.totalorder %s23, 0
      %p170 = por %p168, %p169
      %p171 = scmp.ne.s32.totalorder %s159, %s160
      %p172 = scmp.eq.s32.totalorder %s24, 1
      %p173 = por %p171, %p172
      %p175 = scmp.ne.s32.totalorder %s160, %s174
      %p176 = scmp.eq.s32.totalorder %s24, 0
      %p177 = por %p175, %p176
      %s179 = sadd.s32 %s178, 1
      %p182 = scmp.eq.s32.totalorder %s18, 1
      %p183 = scmp.ne.s32.totalorder %s178, %s180
      %p184 = scmp.eq.s32.totalorder %s18, 0
      %p185 = por %p183, %p184
      %p186 = scmp.ne.s32.totalorder %s178, %s180
      %p187 = scmp.eq.s32.totalorder %s23, 1
      %p188 = por %p186, %p187
      %p189 = scmp.ne.s32.totalorder %s180, %s181
      %p190 = scmp.eq.s32.totalorder %s23, 0
      %p191 = por %p189, %p190
      %p192 = scmp.ne.s32.totalorder %s180, %s181
      %p193 = scmp.eq.s32.totalorder %s24, 1
      %p194 = por %p192, %p193
      %p196 = scmp.ne.s32.totalorder %s181, %s195
      %p197 = scmp.eq.s32.totalorder %s24, 0
      %p198 = por %p196, %p197
      %s200 = sadd.s32 %s199, 1
      %p203 = scmp.eq.s32.totalorder %s18, 1
      %p204 = scmp.ne.s32.totalorder %s199, %s201
      %p205 = scmp.eq.s32.totalorder %s18, 0
      %p206 = por %p204, %p205
      %p207 = scmp.ne.s32.totalorder %s199, %s201
      %p208 = scmp.eq.s32.totalorder %s23, 1
      %p209 = por %p207, %p208
      %p210 = scmp.ne.s32.totalorder %s201, %s202
      %p211 = scmp.eq.s32.totalorder %s23, 0
      %p212 = por %p210, %p211
      %p213 = scmp.ne.s32.totalorder %s201, %s202
      %p214 = scmp.eq.s32.totalorder %s24, 1
      %p215 = por %p213, %p214
      %p217 = scmp.ne.s32.totalorder %s202, %s216
      %p218 = scmp.eq.s32.totalorder %s24, 0
      %p219 = por %p217, %p218
      %s220 = ssub.s32 %s18, %s25
      %p221 = scmp.eq.s32.totalorder %s220, 0
      %s223 = sadd.s32 %s222, 1
      %s224 = scalar_select %p221, %s222, %s223
      %p227 = pneg %p221
      %p228 = scmp.eq.s32.totalorder %s18, 1
      %p229 = por %p227, %p228
      %p230 = scmp.ne.s32.totalorder %s222, %s225
      %p231 = scmp.eq.s32.totalorder %s18, 0
      %p232 = por %p230, %p231
      %p233 = scmp.ne.s32.totalorder %s222, %s225
      %p234 = scmp.eq.s32.totalorder %s23, 1
      %p235 = por %p233, %p234
      %p236 = scmp.ne.s32.totalorder %s225, %s226
      %p237 = scmp.eq.s32.totalorder %s23, 0
      %p238 = por %p236, %p237
      %p239 = scmp.ne.s32.totalorder %s225, %s226
      %p240 = scmp.eq.s32.totalorder %s24, 1
      %p241 = por %p239, %p240
      %p243 = scmp.ne.s32.totalorder %s226, %s242
      %p244 = scmp.eq.s32.totalorder %s24, 0
      %p245 = por %p243, %p244
      %p246 = scmp.le.s32.totalorder 1, %s18
      %p247 = scmp.lt.s32.totalorder %s18, 3
      %p248 = pnand %p246, %p247
      %p249 = pneg %p248
      // Predicated region
      $region9: #{decoder_forward.1} parent=5 // pred_check
        _
      $region10: #{decoder_forward.1} parent=5 // pred_check_branch
        %251 = sbr.rel (%p248) target = $region12
      $region11: #{decoder_forward.1} parent=5 // pred_region
        %s252 = ssub.s32 %s18, 1
        // Predicated region
        $region13: #{decoder_forward.1} parent=11 // pred_check
          %p253 = pneg %p65
        $region14: #{decoder_forward.1} parent=11 // pred_check_branch
          %255 = sbr.rel (%p253) target = $region16
        $region15: #{decoder_forward.1} parent=11 // pred_region
          _
        $region16: #{decoder_forward.1} parent=11 // pred_fallthru
          _
        // Predicated region
        $region17: #{decoder_forward.1} parent=11 // pred_check
          %p256 = pneg %p86
        $region18: #{decoder_forward.1} parent=11 // pred_check_branch
          %258 = sbr.rel (%p256) target = $region20
        $region19: #{decoder_forward.1} parent=11 // pred_region
          %s260 = ssub.s32 16, 16
          %261 = vsyncadd [#allocation6], %s260
          %s263 = sshll.u32 [#allocation5], 4
          %s264 = int_to_ptr.vmem [resolvable:$true] %s263
          %266 = dma.hbm_to_vmem [thread:$0]  %s2, 16, %s264, [#allocation6]
        $region20: #{decoder_forward.1} parent=11 // pred_fallthru
          _
        // Predicated region
        $region21: #{decoder_forward.1} parent=11 // pred_check
          %p267 = pneg %p107
        $region22: #{decoder_forward.1} parent=11 // pred_check_branch
          %269 = sbr.rel (%p267) target = $region24
        $region23: #{decoder_forward.1} parent=11 // pred_region
          _
        $region24: #{decoder_forward.1} parent=11 // pred_fallthru
          _
        // Predicated region
        $region25: #{decoder_forward.1} parent=11 // pred_check
          %p270 = pneg %p128
        $region26: #{decoder_forward.1} parent=11 // pred_check_branch
          %272 = sbr.rel (%p270) target = $region28
        $region27: #{decoder_forward.1} parent=11 // pred_region
          %s274 = ssub.s32 256, 256
          %275 = vsyncadd [#allocation8], %s274
          %s276 = sshll.u32 [#allocation7], 4
          %s277 = int_to_ptr.vmem [resolvable:$true] %s276
          %282 = dma.hbm_to_vmem [thread:$0]  %s4, 256, %s277, [#allocation8], 128, 128, 8
        $region28: #{decoder_forward.1} parent=11 // pred_fallthru
          _
        // Predicated region
        $region29: #{decoder_forward.1} parent=11 // pred_check
          %p283 = pneg %p149
        $region30: #{decoder_forward.1} parent=11 // pred_check_branch
          %285 = sbr.rel (%p283) target = $region32
        $region31: #{decoder_forward.1} parent=11 // pred_region
          _
        $region32: #{decoder_forward.1} parent=11 // pred_fallthru
          _
        // Predicated region
        $region33: #{decoder_forward.1} parent=11 // pred_check
          %p286 = pneg %p170
        $region34: #{decoder_forward.1} parent=11 // pred_check_branch
          %288 = sbr.rel (%p286) target = $region36
        $region35: #{decoder_forward.1} parent=11 // pred_region
          %s290 = ssub.s32 16, 16
          %291 = vsyncadd [#allocation8], %s290
          %s293 = sshll.u32 [#allocation9], 4
          %s294 = int_to_ptr.vmem [resolvable:$true] %s293
          %296 = dma.hbm_to_vmem [thread:$0]  %s6, 16, %s294, [#allocation8]
        $region36: #{decoder_forward.1} parent=11 // pred_fallthru
          _
        // Predicated region
        $region37: #{decoder_forward.1} parent=11 // pred_check
          %p297 = pneg %p191
        $region38: #{decoder_forward.1} parent=11 // pred_check_branch
          %299 = sbr.rel (%p297) target = $region40
        $region39: #{decoder_forward.1} parent=11 // pred_region
          _
        $region40: #{decoder_forward.1} parent=11 // pred_fallthru
          _
        // Predicated region
        $region41: #{decoder_forward.1} parent=11 // pred_check
          %p300 = pneg %p212
        $region42: #{decoder_forward.1} parent=11 // pred_check_branch
          %302 = sbr.rel (%p300) target = $region44
        $region43: #{decoder_forward.1} parent=11 // pred_region
          %s304 = ssub.s32 16, 16
          %305 = vsyncadd [#allocation11], %s304
          %s307 = sshll.u32 [#allocation10], 4
          %s308 = int_to_ptr.vmem [resolvable:$true] %s307
          %310 = dma.hbm_to_vmem [thread:$0]  %s8, 16, %s308, [#allocation11]
        $region44: #{decoder_forward.1} parent=11 // pred_fallthru
          _
      $region12: #{decoder_forward.1} parent=5 // pred_fallthru
        _
      %p311 = scmp.lt.s32.totalorder %s18, 2
      // Predicated region
      $region45: #{decoder_forward.1} parent=5 // pred_check
        %p312 = pneg %p311
      $region46: #{decoder_forward.1} parent=5 // pred_check_branch
        %314 = sbr.rel (%p312) target = $region48
      $region47: #{decoder_forward.1} parent=5 // pred_region
        // Predicated region
        $region49: #{decoder_forward.1} parent=47 // pred_check
          %p315 = pneg %p38
        $region50: #{decoder_forward.1} parent=47 // pred_check_branch
          %317 = sbr.rel (%p315) target = $region52
        $region51: #{decoder_forward.1} parent=47 // pred_region
          %p318 = scmp.lt.s32.totalorder %s18, 1
          %s319 = scalar_select %p318, %s18, 1
          %s320 = smul.addr %s319, 32
          %s321 = smul.addr %s320, 8
          %s322 = scalar_lea.vmem %s0, %s321
        $region52: #{decoder_forward.1} parent=47 // pred_fallthru
          _
      $region48: #{decoder_forward.1} parent=5 // pred_fallthru
        _
      %p323 = scmp.le.s32.totalorder 1, %s18
      %p324 = scmp.lt.s32.totalorder %s18, 3
      %p325 = pnand %p323, %p324
      %p326 = pneg %p325
      // Predicated region
      $region53: #{decoder_forward.1} parent=5 // pred_check
        _
      $region54: #{decoder_forward.1} parent=5 // pred_check_branch
        %328 = sbr.rel (%p325) target = $region56
      $region55: #{decoder_forward.1} parent=5 // pred_region
        %s329 = ssub.s32 %s18, 1
        // Predicated region
        $region57: #{decoder_forward.1} parent=55 // pred_check
          %p330 = pneg %p86
        $region58: #{decoder_forward.1} parent=55 // pred_check_branch
          %332 = sbr.rel (%p330) target = $region60
        $region59: #{decoder_forward.1} parent=55 // pred_region
          %333 = dma.done [#allocation6], 16
        $region60: #{decoder_forward.1} parent=55 // pred_fallthru
          _
        // Predicated region
        $region61: #{decoder_forward.1} parent=55 // pred_check
          %p334 = pneg %p128
        $region62: #{decoder_forward.1} parent=55 // pred_check_branch
          %336 = sbr.rel (%p334) target = $region64
        $region63: #{decoder_forward.1} parent=55 // pred_region
          %337 = dma.done [#allocation8], 256
        $region64: #{decoder_forward.1} parent=55 // pred_fallthru
          _
        // Predicated region
        $region65: #{decoder_forward.1} parent=55 // pred_check
          %p338 = pneg %p170
        $region66: #{decoder_forward.1} parent=55 // pred_check_branch
          %340 = sbr.rel (%p338) target = $region68
        $region67: #{decoder_forward.1} parent=55 // pred_region
          %341 = dma.done [#allocation8], 16
        $region68: #{decoder_forward.1} parent=55 // pred_fallthru
          _
        // Predicated region
        $region69: #{decoder_forward.1} parent=55 // pred_check
          %p342 = pneg %p212
        $region70: #{decoder_forward.1} parent=55 // pred_check_branch
          %344 = sbr.rel (%p342) target = $region72
        $region71: #{decoder_forward.1} parent=55 // pred_region
          %345 = dma.done [#allocation11], 16
        $region72: #{decoder_forward.1} parent=55 // pred_fallthru
          _
        %p346 = scmp.lt.s32.totalorder %s23, 1
        %s347 = scalar_select %p346, %s23, 1
        %s348 = smul.addr %s347, 32
        %s349 = smul.addr %s348, 8
        %s350 = scalar_lea.vmem %s0, %s349
        %p351 = pneg %p44
        %p352 = pneg %p41
        %p353 = pneg %p65
        %p354 = pneg %p62
        %p355 = pneg %p86
        %p356 = pneg %p83
        %p357 = pneg %p107
        %p358 = pneg %p104
        %p359 = pneg %p128
        %p360 = pneg %p125
        %p361 = pneg %p149
        %p362 = pneg %p146
        %p363 = pneg %p170
        %p364 = pneg %p167
        %p365 = pneg %p191
        %p366 = pneg %p188
        %p367 = pneg %p212
        %p368 = pneg %p209
        %p369 = pneg %p238
        %p370 = pneg %p235
        %p371 = scmp.lt.s32.totalorder %s23, 1
        %s372 = scalar_select %p371, %s23, 1
        %s373 = smul.addr %s372, 32
        %s374 = smul.addr %s373, 8
        %s375 = scalar_lea.vmem %s9, %s374
        %p376 = scmp.lt.s32.totalorder %s23, 1
        %s377 = scalar_select %p376, %s23, 1
        %s378 = smul.addr %s377, 32
        %s379 = smul.addr %s378, 8
        %s380 = scalar_lea.vmem %s0, %s379
        %p381 = scmp.lt.s32.totalorder %s23, 1
        %s382 = scalar_select %p381, %s23, 1
        %s383 = smul.addr %s382, 32
        %s384 = smul.addr %s383, 8
        %s385 = scalar_lea.vmem %s9, %s384
        %vm386 = vcmask 31744
        %387 = vst.msk [vmem:[#allocation2] sm:$0xff] %vm386, 0.0
        %388 = vst.msk [vmem:[#allocation2 + $0x8] sm:$0xff] %vm386, 0.0
        %vm389 = vcmask 25600
        %390 = vst.msk [vmem:[#allocation2 + $0x10] sm:$0x3] %vm389, 0.0
        %391 = vst.msk [vmem:[#allocation2 + $0x18] sm:$0xff] %vm386, 0.0
        %392 = vst.msk [vmem:[#allocation2 + $0x20] sm:$0xff] %vm386, 0.0
        %393 = vst.msk [vmem:[#allocation2 + $0x28] sm:$0x3] %vm389, 0.0
        %394 = vst.msk [vmem:[#allocation2 + $0x30] sm:$0xff] %vm386, 0.0
        %395 = vst.msk [vmem:[#allocation2 + $0x38] sm:$0xff] %vm386, 0.0
        %396 = vst.msk [vmem:[#allocation2 + $0x40] sm:$0x3] %vm389, 0.0
        %397 = vst.msk [vmem:[#allocation2 + $0x48] sm:$0xff] %vm386, 0.0
        %398 = vst.msk [vmem:[#allocation2 + $0x50] sm:$0xff] %vm386, 0.0
        %399 = vst.msk [vmem:[#allocation2 + $0x58] sm:$0x3] %vm389, 0.0
        %400 = vst.msk [vmem:[#allocation2 + $0x60] sm:$0xff] %vm386, 0.0
        %401 = vst.msk [vmem:[#allocation2 + $0x68] sm:$0xff] %vm386, 0.0
        %402 = vst.msk [vmem:[#allocation2 + $0x70] sm:$0x3] %vm389, 0.0
        %403 = vst.msk [vmem:[#allocation2 + $0x78] sm:$0xff] %vm386, 0.0
        %404 = vst.msk [vmem:[#allocation2 + $0x80] sm:$0xff] %vm386, 0.0
        %405 = vst.msk [vmem:[#allocation2 + $0x88] sm:$0x3] %vm389, 0.0
        %406 = vst.msk [vmem:[#allocation2 + $0x90] sm:$0xff] %vm386, 0.0
        %407 = vst.msk [vmem:[#allocation2 + $0x98] sm:$0xff] %vm386, 0.0
        %408 = vst.msk [vmem:[#allocation2 + $0xa0] sm:$0x3] %vm389, 0.0
        %409 = vst.msk [vmem:[#allocation2 + $0xa8] sm:$0xff] %vm386, 0.0
        %410 = vst.msk [vmem:[#allocation2 + $0xb0] sm:$0xff] %vm386, 0.0
        %411 = vst.msk [vmem:[#allocation2 + $0xb8] sm:$0x3] %vm389, 0.0
        %412 = vst.msk [vmem:[#allocation2 + $0xc0] sm:$0xff] %vm386, 0.0
        %413 = vst.msk [vmem:[#allocation2 + $0xc8] sm:$0xff] %vm386, 0.0
        %414 = vst.msk [vmem:[#allocation2 + $0xd0] sm:$0x3] %vm389, 0.0
        %415 = vst.msk [vmem:[#allocation2 + $0xd8] sm:$0xff] %vm386, 0.0
        %416 = vst.msk [vmem:[#allocation2 + $0xe0] sm:$0xff] %vm386, 0.0
        %417 = vst.msk [vmem:[#allocation2 + $0xe8] sm:$0x3] %vm389, 0.0
        %418 = vst.msk [vmem:[#allocation2 + $0xf0] sm:$0xff] %vm386, 0.0
        %419 = vst.msk [vmem:[#allocation2 + $0xf8] sm:$0xff] %vm386, 0.0
        %420 = vst.msk [vmem:[#allocation2 + $0x100] sm:$0x3] %vm389, 0.0
        %421 = vst.msk [vmem:[#allocation2 + $0x108] sm:$0xff] %vm386, 0.0
        %422 = vst.msk [vmem:[#allocation2 + $0x110] sm:$0xff] %vm386, 0.0
        %423 = vst.msk [vmem:[#allocation2 + $0x118] sm:$0x3] %vm389, 0.0
        %424 = vst.msk [vmem:[#allocation2 + $0x120] sm:$0xff] %vm386, 0.0
        %425 = vst.msk [vmem:[#allocation2 + $0x128] sm:$0xff] %vm386, 0.0
        %426 = vst.msk [vmem:[#allocation2 + $0x130] sm:$0x3] %vm389, 0.0
        %427 = vst.msk [vmem:[#allocation2 + $0x138] sm:$0xff] %vm386, 0.0
        %428 = vst.msk [vmem:[#allocation2 + $0x140] sm:$0xff] %vm386, 0.0
        %429 = vst.msk [vmem:[#allocation2 + $0x148] sm:$0x3] %vm389, 0.0
        %430 = vst.msk [vmem:[#allocation2 + $0x150] sm:$0xff] %vm386, 0.0
        %431 = vst.msk [vmem:[#allocation2 + $0x158] sm:$0xff] %vm386, 0.0
        %432 = vst.msk [vmem:[#allocation2 + $0x160] sm:$0x3] %vm389, 0.0
        %433 = vst.msk [vmem:[#allocation2 + $0x168] sm:$0xff] %vm386, 0.0
        %434 = vst.msk [vmem:[#allocation2 + $0x170] sm:$0xff] %vm386, 0.0
        %435 = vst.msk [vmem:[#allocation2 + $0x178] sm:$0x3] %vm389, 0.0
        %436 = vst.msk [vmem:[#allocation2 + $0x180] sm:$0xff] %vm386, 0.0
        %437 = vst.msk [vmem:[#allocation2 + $0x188] sm:$0xff] %vm386, 0.0
        %438 = vst.msk [vmem:[#allocation2 + $0x190] sm:$0x3] %vm389, 0.0
        %439 = vst.msk [vmem:[#allocation2 + $0x198] sm:$0xff] %vm386, 0.0
        %440 = vst.msk [vmem:[#allocation2 + $0x1a0] sm:$0xff] %vm386, 0.0
        %441 = vst.msk [vmem:[#allocation2 + $0x1a8] sm:$0x3] %vm389, 0.0
        %v442 = vld [vmem:[%s380] sm:$0xff]
        %v443 = vld [vmem:[%s380 + $0x8] sm:$0xff]
        %v444 = vld [vmem:[%s380 + $0x10] sm:$0xff]
        %v445 = vld [vmem:[%s380 + $0x18] sm:$0xff]
        %v446 = vld [vmem:[%s380 + $0x20] sm:$0xff]
        %v447 = vld [vmem:[%s380 + $0x28] sm:$0xff]
        %v448 = vld [vmem:[%s380 + $0x30] sm:$0xff]
        %v449 = vld [vmem:[%s380 + $0x38] sm:$0xff]
        %v450 = vld [vmem:[%s380 + $0x40] sm:$0xff]
        %v451 = vld [vmem:[%s380 + $0x48] sm:$0xff]
        %v452 = vld [vmem:[%s380 + $0x50] sm:$0xff]
        %v453 = vld [vmem:[%s380 + $0x58] sm:$0xff]
        %v454 = vld [vmem:[%s380 + $0x60] sm:$0xff]
        %v455 = vld [vmem:[%s380 + $0x68] sm:$0xff]
        %v456 = vld [vmem:[%s380 + $0x70] sm:$0xff]
        %v457 = vld [vmem:[%s380 + $0x78] sm:$0xff]
        %v458 = vld [vmem:[%s380 + $0x80] sm:$0xff]
        %v459 = vld [vmem:[%s380 + $0x88] sm:$0xff]
        %v460 = vld [vmem:[%s380 + $0x90] sm:$0xff]
        %v461 = vld [vmem:[%s380 + $0x98] sm:$0xff]
        %v462 = vld [vmem:[%s380 + $0xa0] sm:$0xff]
        %v463 = vld [vmem:[%s380 + $0xa8] sm:$0xff]
        %v464 = vld [vmem:[%s380 + $0xb0] sm:$0xff]
        %v465 = vld [vmem:[%s380 + $0xb8] sm:$0xff]
        %v466 = vld [vmem:[%s380 + $0xc0] sm:$0xff]
        %v467 = vld [vmem:[%s380 + $0xc8] sm:$0xff]
        %v468 = vld [vmem:[%s380 + $0xd0] sm:$0xff]
        %v469 = vld [vmem:[%s380 + $0xd8] sm:$0xff]
        %v470 = vld [vmem:[%s380 + $0xe0] sm:$0xff]
        %v471 = vld [vmem:[%s380 + $0xe8] sm:$0xff]
        %v472 = vld [vmem:[%s380 + $0xf0] sm:$0xff]
        %v473 = vld [vmem:[%s380 + $0xf8] sm:$0xff]
        %s474 = scalar_lea.vmem [#allocation2], 24
        %475 = vst.msk [vmem:[%s474 + $0x1] sm:$0xff] %vm386, %v442
        %476 = vst.msk [vmem:[%s474 + $0x9] sm:$0xff] %vm386, %v443
        %477 = vst.msk [vmem:[%s474 + $0x19] sm:$0xff] %vm386, %v444
        %478 = vst.msk [vmem:[%s474 + $0x21] sm:$0xff] %vm386, %v445
        %479 = vst.msk [vmem:[%s474 + $0x31] sm:$0xff] %vm386, %v446
        %480 = vst.msk [vmem:[%s474 + $0x39] sm:$0xff] %vm386, %v447
        %481 = vst.msk [vmem:[%s474 + $0x49] sm:$0xff] %vm386, %v448
        %482 = vst.msk [vmem:[%s474 + $0x51] sm:$0xff] %vm386, %v449
        %483 = vst.msk [vmem:[%s474 + $0x61] sm:$0xff] %vm386, %v450
        %484 = vst.msk [vmem:[%s474 + $0x69] sm:$0xff] %vm386, %v451
        %485 = vst.msk [vmem:[%s474 + $0x79] sm:$0xff] %vm386, %v452
        %486 = vst.msk [vmem:[%s474 + $0x81] sm:$0xff] %vm386, %v453
        %487 = vst.msk [vmem:[%s474 + $0x91] sm:$0xff] %vm386, %v454
        %488 = vst.msk [vmem:[%s474 + $0x99] sm:$0xff] %vm386, %v455
        %489 = vst.msk [vmem:[%s474 + $0xa9] sm:$0xff] %vm386, %v456
        %490 = vst.msk [vmem:[%s474 + $0xb1] sm:$0xff] %vm386, %v457
        %491 = vst.msk [vmem:[%s474 + $0xc1] sm:$0xff] %vm386, %v458
        %492 = vst.msk [vmem:[%s474 + $0xc9] sm:$0xff] %vm386, %v459
        %493 = vst.msk [vmem:[%s474 + $0xd9] sm:$0xff] %vm386, %v460
        %494 = vst.msk [vmem:[%s474 + $0xe1] sm:$0xff] %vm386, %v461
        %495 = vst.msk [vmem:[%s474 + $0xf1] sm:$0xff] %vm386, %v462
        %496 = vst.msk [vmem:[%s474 + $0xf9] sm:$0xff] %vm386, %v463
        %497 = vst.msk [vmem:[%s474 + $0x109] sm:$0xff] %vm386, %v464
        %498 = vst.msk [vmem:[%s474 + $0x111] sm:$0xff] %vm386, %v465
        %499 = vst.msk [vmem:[%s474 + $0x121] sm:$0xff] %vm386, %v466
        %500 = vst.msk [vmem:[%s474 + $0x129] sm:$0xff] %vm386, %v467
        %501 = vst.msk [vmem:[%s474 + $0x139] sm:$0xff] %vm386, %v468
        %502 = vst.msk [vmem:[%s474 + $0x141] sm:$0xff] %vm386, %v469
        %503 = vst.msk [vmem:[%s474 + $0x151] sm:$0xff] %vm386, %v470
        %504 = vst.msk [vmem:[%s474 + $0x159] sm:$0xff] %vm386, %v471
        %505 = vst.msk [vmem:[%s474 + $0x169] sm:$0xff] %vm386, %v472
        %506 = vst.msk [vmem:[%s474 + $0x171] sm:$0xff] %vm386, %v473
        %v507 = vld [vmem:[#allocation2] sm:$0xff]
        %v508 = vld [vmem:[#allocation2 + $0x8] sm:$0xff]
        %v509 = vld [vmem:[#allocation2 + $0x10] sm:$0x3]
        %v510 = vld [vmem:[#allocation2 + $0x18] sm:$0xff]
        %v511 = vld [vmem:[#allocation2 + $0x20] sm:$0xff]
        %v512 = vld [vmem:[#allocation2 + $0x28] sm:$0x3]
        %v513 = vld [vmem:[#allocation2 + $0x30] sm:$0xff]
        %v514 = vld [vmem:[#allocation2 + $0x38] sm:$0xff]
        %v515 = vld [vmem:[#allocation2 + $0x40] sm:$0x3]
        %v516 = vld [vmem:[#allocation2 + $0x48] sm:$0xff]
        %v517 = vld [vmem:[#allocation2 + $0x50] sm:$0xff]
        %v518 = vld [vmem:[#allocation2 + $0x58] sm:$0x3]
        %v519 = vld [vmem:[#allocation2 + $0x60] sm:$0xff]
        %v520 = vld [vmem:[#allocation2 + $0x68] sm:$0xff]
        %v521 = vld [vmem:[#allocation2 + $0x70] sm:$0x3]
        %v522 = vld [vmem:[#allocation2 + $0x78] sm:$0xff]
        %v523 = vld [vmem:[#allocation2 + $0x80] sm:$0xff]
        %v524 = vld [vmem:[#allocation2 + $0x88] sm:$0x3]
        %v525 = vld [vmem:[#allocation2 + $0x90] sm:$0xff]
        %v526 = vld [vmem:[#allocation2 + $0x98] sm:$0xff]
        %v527 = vld [vmem:[#allocation2 + $0xa0] sm:$0x3]
        %v528 = vld [vmem:[#allocation2 + $0xa8] sm:$0xff]
        %v529 = vld [vmem:[#allocation2 + $0xb0] sm:$0xff]
        %v530 = vld [vmem:[#allocation2 + $0xb8] sm:$0x3]
        %v531 = vld [vmem:[#allocation2 + $0xc0] sm:$0xff]
        %v532 = vld [vmem:[#allocation2 + $0xc8] sm:$0xff]
        %v533 = vld [vmem:[#allocation2 + $0xd0] sm:$0x3]
        %v534 = vld [vmem:[#allocation2 + $0xd8] sm:$0xff]
        %v535 = vld [vmem:[#allocation2 + $0xe0] sm:$0xff]
        %v536 = vld [vmem:[#allocation2 + $0xe8] sm:$0x3]
        %v537 = vld [vmem:[#allocation2 + $0xf0] sm:$0xff]
        %v538 = vld [vmem:[#allocation2 + $0xf8] sm:$0xff]
        %v539 = vld [vmem:[#allocation2 + $0x100] sm:$0x3]
        %v540 = vld [vmem:[#allocation2 + $0x108] sm:$0xff]
        %v541 = vld [vmem:[#allocation2 + $0x110] sm:$0xff]
        %v542 = vld [vmem:[#allocation2 + $0x118] sm:$0x3]
        %v543 = vld [vmem:[#allocation2 + $0x120] sm:$0xff]
        %v544 = vld [vmem:[#allocation2 + $0x128] sm:$0xff]
        %v545 = vld [vmem:[#allocation2 + $0x130] sm:$0x3]
        %v546 = vld [vmem:[#allocation2 + $0x138] sm:$0xff]
        %v547 = vld [vmem:[#allocation2 + $0x140] sm:$0xff]
        %v548 = vld [vmem:[#allocation2 + $0x148] sm:$0x3]
        %v549 = vld [vmem:[#allocation2 + $0x150] sm:$0xff]
        %v550 = vld [vmem:[#allocation2 + $0x158] sm:$0xff]
        %v551 = vld [vmem:[#allocation2 + $0x160] sm:$0x3]
        %v552 = vld [vmem:[#allocation2 + $0x168] sm:$0xff]
        %v553 = vld [vmem:[#allocation2 + $0x170] sm:$0xff]
        %v554 = vld [vmem:[#allocation2 + $0x178] sm:$0x3]
        %v555 = vld [vmem:[#allocation2 + $0x180] sm:$0xff]
        %v556 = vld [vmem:[#allocation2 + $0x188] sm:$0xff]
        %v557 = vld [vmem:[#allocation2 + $0x190] sm:$0x3]
        %v558 = vld [vmem:[#allocation2 + $0x198] sm:$0xff]
        %v559 = vld [vmem:[#allocation2 + $0x1a0] sm:$0xff]
        %v560 = vld [vmem:[#allocation2 + $0x1a8] sm:$0x3]
        %vm609 = vcmask 1046528
        %v610 = vrot.slane %v507, 1
        %v611 = vrot.slane %v508, 1
        %v612 = vsel %vm609, %v610, %v611
        %v613 = vrot.slane %v509, 1
        %v614 = vsel %vm609, %v611, %v613
        %v615 = vrot.slane %v510, 1
        %v616 = vrot.slane %v511, 1
        %v617 = vsel %vm609, %v615, %v616
        %v618 = vrot.slane %v512, 1
        %v619 = vsel %vm609, %v616, %v618
        %v620 = vrot.slane %v513, 1
        %v621 = vrot.slane %v514, 1
        %v622 = vsel %vm609, %v620, %v621
        %v623 = vrot.slane %v515, 1
        %v624 = vsel %vm609, %v621, %v623
        %v625 = vrot.slane %v516, 1
        %v626 = vrot.slane %v517, 1
        %v627 = vsel %vm609, %v625, %v626
        %v628 = vrot.slane %v518, 1
        %v629 = vsel %vm609, %v626, %v628
        %v630 = vrot.slane %v519, 1
        %v631 = vrot.slane %v520, 1
        %v632 = vsel %vm609, %v630, %v631
        %v633 = vrot.slane %v521, 1
        %v634 = vsel %vm609, %v631, %v633
        %v635 = vrot.slane %v522, 1
        %v636 = vrot.slane %v523, 1
        %v637 = vsel %vm609, %v635, %v636
        %v638 = vrot.slane %v524, 1
        %v639 = vsel %vm609, %v636, %v638
        %v640 = vrot.slane %v525, 1
        %v641 = vrot.slane %v526, 1
        %v642 = vsel %vm609, %v640, %v641
        %v643 = vrot.slane %v527, 1
        %v644 = vsel %vm609, %v641, %v643
        %v645 = vrot.slane %v528, 1
        %v646 = vrot.slane %v529, 1
        %v647 = vsel %vm609, %v645, %v646
        %v648 = vrot.slane %v530, 1
        %v649 = vsel %vm609, %v646, %v648
        %v650 = vrot.slane %v531, 1
        %v651 = vrot.slane %v532, 1
        %v652 = vsel %vm609, %v650, %v651
        %v653 = vrot.slane %v533, 1
        %v654 = vsel %vm609, %v651, %v653
        %v655 = vrot.slane %v534, 1
        %v656 = vrot.slane %v535, 1
        %v657 = vsel %vm609, %v655, %v656
        %v658 = vrot.slane %v536, 1
        %v659 = vsel %vm609, %v656, %v658
        %v660 = vrot.slane %v537, 1
        %v661 = vrot.slane %v538, 1
        %v662 = vsel %vm609, %v660, %v661
        %v663 = vrot.slane %v539, 1
        %v664 = vsel %vm609, %v661, %v663
        %v665 = vrot.slane %v540, 1
        %v666 = vrot.slane %v541, 1
        %v667 = vsel %vm609, %v665, %v666
        %v668 = vrot.slane %v542, 1
        %v669 = vsel %vm609, %v666, %v668
        %v670 = vrot.slane %v543, 1
        %v671 = vrot.slane %v544, 1
        %v672 = vsel %vm609, %v670, %v671
        %v673 = vrot.slane %v545, 1
        %v674 = vsel %vm609, %v671, %v673
        %v675 = vrot.slane %v546, 1
        %v676 = vrot.slane %v547, 1
        %v677 = vsel %vm609, %v675, %v676
        %v678 = vrot.slane %v548, 1
        %v679 = vsel %vm609, %v676, %v678
        %v680 = vrot.slane %v549, 1
        %v681 = vrot.slane %v550, 1
        %v682 = vsel %vm609, %v680, %v681
        %v683 = vrot.slane %v551, 1
        %v684 = vsel %vm609, %v681, %v683
        %v685 = vrot.slane %v552, 1
        %v686 = vrot.slane %v553, 1
        %v687 = vsel %vm609, %v685, %v686
        %v688 = vrot.slane %v554, 1
        %v689 = vsel %vm609, %v686, %v688
        %690 = vrot.lane.b32.xlu0 %v612, 4
        %v691 = vpop.permute.xlu0 %690
        %692 = vrot.lane.b32.xlu0 %v614, 4
        %v693 = vpop.permute.xlu0 %692
        %694 = vrot.lane.b32.xlu0 %v617, 4
        %v695 = vpop.permute.xlu0 %694
        %696 = vrot.lane.b32.xlu0 %v619, 4
        %v697 = vpop.permute.xlu0 %696
        %698 = vrot.lane.b32.xlu0 %v622, 4
        %v699 = vpop.permute.xlu0 %698
        %700 = vrot.lane.b32.xlu0 %v624, 4
        %v701 = vpop.permute.xlu0 %700
        %702 = vrot.lane.b32.xlu0 %v627, 4
        %v703 = vpop.permute.xlu0 %702
        %704 = vrot.lane.b32.xlu0 %v629, 4
        %v705 = vpop.permute.xlu0 %704
        %706 = vrot.lane.b32.xlu0 %v632, 4
        %v707 = vpop.permute.xlu0 %706
        %708 = vrot.lane.b32.xlu0 %v634, 4
        %v709 = vpop.permute.xlu0 %708
        %710 = vrot.lane.b32.xlu0 %v637, 4
        %v711 = vpop.permute.xlu0 %710
        %712 = vrot.lane.b32.xlu0 %v639, 4
        %v713 = vpop.permute.xlu0 %712
        %714 = vrot.lane.b32.xlu0 %v642, 4
        %v715 = vpop.permute.xlu0 %714
        %716 = vrot.lane.b32.xlu0 %v644, 4
        %v717 = vpop.permute.xlu0 %716
        %718 = vrot.lane.b32.xlu0 %v647, 4
        %v719 = vpop.permute.xlu0 %718
        %720 = vrot.lane.b32.xlu0 %v649, 4
        %v721 = vpop.permute.xlu0 %720
        %722 = vrot.lane.b32.xlu0 %v652, 4
        %v723 = vpop.permute.xlu0 %722
        %724 = vrot.lane.b32.xlu0 %v654, 4
        %v725 = vpop.permute.xlu0 %724
        %726 = vrot.lane.b32.xlu0 %v657, 4
        %v727 = vpop.permute.xlu0 %726
        %728 = vrot.lane.b32.xlu0 %v659, 4
        %v729 = vpop.permute.xlu0 %728
        %730 = vrot.lane.b32.xlu0 %v662, 4
        %v731 = vpop.permute.xlu0 %730
        %732 = vrot.lane.b32.xlu0 %v664, 4
        %v733 = vpop.permute.xlu0 %732
        %734 = vrot.lane.b32.xlu0 %v667, 4
        %v735 = vpop.permute.xlu0 %734
        %736 = vrot.lane.b32.xlu0 %v669, 4
        %v737 = vpop.permute.xlu0 %736
        %738 = vrot.lane.b32.xlu0 %v672, 4
        %v739 = vpop.permute.xlu0 %738
        %740 = vrot.lane.b32.xlu0 %v674, 4
        %v741 = vpop.permute.xlu0 %740
        %742 = vrot.lane.b32.xlu0 %v677, 4
        %v743 = vpop.permute.xlu0 %742
        %744 = vrot.lane.b32.xlu0 %v679, 4
        %v745 = vpop.permute.xlu0 %744
        %746 = vrot.lane.b32.xlu0 %v682, 4
        %v747 = vpop.permute.xlu0 %746
        %748 = vrot.lane.b32.xlu0 %v684, 4
        %v749 = vpop.permute.xlu0 %748
        %750 = vrot.lane.b32.xlu0 %v687, 4
        %v751 = vpop.permute.xlu0 %750
        %752 = vrot.lane.b32.xlu0 %v689, 4
        %v753 = vpop.permute.xlu0 %752
        %vm786 = vcmask 1045504
        %v787 = vrot.slane %v507, 2
        %v788 = vrot.slane %v508, 2
        %v789 = vsel %vm786, %v787, %v788
        %v790 = vrot.slane %v509, 2
        %v791 = vsel %vm786, %v788, %v790
        %v792 = vrot.slane %v510, 2
        %v793 = vrot.slane %v511, 2
        %v794 = vsel %vm786, %v792, %v793
        %v795 = vrot.slane %v512, 2
        %v796 = vsel %vm786, %v793, %v795
        %v797 = vrot.slane %v513, 2
        %v798 = vrot.slane %v514, 2
        %v799 = vsel %vm786, %v797, %v798
        %v800 = vrot.slane %v515, 2
        %v801 = vsel %vm786, %v798, %v800
        %v802 = vrot.slane %v516, 2
        %v803 = vrot.slane %v517, 2
        %v804 = vsel %vm786, %v802, %v803
        %v805 = vrot.slane %v518, 2
        %v806 = vsel %vm786, %v803, %v805
        %v807 = vrot.slane %v519, 2
        %v808 = vrot.slane %v520, 2
        %v809 = vsel %vm786, %v807, %v808
        %v810 = vrot.slane %v521, 2
        %v811 = vsel %vm786, %v808, %v810
        %v812 = vrot.slane %v522, 2
        %v813 = vrot.slane %v523, 2
        %v814 = vsel %vm786, %v812, %v813
        %v815 = vrot.slane %v524, 2
        %v816 = vsel %vm786, %v813, %v815
        %v817 = vrot.slane %v525, 2
        %v818 = vrot.slane %v526, 2
        %v819 = vsel %vm786, %v817, %v818
        %v820 = vrot.slane %v527, 2
        %v821 = vsel %vm786, %v818, %v820
        %v822 = vrot.slane %v528, 2
        %v823 = vrot.slane %v529, 2
        %v824 = vsel %vm786, %v822, %v823
        %v825 = vrot.slane %v530, 2
        %v826 = vsel %vm786, %v823, %v825
        %v827 = vrot.slane %v531, 2
        %v828 = vrot.slane %v532, 2
        %v829 = vsel %vm786, %v827, %v828
        %v830 = vrot.slane %v533, 2
        %v831 = vsel %vm786, %v828, %v830
        %v832 = vrot.slane %v534, 2
        %v833 = vrot.slane %v535, 2
        %v834 = vsel %vm786, %v832, %v833
        %v835 = vrot.slane %v536, 2
        %v836 = vsel %vm786, %v833, %v835
        %v837 = vrot.slane %v537, 2
        %v838 = vrot.slane %v538, 2
        %v839 = vsel %vm786, %v837, %v838
        %v840 = vrot.slane %v539, 2
        %v841 = vsel %vm786, %v838, %v840
        %v842 = vrot.slane %v540, 2
        %v843 = vrot.slane %v541, 2
        %v844 = vsel %vm786, %v842, %v843
        %v845 = vrot.slane %v542, 2
        %v846 = vsel %vm786, %v843, %v845
        %v847 = vrot.slane %v543, 2
        %v848 = vrot.slane %v544, 2
        %v849 = vsel %vm786, %v847, %v848
        %v850 = vrot.slane %v545, 2
        %v851 = vsel %vm786, %v848, %v850
        %v852 = vrot.slane %v546, 2
        %v853 = vrot.slane %v547, 2
        %v854 = vsel %vm786, %v852, %v853
        %v855 = vrot.slane %v548, 2
        %v856 = vsel %vm786, %v853, %v855
        %v857 = vrot.slane %v549, 2
        %v858 = vrot.slane %v550, 2
        %v859 = vsel %vm786, %v857, %v858
        %v860 = vrot.slane %v551, 2
        %v861 = vsel %vm786, %v858, %v860
        %v862 = vrot.slane %v552, 2
        %v863 = vrot.slane %v553, 2
        %v864 = vsel %vm786, %v862, %v863
        %v865 = vrot.slane %v554, 2
        %v866 = vsel %vm786, %v863, %v865
        %867 = vrot.lane.b32.xlu0 %v789, 8
        %v868 = vpop.permute.xlu0 %867
        %869 = vrot.lane.b32.xlu0 %v791, 8
        %v870 = vpop.permute.xlu0 %869
        %871 = vrot.lane.b32.xlu0 %v794, 8
        %v872 = vpop.permute.xlu0 %871
        %873 = vrot.lane.b32.xlu0 %v796, 8
        %v874 = vpop.permute.xlu0 %873
        %875 = vrot.lane.b32.xlu0 %v799, 8
        %v876 = vpop.permute.xlu0 %875
        %877 = vrot.lane.b32.xlu0 %v801, 8
        %v878 = vpop.permute.xlu0 %877
        %879 = vrot.lane.b32.xlu0 %v804, 8
        %v880 = vpop.permute.xlu0 %879
        %881 = vrot.lane.b32.xlu0 %v806, 8
        %v882 = vpop.permute.xlu0 %881
        %883 = vrot.lane.b32.xlu0 %v809, 8
        %v884 = vpop.permute.xlu0 %883
        %885 = vrot.lane.b32.xlu0 %v811, 8
        %v886 = vpop.permute.xlu0 %885
        %887 = vrot.lane.b32.xlu0 %v814, 8
        %v888 = vpop.permute.xlu0 %887
        %889 = vrot.lane.b32.xlu0 %v816, 8
        %v890 = vpop.permute.xlu0 %889
        %891 = vrot.lane.b32.xlu0 %v819, 8
        %v892 = vpop.permute.xlu0 %891
        %893 = vrot.lane.b32.xlu0 %v821, 8
        %v894 = vpop.permute.xlu0 %893
        %895 = vrot.lane.b32.xlu0 %v824, 8
        %v896 = vpop.permute.xlu0 %895
        %897 = vrot.lane.b32.xlu0 %v826, 8
        %v898 = vpop.permute.xlu0 %897
        %899 = vrot.lane.b32.xlu0 %v829, 8
        %v900 = vpop.permute.xlu0 %899
        %901 = vrot.lane.b32.xlu0 %v831, 8
        %v902 = vpop.permute.xlu0 %901
        %903 = vrot.lane.b32.xlu0 %v834, 8
        %v904 = vpop.permute.xlu0 %903
        %905 = vrot.lane.b32.xlu0 %v836, 8
        %v906 = vpop.permute.xlu0 %905
        %907 = vrot.lane.b32.xlu0 %v839, 8
        %v908 = vpop.permute.xlu0 %907
        %909 = vrot.lane.b32.xlu0 %v841, 8
        %v910 = vpop.permute.xlu0 %909
        %911 = vrot.lane.b32.xlu0 %v844, 8
        %v912 = vpop.permute.xlu0 %911
        %913 = vrot.lane.b32.xlu0 %v846, 8
        %v914 = vpop.permute.xlu0 %913
        %915 = vrot.lane.b32.xlu0 %v849, 8
        %v916 = vpop.permute.xlu0 %915
        %917 = vrot.lane.b32.xlu0 %v851, 8
        %v918 = vpop.permute.xlu0 %917
        %919 = vrot.lane.b32.xlu0 %v854, 8
        %v920 = vpop.permute.xlu0 %919
        %921 = vrot.lane.b32.xlu0 %v856, 8
        %v922 = vpop.permute.xlu0 %921
        %923 = vrot.lane.b32.xlu0 %v859, 8
        %v924 = vpop.permute.xlu0 %923
        %925 = vrot.lane.b32.xlu0 %v861, 8
        %v926 = vpop.permute.xlu0 %925
        %927 = vrot.lane.b32.xlu0 %v864, 8
        %v928 = vpop.permute.xlu0 %927
        %929 = vrot.lane.b32.xlu0 %v866, 8
        %v930 = vpop.permute.xlu0 %929
        %965 = vrot.lane.b32.xlu0 %v510, 12
        %v966 = vpop.permute.xlu0 %965
        %967 = vrot.lane.b32.xlu0 %v511, 12
        %v968 = vpop.permute.xlu0 %967
        %969 = vrot.lane.b32.xlu0 %v513, 12
        %v970 = vpop.permute.xlu0 %969
        %971 = vrot.lane.b32.xlu0 %v514, 12
        %v972 = vpop.permute.xlu0 %971
        %973 = vrot.lane.b32.xlu0 %v516, 12
        %v974 = vpop.permute.xlu0 %973
        %975 = vrot.lane.b32.xlu0 %v517, 12
        %v976 = vpop.permute.xlu0 %975
        %977 = vrot.lane.b32.xlu0 %v519, 12
        %v978 = vpop.permute.xlu0 %977
        %979 = vrot.lane.b32.xlu0 %v520, 12
        %v980 = vpop.permute.xlu0 %979
        %981 = vrot.lane.b32.xlu0 %v522, 12
        %v982 = vpop.permute.xlu0 %981
        %983 = vrot.lane.b32.xlu0 %v523, 12
        %v984 = vpop.permute.xlu0 %983
        %985 = vrot.lane.b32.xlu0 %v525, 12
        %v986 = vpop.permute.xlu0 %985
        %987 = vrot.lane.b32.xlu0 %v526, 12
        %v988 = vpop.permute.xlu0 %987
        %989 = vrot.lane.b32.xlu0 %v528, 12
        %v990 = vpop.permute.xlu0 %989
        %991 = vrot.lane.b32.xlu0 %v529, 12
        %v992 = vpop.permute.xlu0 %991
        %993 = vrot.lane.b32.xlu0 %v531, 12
        %v994 = vpop.permute.xlu0 %993
        %995 = vrot.lane.b32.xlu0 %v532, 12
        %v996 = vpop.permute.xlu0 %995
        %997 = vrot.lane.b32.xlu0 %v534, 12
        %v998 = vpop.permute.xlu0 %997
        %999 = vrot.lane.b32.xlu0 %v535, 12
        %v1000 = vpop.permute.xlu0 %999
        %1001 = vrot.lane.b32.xlu0 %v537, 12
        %v1002 = vpop.permute.xlu0 %1001
        %1003 = vrot.lane.b32.xlu0 %v538, 12
        %v1004 = vpop.permute.xlu0 %1003
        %1005 = vrot.lane.b32.xlu0 %v540, 12
        %v1006 = vpop.permute.xlu0 %1005
        %1007 = vrot.lane.b32.xlu0 %v541, 12
        %v1008 = vpop.permute.xlu0 %1007
        %1009 = vrot.lane.b32.xlu0 %v543, 12
        %v1010 = vpop.permute.xlu0 %1009
        %1011 = vrot.lane.b32.xlu0 %v544, 12
        %v1012 = vpop.permute.xlu0 %1011
        %1013 = vrot.lane.b32.xlu0 %v546, 12
        %v1014 = vpop.permute.xlu0 %1013
        %1015 = vrot.lane.b32.xlu0 %v547, 12
        %v1016 = vpop.permute.xlu0 %1015
        %1017 = vrot.lane.b32.xlu0 %v549, 12
        %v1018 = vpop.permute.xlu0 %1017
        %1019 = vrot.lane.b32.xlu0 %v550, 12
        %v1020 = vpop.permute.xlu0 %1019
        %1021 = vrot.lane.b32.xlu0 %v552, 12
        %v1022 = vpop.permute.xlu0 %1021
        %1023 = vrot.lane.b32.xlu0 %v553, 12
        %v1024 = vpop.permute.xlu0 %1023
        %1025 = vrot.lane.b32.xlu0 %v555, 12
        %v1026 = vpop.permute.xlu0 %1025
        %1027 = vrot.lane.b32.xlu0 %v556, 12
        %v1028 = vpop.permute.xlu0 %1027
        %v1062 = vrot.slane %v555, 1
        %v1063 = vrot.slane %v556, 1
        %v1064 = vsel %vm609, %v1062, %v1063
        %v1065 = vrot.slane %v557, 1
        %v1066 = vsel %vm609, %v1063, %v1065
        %1067 = vrot.lane.b32.xlu0 %v617, 16
        %v1068 = vpop.permute.xlu0 %1067
        %1069 = vrot.lane.b32.xlu0 %v619, 16
        %v1070 = vpop.permute.xlu0 %1069
        %1071 = vrot.lane.b32.xlu0 %v622, 16
        %v1072 = vpop.permute.xlu0 %1071
        %1073 = vrot.lane.b32.xlu0 %v624, 16
        %v1074 = vpop.permute.xlu0 %1073
        %1075 = vrot.lane.b32.xlu0 %v627, 16
        %v1076 = vpop.permute.xlu0 %1075
        %1077 = vrot.lane.b32.xlu0 %v629, 16
        %v1078 = vpop.permute.xlu0 %1077
        %1079 = vrot.lane.b32.xlu0 %v632, 16
        %v1080 = vpop.permute.xlu0 %1079
        %1081 = vrot.lane.b32.xlu0 %v634, 16
        %v1082 = vpop.permute.xlu0 %1081
        %1083 = vrot.lane.b32.xlu0 %v637, 16
        %v1084 = vpop.permute.xlu0 %1083
        %1085 = vrot.lane.b32.xlu0 %v639, 16
        %v1086 = vpop.permute.xlu0 %1085
        %1087 = vrot.lane.b32.xlu0 %v642, 16
        %v1088 = vpop.permute.xlu0 %1087
        %1089 = vrot.lane.b32.xlu0 %v644, 16
        %v1090 = vpop.permute.xlu0 %1089
        %1091 = vrot.lane.b32.xlu0 %v647, 16
        %v1092 = vpop.permute.xlu0 %1091
        %1093 = vrot.lane.b32.xlu0 %v649, 16
        %v1094 = vpop.permute.xlu0 %1093
        %1095 = vrot.lane.b32.xlu0 %v652, 16
        %v1096 = vpop.permute.xlu0 %1095
        %1097 = vrot.lane.b32.xlu0 %v654, 16
        %v1098 = vpop.permute.xlu0 %1097
        %1099 = vrot.lane.b32.xlu0 %v657, 16
        %v1100 = vpop.permute.xlu0 %1099
        %1101 = vrot.lane.b32.xlu0 %v659, 16
        %v1102 = vpop.permute.xlu0 %1101
        %1103 = vrot.lane.b32.xlu0 %v662, 16
        %v1104 = vpop.permute.xlu0 %1103
        %1105 = vrot.lane.b32.xlu0 %v664, 16
        %v1106 = vpop.permute.xlu0 %1105
        %1107 = vrot.lane.b32.xlu0 %v667, 16
        %v1108 = vpop.permute.xlu0 %1107
        %1109 = vrot.lane.b32.xlu0 %v669, 16
        %v1110 = vpop.permute.xlu0 %1109
        %1111 = vrot.lane.b32.xlu0 %v672, 16
        %v1112 = vpop.permute.xlu0 %1111
        %1113 = vrot.lane.b32.xlu0 %v674, 16
        %v1114 = vpop.permute.xlu0 %1113
        %1115 = vrot.lane.b32.xlu0 %v677, 16
        %v1116 = vpop.permute.xlu0 %1115
        %1117 = vrot.lane.b32.xlu0 %v679, 16
        %v1118 = vpop.permute.xlu0 %1117
        %1119 = vrot.lane.b32.xlu0 %v682, 16
        %v1120 = vpop.permute.xlu0 %1119
        %1121 = vrot.lane.b32.xlu0 %v684, 16
        %v1122 = vpop.permute.xlu0 %1121
        %1123 = vrot.lane.b32.xlu0 %v687, 16
        %v1124 = vpop.permute.xlu0 %1123
        %1125 = vrot.lane.b32.xlu0 %v689, 16
        %v1126 = vpop.permute.xlu0 %1125
        %1127 = vrot.lane.b32.xlu0 %v1064, 16
        %v1128 = vpop.permute.xlu0 %1127
        %1129 = vrot.lane.b32.xlu0 %v1066, 16
        %v1130 = vpop.permute.xlu0 %1129
        %v1163 = vrot.slane %v555, 2
        %v1164 = vrot.slane %v556, 2
        %v1165 = vsel %vm786, %v1163, %v1164
        %v1166 = vrot.slane %v557, 2
        %v1167 = vsel %vm786, %v1164, %v1166
        %1168 = vrot.lane.b32.xlu0 %v794, 20
        %v1169 = vpop.permute.xlu0 %1168
        %1170 = vrot.lane.b32.xlu0 %v796, 20
        %v1171 = vpop.permute.xlu0 %1170
        %1172 = vrot.lane.b32.xlu0 %v799, 20
        %v1173 = vpop.permute.xlu0 %1172
        %1174 = vrot.lane.b32.xlu0 %v801, 20
        %v1175 = vpop.permute.xlu0 %1174
        %1176 = vrot.lane.b32.xlu0 %v804, 20
        %v1177 = vpop.permute.xlu0 %1176
        %1178 = vrot.lane.b32.xlu0 %v806, 20
        %v1179 = vpop.permute.xlu0 %1178
        %1180 = vrot.lane.b32.xlu0 %v809, 20
        %v1181 = vpop.permute.xlu0 %1180
        %1182 = vrot.lane.b32.xlu0 %v811, 20
        %v1183 = vpop.permute.xlu0 %1182
        %1184 = vrot.lane.b32.xlu0 %v814, 20
        %v1185 = vpop.permute.xlu0 %1184
        %1186 = vrot.lane.b32.xlu0 %v816, 20
        %v1187 = vpop.permute.xlu0 %1186
        %1188 = vrot.lane.b32.xlu0 %v819, 20
        %v1189 = vpop.permute.xlu0 %1188
        %1190 = vrot.lane.b32.xlu0 %v821, 20
        %v1191 = vpop.permute.xlu0 %1190
        %1192 = vrot.lane.b32.xlu0 %v824, 20
        %v1193 = vpop.permute.xlu0 %1192
        %1194 = vrot.lane.b32.xlu0 %v826, 20
        %v1195 = vpop.permute.xlu0 %1194
        %1196 = vrot.lane.b32.xlu0 %v829, 20
        %v1197 = vpop.permute.xlu0 %1196
        %1198 = vrot.lane.b32.xlu0 %v831, 20
        %v1199 = vpop.permute.xlu0 %1198
        %1200 = vrot.lane.b32.xlu0 %v834, 20
        %v1201 = vpop.permute.xlu0 %1200
        %1202 = vrot.lane.b32.xlu0 %v836, 20
        %v1203 = vpop.permute.xlu0 %1202
        %1204 = vrot.lane.b32.xlu0 %v839, 20
        %v1205 = vpop.permute.xlu0 %1204
        %1206 = vrot.lane.b32.xlu0 %v841, 20
        %v1207 = vpop.permute.xlu0 %1206
        %1208 = vrot.lane.b32.xlu0 %v844, 20
        %v1209 = vpop.permute.xlu0 %1208
        %1210 = vrot.lane.b32.xlu0 %v846, 20
        %v1211 = vpop.permute.xlu0 %1210
        %1212 = vrot.lane.b32.xlu0 %v849, 20
        %v1213 = vpop.permute.xlu0 %1212
        %1214 = vrot.lane.b32.xlu0 %v851, 20
        %v1215 = vpop.permute.xlu0 %1214
        %1216 = vrot.lane.b32.xlu0 %v854, 20
        %v1217 = vpop.permute.xlu0 %1216
        %1218 = vrot.lane.b32.xlu0 %v856, 20
        %v1219 = vpop.permute.xlu0 %1218
        %1220 = vrot.lane.b32.xlu0 %v859, 20
        %v1221 = vpop.permute.xlu0 %1220
        %1222 = vrot.lane.b32.xlu0 %v861, 20
        %v1223 = vpop.permute.xlu0 %1222
        %1224 = vrot.lane.b32.xlu0 %v864, 20
        %v1225 = vpop.permute.xlu0 %1224
        %1226 = vrot.lane.b32.xlu0 %v866, 20
        %v1227 = vpop.permute.xlu0 %1226
        %1228 = vrot.lane.b32.xlu0 %v1165, 20
        %v1229 = vpop.permute.xlu0 %1228
        %1230 = vrot.lane.b32.xlu0 %v1167, 20
        %v1231 = vpop.permute.xlu0 %1230
        %1266 = vrot.lane.b32.xlu0 %v513, 24
        %v1267 = vpop.permute.xlu0 %1266
        %1268 = vrot.lane.b32.xlu0 %v514, 24
        %v1269 = vpop.permute.xlu0 %1268
        %1270 = vrot.lane.b32.xlu0 %v516, 24
        %v1271 = vpop.permute.xlu0 %1270
        %1272 = vrot.lane.b32.xlu0 %v517, 24
        %v1273 = vpop.permute.xlu0 %1272
        %1274 = vrot.lane.b32.xlu0 %v519, 24
        %v1275 = vpop.permute.xlu0 %1274
        %1276 = vrot.lane.b32.xlu0 %v520, 24
        %v1277 = vpop.permute.xlu0 %1276
        %1278 = vrot.lane.b32.xlu0 %v522, 24
        %v1279 = vpop.permute.xlu0 %1278
        %1280 = vrot.lane.b32.xlu0 %v523, 24
        %v1281 = vpop.permute.xlu0 %1280
        %1282 = vrot.lane.b32.xlu0 %v525, 24
        %v1283 = vpop.permute.xlu0 %1282
        %1284 = vrot.lane.b32.xlu0 %v526, 24
        %v1285 = vpop.permute.xlu0 %1284
        %1286 = vrot.lane.b32.xlu0 %v528, 24
        %v1287 = vpop.permute.xlu0 %1286
        %1288 = vrot.lane.b32.xlu0 %v529, 24
        %v1289 = vpop.permute.xlu0 %1288
        %1290 = vrot.lane.b32.xlu0 %v531, 24
        %v1291 = vpop.permute.xlu0 %1290
        %1292 = vrot.lane.b32.xlu0 %v532, 24
        %v1293 = vpop.permute.xlu0 %1292
        %1294 = vrot.lane.b32.xlu0 %v534, 24
        %v1295 = vpop.permute.xlu0 %1294
        %1296 = vrot.lane.b32.xlu0 %v535, 24
        %v1297 = vpop.permute.xlu0 %1296
        %1298 = vrot.lane.b32.xlu0 %v537, 24
        %v1299 = vpop.permute.xlu0 %1298
        %1300 = vrot.lane.b32.xlu0 %v538, 24
        %v1301 = vpop.permute.xlu0 %1300
        %1302 = vrot.lane.b32.xlu0 %v540, 24
        %v1303 = vpop.permute.xlu0 %1302
        %1304 = vrot.lane.b32.xlu0 %v541, 24
        %v1305 = vpop.permute.xlu0 %1304
        %1306 = vrot.lane.b32.xlu0 %v543, 24
        %v1307 = vpop.permute.xlu0 %1306
        %1308 = vrot.lane.b32.xlu0 %v544, 24
        %v1309 = vpop.permute.xlu0 %1308
        %1310 = vrot.lane.b32.xlu0 %v546, 24
        %v1311 = vpop.permute.xlu0 %1310
        %1312 = vrot.lane.b32.xlu0 %v547, 24
        %v1313 = vpop.permute.xlu0 %1312
        %1314 = vrot.lane.b32.xlu0 %v549, 24
        %v1315 = vpop.permute.xlu0 %1314
        %1316 = vrot.lane.b32.xlu0 %v550, 24
        %v1317 = vpop.permute.xlu0 %1316
        %1318 = vrot.lane.b32.xlu0 %v552, 24
        %v1319 = vpop.permute.xlu0 %1318
        %1320 = vrot.lane.b32.xlu0 %v553, 24
        %v1321 = vpop.permute.xlu0 %1320
        %1322 = vrot.lane.b32.xlu0 %v555, 24
        %v1323 = vpop.permute.xlu0 %1322
        %1324 = vrot.lane.b32.xlu0 %v556, 24
        %v1325 = vpop.permute.xlu0 %1324
        %1326 = vrot.lane.b32.xlu0 %v558, 24
        %v1327 = vpop.permute.xlu0 %1326
        %1328 = vrot.lane.b32.xlu0 %v559, 24
        %v1329 = vpop.permute.xlu0 %1328
        %v1363 = vrot.slane %v558, 1
        %v1364 = vrot.slane %v559, 1
        %v1365 = vsel %vm609, %v1363, %v1364
        %v1366 = vrot.slane %v560, 1
        %v1367 = vsel %vm609, %v1364, %v1366
        %1368 = vrot.lane.b32.xlu0 %v622, 28
        %v1369 = vpop.permute.xlu0 %1368
        %1370 = vrot.lane.b32.xlu0 %v624, 28
        %v1371 = vpop.permute.xlu0 %1370
        %1372 = vrot.lane.b32.xlu0 %v627, 28
        %v1373 = vpop.permute.xlu0 %1372
        %1374 = vrot.lane.b32.xlu0 %v629, 28
        %v1375 = vpop.permute.xlu0 %1374
        %1376 = vrot.lane.b32.xlu0 %v632, 28
        %v1377 = vpop.permute.xlu0 %1376
        %1378 = vrot.lane.b32.xlu0 %v634, 28
        %v1379 = vpop.permute.xlu0 %1378
        %1380 = vrot.lane.b32.xlu0 %v637, 28
        %v1381 = vpop.permute.xlu0 %1380
        %1382 = vrot.lane.b32.xlu0 %v639, 28
        %v1383 = vpop.permute.xlu0 %1382
        %1384 = vrot.lane.b32.xlu0 %v642, 28
        %v1385 = vpop.permute.xlu0 %1384
        %1386 = vrot.lane.b32.xlu0 %v644, 28
        %v1387 = vpop.permute.xlu0 %1386
        %1388 = vrot.lane.b32.xlu0 %v647, 28
        %v1389 = vpop.permute.xlu0 %1388
        %1390 = vrot.lane.b32.xlu0 %v649, 28
        %v1391 = vpop.permute.xlu0 %1390
        %1392 = vrot.lane.b32.xlu0 %v652, 28
        %v1393 = vpop.permute.xlu0 %1392
        %1394 = vrot.lane.b32.xlu0 %v654, 28
        %v1395 = vpop.permute.xlu0 %1394
        %1396 = vrot.lane.b32.xlu0 %v657, 28
        %v1397 = vpop.permute.xlu0 %1396
        %1398 = vrot.lane.b32.xlu0 %v659, 28
        %v1399 = vpop.permute.xlu0 %1398
        %1400 = vrot.lane.b32.xlu0 %v662, 28
        %v1401 = vpop.permute.xlu0 %1400
        %1402 = vrot.lane.b32.xlu0 %v664, 28
        %v1403 = vpop.permute.xlu0 %1402
        %1404 = vrot.lane.b32.xlu0 %v667, 28
        %v1405 = vpop.permute.xlu0 %1404
        %1406 = vrot.lane.b32.xlu0 %v669, 28
        %v1407 = vpop.permute.xlu0 %1406
        %1408 = vrot.lane.b32.xlu0 %v672, 28
        %v1409 = vpop.permute.xlu0 %1408
        %1410 = vrot.lane.b32.xlu0 %v674, 28
        %v1411 = vpop.permute.xlu0 %1410
        %1412 = vrot.lane.b32.xlu0 %v677, 28
        %v1413 = vpop.permute.xlu0 %1412
        %1414 = vrot.lane.b32.xlu0 %v679, 28
        %v1415 = vpop.permute.xlu0 %1414
        %1416 = vrot.lane.b32.xlu0 %v682, 28
        %v1417 = vpop.permute.xlu0 %1416
        %1418 = vrot.lane.b32.xlu0 %v684, 28
        %v1419 = vpop.permute.xlu0 %1418
        %1420 = vrot.lane.b32.xlu0 %v687, 28
        %v1421 = vpop.permute.xlu0 %1420
        %1422 = vrot.lane.b32.xlu0 %v689, 28
        %v1423 = vpop.permute.xlu0 %1422
        %1424 = vrot.lane.b32.xlu0 %v1064, 28
        %v1425 = vpop.permute.xlu0 %1424
        %1426 = vrot.lane.b32.xlu0 %v1066, 28
        %v1427 = vpop.permute.xlu0 %1426
        %1428 = vrot.lane.b32.xlu0 %v1365, 28
        %v1429 = vpop.permute.xlu0 %1428
        %1430 = vrot.lane.b32.xlu0 %v1367, 28
        %v1431 = vpop.permute.xlu0 %1430
        %v1464 = vrot.slane %v558, 2
        %v1465 = vrot.slane %v559, 2
        %v1466 = vsel %vm786, %v1464, %v1465
        %v1467 = vrot.slane %v560, 2
        %v1468 = vsel %vm786, %v1465, %v1467
        %1469 = vrot.lane.b32.xlu0 %v799, 32
        %v1470 = vpop.permute.xlu0 %1469
        %1471 = vrot.lane.b32.xlu0 %v801, 32
        %v1472 = vpop.permute.xlu0 %1471
        %1473 = vrot.lane.b32.xlu0 %v804, 32
        %v1474 = vpop.permute.xlu0 %1473
        %1475 = vrot.lane.b32.xlu0 %v806, 32
        %v1476 = vpop.permute.xlu0 %1475
        %1477 = vrot.lane.b32.xlu0 %v809, 32
        %v1478 = vpop.permute.xlu0 %1477
        %1479 = vrot.lane.b32.xlu0 %v811, 32
        %v1480 = vpop.permute.xlu0 %1479
        %1481 = vrot.lane.b32.xlu0 %v814, 32
        %v1482 = vpop.permute.xlu0 %1481
        %1483 = vrot.lane.b32.xlu0 %v816, 32
        %v1484 = vpop.permute.xlu0 %1483
        %1485 = vrot.lane.b32.xlu0 %v819, 32
        %v1486 = vpop.permute.xlu0 %1485
        %1487 = vrot.lane.b32.xlu0 %v821, 32
        %v1488 = vpop.permute.xlu0 %1487
        %1489 = vrot.lane.b32.xlu0 %v824, 32
        %v1490 = vpop.permute.xlu0 %1489
        %1491 = vrot.lane.b32.xlu0 %v826, 32
        %v1492 = vpop.permute.xlu0 %1491
        %1493 = vrot.lane.b32.xlu0 %v829, 32
        %v1494 = vpop.permute.xlu0 %1493
        %1495 = vrot.lane.b32.xlu0 %v831, 32
        %v1496 = vpop.permute.xlu0 %1495
        %1497 = vrot.lane.b32.xlu0 %v834, 32
        %v1498 = vpop.permute.xlu0 %1497
        %1499 = vrot.lane.b32.xlu0 %v836, 32
        %v1500 = vpop.permute.xlu0 %1499
        %1501 = vrot.lane.b32.xlu0 %v839, 32
        %v1502 = vpop.permute.xlu0 %1501
        %1503 = vrot.lane.b32.xlu0 %v841, 32
        %v1504 = vpop.permute.xlu0 %1503
        %1505 = vrot.lane.b32.xlu0 %v844, 32
        %v1506 = vpop.permute.xlu0 %1505
        %1507 = vrot.lane.b32.xlu0 %v846, 32
        %v1508 = vpop.permute.xlu0 %1507
        %1509 = vrot.lane.b32.xlu0 %v849, 32
        %v1510 = vpop.permute.xlu0 %1509
        %1511 = vrot.lane.b32.xlu0 %v851, 32
        %v1512 = vpop.permute.xlu0 %1511
        %1513 = vrot.lane.b32.xlu0 %v854, 32
        %v1514 = vpop.permute.xlu0 %1513
        %1515 = vrot.lane.b32.xlu0 %v856, 32
        %v1516 = vpop.permute.xlu0 %1515
        %1517 = vrot.lane.b32.xlu0 %v859, 32
        %v1518 = vpop.permute.xlu0 %1517
        %1519 = vrot.lane.b32.xlu0 %v861, 32
        %v1520 = vpop.permute.xlu0 %1519
        %1521 = vrot.lane.b32.xlu0 %v864, 32
        %v1522 = vpop.permute.xlu0 %1521
        %1523 = vrot.lane.b32.xlu0 %v866, 32
        %v1524 = vpop.permute.xlu0 %1523
        %1525 = vrot.lane.b32.xlu0 %v1165, 32
        %v1526 = vpop.permute.xlu0 %1525
        %1527 = vrot.lane.b32.xlu0 %v1167, 32
        %v1528 = vpop.permute.xlu0 %1527
        %1529 = vrot.lane.b32.xlu0 %v1466, 32
        %v1530 = vpop.permute.xlu0 %1529
        %1531 = vrot.lane.b32.xlu0 %v1468, 32
        %v1532 = vpop.permute.xlu0 %1531
        %v1565 = vsel %vm386, %v507, %v691
        %v1566 = vsel %vm386, %v508, %v693
        %v1567 = vsel %vm386, %v510, %v695
        %v1568 = vsel %vm386, %v511, %v697
        %v1569 = vsel %vm386, %v513, %v699
        %v1570 = vsel %vm386, %v514, %v701
        %v1571 = vsel %vm386, %v516, %v703
        %v1572 = vsel %vm386, %v517, %v705
        %v1573 = vsel %vm386, %v519, %v707
        %v1574 = vsel %vm386, %v520, %v709
        %v1575 = vsel %vm386, %v522, %v711
        %v1576 = vsel %vm386, %v523, %v713
        %v1577 = vsel %vm386, %v525, %v715
        %v1578 = vsel %vm386, %v526, %v717
        %v1579 = vsel %vm386, %v528, %v719
        %v1580 = vsel %vm386, %v529, %v721
        %v1581 = vsel %vm386, %v531, %v723
        %v1582 = vsel %vm386, %v532, %v725
        %v1583 = vsel %vm386, %v534, %v727
        %v1584 = vsel %vm386, %v535, %v729
        %v1585 = vsel %vm386, %v537, %v731
        %v1586 = vsel %vm386, %v538, %v733
        %v1587 = vsel %vm386, %v540, %v735
        %v1588 = vsel %vm386, %v541, %v737
        %v1589 = vsel %vm386, %v543, %v739
        %v1590 = vsel %vm386, %v544, %v741
        %v1591 = vsel %vm386, %v546, %v743
        %v1592 = vsel %vm386, %v547, %v745
        %v1593 = vsel %vm386, %v549, %v747
        %v1594 = vsel %vm386, %v550, %v749
        %v1595 = vsel %vm386, %v552, %v751
        %v1596 = vsel %vm386, %v553, %v753
        %vm1597 = vcmask 64512
        %v1598 = vsel %vm1597, %v1565, %v868
        %v1599 = vsel %vm1597, %v1566, %v870
        %v1600 = vsel %vm1597, %v1567, %v872
        %v1601 = vsel %vm1597, %v1568, %v874
        %v1602 = vsel %vm1597, %v1569, %v876
        %v1603 = vsel %vm1597, %v1570, %v878
        %v1604 = vsel %vm1597, %v1571, %v880
        %v1605 = vsel %vm1597, %v1572, %v882
        %v1606 = vsel %vm1597, %v1573, %v884
        %v1607 = vsel %vm1597, %v1574, %v886
        %v1608 = vsel %vm1597, %v1575, %v888
        %v1609 = vsel %vm1597, %v1576, %v890
        %v1610 = vsel %vm1597, %v1577, %v892
        %v1611 = vsel %vm1597, %v1578, %v894
        %v1612 = vsel %vm1597, %v1579, %v896
        %v1613 = vsel %vm1597, %v1580, %v898
        %v1614 = vsel %vm1597, %v1581, %v900
        %v1615 = vsel %vm1597, %v1582, %v902
        %v1616 = vsel %vm1597, %v1583, %v904
        %v1617 = vsel %vm1597, %v1584, %v906
        %v1618 = vsel %vm1597, %v1585, %v908
        %v1619 = vsel %vm1597, %v1586, %v910
        %v1620 = vsel %vm1597, %v1587, %v912
        %v1621 = vsel %vm1597, %v1588, %v914
        %v1622 = vsel %vm1597, %v1589, %v916
        %v1623 = vsel %vm1597, %v1590, %v918
        %v1624 = vsel %vm1597, %v1591, %v920
        %v1625 = vsel %vm1597, %v1592, %v922
        %v1626 = vsel %vm1597, %v1593, %v924
        %v1627 = vsel %vm1597, %v1594, %v926
        %v1628 = vsel %vm1597, %v1595, %v928
        %v1629 = vsel %vm1597, %v1596, %v930
        %vm1630 = vcmask 97280
        %v1631 = vsel %vm1630, %v1598, %v966
        %v1632 = vsel %vm1630, %v1599, %v968
        %v1633 = vsel %vm1630, %v1600, %v970
        %v1634 = vsel %vm1630, %v1601, %v972
        %v1635 = vsel %vm1630, %v1602, %v974
        %v1636 = vsel %vm1630, %v1603, %v976
        %v1637 = vsel %vm1630, %v1604, %v978
        %v1638 = vsel %vm1630, %v1605, %v980
        %v1639 = vsel %vm1630, %v1606, %v982
        %v1640 = vsel %vm1630, %v1607, %v984
        %v1641 = vsel %vm1630, %v1608, %v986
        %v1642 = vsel %vm1630, %v1609, %v988
        %v1643 = vsel %vm1630, %v1610, %v990
        %v1644 = vsel %vm1630, %v1611, %v992
        %v1645 = vsel %vm1630, %v1612, %v994
        %v1646 = vsel %vm1630, %v1613, %v996
        %v1647 = vsel %vm1630, %v1614, %v998
        %v1648 = vsel %vm1630, %v1615, %v1000
        %v1649 = vsel %vm1630, %v1616, %v1002
        %v1650 = vsel %vm1630, %v1617, %v1004
        %v1651 = vsel %vm1630, %v1618, %v1006
        %v1652 = vsel %vm1630, %v1619, %v1008
        %v1653 = vsel %vm1630, %v1620, %v1010
        %v1654 = vsel %vm1630, %v1621, %v1012
        %v1655 = vsel %vm1630, %v1622, %v1014
        %v1656 = vsel %vm1630, %v1623, %v1016
        %v1657 = vsel %vm1630, %v1624, %v1018
        %v1658 = vsel %vm1630, %v1625, %v1020
        %v1659 = vsel %vm1630, %v1626, %v1022
        %v1660 = vsel %vm1630, %v1627, %v1024
        %v1661 = vsel %vm1630, %v1628, %v1026
        %v1662 = vsel %vm1630, %v1629, %v1028
        %vm1663 = vcmask 130048
        %v1664 = vsel %vm1663, %v1631, %v1068
        %v1665 = vsel %vm1663, %v1632, %v1070
        %v1666 = vsel %vm1663, %v1633, %v1072
        %v1667 = vsel %vm1663, %v1634, %v1074
        %v1668 = vsel %vm1663, %v1635, %v1076
        %v1669 = vsel %vm1663, %v1636, %v1078
        %v1670 = vsel %vm1663, %v1637, %v1080
        %v1671 = vsel %vm1663, %v1638, %v1082
        %v1672 = vsel %vm1663, %v1639, %v1084
        %v1673 = vsel %vm1663, %v1640, %v1086
        %v1674 = vsel %vm1663, %v1641, %v1088
        %v1675 = vsel %vm1663, %v1642, %v1090
        %v1676 = vsel %vm1663, %v1643, %v1092
        %v1677 = vsel %vm1663, %v1644, %v1094
        %v1678 = vsel %vm1663, %v1645, %v1096
        %v1679 = vsel %vm1663, %v1646, %v1098
        %v1680 = vsel %vm1663, %v1647, %v1100
        %v1681 = vsel %vm1663, %v1648, %v1102
        %v1682 = vsel %vm1663, %v1649, %v1104
        %v1683 = vsel %vm1663, %v1650, %v1106
        %v1684 = vsel %vm1663, %v1651, %v1108
        %v1685 = vsel %vm1663, %v1652, %v1110
        %v1686 = vsel %vm1663, %v1653, %v1112
        %v1687 = vsel %vm1663, %v1654, %v1114
        %v1688 = vsel %vm1663, %v1655, %v1116
        %v1689 = vsel %vm1663, %v1656, %v1118
        %v1690 = vsel %vm1663, %v1657, %v1120
        %v1691 = vsel %vm1663, %v1658, %v1122
        %v1692 = vsel %vm1663, %v1659, %v1124
        %v1693 = vsel %vm1663, %v1660, %v1126
        %v1694 = vsel %vm1663, %v1661, %v1128
        %v1695 = vsel %vm1663, %v1662, %v1130
        %vm1696 = vcmask 162816
        %v1697 = vsel %vm1696, %v1664, %v1169
        %v1698 = vsel %vm1696, %v1665, %v1171
        %v1699 = vsel %vm1696, %v1666, %v1173
        %v1700 = vsel %vm1696, %v1667, %v1175
        %v1701 = vsel %vm1696, %v1668, %v1177
        %v1702 = vsel %vm1696, %v1669, %v1179
        %v1703 = vsel %vm1696, %v1670, %v1181
        %v1704 = vsel %vm1696, %v1671, %v1183
        %v1705 = vsel %vm1696, %v1672, %v1185
        %v1706 = vsel %vm1696, %v1673, %v1187
        %v1707 = vsel %vm1696, %v1674, %v1189
        %v1708 = vsel %vm1696, %v1675, %v1191
        %v1709 = vsel %vm1696, %v1676, %v1193
        %v1710 = vsel %vm1696, %v1677, %v1195
        %v1711 = vsel %vm1696, %v1678, %v1197
        %v1712 = vsel %vm1696, %v1679, %v1199
        %v1713 = vsel %vm1696, %v1680, %v1201
        %v1714 = vsel %vm1696, %v1681, %v1203
        %v1715 = vsel %vm1696, %v1682, %v1205
        %v1716 = vsel %vm1696, %v1683, %v1207
        %v1717 = vsel %vm1696, %v1684, %v1209
        %v1718 = vsel %vm1696, %v1685, %v1211
        %v1719 = vsel %vm1696, %v1686, %v1213
        %v1720 = vsel %vm1696, %v1687, %v1215
        %v1721 = vsel %vm1696, %v1688, %v1217
        %v1722 = vsel %vm1696, %v1689, %v1219
        %v1723 = vsel %vm1696, %v1690, %v1221
        %v1724 = vsel %vm1696, %v1691, %v1223
        %v1725 = vsel %vm1696, %v1692, %v1225
        %v1726 = vsel %vm1696, %v1693, %v1227
        %v1727 = vsel %vm1696, %v1694, %v1229
        %v1728 = vsel %vm1696, %v1695, %v1231
        %vm1729 = vcmask 195584
        %v1730 = vsel %vm1729, %v1697, %v1267
        %v1731 = vsel %vm1729, %v1698, %v1269
        %v1732 = vsel %vm1729, %v1699, %v1271
        %v1733 = vsel %vm1729, %v1700, %v1273
        %v1734 = vsel %vm1729, %v1701, %v1275
        %v1735 = vsel %vm1729, %v1702, %v1277
        %v1736 = vsel %vm1729, %v1703, %v1279
        %v1737 = vsel %vm1729, %v1704, %v1281
        %v1738 = vsel %vm1729, %v1705, %v1283
        %v1739 = vsel %vm1729, %v1706, %v1285
        %v1740 = vsel %vm1729, %v1707, %v1287
        %v1741 = vsel %vm1729, %v1708, %v1289
        %v1742 = vsel %vm1729, %v1709, %v1291
        %v1743 = vsel %vm1729, %v1710, %v1293
        %v1744 = vsel %vm1729, %v1711, %v1295
        %v1745 = vsel %vm1729, %v1712, %v1297
        %v1746 = vsel %vm1729, %v1713, %v1299
        %v1747 = vsel %vm1729, %v1714, %v1301
        %v1748 = vsel %vm1729, %v1715, %v1303
        %v1749 = vsel %vm1729, %v1716, %v1305
        %v1750 = vsel %vm1729, %v1717, %v1307
        %v1751 = vsel %vm1729, %v1718, %v1309
        %v1752 = vsel %vm1729, %v1719, %v1311
        %v1753 = vsel %vm1729, %v1720, %v1313
        %v1754 = vsel %vm1729, %v1721, %v1315
        %v1755 = vsel %vm1729, %v1722, %v1317
        %v1756 = vsel %vm1729, %v1723, %v1319
        %v1757 = vsel %vm1729, %v1724, %v1321
        %v1758 = vsel %vm1729, %v1725, %v1323
        %v1759 = vsel %vm1729, %v1726, %v1325
        %v1760 = vsel %vm1729, %v1727, %v1327
        %v1761 = vsel %vm1729, %v1728, %v1329
        %vm1762 = vcmask 228352
        %v1763 = vsel %vm1762, %v1730, %v1369
        %v1764 = vsel %vm1762, %v1731, %v1371
        %v1765 = vsel %vm1762, %v1732, %v1373
        %v1766 = vsel %vm1762, %v1733, %v1375
        %v1767 = vsel %vm1762, %v1734, %v1377
        %v1768 = vsel %vm1762, %v1735, %v1379
        %v1769 = vsel %vm1762, %v1736, %v1381
        %v1770 = vsel %vm1762, %v1737, %v1383
        %v1771 = vsel %vm1762, %v1738, %v1385
        %v1772 = vsel %vm1762, %v1739, %v1387
        %v1773 = vsel %vm1762, %v1740, %v1389
        %v1774 = vsel %vm1762, %v1741, %v1391
        %v1775 = vsel %vm1762, %v1742, %v1393
        %v1776 = vsel %vm1762, %v1743, %v1395
        %v1777 = vsel %vm1762, %v1744, %v1397
        %v1778 = vsel %vm1762, %v1745, %v1399
        %v1779 = vsel %vm1762, %v1746, %v1401
        %v1780 = vsel %vm1762, %v1747, %v1403
        %v1781 = vsel %vm1762, %v1748, %v1405
        %v1782 = vsel %vm1762, %v1749, %v1407
        %v1783 = vsel %vm1762, %v1750, %v1409
        %v1784 = vsel %vm1762, %v1751, %v1411
        %v1785 = vsel %vm1762, %v1752, %v1413
        %v1786 = vsel %vm1762, %v1753, %v1415
        %v1787 = vsel %vm1762, %v1754, %v1417
        %v1788 = vsel %vm1762, %v1755, %v1419
        %v1789 = vsel %vm1762, %v1756, %v1421
        %v1790 = vsel %vm1762, %v1757, %v1423
        %v1791 = vsel %vm1762, %v1758, %v1425
        %v1792 = vsel %vm1762, %v1759, %v1427
        %v1793 = vsel %vm1762, %v1760, %v1429
        %v1794 = vsel %vm1762, %v1761, %v1431
        %vm1795 = vcmask 261120
        %v1796 = vsel %vm1795, %v1763, %v1470
        %v1797 = vsel %vm1795, %v1764, %v1472
        %v1798 = vsel %vm1795, %v1765, %v1474
        %v1799 = vsel %vm1795, %v1766, %v1476
        %v1800 = vsel %vm1795, %v1767, %v1478
        %v1801 = vsel %vm1795, %v1768, %v1480
        %v1802 = vsel %vm1795, %v1769, %v1482
        %v1803 = vsel %vm1795, %v1770, %v1484
        %v1804 = vsel %vm1795, %v1771, %v1486
        %v1805 = vsel %vm1795, %v1772, %v1488
        %v1806 = vsel %vm1795, %v1773, %v1490
        %v1807 = vsel %vm1795, %v1774, %v1492
        %v1808 = vsel %vm1795, %v1775, %v1494
        %v1809 = vsel %vm1795, %v1776, %v1496
        %v1810 = vsel %vm1795, %v1777, %v1498
        %v1811 = vsel %vm1795, %v1778, %v1500
        %v1812 = vsel %vm1795, %v1779, %v1502
        %v1813 = vsel %vm1795, %v1780, %v1504
        %v1814 = vsel %vm1795, %v1781, %v1506
        %v1815 = vsel %vm1795, %v1782, %v1508
        %v1816 = vsel %vm1795, %v1783, %v1510
        %v1817 = vsel %vm1795, %v1784, %v1512
        %v1818 = vsel %vm1795, %v1785, %v1514
        %v1819 = vsel %vm1795, %v1786, %v1516
        %v1820 = vsel %vm1795, %v1787, %v1518
        %v1821 = vsel %vm1795, %v1788, %v1520
        %v1822 = vsel %vm1795, %v1789, %v1522
        %v1823 = vsel %vm1795, %v1790, %v1524
        %v1824 = vsel %vm1795, %v1791, %v1526
        %v1825 = vsel %vm1795, %v1792, %v1528
        %v1826 = vsel %vm1795, %v1793, %v1530
        %v1827 = vsel %vm1795, %v1794, %v1532
        %v1828 = vld [vmem:[%s1] sm:$0xff]
        %v1829 = vld [vmem:[%s1 + $0x8] sm:$0xff]
        %v1830 = vld [vmem:[%s1 + $0x10] sm:$0xff]
        %v1831 = vld [vmem:[%s1 + $0x18] sm:$0xff]
        %v1832 = vld [vmem:[%s1 + $0x20] sm:$0xf]
        %v1833 = vld [vmem:[#allocation5] sm:$0x1]
        %v1835 = vlaneseq
        %v1836 = vshrl.u32 %v1835, 7
        %v1837 = vsub.s32 0, %v1836
        %v1838 = vrot.slane %v1833, %v1837
        %vm1840 = vcmask 293888
        %v1842 = vsel %vm1840, %v1796, 0
        %v1845 = vsel %vm1840, %v1797, 0
        %v1848 = vsel %vm1840, %v1798, 0
        %v1851 = vsel %vm1840, %v1799, 0
        %v1854 = vsel %vm1840, %v1800, 0
        %v1857 = vsel %vm1840, %v1801, 0
        %v1860 = vsel %vm1840, %v1802, 0
        %v1863 = vsel %vm1840, %v1803, 0
        %v1866 = vsel %vm1840, %v1804, 0
        %v1869 = vsel %vm1840, %v1805, 0
        %v1872 = vsel %vm1840, %v1806, 0
        %v1875 = vsel %vm1840, %v1807, 0
        %v1878 = vsel %vm1840, %v1808, 0
        %v1881 = vsel %vm1840, %v1809, 0
        %v1884 = vsel %vm1840, %v1810, 0
        %v1887 = vsel %vm1840, %v1811, 0
        %v1890 = vsel %vm1840, %v1812, 0
        %v1893 = vsel %vm1840, %v1813, 0
        %v1896 = vsel %vm1840, %v1814, 0
        %v1899 = vsel %vm1840, %v1815, 0
        %v1902 = vsel %vm1840, %v1816, 0
        %v1905 = vsel %vm1840, %v1817, 0
        %v1908 = vsel %vm1840, %v1818, 0
        %v1911 = vsel %vm1840, %v1819, 0
        %v1914 = vsel %vm1840, %v1820, 0
        %v1917 = vsel %vm1840, %v1821, 0
        %v1920 = vsel %vm1840, %v1822, 0
        %v1923 = vsel %vm1840, %v1823, 0
        %v1926 = vsel %vm1840, %v1824, 0
        %v1929 = vsel %vm1840, %v1825, 0
        %v1932 = vsel %vm1840, %v1826, 0
        %v1935 = vsel %vm1840, %v1827, 0
        %vm1937 = vcmask 1043456
        %v1939 = vsel %vm1937, %v1832, 0
        %1941 = vmatprep.subr.mxu0 0.0
        %1942 = vmatpush1.msra.mxu0 %v1828
        %1943 = vmatprep.subr.mxu0 0.0
        %1944 = vmatpush1.msra.mxu0 %v1829
        %1945 = vmatprep.subr.mxu0 0.0
        %1946 = vmatpush1.msra.mxu0 %v1830
        %1947 = vmatprep.subr.mxu0 0.0
        %1948 = vmatpush1.msra.mxu0 %v1831
        %1949 = vmatprep.subr.mxu0 0.0
        %1950 = vmatpush1.msra.mxu0 %v1939
        %1951 = vmatprep.subr.mxu0 0.0
        %1952 = vmatpush1.msra.mxu0 0.0
        %1953 = vmatprep.subr.mxu0 0.0
        %1954 = vmatpush1.msra.mxu0 0.0
        %1955 = vmatprep.subr.mxu0 0.0
        %1956 = vmatpush1.msra.mxu0 0.0
        %1957 = vmatprep.subr.mxu0 0.0
        %1958 = vmatpush1.msra.mxu0 0.0
        %1959 = vmatprep.subr.mxu0 0.0
        %1960 = vmatpush1.msra.mxu0 0.0
        %1961 = vmatprep.subr.mxu0 0.0
        %1962 = vmatpush1.msra.mxu0 0.0
        %1963 = vmatprep.subr.mxu0 0.0
        %1964 = vmatpush1.msra.mxu0 0.0
        %1965 = vmatprep.subr.mxu0 0.0
        %1966 = vmatpush1.msra.mxu0 0.0
        %1967 = vmatprep.subr.mxu0 0.0
        %1968 = vmatpush1.msra.mxu0 0.0
        %1969 = vmatprep.subr.mxu0 0.0
        %1970 = vmatpush1.msra.mxu0 0.0
        %1971 = vmatprep.subr.mxu0 0.0
        %1972 = vmatpush1.msra.mxu0 0.0
        %1973 = vmatprep.subr.mxu0 0.0
        %1974 = vmatpush1.msra.mxu0 0.0
        %1975 = vmatprep.subr.mxu0 0.0
        %1976 = vmatpush1.msra.mxu0 0.0
        %1977 = vmatprep.subr.mxu0 0.0
        %1978 = vmatpush1.msra.mxu0 0.0
        %1979 = vmatprep.subr.mxu0 0.0
        %1980 = vmatpush1.msra.mxu0 0.0
        %1981 = vmatprep.subr.mxu0 0.0
        %1982 = vmatpush1.msra.mxu0 0.0
        %1983 = vmatprep.subr.mxu0 0.0
        %1984 = vmatpush1.msra.mxu0 0.0
        %1985 = vmatprep.subr.mxu0 0.0
        %1986 = vmatpush1.msra.mxu0 0.0
        %1987 = vmatprep.subr.mxu0 0.0
        %1988 = vmatpush1.msra.mxu0 0.0
        %1989 = vmatprep.subr.mxu0 0.0
        %1990 = vmatpush1.msra.mxu0 0.0
        %1991 = vmatprep.subr.mxu0 0.0
        %1992 = vmatpush1.msra.mxu0 0.0
        %1993 = vmatprep.subr.mxu0 0.0
        %1994 = vmatpush1.msra.mxu0 0.0
        %1995 = vmatprep.subr.mxu0 0.0
        %1996 = vmatpush1.msra.mxu0 0.0
        %1997 = vmatprep.subr.mxu0 0.0
        %1998 = vmatpush1.msra.mxu0 0.0
        %1999 = vmatprep.subr.mxu0 0.0
        %2000 = vmatpush1.msra.mxu0 0.0
        %2001 = vmatprep.subr.mxu0 0.0
        %2002 = vmatpush1.msra.mxu0 0.0
        %2003 = vmatprep.subr.mxu0 0.0
        %2004 = vmatpush1.msra.mxu0 0.0
        %2005 = vmatprep.mubr.f32.mxu0 0.0
        %2006 = vmatmul.mubr.f32.gmra.mrb[0].mxu0 %v1842
        %v2007 = vpop.f32.mrb[0].mxu0
        %v2008 = vadd.f32 %v1838, %v2007
        %v2009 = vpop.f32.mrb[0].mxu0
        %2010 = vmatprep.mubr.f32.mxu0 0.0
        %2011 = vmatmul.mubr.f32.gmra.mrb[0].mxu0 %v1845
        %v2012 = vpop.f32.mrb[0].mxu0
        %v2013 = vadd.f32 %v1838, %v2012
        %v2014 = vpop.f32.mrb[0].mxu0
        %2015 = vmatprep.mubr.f32.mxu0 0.0
        %2016 = vmatmul.mubr.f32.gmra.mrb[0].mxu0 %v1848
        %v2017 = vpop.f32.mrb[0].mxu0
        %v2018 = vadd.f32 %v1838, %v2017
        %v2019 = vpop.f32.mrb[0].mxu0
        %2020 = vmatprep.mubr.f32.mxu0 0.0
        %2021 = vmatmul.mubr.f32.gmra.mrb[0].mxu0 %v1851
        %v2022 = vpop.f32.mrb[0].mxu0
        %v2023 = vadd.f32 %v1838, %v2022
        %v2024 = vpop.f32.mrb[0].mxu0
        %2025 = vmatprep.mubr.f32.mxu0 0.0
        %2026 = vmatmul.mubr.f32.gmra.mrb[0].mxu0 %v1854
        %v2027 = vpop.f32.mrb[0].mxu0
        %v2028 = vadd.f32 %v1838, %v2027
        %v2029 = vpop.f32.mrb[0].mxu0
        %2030 = vmatprep.mubr.f32.mxu0 0.0
        %2031 = vmatmul.mubr.f32.gmra.mrb[0].mxu0 %v1857
        %v2032 = vpop.f32.mrb[0].mxu0
        %v2033 = vadd.f32 %v1838, %v2032
        %v2034 = vpop.f32.mrb[0].mxu0
        %2035 = vmatprep.mubr.f32.mxu0 0.0
        %2036 = vmatmul.mubr.f32.gmra.mrb[0].mxu0 %v1860
        %v2037 = vpop.f32.mrb[0].mxu0
        %v2038 = vadd.f32 %v1838, %v2037
        %v2039 = vpop.f32.mrb[0].mxu0
        %2040 = vmatprep.mubr.f32.mxu0 0.0
        %2041 = vmatmul.mubr.f32.gmra.mrb[0].mxu0 %v1863
        %v2042 = vpop.f32.mrb[0].mxu0
        %v2043 = vadd.f32 %v1838, %v2042
        %v2044 = vpop.f32.mrb[0].mxu0
        %2045 = vmatprep.mubr.f32.mxu0 0.0
        %2046 = vmatmul.mubr.f32.gmra.mrb[0].mxu0 %v1866
        %v2047 = vpop.f32.mrb[0].mxu0
        %v2048 = vadd.f32 %v1838, %v2047
        %v2049 = vpop.f32.mrb[0].mxu0
        %2050 = vmatprep.mubr.f32.mxu0 0.0
        %2051 = vmatmul.mubr.f32.gmra.mrb[0].mxu0 %v1869
        %v2052 = vpop.f32.mrb[0].mxu0
        %v2053 = vadd.f32 %v1838, %v2052
        %v2054 = vpop.f32.mrb[0].mxu0
        %2055 = vmatprep.mubr.f32.mxu0 0.0
        %2056 = vmatmul.mubr.f32.gmra.mrb[0].mxu0 %v1872
        %v2057 = vpop.f32.mrb[0].mxu0
        %v2058 = vadd.f32 %v1838, %v2057
        %v2059 = vpop.f32.mrb[0].mxu0
        %2060 = vmatprep.mubr.f32.mxu0 0.0
        %2061 = vmatmul.mubr.f32.gmra.mrb[0].mxu0 %v1875
        %v2062 = vpop.f32.mrb[0].mxu0
        %v2063 = vadd.f32 %v1838, %v2062
        %v2064 = vpop.f32.mrb[0].mxu0
        %2065 = vmatprep.mubr.f32.mxu0 0.0
        %2066 = vmatmul.mubr.f32.gmra.mrb[0].mxu0 %v1878
        %v2067 = vpop.f32.mrb[0].mxu0
        %v2068 = vadd.f32 %v1838, %v2067
        %v2069 = vpop.f32.mrb[0].mxu0
        %2070 = vmatprep.mubr.f32.mxu0 0.0
        %2071 = vmatmul.mubr.f32.gmra.mrb[0].mxu0 %v1881
        %v2072 = vpop.f32.mrb[0].mxu0
        %v2073 = vadd.f32 %v1838, %v2072
        %v2074 = vpop.f32.mrb[0].mxu0
        %2075 = vmatprep.mubr.f32.mxu0 0.0
        %2076 = vmatmul.mubr.f32.gmra.mrb[0].mxu0 %v1884
        %v2077 = vpop.f32.mrb[0].mxu0
        %v2078 = vadd.f32 %v1838, %v2077
        %v2079 = vpop.f32.mrb[0].mxu0
        %2080 = vmatprep.mubr.f32.mxu0 0.0
        %2081 = vmatmul.mubr.f32.gmra.mrb[0].mxu0 %v1887
        %v2082 = vpop.f32.mrb[0].mxu0
        %v2083 = vadd.f32 %v1838, %v2082
        %v2084 = vpop.f32.mrb[0].mxu0
        %2085 = vmatprep.mubr.f32.mxu0 0.0
        %2086 = vmatmul.mubr.f32.gmra.mrb[0].mxu0 %v1890
        %v2087 = vpop.f32.mrb[0].mxu0
        %v2088 = vadd.f32 %v1838, %v2087
        %v2089 = vpop.f32.mrb[0].mxu0
        %2090 = vmatprep.mubr.f32.mxu0 0.0
        %2091 = vmatmul.mubr.f32.gmra.mrb[0].mxu0 %v1893
        %v2092 = vpop.f32.mrb[0].mxu0
        %v2093 = vadd.f32 %v1838, %v2092
        %v2094 = vpop.f32.mrb[0].mxu0
        %2095 = vmatprep.mubr.f32.mxu0 0.0
        %2096 = vmatmul.mubr.f32.gmra.mrb[0].mxu0 %v1896
        %v2097 = vpop.f32.mrb[0].mxu0
        %v2098 = vadd.f32 %v1838, %v2097
        %v2099 = vpop.f32.mrb[0].mxu0
        %2100 = vmatprep.mubr.f32.mxu0 0.0
        %2101 = vmatmul.mubr.f32.gmra.mrb[0].mxu0 %v1899
        %v2102 = vpop.f32.mrb[0].mxu0
        %v2103 = vadd.f32 %v1838, %v2102
        %v2104 = vpop.f32.mrb[0].mxu0
        %2105 = vmatprep.mubr.f32.mxu0 0.0
        %2106 = vmatmul.mubr.f32.gmra.mrb[0].mxu0 %v1902
        %v2107 = vpop.f32.mrb[0].mxu0
        %v2108 = vadd.f32 %v1838, %v2107
        %v2109 = vpop.f32.mrb[0].mxu0
        %2110 = vmatprep.mubr.f32.mxu0 0.0
        %2111 = vmatmul.mubr.f32.gmra.mrb[0].mxu0 %v1905
        %v2112 = vpop.f32.mrb[0].mxu0
        %v2113 = vadd.f32 %v1838, %v2112
        %v2114 = vpop.f32.mrb[0].mxu0
        %2115 = vmatprep.mubr.f32.mxu0 0.0
        %2116 = vmatmul.mubr.f32.gmra.mrb[0].mxu0 %v1908
        %v2117 = vpop.f32.mrb[0].mxu0
        %v2118 = vadd.f32 %v1838, %v2117
        %v2119 = vpop.f32.mrb[0].mxu0
        %2120 = vmatprep.mubr.f32.mxu0 0.0
        %2121 = vmatmul.mubr.f32.gmra.mrb[0].mxu0 %v1911
        %v2122 = vpop.f32.mrb[0].mxu0
        %v2123 = vadd.f32 %v1838, %v2122
        %v2124 = vpop.f32.mrb[0].mxu0
        %2125 = vmatprep.mubr.f32.mxu0 0.0
        %2126 = vmatmul.mubr.f32.gmra.mrb[0].mxu0 %v1914
        %v2127 = vpop.f32.mrb[0].mxu0
        %v2128 = vadd.f32 %v1838, %v2127
        %v2129 = vpop.f32.mrb[0].mxu0
        %2130 = vmatprep.mubr.f32.mxu0 0.0
        %2131 = vmatmul.mubr.f32.gmra.mrb[0].mxu0 %v1917
        %v2132 = vpop.f32.mrb[0].mxu0
        %v2133 = vadd.f32 %v1838, %v2132
        %v2134 = vpop.f32.mrb[0].mxu0
        %2135 = vmatprep.mubr.f32.mxu0 0.0
        %2136 = vmatmul.mubr.f32.gmra.mrb[0].mxu0 %v1920
        %v2137 = vpop.f32.mrb[0].mxu0
        %v2138 = vadd.f32 %v1838, %v2137
        %v2139 = vpop.f32.mrb[0].mxu0
        %2140 = vmatprep.mubr.f32.mxu0 0.0
        %2141 = vmatmul.mubr.f32.gmra.mrb[0].mxu0 %v1923
        %v2142 = vpop.f32.mrb[0].mxu0
        %v2143 = vadd.f32 %v1838, %v2142
        %v2144 = vpop.f32.mrb[0].mxu0
        %2145 = vmatprep.mubr.f32.mxu0 0.0
        %2146 = vmatmul.mubr.f32.gmra.mrb[0].mxu0 %v1926
        %v2147 = vpop.f32.mrb[0].mxu0
        %v2148 = vadd.f32 %v1838, %v2147
        %v2149 = vpop.f32.mrb[0].mxu0
        %2150 = vmatprep.mubr.f32.mxu0 0.0
        %2151 = vmatmul.mubr.f32.gmra.mrb[0].mxu0 %v1929
        %v2152 = vpop.f32.mrb[0].mxu0
        %v2153 = vadd.f32 %v1838, %v2152
        %v2154 = vpop.f32.mrb[0].mxu0
        %2155 = vmatprep.mubr.f32.mxu0 0.0
        %2156 = vmatmul.mubr.f32.gmra.mrb[0].mxu0 %v1932
        %v2157 = vpop.f32.mrb[0].mxu0
        %v2158 = vadd.f32 %v1838, %v2157
        %v2159 = vpop.f32.mrb[0].mxu0
        %2160 = vmatprep.mubr.f32.mxu0 0.0
        %2161 = vmatmul.mubr.f32.gmra.mrb[0].mxu0 %v1935
        %v2162 = vpop.f32.mrb[0].mxu0
        %v2163 = vadd.f32 %v1838, %v2162
        %v2164 = vpop.f32.mrb[0].mxu0
        %2165 = vdwg.mxu0
        %2166 = vst.msk [vmem:[#allocation3] sm:$0xff] %vm1795, 0.0
        %2167 = vst.msk [vmem:[#allocation3 + $0x8] sm:$0xff] %vm1795, 0.0
        %vm2168 = vcmask 254976
        %2169 = vst.msk [vmem:[#allocation3 + $0x10] sm:$0x3] %vm2168, 0.0
        %2170 = vst.msk [vmem:[#allocation3 + $0x18] sm:$0xff] %vm1795, 0.0
        %2171 = vst.msk [vmem:[#allocation3 + $0x20] sm:$0xff] %vm1795, 0.0
        %2172 = vst.msk [vmem:[#allocation3 + $0x28] sm:$0x3] %vm2168, 0.0
        %2173 = vst.msk [vmem:[#allocation3 + $0x30] sm:$0xff] %vm1795, 0.0
        %2174 = vst.msk [vmem:[#allocation3 + $0x38] sm:$0xff] %vm1795, 0.0
        %2175 = vst.msk [vmem:[#allocation3 + $0x40] sm:$0x3] %vm2168, 0.0
        %2176 = vst.msk [vmem:[#allocation3 + $0x48] sm:$0xff] %vm1795, 0.0
        %2177 = vst.msk [vmem:[#allocation3 + $0x50] sm:$0xff] %vm1795, 0.0
        %2178 = vst.msk [vmem:[#allocation3 + $0x58] sm:$0x3] %vm2168, 0.0
        %2179 = vst.msk [vmem:[#allocation3 + $0x60] sm:$0xff] %vm1795, 0.0
        %2180 = vst.msk [vmem:[#allocation3 + $0x68] sm:$0xff] %vm1795, 0.0
        %2181 = vst.msk [vmem:[#allocation3 + $0x70] sm:$0x3] %vm2168, 0.0
        %2182 = vst.msk [vmem:[#allocation3 + $0x78] sm:$0xff] %vm1795, 0.0
        %2183 = vst.msk [vmem:[#allocation3 + $0x80] sm:$0xff] %vm1795, 0.0
        %2184 = vst.msk [vmem:[#allocation3 + $0x88] sm:$0x3] %vm2168, 0.0
        %2185 = vst.msk [vmem:[#allocation3 + $0x90] sm:$0xff] %vm1795, 0.0
        %2186 = vst.msk [vmem:[#allocation3 + $0x98] sm:$0xff] %vm1795, 0.0
        %2187 = vst.msk [vmem:[#allocation3 + $0xa0] sm:$0x3] %vm2168, 0.0
        %2188 = vst.msk [vmem:[#allocation3 + $0xa8] sm:$0xff] %vm1795, 0.0
        %2189 = vst.msk [vmem:[#allocation3 + $0xb0] sm:$0xff] %vm1795, 0.0
        %2190 = vst.msk [vmem:[#allocation3 + $0xb8] sm:$0x3] %vm2168, 0.0
        %2191 = vst.msk [vmem:[#allocation3 + $0xc0] sm:$0xff] %vm1795, 0.0
        %2192 = vst.msk [vmem:[#allocation3 + $0xc8] sm:$0xff] %vm1795, 0.0
        %2193 = vst.msk [vmem:[#allocation3 + $0xd0] sm:$0x3] %vm2168, 0.0
        %2194 = vst.msk [vmem:[#allocation3 + $0xd8] sm:$0xff] %vm1795, 0.0
        %2195 = vst.msk [vmem:[#allocation3 + $0xe0] sm:$0xff] %vm1795, 0.0
        %2196 = vst.msk [vmem:[#allocation3 + $0xe8] sm:$0x3] %vm2168, 0.0
        %2197 = vst.msk [vmem:[#allocation3 + $0xf0] sm:$0xff] %vm1795, 0.0
        %2198 = vst.msk [vmem:[#allocation3 + $0xf8] sm:$0xff] %vm1795, 0.0
        %2199 = vst.msk [vmem:[#allocation3 + $0x100] sm:$0x3] %vm2168, 0.0
        %2200 = vst.msk [vmem:[#allocation3 + $0x108] sm:$0xff] %vm1795, 0.0
        %2201 = vst.msk [vmem:[#allocation3 + $0x110] sm:$0xff] %vm1795, 0.0
        %2202 = vst.msk [vmem:[#allocation3 + $0x118] sm:$0x3] %vm2168, 0.0
        %2203 = vst.msk [vmem:[#allocation3 + $0x120] sm:$0xff] %vm1795, 0.0
        %2204 = vst.msk [vmem:[#allocation3 + $0x128] sm:$0xff] %vm1795, 0.0
        %2205 = vst.msk [vmem:[#allocation3 + $0x130] sm:$0x3] %vm2168, 0.0
        %2206 = vst.msk [vmem:[#allocation3 + $0x138] sm:$0xff] %vm1795, 0.0
        %2207 = vst.msk [vmem:[#allocation3 + $0x140] sm:$0xff] %vm1795, 0.0
        %2208 = vst.msk [vmem:[#allocation3 + $0x148] sm:$0x3] %vm2168, 0.0
        %2209 = vst.msk [vmem:[#allocation3 + $0x150] sm:$0xff] %vm1795, 0.0
        %2210 = vst.msk [vmem:[#allocation3 + $0x158] sm:$0xff] %vm1795, 0.0
        %2211 = vst.msk [vmem:[#allocation3 + $0x160] sm:$0x3] %vm2168, 0.0
        %2212 = vst.msk [vmem:[#allocation3 + $0x168] sm:$0xff] %vm1795, 0.0
        %2213 = vst.msk [vmem:[#allocation3 + $0x170] sm:$0xff] %vm1795, 0.0
        %2214 = vst.msk [vmem:[#allocation3 + $0x178] sm:$0x3] %vm2168, 0.0
        %2215 = vst.msk [vmem:[#allocation3 + $0x180] sm:$0xff] %vm1795, 0.0
        %2216 = vst.msk [vmem:[#allocation3 + $0x188] sm:$0xff] %vm1795, 0.0
        %2217 = vst.msk [vmem:[#allocation3 + $0x190] sm:$0x3] %vm2168, 0.0
        %2218 = vst.msk [vmem:[#allocation3 + $0x198] sm:$0xff] %vm1795, 0.0
        %2219 = vst.msk [vmem:[#allocation3 + $0x1a0] sm:$0xff] %vm1795, 0.0
        %2220 = vst.msk [vmem:[#allocation3 + $0x1a8] sm:$0x3] %vm2168, 0.0
        %s2221 = scalar_lea.vmem [#allocation3], 24
        %2222 = vst.msk [vmem:[%s2221 + $0x1] sm:$0xff] %vm1795, %v2008
        %2223 = vst.msk [vmem:[%s2221 + $0x9] sm:$0xff] %vm1795, %v2013
        %2224 = vst.msk [vmem:[%s2221 + $0x19] sm:$0xff] %vm1795, %v2018
        %2225 = vst.msk [vmem:[%s2221 + $0x21] sm:$0xff] %vm1795, %v2023
        %2226 = vst.msk [vmem:[%s2221 + $0x31] sm:$0xff] %vm1795, %v2028
        %2227 = vst.msk [vmem:[%s2221 + $0x39] sm:$0xff] %vm1795, %v2033
        %2228 = vst.msk [vmem:[%s2221 + $0x49] sm:$0xff] %vm1795, %v2038
        %2229 = vst.msk [vmem:[%s2221 + $0x51] sm:$0xff] %vm1795, %v2043
        %2230 = vst.msk [vmem:[%s2221 + $0x61] sm:$0xff] %vm1795, %v2048
        %2231 = vst.msk [vmem:[%s2221 + $0x69] sm:$0xff] %vm1795, %v2053
        %2232 = vst.msk [vmem:[%s2221 + $0x79] sm:$0xff] %vm1795, %v2058
        %2233 = vst.msk [vmem:[%s2221 + $0x81] sm:$0xff] %vm1795, %v2063
        %2234 = vst.msk [vmem:[%s2221 + $0x91] sm:$0xff] %vm1795, %v2068
        %2235 = vst.msk [vmem:[%s2221 + $0x99] sm:$0xff] %vm1795, %v2073
        %2236 = vst.msk [vmem:[%s2221 + $0xa9] sm:$0xff] %vm1795, %v2078
        %2237 = vst.msk [vmem:[%s2221 + $0xb1] sm:$0xff] %vm1795, %v2083
        %2238 = vst.msk [vmem:[%s2221 + $0xc1] sm:$0xff] %vm1795, %v2088
        %2239 = vst.msk [vmem:[%s2221 + $0xc9] sm:$0xff] %vm1795, %v2093
        %2240 = vst.msk [vmem:[%s2221 + $0xd9] sm:$0xff] %vm1795, %v2098
        %2241 = vst.msk [vmem:[%s2221 + $0xe1] sm:$0xff] %vm1795, %v2103
        %2242 = vst.msk [vmem:[%s2221 + $0xf1] sm:$0xff] %vm1795, %v2108
        %2243 = vst.msk [vmem:[%s2221 + $0xf9] sm:$0xff] %vm1795, %v2113
        %2244 = vst.msk [vmem:[%s2221 + $0x109] sm:$0xff] %vm1795, %v2118
        %2245 = vst.msk [vmem:[%s2221 + $0x111] sm:$0xff] %vm1795, %v2123
        %2246 = vst.msk [vmem:[%s2221 + $0x121] sm:$0xff] %vm1795, %v2128
        %2247 = vst.msk [vmem:[%s2221 + $0x129] sm:$0xff] %vm1795, %v2133
        %2248 = vst.msk [vmem:[%s2221 + $0x139] sm:$0xff] %vm1795, %v2138
        %2249 = vst.msk [vmem:[%s2221 + $0x141] sm:$0xff] %vm1795, %v2143
        %2250 = vst.msk [vmem:[%s2221 + $0x151] sm:$0xff] %vm1795, %v2148
        %2251 = vst.msk [vmem:[%s2221 + $0x159] sm:$0xff] %vm1795, %v2153
        %2252 = vst.msk [vmem:[%s2221 + $0x169] sm:$0xff] %vm1795, %v2158
        %2253 = vst.msk [vmem:[%s2221 + $0x171] sm:$0xff] %vm1795, %v2163
        %v2254 = vld [vmem:[#allocation3] sm:$0xff]
        %v2255 = vld [vmem:[#allocation3 + $0x8] sm:$0xff]
        %v2256 = vld [vmem:[#allocation3 + $0x10] sm:$0x3]
        %v2257 = vld [vmem:[#allocation3 + $0x18] sm:$0xff]
        %v2258 = vld [vmem:[#allocation3 + $0x20] sm:$0xff]
        %v2259 = vld [vmem:[#allocation3 + $0x28] sm:$0x3]
        %v2260 = vld [vmem:[#allocation3 + $0x30] sm:$0xff]
        %v2261 = vld [vmem:[#allocation3 + $0x38] sm:$0xff]
        %v2262 = vld [vmem:[#allocation3 + $0x40] sm:$0x3]
        %v2263 = vld [vmem:[#allocation3 + $0x48] sm:$0xff]
        %v2264 = vld [vmem:[#allocation3 + $0x50] sm:$0xff]
        %v2265 = vld [vmem:[#allocation3 + $0x58] sm:$0x3]
        %v2266 = vld [vmem:[#allocation3 + $0x60] sm:$0xff]
        %v2267 = vld [vmem:[#allocation3 + $0x68] sm:$0xff]
        %v2268 = vld [vmem:[#allocation3 + $0x70] sm:$0x3]
        %v2269 = vld [vmem:[#allocation3 + $0x78] sm:$0xff]
        %v2270 = vld [vmem:[#allocation3 + $0x80] sm:$0xff]
        %v2271 = vld [vmem:[#allocation3 + $0x88] sm:$0x3]
        %v2272 = vld [vmem:[#allocation3 + $0x90] sm:$0xff]
        %v2273 = vld [vmem:[#allocation3 + $0x98] sm:$0xff]
        %v2274 = vld [vmem:[#allocation3 + $0xa0] sm:$0x3]
        %v2275 = vld [vmem:[#allocation3 + $0xa8] sm:$0xff]
        %v2276 = vld [vmem:[#allocation3 + $0xb0] sm:$0xff]
        %v2277 = vld [vmem:[#allocation3 + $0xb8] sm:$0x3]
        %v2278 = vld [vmem:[#allocation3 + $0xc0] sm:$0xff]
        %v2279 = vld [vmem:[#allocation3 + $0xc8] sm:$0xff]
        %v2280 = vld [vmem:[#allocation3 + $0xd0] sm:$0x3]
        %v2281 = vld [vmem:[#allocation3 + $0xd8] sm:$0xff]
        %v2282 = vld [vmem:[#allocation3 + $0xe0] sm:$0xff]
        %v2283 = vld [vmem:[#allocation3 + $0xe8] sm:$0x3]
        %v2284 = vld [vmem:[#allocation3 + $0xf0] sm:$0xff]
        %v2285 = vld [vmem:[#allocation3 + $0xf8] sm:$0xff]
        %v2286 = vld [vmem:[#allocation3 + $0x100] sm:$0x3]
        %v2287 = vld [vmem:[#allocation3 + $0x108] sm:$0xff]
        %v2288 = vld [vmem:[#allocation3 + $0x110] sm:$0xff]
        %v2289 = vld [vmem:[#allocation3 + $0x118] sm:$0x3]
        %v2290 = vld [vmem:[#allocation3 + $0x120] sm:$0xff]
        %v2291 = vld [vmem:[#allocation3 + $0x128] sm:$0xff]
        %v2292 = vld [vmem:[#allocation3 + $0x130] sm:$0x3]
        %v2293 = vld [vmem:[#allocation3 + $0x138] sm:$0xff]
        %v2294 = vld [vmem:[#allocation3 + $0x140] sm:$0xff]
        %v2295 = vld [vmem:[#allocation3 + $0x148] sm:$0x3]
        %v2296 = vld [vmem:[#allocation3 + $0x150] sm:$0xff]
        %v2297 = vld [vmem:[#allocation3 + $0x158] sm:$0xff]
        %v2298 = vld [vmem:[#allocation3 + $0x160] sm:$0x3]
        %v2299 = vld [vmem:[#allocation3 + $0x168] sm:$0xff]
        %v2300 = vld [vmem:[#allocation3 + $0x170] sm:$0xff]
        %v2301 = vld [vmem:[#allocation3 + $0x178] sm:$0x3]
        %v2302 = vld [vmem:[#allocation3 + $0x180] sm:$0xff]
        %v2303 = vld [vmem:[#allocation3 + $0x188] sm:$0xff]
        %v2304 = vld [vmem:[#allocation3 + $0x190] sm:$0x3]
        %v2305 = vld [vmem:[#allocation3 + $0x198] sm:$0xff]
        %v2306 = vld [vmem:[#allocation3 + $0x1a0] sm:$0xff]
        %v2307 = vld [vmem:[#allocation3 + $0x1a8] sm:$0x3]
        %v2308 = vmax.f32 %v2254, 0.0
        %v2309 = vmax.f32 %v2255, 0.0
        %v2310 = vmax.f32 %v2256, 0.0
        %v2311 = vmax.f32 %v2257, 0.0
        %v2312 = vmax.f32 %v2258, 0.0
        %v2313 = vmax.f32 %v2259, 0.0
        %v2314 = vmax.f32 %v2260, 0.0
        %v2315 = vmax.f32 %v2261, 0.0
        %v2316 = vmax.f32 %v2262, 0.0
        %v2317 = vmax.f32 %v2263, 0.0
        %v2318 = vmax.f32 %v2264, 0.0
        %v2319 = vmax.f32 %v2265, 0.0
        %v2320 = vmax.f32 %v2266, 0.0
        %v2321 = vmax.f32 %v2267, 0.0
        %v2322 = vmax.f32 %v2268, 0.0
        %v2323 = vmax.f32 %v2269, 0.0
        %v2324 = vmax.f32 %v2270, 0.0
        %v2325 = vmax.f32 %v2271, 0.0
        %v2326 = vmax.f32 %v2272, 0.0
        %v2327 = vmax.f32 %v2273, 0.0
        %v2328 = vmax.f32 %v2274, 0.0
        %v2329 = vmax.f32 %v2275, 0.0
        %v2330 = vmax.f32 %v2276, 0.0
        %v2331 = vmax.f32 %v2277, 0.0
        %v2332 = vmax.f32 %v2278, 0.0
        %v2333 = vmax.f32 %v2279, 0.0
        %v2334 = vmax.f32 %v2280, 0.0
        %v2335 = vmax.f32 %v2281, 0.0
        %v2336 = vmax.f32 %v2282, 0.0
        %v2337 = vmax.f32 %v2283, 0.0
        %v2338 = vmax.f32 %v2284, 0.0
        %v2339 = vmax.f32 %v2285, 0.0
        %v2340 = vmax.f32 %v2286, 0.0
        %v2341 = vmax.f32 %v2287, 0.0
        %v2342 = vmax.f32 %v2288, 0.0
        %v2343 = vmax.f32 %v2289, 0.0
        %v2344 = vmax.f32 %v2290, 0.0
        %v2345 = vmax.f32 %v2291, 0.0
        %v2346 = vmax.f32 %v2292, 0.0
        %v2347 = vmax.f32 %v2293, 0.0
        %v2348 = vmax.f32 %v2294, 0.0
        %v2349 = vmax.f32 %v2295, 0.0
        %v2350 = vmax.f32 %v2296, 0.0
        %v2351 = vmax.f32 %v2297, 0.0
        %v2352 = vmax.f32 %v2298, 0.0
        %v2353 = vmax.f32 %v2299, 0.0
        %v2354 = vmax.f32 %v2300, 0.0
        %v2355 = vmax.f32 %v2301, 0.0
        %v2356 = vmax.f32 %v2302, 0.0
        %v2357 = vmax.f32 %v2303, 0.0
        %v2358 = vmax.f32 %v2304, 0.0
        %v2359 = vmax.f32 %v2305, 0.0
        %v2360 = vmax.f32 %v2306, 0.0
        %v2361 = vmax.f32 %v2307, 0.0
        %v2410 = vrot.slane %v2308, 1
        %v2411 = vrot.slane %v2309, 1
        %v2412 = vsel %vm609, %v2410, %v2411
        %v2413 = vrot.slane %v2310, 1
        %v2414 = vsel %vm609, %v2411, %v2413
        %v2415 = vrot.slane %v2311, 1
        %v2416 = vrot.slane %v2312, 1
        %v2417 = vsel %vm609, %v2415, %v2416
        %v2418 = vrot.slane %v2313, 1
        %v2419 = vsel %vm609, %v2416, %v2418
        %v2420 = vrot.slane %v2314, 1
        %v2421 = vrot.slane %v2315, 1
        %v2422 = vsel %vm609, %v2420, %v2421
        %v2423 = vrot.slane %v2316, 1
        %v2424 = vsel %vm609, %v2421, %v2423
        %v2425 = vrot.slane %v2317, 1
        %v2426 = vrot.slane %v2318, 1
        %v2427 = vsel %vm609, %v2425, %v2426
        %v2428 = vrot.slane %v2319, 1
        %v2429 = vsel %vm609, %v2426, %v2428
        %v2430 = vrot.slane %v2320, 1
        %v2431 = vrot.slane %v2321, 1
        %v2432 = vsel %vm609, %v2430, %v2431
        %v2433 = vrot.slane %v2322, 1
        %v2434 = vsel %vm609, %v2431, %v2433
        %v2435 = vrot.slane %v2323, 1
        %v2436 = vrot.slane %v2324, 1
        %v2437 = vsel %vm609, %v2435, %v2436
        %v2438 = vrot.slane %v2325, 1
        %v2439 = vsel %vm609, %v2436, %v2438
        %v2440 = vrot.slane %v2326, 1
        %v2441 = vrot.slane %v2327, 1
        %v2442 = vsel %vm609, %v2440, %v2441
        %v2443 = vrot.slane %v2328, 1
        %v2444 = vsel %vm609, %v2441, %v2443
        %v2445 = vrot.slane %v2329, 1
        %v2446 = vrot.slane %v2330, 1
        %v2447 = vsel %vm609, %v2445, %v2446
        %v2448 = vrot.slane %v2331, 1
        %v2449 = vsel %vm609, %v2446, %v2448
        %v2450 = vrot.slane %v2332, 1
        %v2451 = vrot.slane %v2333, 1
        %v2452 = vsel %vm609, %v2450, %v2451
        %v2453 = vrot.slane %v2334, 1
        %v2454 = vsel %vm609, %v2451, %v2453
        %v2455 = vrot.slane %v2335, 1
        %v2456 = vrot.slane %v2336, 1
        %v2457 = vsel %vm609, %v2455, %v2456
        %v2458 = vrot.slane %v2337, 1
        %v2459 = vsel %vm609, %v2456, %v2458
        %v2460 = vrot.slane %v2338, 1
        %v2461 = vrot.slane %v2339, 1
        %v2462 = vsel %vm609, %v2460, %v2461
        %v2463 = vrot.slane %v2340, 1
        %v2464 = vsel %vm609, %v2461, %v2463
        %v2465 = vrot.slane %v2341, 1
        %v2466 = vrot.slane %v2342, 1
        %v2467 = vsel %vm609, %v2465, %v2466
        %v2468 = vrot.slane %v2343, 1
        %v2469 = vsel %vm609, %v2466, %v2468
        %v2470 = vrot.slane %v2344, 1
        %v2471 = vrot.slane %v2345, 1
        %v2472 = vsel %vm609, %v2470, %v2471
        %v2473 = vrot.slane %v2346, 1
        %v2474 = vsel %vm609, %v2471, %v2473
        %v2475 = vrot.slane %v2347, 1
        %v2476 = vrot.slane %v2348, 1
        %v2477 = vsel %vm609, %v2475, %v2476
        %v2478 = vrot.slane %v2349, 1
        %v2479 = vsel %vm609, %v2476, %v2478
        %v2480 = vrot.slane %v2350, 1
        %v2481 = vrot.slane %v2351, 1
        %v2482 = vsel %vm609, %v2480, %v2481
        %v2483 = vrot.slane %v2352, 1
        %v2484 = vsel %vm609, %v2481, %v2483
        %v2485 = vrot.slane %v2353, 1
        %v2486 = vrot.slane %v2354, 1
        %v2487 = vsel %vm609, %v2485, %v2486
        %v2488 = vrot.slane %v2355, 1
        %v2489 = vsel %vm609, %v2486, %v2488
        %2490 = vrot.lane.b32.xlu0 %v2412, 32
        %v2491 = vpop.permute.xlu0 %2490
        %2492 = vrot.lane.b32.xlu0 %v2414, 32
        %v2493 = vpop.permute.xlu0 %2492
        %2494 = vrot.lane.b32.xlu0 %v2417, 32
        %v2495 = vpop.permute.xlu0 %2494
        %2496 = vrot.lane.b32.xlu0 %v2419, 32
        %v2497 = vpop.permute.xlu0 %2496
        %2498 = vrot.lane.b32.xlu0 %v2422, 32
        %v2499 = vpop.permute.xlu0 %2498
        %2500 = vrot.lane.b32.xlu0 %v2424, 32
        %v2501 = vpop.permute.xlu0 %2500
        %2502 = vrot.lane.b32.xlu0 %v2427, 32
        %v2503 = vpop.permute.xlu0 %2502
        %2504 = vrot.lane.b32.xlu0 %v2429, 32
        %v2505 = vpop.permute.xlu0 %2504
        %2506 = vrot.lane.b32.xlu0 %v2432, 32
        %v2507 = vpop.permute.xlu0 %2506
        %2508 = vrot.lane.b32.xlu0 %v2434, 32
        %v2509 = vpop.permute.xlu0 %2508
        %2510 = vrot.lane.b32.xlu0 %v2437, 32
        %v2511 = vpop.permute.xlu0 %2510
        %2512 = vrot.lane.b32.xlu0 %v2439, 32
        %v2513 = vpop.permute.xlu0 %2512
        %2514 = vrot.lane.b32.xlu0 %v2442, 32
        %v2515 = vpop.permute.xlu0 %2514
        %2516 = vrot.lane.b32.xlu0 %v2444, 32
        %v2517 = vpop.permute.xlu0 %2516
        %2518 = vrot.lane.b32.xlu0 %v2447, 32
        %v2519 = vpop.permute.xlu0 %2518
        %2520 = vrot.lane.b32.xlu0 %v2449, 32
        %v2521 = vpop.permute.xlu0 %2520
        %2522 = vrot.lane.b32.xlu0 %v2452, 32
        %v2523 = vpop.permute.xlu0 %2522
        %2524 = vrot.lane.b32.xlu0 %v2454, 32
        %v2525 = vpop.permute.xlu0 %2524
        %2526 = vrot.lane.b32.xlu0 %v2457, 32
        %v2527 = vpop.permute.xlu0 %2526
        %2528 = vrot.lane.b32.xlu0 %v2459, 32
        %v2529 = vpop.permute.xlu0 %2528
        %2530 = vrot.lane.b32.xlu0 %v2462, 32
        %v2531 = vpop.permute.xlu0 %2530
        %2532 = vrot.lane.b32.xlu0 %v2464, 32
        %v2533 = vpop.permute.xlu0 %2532
        %2534 = vrot.lane.b32.xlu0 %v2467, 32
        %v2535 = vpop.permute.xlu0 %2534
        %2536 = vrot.lane.b32.xlu0 %v2469, 32
        %v2537 = vpop.permute.xlu0 %2536
        %2538 = vrot.lane.b32.xlu0 %v2472, 32
        %v2539 = vpop.permute.xlu0 %2538
        %2540 = vrot.lane.b32.xlu0 %v2474, 32
        %v2541 = vpop.permute.xlu0 %2540
        %2542 = vrot.lane.b32.xlu0 %v2477, 32
        %v2543 = vpop.permute.xlu0 %2542
        %2544 = vrot.lane.b32.xlu0 %v2479, 32
        %v2545 = vpop.permute.xlu0 %2544
        %2546 = vrot.lane.b32.xlu0 %v2482, 32
        %v2547 = vpop.permute.xlu0 %2546
        %2548 = vrot.lane.b32.xlu0 %v2484, 32
        %v2549 = vpop.permute.xlu0 %2548
        %2550 = vrot.lane.b32.xlu0 %v2487, 32
        %v2551 = vpop.permute.xlu0 %2550
        %2552 = vrot.lane.b32.xlu0 %v2489, 32
        %v2553 = vpop.permute.xlu0 %2552
        %v2586 = vrot.slane %v2308, 2
        %v2587 = vrot.slane %v2309, 2
        %v2588 = vsel %vm786, %v2586, %v2587
        %v2589 = vrot.slane %v2310, 2
        %v2590 = vsel %vm786, %v2587, %v2589
        %v2591 = vrot.slane %v2311, 2
        %v2592 = vrot.slane %v2312, 2
        %v2593 = vsel %vm786, %v2591, %v2592
        %v2594 = vrot.slane %v2313, 2
        %v2595 = vsel %vm786, %v2592, %v2594
        %v2596 = vrot.slane %v2314, 2
        %v2597 = vrot.slane %v2315, 2
        %v2598 = vsel %vm786, %v2596, %v2597
        %v2599 = vrot.slane %v2316, 2
        %v2600 = vsel %vm786, %v2597, %v2599
        %v2601 = vrot.slane %v2317, 2
        %v2602 = vrot.slane %v2318, 2
        %v2603 = vsel %vm786, %v2601, %v2602
        %v2604 = vrot.slane %v2319, 2
        %v2605 = vsel %vm786, %v2602, %v2604
        %v2606 = vrot.slane %v2320, 2
        %v2607 = vrot.slane %v2321, 2
        %v2608 = vsel %vm786, %v2606, %v2607
        %v2609 = vrot.slane %v2322, 2
        %v2610 = vsel %vm786, %v2607, %v2609
        %v2611 = vrot.slane %v2323, 2
        %v2612 = vrot.slane %v2324, 2
        %v2613 = vsel %vm786, %v2611, %v2612
        %v2614 = vrot.slane %v2325, 2
        %v2615 = vsel %vm786, %v2612, %v2614
        %v2616 = vrot.slane %v2326, 2
        %v2617 = vrot.slane %v2327, 2
        %v2618 = vsel %vm786, %v2616, %v2617
        %v2619 = vrot.slane %v2328, 2
        %v2620 = vsel %vm786, %v2617, %v2619
        %v2621 = vrot.slane %v2329, 2
        %v2622 = vrot.slane %v2330, 2
        %v2623 = vsel %vm786, %v2621, %v2622
        %v2624 = vrot.slane %v2331, 2
        %v2625 = vsel %vm786, %v2622, %v2624
        %v2626 = vrot.slane %v2332, 2
        %v2627 = vrot.slane %v2333, 2
        %v2628 = vsel %vm786, %v2626, %v2627
        %v2629 = vrot.slane %v2334, 2
        %v2630 = vsel %vm786, %v2627, %v2629
        %v2631 = vrot.slane %v2335, 2
        %v2632 = vrot.slane %v2336, 2
        %v2633 = vsel %vm786, %v2631, %v2632
        %v2634 = vrot.slane %v2337, 2
        %v2635 = vsel %vm786, %v2632, %v2634
        %v2636 = vrot.slane %v2338, 2
        %v2637 = vrot.slane %v2339, 2
        %v2638 = vsel %vm786, %v2636, %v2637
        %v2639 = vrot.slane %v2340, 2
        %v2640 = vsel %vm786, %v2637, %v2639
        %v2641 = vrot.slane %v2341, 2
        %v2642 = vrot.slane %v2342, 2
        %v2643 = vsel %vm786, %v2641, %v2642
        %v2644 = vrot.slane %v2343, 2
        %v2645 = vsel %vm786, %v2642, %v2644
        %v2646 = vrot.slane %v2344, 2
        %v2647 = vrot.slane %v2345, 2
        %v2648 = vsel %vm786, %v2646, %v2647
        %v2649 = vrot.slane %v2346, 2
        %v2650 = vsel %vm786, %v2647, %v2649
        %v2651 = vrot.slane %v2347, 2
        %v2652 = vrot.slane %v2348, 2
        %v2653 = vsel %vm786, %v2651, %v2652
        %v2654 = vrot.slane %v2349, 2
        %v2655 = vsel %vm786, %v2652, %v2654
        %v2656 = vrot.slane %v2350, 2
        %v2657 = vrot.slane %v2351, 2
        %v2658 = vsel %vm786, %v2656, %v2657
        %v2659 = vrot.slane %v2352, 2
        %v2660 = vsel %vm786, %v2657, %v2659
        %v2661 = vrot.slane %v2353, 2
        %v2662 = vrot.slane %v2354, 2
        %v2663 = vsel %vm786, %v2661, %v2662
        %v2664 = vrot.slane %v2355, 2
        %v2665 = vsel %vm786, %v2662, %v2664
        %2666 = vrot.lane.b32.xlu0 %v2588, 64
        %v2667 = vpop.permute.xlu0 %2666
        %2668 = vrot.lane.b32.xlu0 %v2590, 64
        %v2669 = vpop.permute.xlu0 %2668
        %2670 = vrot.lane.b32.xlu0 %v2593, 64
        %v2671 = vpop.permute.xlu0 %2670
        %2672 = vrot.lane.b32.xlu0 %v2595, 64
        %v2673 = vpop.permute.xlu0 %2672
        %2674 = vrot.lane.b32.xlu0 %v2598, 64
        %v2675 = vpop.permute.xlu0 %2674
        %2676 = vrot.lane.b32.xlu0 %v2600, 64
        %v2677 = vpop.permute.xlu0 %2676
        %2678 = vrot.lane.b32.xlu0 %v2603, 64
        %v2679 = vpop.permute.xlu0 %2678
        %2680 = vrot.lane.b32.xlu0 %v2605, 64
        %v2681 = vpop.permute.xlu0 %2680
        %2682 = vrot.lane.b32.xlu0 %v2608, 64
        %v2683 = vpop.permute.xlu0 %2682
        %2684 = vrot.lane.b32.xlu0 %v2610, 64
        %v2685 = vpop.permute.xlu0 %2684
        %2686 = vrot.lane.b32.xlu0 %v2613, 64
        %v2687 = vpop.permute.xlu0 %2686
        %2688 = vrot.lane.b32.xlu0 %v2615, 64
        %v2689 = vpop.permute.xlu0 %2688
        %2690 = vrot.lane.b32.xlu0 %v2618, 64
        %v2691 = vpop.permute.xlu0 %2690
        %2692 = vrot.lane.b32.xlu0 %v2620, 64
        %v2693 = vpop.permute.xlu0 %2692
        %2694 = vrot.lane.b32.xlu0 %v2623, 64
        %v2695 = vpop.permute.xlu0 %2694
        %2696 = vrot.lane.b32.xlu0 %v2625, 64
        %v2697 = vpop.permute.xlu0 %2696
        %2698 = vrot.lane.b32.xlu0 %v2628, 64
        %v2699 = vpop.permute.xlu0 %2698
        %2700 = vrot.lane.b32.xlu0 %v2630, 64
        %v2701 = vpop.permute.xlu0 %2700
        %2702 = vrot.lane.b32.xlu0 %v2633, 64
        %v2703 = vpop.permute.xlu0 %2702
        %2704 = vrot.lane.b32.xlu0 %v2635, 64
        %v2705 = vpop.permute.xlu0 %2704
        %2706 = vrot.lane.b32.xlu0 %v2638, 64
        %v2707 = vpop.permute.xlu0 %2706
        %2708 = vrot.lane.b32.xlu0 %v2640, 64
        %v2709 = vpop.permute.xlu0 %2708
        %2710 = vrot.lane.b32.xlu0 %v2643, 64
        %v2711 = vpop.permute.xlu0 %2710
        %2712 = vrot.lane.b32.xlu0 %v2645, 64
        %v2713 = vpop.permute.xlu0 %2712
        %2714 = vrot.lane.b32.xlu0 %v2648, 64
        %v2715 = vpop.permute.xlu0 %2714
        %2716 = vrot.lane.b32.xlu0 %v2650, 64
        %v2717 = vpop.permute.xlu0 %2716
        %2718 = vrot.lane.b32.xlu0 %v2653, 64
        %v2719 = vpop.permute.xlu0 %2718
        %2720 = vrot.lane.b32.xlu0 %v2655, 64
        %v2721 = vpop.permute.xlu0 %2720
        %2722 = vrot.lane.b32.xlu0 %v2658, 64
        %v2723 = vpop.permute.xlu0 %2722
        %2724 = vrot.lane.b32.xlu0 %v2660, 64
        %v2725 = vpop.permute.xlu0 %2724
        %2726 = vrot.lane.b32.xlu0 %v2663, 64
        %v2727 = vpop.permute.xlu0 %2726
        %2728 = vrot.lane.b32.xlu0 %v2665, 64
        %v2729 = vpop.permute.xlu0 %2728
        %2764 = vrot.lane.b32.xlu0 %v2311, 96
        %v2765 = vpop.permute.xlu0 %2764
        %2766 = vrot.lane.b32.xlu0 %v2312, 96
        %v2767 = vpop.permute.xlu0 %2766
        %2768 = vrot.lane.b32.xlu0 %v2314, 96
        %v2769 = vpop.permute.xlu0 %2768
        %2770 = vrot.lane.b32.xlu0 %v2315, 96
        %v2771 = vpop.permute.xlu0 %2770
        %2772 = vrot.lane.b32.xlu0 %v2317, 96
        %v2773 = vpop.permute.xlu0 %2772
        %2774 = vrot.lane.b32.xlu0 %v2318, 96
        %v2775 = vpop.permute.xlu0 %2774
        %2776 = vrot.lane.b32.xlu0 %v2320, 96
        %v2777 = vpop.permute.xlu0 %2776
        %2778 = vrot.lane.b32.xlu0 %v2321, 96
        %v2779 = vpop.permute.xlu0 %2778
        %2780 = vrot.lane.b32.xlu0 %v2323, 96
        %v2781 = vpop.permute.xlu0 %2780
        %2782 = vrot.lane.b32.xlu0 %v2324, 96
        %v2783 = vpop.permute.xlu0 %2782
        %2784 = vrot.lane.b32.xlu0 %v2326, 96
        %v2785 = vpop.permute.xlu0 %2784
        %2786 = vrot.lane.b32.xlu0 %v2327, 96
        %v2787 = vpop.permute.xlu0 %2786
        %2788 = vrot.lane.b32.xlu0 %v2329, 96
        %v2789 = vpop.permute.xlu0 %2788
        %2790 = vrot.lane.b32.xlu0 %v2330, 96
        %v2791 = vpop.permute.xlu0 %2790
        %2792 = vrot.lane.b32.xlu0 %v2332, 96
        %v2793 = vpop.permute.xlu0 %2792
        %2794 = vrot.lane.b32.xlu0 %v2333, 96
        %v2795 = vpop.permute.xlu0 %2794
        %2796 = vrot.lane.b32.xlu0 %v2335, 96
        %v2797 = vpop.permute.xlu0 %2796
        %2798 = vrot.lane.b32.xlu0 %v2336, 96
        %v2799 = vpop.permute.xlu0 %2798
        %2800 = vrot.lane.b32.xlu0 %v2338, 96
        %v2801 = vpop.permute.xlu0 %2800
        %2802 = vrot.lane.b32.xlu0 %v2339, 96
        %v2803 = vpop.permute.xlu0 %2802
        %2804 = vrot.lane.b32.xlu0 %v2341, 96
        %v2805 = vpop.permute.xlu0 %2804
        %2806 = vrot.lane.b32.xlu0 %v2342, 96
        %v2807 = vpop.permute.xlu0 %2806
        %2808 = vrot.lane.b32.xlu0 %v2344, 96
        %v2809 = vpop.permute.xlu0 %2808
        %2810 = vrot.lane.b32.xlu0 %v2345, 96
        %v2811 = vpop.permute.xlu0 %2810
        %2812 = vrot.lane.b32.xlu0 %v2347, 96
        %v2813 = vpop.permute.xlu0 %2812
        %2814 = vrot.lane.b32.xlu0 %v2348, 96
        %v2815 = vpop.permute.xlu0 %2814
        %2816 = vrot.lane.b32.xlu0 %v2350, 96
        %v2817 = vpop.permute.xlu0 %2816
        %2818 = vrot.lane.b32.xlu0 %v2351, 96
        %v2819 = vpop.permute.xlu0 %2818
        %2820 = vrot.lane.b32.xlu0 %v2353, 96
        %v2821 = vpop.permute.xlu0 %2820
        %2822 = vrot.lane.b32.xlu0 %v2354, 96
        %v2823 = vpop.permute.xlu0 %2822
        %2824 = vrot.lane.b32.xlu0 %v2356, 96
        %v2825 = vpop.permute.xlu0 %2824
        %2826 = vrot.lane.b32.xlu0 %v2357, 96
        %v2827 = vpop.permute.xlu0 %2826
        %v2861 = vrot.slane %v2356, 1
        %v2862 = vrot.slane %v2357, 1
        %v2863 = vsel %vm609, %v2861, %v2862
        %v2864 = vrot.slane %v2358, 1
        %v2865 = vsel %vm609, %v2862, %v2864
        %v2898 = vrot.slane %v2356, 2
        %v2899 = vrot.slane %v2357, 2
        %v2900 = vsel %vm786, %v2898, %v2899
        %v2901 = vrot.slane %v2358, 2
        %v2902 = vsel %vm786, %v2899, %v2901
        %2903 = vrot.lane.b32.xlu0 %v2593, 32
        %v2904 = vpop.permute.xlu0 %2903
        %2905 = vrot.lane.b32.xlu0 %v2595, 32
        %v2906 = vpop.permute.xlu0 %2905
        %2907 = vrot.lane.b32.xlu0 %v2598, 32
        %v2908 = vpop.permute.xlu0 %2907
        %2909 = vrot.lane.b32.xlu0 %v2600, 32
        %v2910 = vpop.permute.xlu0 %2909
        %2911 = vrot.lane.b32.xlu0 %v2603, 32
        %v2912 = vpop.permute.xlu0 %2911
        %2913 = vrot.lane.b32.xlu0 %v2605, 32
        %v2914 = vpop.permute.xlu0 %2913
        %2915 = vrot.lane.b32.xlu0 %v2608, 32
        %v2916 = vpop.permute.xlu0 %2915
        %2917 = vrot.lane.b32.xlu0 %v2610, 32
        %v2918 = vpop.permute.xlu0 %2917
        %2919 = vrot.lane.b32.xlu0 %v2613, 32
        %v2920 = vpop.permute.xlu0 %2919
        %2921 = vrot.lane.b32.xlu0 %v2615, 32
        %v2922 = vpop.permute.xlu0 %2921
        %2923 = vrot.lane.b32.xlu0 %v2618, 32
        %v2924 = vpop.permute.xlu0 %2923
        %2925 = vrot.lane.b32.xlu0 %v2620, 32
        %v2926 = vpop.permute.xlu0 %2925
        %2927 = vrot.lane.b32.xlu0 %v2623, 32
        %v2928 = vpop.permute.xlu0 %2927
        %2929 = vrot.lane.b32.xlu0 %v2625, 32
        %v2930 = vpop.permute.xlu0 %2929
        %2931 = vrot.lane.b32.xlu0 %v2628, 32
        %v2932 = vpop.permute.xlu0 %2931
        %2933 = vrot.lane.b32.xlu0 %v2630, 32
        %v2934 = vpop.permute.xlu0 %2933
        %2935 = vrot.lane.b32.xlu0 %v2633, 32
        %v2936 = vpop.permute.xlu0 %2935
        %2937 = vrot.lane.b32.xlu0 %v2635, 32
        %v2938 = vpop.permute.xlu0 %2937
        %2939 = vrot.lane.b32.xlu0 %v2638, 32
        %v2940 = vpop.permute.xlu0 %2939
        %2941 = vrot.lane.b32.xlu0 %v2640, 32
        %v2942 = vpop.permute.xlu0 %2941
        %2943 = vrot.lane.b32.xlu0 %v2643, 32
        %v2944 = vpop.permute.xlu0 %2943
        %2945 = vrot.lane.b32.xlu0 %v2645, 32
        %v2946 = vpop.permute.xlu0 %2945
        %2947 = vrot.lane.b32.xlu0 %v2648, 32
        %v2948 = vpop.permute.xlu0 %2947
        %2949 = vrot.lane.b32.xlu0 %v2650, 32
        %v2950 = vpop.permute.xlu0 %2949
        %2951 = vrot.lane.b32.xlu0 %v2653, 32
        %v2952 = vpop.permute.xlu0 %2951
        %2953 = vrot.lane.b32.xlu0 %v2655, 32
        %v2954 = vpop.permute.xlu0 %2953
        %2955 = vrot.lane.b32.xlu0 %v2658, 32
        %v2956 = vpop.permute.xlu0 %2955
        %2957 = vrot.lane.b32.xlu0 %v2660, 32
        %v2958 = vpop.permute.xlu0 %2957
        %2959 = vrot.lane.b32.xlu0 %v2663, 32
        %v2960 = vpop.permute.xlu0 %2959
        %2961 = vrot.lane.b32.xlu0 %v2665, 32
        %v2962 = vpop.permute.xlu0 %2961
        %2963 = vrot.lane.b32.xlu0 %v2900, 32
        %v2964 = vpop.permute.xlu0 %2963
        %2965 = vrot.lane.b32.xlu0 %v2902, 32
        %v2966 = vpop.permute.xlu0 %2965
        %3001 = vrot.lane.b32.xlu0 %v2314, 64
        %v3002 = vpop.permute.xlu0 %3001
        %3003 = vrot.lane.b32.xlu0 %v2315, 64
        %v3004 = vpop.permute.xlu0 %3003
        %3005 = vrot.lane.b32.xlu0 %v2317, 64
        %v3006 = vpop.permute.xlu0 %3005
        %3007 = vrot.lane.b32.xlu0 %v2318, 64
        %v3008 = vpop.permute.xlu0 %3007
        %3009 = vrot.lane.b32.xlu0 %v2320, 64
        %v3010 = vpop.permute.xlu0 %3009
        %3011 = vrot.lane.b32.xlu0 %v2321, 64
        %v3012 = vpop.permute.xlu0 %3011
        %3013 = vrot.lane.b32.xlu0 %v2323, 64
        %v3014 = vpop.permute.xlu0 %3013
        %3015 = vrot.lane.b32.xlu0 %v2324, 64
        %v3016 = vpop.permute.xlu0 %3015
        %3017 = vrot.lane.b32.xlu0 %v2326, 64
        %v3018 = vpop.permute.xlu0 %3017
        %3019 = vrot.lane.b32.xlu0 %v2327, 64
        %v3020 = vpop.permute.xlu0 %3019
        %3021 = vrot.lane.b32.xlu0 %v2329, 64
        %v3022 = vpop.permute.xlu0 %3021
        %3023 = vrot.lane.b32.xlu0 %v2330, 64
        %v3024 = vpop.permute.xlu0 %3023
        %3025 = vrot.lane.b32.xlu0 %v2332, 64
        %v3026 = vpop.permute.xlu0 %3025
        %3027 = vrot.lane.b32.xlu0 %v2333, 64
        %v3028 = vpop.permute.xlu0 %3027
        %3029 = vrot.lane.b32.xlu0 %v2335, 64
        %v3030 = vpop.permute.xlu0 %3029
        %3031 = vrot.lane.b32.xlu0 %v2336, 64
        %v3032 = vpop.permute.xlu0 %3031
        %3033 = vrot.lane.b32.xlu0 %v2338, 64
        %v3034 = vpop.permute.xlu0 %3033
        %3035 = vrot.lane.b32.xlu0 %v2339, 64
        %v3036 = vpop.permute.xlu0 %3035
        %3037 = vrot.lane.b32.xlu0 %v2341, 64
        %v3038 = vpop.permute.xlu0 %3037
        %3039 = vrot.lane.b32.xlu0 %v2342, 64
        %v3040 = vpop.permute.xlu0 %3039
        %3041 = vrot.lane.b32.xlu0 %v2344, 64
        %v3042 = vpop.permute.xlu0 %3041
        %3043 = vrot.lane.b32.xlu0 %v2345, 64
        %v3044 = vpop.permute.xlu0 %3043
        %3045 = vrot.lane.b32.xlu0 %v2347, 64
        %v3046 = vpop.permute.xlu0 %3045
        %3047 = vrot.lane.b32.xlu0 %v2348, 64
        %v3048 = vpop.permute.xlu0 %3047
        %3049 = vrot.lane.b32.xlu0 %v2350, 64
        %v3050 = vpop.permute.xlu0 %3049
        %3051 = vrot.lane.b32.xlu0 %v2351, 64
        %v3052 = vpop.permute.xlu0 %3051
        %3053 = vrot.lane.b32.xlu0 %v2353, 64
        %v3054 = vpop.permute.xlu0 %3053
        %3055 = vrot.lane.b32.xlu0 %v2354, 64
        %v3056 = vpop.permute.xlu0 %3055
        %3057 = vrot.lane.b32.xlu0 %v2356, 64
        %v3058 = vpop.permute.xlu0 %3057
        %3059 = vrot.lane.b32.xlu0 %v2357, 64
        %v3060 = vpop.permute.xlu0 %3059
        %3061 = vrot.lane.b32.xlu0 %v2359, 64
        %v3062 = vpop.permute.xlu0 %3061
        %3063 = vrot.lane.b32.xlu0 %v2360, 64
        %v3064 = vpop.permute.xlu0 %3063
        %v3098 = vrot.slane %v2359, 1
        %v3099 = vrot.slane %v2360, 1
        %v3100 = vsel %vm609, %v3098, %v3099
        %v3101 = vrot.slane %v2361, 1
        %v3102 = vsel %vm609, %v3099, %v3101
        %3103 = vrot.lane.b32.xlu0 %v2422, 96
        %v3104 = vpop.permute.xlu0 %3103
        %3105 = vrot.lane.b32.xlu0 %v2424, 96
        %v3106 = vpop.permute.xlu0 %3105
        %3107 = vrot.lane.b32.xlu0 %v2427, 96
        %v3108 = vpop.permute.xlu0 %3107
        %3109 = vrot.lane.b32.xlu0 %v2429, 96
        %v3110 = vpop.permute.xlu0 %3109
        %3111 = vrot.lane.b32.xlu0 %v2432, 96
        %v3112 = vpop.permute.xlu0 %3111
        %3113 = vrot.lane.b32.xlu0 %v2434, 96
        %v3114 = vpop.permute.xlu0 %3113
        %3115 = vrot.lane.b32.xlu0 %v2437, 96
        %v3116 = vpop.permute.xlu0 %3115
        %3117 = vrot.lane.b32.xlu0 %v2439, 96
        %v3118 = vpop.permute.xlu0 %3117
        %3119 = vrot.lane.b32.xlu0 %v2442, 96
        %v3120 = vpop.permute.xlu0 %3119
        %3121 = vrot.lane.b32.xlu0 %v2444, 96
        %v3122 = vpop.permute.xlu0 %3121
        %3123 = vrot.lane.b32.xlu0 %v2447, 96
        %v3124 = vpop.permute.xlu0 %3123
        %3125 = vrot.lane.b32.xlu0 %v2449, 96
        %v3126 = vpop.permute.xlu0 %3125
        %3127 = vrot.lane.b32.xlu0 %v2452, 96
        %v3128 = vpop.permute.xlu0 %3127
        %3129 = vrot.lane.b32.xlu0 %v2454, 96
        %v3130 = vpop.permute.xlu0 %3129
        %3131 = vrot.lane.b32.xlu0 %v2457, 96
        %v3132 = vpop.permute.xlu0 %3131
        %3133 = vrot.lane.b32.xlu0 %v2459, 96
        %v3134 = vpop.permute.xlu0 %3133
        %3135 = vrot.lane.b32.xlu0 %v2462, 96
        %v3136 = vpop.permute.xlu0 %3135
        %3137 = vrot.lane.b32.xlu0 %v2464, 96
        %v3138 = vpop.permute.xlu0 %3137
        %3139 = vrot.lane.b32.xlu0 %v2467, 96
        %v3140 = vpop.permute.xlu0 %3139
        %3141 = vrot.lane.b32.xlu0 %v2469, 96
        %v3142 = vpop.permute.xlu0 %3141
        %3143 = vrot.lane.b32.xlu0 %v2472, 96
        %v3144 = vpop.permute.xlu0 %3143
        %3145 = vrot.lane.b32.xlu0 %v2474, 96
        %v3146 = vpop.permute.xlu0 %3145
        %3147 = vrot.lane.b32.xlu0 %v2477, 96
        %v3148 = vpop.permute.xlu0 %3147
        %3149 = vrot.lane.b32.xlu0 %v2479, 96
        %v3150 = vpop.permute.xlu0 %3149
        %3151 = vrot.lane.b32.xlu0 %v2482, 96
        %v3152 = vpop.permute.xlu0 %3151
        %3153 = vrot.lane.b32.xlu0 %v2484, 96
        %v3154 = vpop.permute.xlu0 %3153
        %3155 = vrot.lane.b32.xlu0 %v2487, 96
        %v3156 = vpop.permute.xlu0 %3155
        %3157 = vrot.lane.b32.xlu0 %v2489, 96
        %v3158 = vpop.permute.xlu0 %3157
        %3159 = vrot.lane.b32.xlu0 %v2863, 96
        %v3160 = vpop.permute.xlu0 %3159
        %3161 = vrot.lane.b32.xlu0 %v2865, 96
        %v3162 = vpop.permute.xlu0 %3161
        %3163 = vrot.lane.b32.xlu0 %v3100, 96
        %v3164 = vpop.permute.xlu0 %3163
        %3165 = vrot.lane.b32.xlu0 %v3102, 96
        %v3166 = vpop.permute.xlu0 %3165
        %v3199 = vrot.slane %v2359, 2
        %v3200 = vrot.slane %v2360, 2
        %v3201 = vsel %vm786, %v3199, %v3200
        %v3202 = vrot.slane %v2361, 2
        %v3203 = vsel %vm786, %v3200, %v3202
        %v3204 = vsel %vm1795, %v2308, %v2491
        %v3205 = vsel %vm1795, %v2309, %v2493
        %v3206 = vsel %vm1795, %v2311, %v2495
        %v3207 = vsel %vm1795, %v2312, %v2497
        %v3208 = vsel %vm1795, %v2314, %v2499
        %v3209 = vsel %vm1795, %v2315, %v2501
        %v3210 = vsel %vm1795, %v2317, %v2503
        %v3211 = vsel %vm1795, %v2318, %v2505
        %v3212 = vsel %vm1795, %v2320, %v2507
        %v3213 = vsel %vm1795, %v2321, %v2509
        %v3214 = vsel %vm1795, %v2323, %v2511
        %v3215 = vsel %vm1795, %v2324, %v2513
        %v3216 = vsel %vm1795, %v2326, %v2515
        %v3217 = vsel %vm1795, %v2327, %v2517
        %v3218 = vsel %vm1795, %v2329, %v2519
        %v3219 = vsel %vm1795, %v2330, %v2521
        %v3220 = vsel %vm1795, %v2332, %v2523
        %v3221 = vsel %vm1795, %v2333, %v2525
        %v3222 = vsel %vm1795, %v2335, %v2527
        %v3223 = vsel %vm1795, %v2336, %v2529
        %v3224 = vsel %vm1795, %v2338, %v2531
        %v3225 = vsel %vm1795, %v2339, %v2533
        %v3226 = vsel %vm1795, %v2341, %v2535
        %v3227 = vsel %vm1795, %v2342, %v2537
        %v3228 = vsel %vm1795, %v2344, %v2539
        %v3229 = vsel %vm1795, %v2345, %v2541
        %v3230 = vsel %vm1795, %v2347, %v2543
        %v3231 = vsel %vm1795, %v2348, %v2545
        %v3232 = vsel %vm1795, %v2350, %v2547
        %v3233 = vsel %vm1795, %v2351, %v2549
        %v3234 = vsel %vm1795, %v2353, %v2551
        %v3235 = vsel %vm1795, %v2354, %v2553
        %vm3236 = vcmask 523264
        %v3237 = vsel %vm3236, %v3204, %v2667
        %v3238 = vsel %vm3236, %v3205, %v2669
        %v3239 = vsel %vm3236, %v3206, %v2671
        %v3240 = vsel %vm3236, %v3207, %v2673
        %v3241 = vsel %vm3236, %v3208, %v2675
        %v3242 = vsel %vm3236, %v3209, %v2677
        %v3243 = vsel %vm3236, %v3210, %v2679
        %v3244 = vsel %vm3236, %v3211, %v2681
        %v3245 = vsel %vm3236, %v3212, %v2683
        %v3246 = vsel %vm3236, %v3213, %v2685
        %v3247 = vsel %vm3236, %v3214, %v2687
        %v3248 = vsel %vm3236, %v3215, %v2689
        %v3249 = vsel %vm3236, %v3216, %v2691
        %v3250 = vsel %vm3236, %v3217, %v2693
        %v3251 = vsel %vm3236, %v3218, %v2695
        %v3252 = vsel %vm3236, %v3219, %v2697
        %v3253 = vsel %vm3236, %v3220, %v2699
        %v3254 = vsel %vm3236, %v3221, %v2701
        %v3255 = vsel %vm3236, %v3222, %v2703
        %v3256 = vsel %vm3236, %v3223, %v2705
        %v3257 = vsel %vm3236, %v3224, %v2707
        %v3258 = vsel %vm3236, %v3225, %v2709
        %v3259 = vsel %vm3236, %v3226, %v2711
        %v3260 = vsel %vm3236, %v3227, %v2713
        %v3261 = vsel %vm3236, %v3228, %v2715
        %v3262 = vsel %vm3236, %v3229, %v2717
        %v3263 = vsel %vm3236, %v3230, %v2719
        %v3264 = vsel %vm3236, %v3231, %v2721
        %v3265 = vsel %vm3236, %v3232, %v2723
        %v3266 = vsel %vm3236, %v3233, %v2725
        %v3267 = vsel %vm3236, %v3234, %v2727
        %v3268 = vsel %vm3236, %v3235, %v2729
        %vm3269 = vcmask 785408
        %v3270 = vsel %vm3269, %v3237, %v2765
        %v3271 = vsel %vm3269, %v3238, %v2767
        %v3272 = vsel %vm3269, %v3239, %v2769
        %v3273 = vsel %vm3269, %v3240, %v2771
        %v3274 = vsel %vm3269, %v3241, %v2773
        %v3275 = vsel %vm3269, %v3242, %v2775
        %v3276 = vsel %vm3269, %v3243, %v2777
        %v3277 = vsel %vm3269, %v3244, %v2779
        %v3278 = vsel %vm3269, %v3245, %v2781
        %v3279 = vsel %vm3269, %v3246, %v2783
        %v3280 = vsel %vm3269, %v3247, %v2785
        %v3281 = vsel %vm3269, %v3248, %v2787
        %v3282 = vsel %vm3269, %v3249, %v2789
        %v3283 = vsel %vm3269, %v3250, %v2791
        %v3284 = vsel %vm3269, %v3251, %v2793
        %v3285 = vsel %vm3269, %v3252, %v2795
        %v3286 = vsel %vm3269, %v3253, %v2797
        %v3287 = vsel %vm3269, %v3254, %v2799
        %v3288 = vsel %vm3269, %v3255, %v2801
        %v3289 = vsel %vm3269, %v3256, %v2803
        %v3290 = vsel %vm3269, %v3257, %v2805
        %v3291 = vsel %vm3269, %v3258, %v2807
        %v3292 = vsel %vm3269, %v3259, %v2809
        %v3293 = vsel %vm3269, %v3260, %v2811
        %v3294 = vsel %vm3269, %v3261, %v2813
        %v3295 = vsel %vm3269, %v3262, %v2815
        %v3296 = vsel %vm3269, %v3263, %v2817
        %v3297 = vsel %vm3269, %v3264, %v2819
        %v3298 = vsel %vm3269, %v3265, %v2821
        %v3299 = vsel %vm3269, %v3266, %v2823
        %v3300 = vsel %vm3269, %v3267, %v2825
        %v3301 = vsel %vm3269, %v3268, %v2827
        %v3302 = vsel %vm1795, %v2417, %v2904
        %v3303 = vsel %vm1795, %v2419, %v2906
        %v3304 = vsel %vm1795, %v2422, %v2908
        %v3305 = vsel %vm1795, %v2424, %v2910
        %v3306 = vsel %vm1795, %v2427, %v2912
        %v3307 = vsel %vm1795, %v2429, %v2914
        %v3308 = vsel %vm1795, %v2432, %v2916
        %v3309 = vsel %vm1795, %v2434, %v2918
        %v3310 = vsel %vm1795, %v2437, %v2920
        %v3311 = vsel %vm1795, %v2439, %v2922
        %v3312 = vsel %vm1795, %v2442, %v2924
        %v3313 = vsel %vm1795, %v2444, %v2926
        %v3314 = vsel %vm1795, %v2447, %v2928
        %v3315 = vsel %vm1795, %v2449, %v2930
        %v3316 = vsel %vm1795, %v2452, %v2932
        %v3317 = vsel %vm1795, %v2454, %v2934
        %v3318 = vsel %vm1795, %v2457, %v2936
        %v3319 = vsel %vm1795, %v2459, %v2938
        %v3320 = vsel %vm1795, %v2462, %v2940
        %v3321 = vsel %vm1795, %v2464, %v2942
        %v3322 = vsel %vm1795, %v2467, %v2944
        %v3323 = vsel %vm1795, %v2469, %v2946
        %v3324 = vsel %vm1795, %v2472, %v2948
        %v3325 = vsel %vm1795, %v2474, %v2950
        %v3326 = vsel %vm1795, %v2477, %v2952
        %v3327 = vsel %vm1795, %v2479, %v2954
        %v3328 = vsel %vm1795, %v2482, %v2956
        %v3329 = vsel %vm1795, %v2484, %v2958
        %v3330 = vsel %vm1795, %v2487, %v2960
        %v3331 = vsel %vm1795, %v2489, %v2962
        %v3332 = vsel %vm1795, %v2863, %v2964
        %v3333 = vsel %vm1795, %v2865, %v2966
        %v3334 = vsel %vm3236, %v3302, %v3002
        %v3335 = vsel %vm3236, %v3303, %v3004
        %v3336 = vsel %vm3236, %v3304, %v3006
        %v3337 = vsel %vm3236, %v3305, %v3008
        %v3338 = vsel %vm3236, %v3306, %v3010
        %v3339 = vsel %vm3236, %v3307, %v3012
        %v3340 = vsel %vm3236, %v3308, %v3014
        %v3341 = vsel %vm3236, %v3309, %v3016
        %v3342 = vsel %vm3236, %v3310, %v3018
        %v3343 = vsel %vm3236, %v3311, %v3020
        %v3344 = vsel %vm3236, %v3312, %v3022
        %v3345 = vsel %vm3236, %v3313, %v3024
        %v3346 = vsel %vm3236, %v3314, %v3026
        %v3347 = vsel %vm3236, %v3315, %v3028
        %v3348 = vsel %vm3236, %v3316, %v3030
        %v3349 = vsel %vm3236, %v3317, %v3032
        %v3350 = vsel %vm3236, %v3318, %v3034
        %v3351 = vsel %vm3236, %v3319, %v3036
        %v3352 = vsel %vm3236, %v3320, %v3038
        %v3353 = vsel %vm3236, %v3321, %v3040
        %v3354 = vsel %vm3236, %v3322, %v3042
        %v3355 = vsel %vm3236, %v3323, %v3044
        %v3356 = vsel %vm3236, %v3324, %v3046
        %v3357 = vsel %vm3236, %v3325, %v3048
        %v3358 = vsel %vm3236, %v3326, %v3050
        %v3359 = vsel %vm3236, %v3327, %v3052
        %v3360 = vsel %vm3236, %v3328, %v3054
        %v3361 = vsel %vm3236, %v3329, %v3056
        %v3362 = vsel %vm3236, %v3330, %v3058
        %v3363 = vsel %vm3236, %v3331, %v3060
        %v3364 = vsel %vm3236, %v3332, %v3062
        %v3365 = vsel %vm3236, %v3333, %v3064
        %v3366 = vsel %vm3269, %v3334, %v3104
        %v3367 = vsel %vm3269, %v3335, %v3106
        %v3368 = vsel %vm3269, %v3336, %v3108
        %v3369 = vsel %vm3269, %v3337, %v3110
        %v3370 = vsel %vm3269, %v3338, %v3112
        %v3371 = vsel %vm3269, %v3339, %v3114
        %v3372 = vsel %vm3269, %v3340, %v3116
        %v3373 = vsel %vm3269, %v3341, %v3118
        %v3374 = vsel %vm3269, %v3342, %v3120
        %v3375 = vsel %vm3269, %v3343, %v3122
        %v3376 = vsel %vm3269, %v3344, %v3124
        %v3377 = vsel %vm3269, %v3345, %v3126
        %v3378 = vsel %vm3269, %v3346, %v3128
        %v3379 = vsel %vm3269, %v3347, %v3130
        %v3380 = vsel %vm3269, %v3348, %v3132
        %v3381 = vsel %vm3269, %v3349, %v3134
        %v3382 = vsel %vm3269, %v3350, %v3136
        %v3383 = vsel %vm3269, %v3351, %v3138
        %v3384 = vsel %vm3269, %v3352, %v3140
        %v3385 = vsel %vm3269, %v3353, %v3142
        %v3386 = vsel %vm3269, %v3354, %v3144
        %v3387 = vsel %vm3269, %v3355, %v3146
        %v3388 = vsel %vm3269, %v3356, %v3148
        %v3389 = vsel %vm3269, %v3357, %v3150
        %v3390 = vsel %vm3269, %v3358, %v3152
        %v3391 = vsel %vm3269, %v3359, %v3154
        %v3392 = vsel %vm3269, %v3360, %v3156
        %v3393 = vsel %vm3269, %v3361, %v3158
        %v3394 = vsel %vm3269, %v3362, %v3160
        %v3395 = vsel %vm3269, %v3363, %v3162
        %v3396 = vsel %vm3269, %v3364, %v3164
        %v3397 = vsel %vm3269, %v3365, %v3166
        %v3398 = vld [vmem:[%s3] sm:$0xff]
        %v3399 = vld [vmem:[%s3 + $0x8] sm:$0xff]
        %v3400 = vld [vmem:[%s3 + $0x10] sm:$0xff]
        %v3401 = vld [vmem:[%s3 + $0x18] sm:$0xff]
        %v3402 = vld [vmem:[%s3 + $0x20] sm:$0xff]
        %v3403 = vld [vmem:[%s3 + $0x28] sm:$0xff]
        %v3404 = vld [vmem:[%s3 + $0x30] sm:$0xff]
        %v3405 = vld [vmem:[%s3 + $0x38] sm:$0xff]
        %v3406 = vld [vmem:[%s3 + $0x40] sm:$0xff]
        %v3407 = vld [vmem:[%s3 + $0x48] sm:$0xff]
        %v3408 = vld [vmem:[%s3 + $0x50] sm:$0xff]
        %v3409 = vld [vmem:[%s3 + $0x58] sm:$0xff]
        %v3410 = vld [vmem:[%s3 + $0x60] sm:$0xff]
        %v3411 = vld [vmem:[%s3 + $0x68] sm:$0xff]
        %v3412 = vld [vmem:[%s3 + $0x70] sm:$0xff]
        %v3413 = vld [vmem:[%s3 + $0x78] sm:$0xff]
        %v3414 = vld [vmem:[%s3 + $0x80] sm:$0xff]
        %v3415 = vld [vmem:[%s3 + $0x88] sm:$0xff]
        %v3416 = vld [vmem:[%s3 + $0x90] sm:$0xff]
        %v3417 = vld [vmem:[%s3 + $0x98] sm:$0xff]
        %v3418 = vld [vmem:[%s3 + $0xa0] sm:$0xff]
        %v3419 = vld [vmem:[%s3 + $0xa8] sm:$0xff]
        %v3420 = vld [vmem:[%s3 + $0xb0] sm:$0xff]
        %v3421 = vld [vmem:[%s3 + $0xb8] sm:$0xff]
        %v3422 = vld [vmem:[%s3 + $0xc0] sm:$0xff]
        %v3423 = vld [vmem:[%s3 + $0xc8] sm:$0xff]
        %v3424 = vld [vmem:[%s3 + $0xd0] sm:$0xff]
        %v3425 = vld [vmem:[%s3 + $0xd8] sm:$0xff]
        %v3426 = vld [vmem:[%s3 + $0xe0] sm:$0xff]
        %v3427 = vld [vmem:[%s3 + $0xe8] sm:$0xff]
        %v3428 = vld [vmem:[%s3 + $0xf0] sm:$0xff]
        %v3429 = vld [vmem:[%s3 + $0xf8] sm:$0xff]
        %v3430 = vld [vmem:[%s3 + $0x100] sm:$0xff]
        %v3431 = vld [vmem:[%s3 + $0x108] sm:$0xff]
        %v3432 = vld [vmem:[%s3 + $0x110] sm:$0xff]
        %v3433 = vld [vmem:[%s3 + $0x118] sm:$0xff]
        %v3434 = vsel %vm1795, %v2598, 0
        %v3436 = vsel %vm1795, %v2600, 0
        %v3438 = vsel %vm1795, %v2603, 0
        %v3440 = vsel %vm1795, %v2605, 0
        %v3442 = vsel %vm1795, %v2608, 0
        %v3444 = vsel %vm1795, %v2610, 0
        %v3446 = vsel %vm1795, %v2613, 0
        %v3448 = vsel %vm1795, %v2615, 0
        %v3450 = vsel %vm1795, %v2618, 0
        %v3452 = vsel %vm1795, %v2620, 0
        %v3454 = vsel %vm1795, %v2623, 0
        %v3456 = vsel %vm1795, %v2625, 0
        %v3458 = vsel %vm1795, %v2628, 0
        %v3460 = vsel %vm1795, %v2630, 0
        %v3462 = vsel %vm1795, %v2633, 0
        %v3464 = vsel %vm1795, %v2635, 0
        %v3466 = vsel %vm1795, %v2638, 0
        %v3468 = vsel %vm1795, %v2640, 0
        %v3470 = vsel %vm1795, %v2643, 0
        %v3472 = vsel %vm1795, %v2645, 0
        %v3474 = vsel %vm1795, %v2648, 0
        %v3476 = vsel %vm1795, %v2650, 0
        %v3478 = vsel %vm1795, %v2653, 0
        %v3480 = vsel %vm1795, %v2655, 0
        %v3482 = vsel %vm1795, %v2658, 0
        %v3484 = vsel %vm1795, %v2660, 0
        %v3486 = vsel %vm1795, %v2663, 0
        %v3488 = vsel %vm1795, %v2665, 0
        %v3490 = vsel %vm1795, %v2900, 0
        %v3492 = vsel %vm1795, %v2902, 0
        %v3494 = vsel %vm1795, %v3201, 0
        %v3496 = vsel %vm1795, %v3203, 0
        %3498 = vmatprep.subr.mxu0 0.0
        %3499 = vmatpush1.msra.mxu0 %v3398
        %3500 = vmatprep.subr.mxu0 0.0
        %3501 = vmatpush1.msra.mxu0 %v3399
        %3502 = vmatprep.subr.mxu0 0.0
        %3503 = vmatpush1.msra.mxu0 %v3400
        %3504 = vmatprep.subr.mxu0 0.0
        %3505 = vmatpush1.msra.mxu0 %v3401
        %3506 = vmatprep.subr.mxu0 0.0
        %3507 = vmatpush1.msra.mxu0 %v3402
        %3508 = vmatprep.subr.mxu0 0.0
        %3509 = vmatpush1.msra.mxu0 %v3403
        %3510 = vmatprep.subr.mxu0 0.0
        %3511 = vmatpush1.msra.mxu0 %v3404
        %3512 = vmatprep.subr.mxu0 0.0
        %3513 = vmatpush1.msra.mxu0 %v3405
        %3514 = vmatprep.subr.mxu0 0.0
        %3515 = vmatpush1.msra.mxu0 %v3406
        %3516 = vmatprep.subr.mxu0 0.0
        %3517 = vmatpush1.msra.mxu0 %v3407
        %3518 = vmatprep.subr.mxu0 0.0
        %3519 = vmatpush1.msra.mxu0 %v3408
        %3520 = vmatprep.subr.mxu0 0.0
        %3521 = vmatpush1.msra.mxu0 %v3409
        %3522 = vmatprep.subr.mxu0 0.0
        %3523 = vmatpush1.msra.mxu0 %v3410
        %3524 = vmatprep.subr.mxu0 0.0
        %3525 = vmatpush1.msra.mxu0 %v3411
        %3526 = vmatprep.subr.mxu0 0.0
        %3527 = vmatpush1.msra.mxu0 %v3412
        %3528 = vmatprep.subr.mxu0 0.0
        %3529 = vmatpush1.msra.mxu0 %v3413
        %3530 = vmatprep.subr.mxu0 0.0
        %3531 = vmatpush1.msra.mxu0 %v3414
        %3532 = vmatprep.subr.mxu0 0.0
        %3533 = vmatpush1.msra.mxu0 %v3415
        %3534 = vmatprep.subr.mxu0 0.0
        %3535 = vmatpush1.msra.mxu0 %v3416
        %3536 = vmatprep.subr.mxu0 0.0
        %3537 = vmatpush1.msra.mxu0 %v3417
        %3538 = vmatprep.subr.mxu0 0.0
        %3539 = vmatpush1.msra.mxu0 %v3418
        %3540 = vmatprep.subr.mxu0 0.0
        %3541 = vmatpush1.msra.mxu0 %v3419
        %3542 = vmatprep.subr.mxu0 0.0
        %3543 = vmatpush1.msra.mxu0 %v3420
        %3544 = vmatprep.subr.mxu0 0.0
        %3545 = vmatpush1.msra.mxu0 %v3421
        %3546 = vmatprep.subr.mxu0 0.0
        %3547 = vmatpush1.msra.mxu0 %v3422
        %3548 = vmatprep.subr.mxu0 0.0
        %3549 = vmatpush1.msra.mxu0 %v3423
        %3550 = vmatprep.subr.mxu0 0.0
        %3551 = vmatpush1.msra.mxu0 %v3424
        %3552 = vmatprep.subr.mxu0 0.0
        %3553 = vmatpush1.msra.mxu0 %v3425
        %3554 = vmatprep.subr.mxu0 0.0
        %3555 = vmatpush1.msra.mxu0 %v3426
        %3556 = vmatprep.subr.mxu0 0.0
        %3557 = vmatpush1.msra.mxu0 %v3427
        %3558 = vmatprep.subr.mxu0 0.0
        %3559 = vmatpush1.msra.mxu0 %v3428
        %3560 = vmatprep.subr.mxu0 0.0
        %3561 = vmatpush1.msra.mxu0 %v3429
        %3562 = vmatprep.mubr.f32.mxu0 %v3366
        %3563 = vmatmul.mubr.f32.gmra.mrb[0].mxu0 %v3270
        %v3564 = vpop.f32.mrb[0].mxu0
        %v3565 = vadd.f32 0.0, %v3564
        %v3566 = vpop.f32.mrb[0].mxu0
        %3567 = vmatprep.mubr.f32.mxu0 %v3367
        %3568 = vmatmul.mubr.f32.gmra.mrb[0].mxu0 %v3271
        %v3569 = vpop.f32.mrb[0].mxu0
        %v3570 = vadd.f32 0.0, %v3569
        %v3571 = vpop.f32.mrb[0].mxu0
        %3572 = vmatprep.mubr.f32.mxu0 %v3368
        %3573 = vmatmul.mubr.f32.gmra.mrb[0].mxu0 %v3272
        %v3574 = vpop.f32.mrb[0].mxu0
        %v3575 = vadd.f32 0.0, %v3574
        %v3576 = vpop.f32.mrb[0].mxu0
        %3577 = vmatprep.mubr.f32.mxu0 %v3369
        %3578 = vmatmul.mubr.f32.gmra.mrb[0].mxu0 %v3273
        %v3579 = vpop.f32.mrb[0].mxu0
        %v3580 = vadd.f32 0.0, %v3579
        %v3581 = vpop.f32.mrb[0].mxu0
        %3582 = vmatprep.mubr.f32.mxu0 %v3370
        %3583 = vmatmul.mubr.f32.gmra.mrb[0].mxu0 %v3274
        %v3584 = vpop.f32.mrb[0].mxu0
        %v3585 = vadd.f32 0.0, %v3584
        %v3586 = vpop.f32.mrb[0].mxu0
        %3587 = vmatprep.mubr.f32.mxu0 %v3371
        %3588 = vmatmul.mubr.f32.gmra.mrb[0].mxu0 %v3275
        %v3589 = vpop.f32.mrb[0].mxu0
        %v3590 = vadd.f32 0.0, %v3589
        %v3591 = vpop.f32.mrb[0].mxu0
        %3592 = vmatprep.mubr.f32.mxu0 %v3372
        %3593 = vmatmul.mubr.f32.gmra.mrb[0].mxu0 %v3276
        %v3594 = vpop.f32.mrb[0].mxu0
        %v3595 = vadd.f32 0.0, %v3594
        %v3596 = vpop.f32.mrb[0].mxu0
        %3597 = vmatprep.mubr.f32.mxu0 %v3373
        %3598 = vmatmul.mubr.f32.gmra.mrb[0].mxu0 %v3277
        %v3599 = vpop.f32.mrb[0].mxu0
        %v3600 = vadd.f32 0.0, %v3599
        %v3601 = vpop.f32.mrb[0].mxu0
        %3602 = vmatprep.mubr.f32.mxu0 %v3374
        %3603 = vmatmul.mubr.f32.gmra.mrb[0].mxu0 %v3278
        %v3604 = vpop.f32.mrb[0].mxu0
        %v3605 = vadd.f32 0.0, %v3604
        %v3606 = vpop.f32.mrb[0].mxu0
        %3607 = vmatprep.mubr.f32.mxu0 %v3375
        %3608 = vmatmul.mubr.f32.gmra.mrb[0].mxu0 %v3279
        %v3609 = vpop.f32.mrb[0].mxu0
        %v3610 = vadd.f32 0.0, %v3609
        %v3611 = vpop.f32.mrb[0].mxu0
        %3612 = vmatprep.mubr.f32.mxu0 %v3376
        %3613 = vmatmul.mubr.f32.gmra.mrb[0].mxu0 %v3280
        %v3614 = vpop.f32.mrb[0].mxu0
        %v3615 = vadd.f32 0.0, %v3614
        %v3616 = vpop.f32.mrb[0].mxu0
        %3617 = vmatprep.mubr.f32.mxu0 %v3377
        %3618 = vmatmul.mubr.f32.gmra.mrb[0].mxu0 %v3281
        %v3619 = vpop.f32.mrb[0].mxu0
        %v3620 = vadd.f32 0.0, %v3619
        %v3621 = vpop.f32.mrb[0].mxu0
        %3622 = vmatprep.mubr.f32.mxu0 %v3378
        %3623 = vmatmul.mubr.f32.gmra.mrb[0].mxu0 %v3282
        %v3624 = vpop.f32.mrb[0].mxu0
        %v3625 = vadd.f32 0.0, %v3624
        %v3626 = vpop.f32.mrb[0].mxu0
        %3627 = vmatprep.mubr.f32.mxu0 %v3379
        %3628 = vmatmul.mubr.f32.gmra.mrb[0].mxu0 %v3283
        %v3629 = vpop.f32.mrb[0].mxu0
        %v3630 = vadd.f32 0.0, %v3629
        %v3631 = vpop.f32.mrb[0].mxu0
        %3632 = vmatprep.mubr.f32.mxu0 %v3380
        %3633 = vmatmul.mubr.f32.gmra.mrb[0].mxu0 %v3284
        %v3634 = vpop.f32.mrb[0].mxu0
        %v3635 = vadd.f32 0.0, %v3634
        %v3636 = vpop.f32.mrb[0].mxu0
        %3637 = vmatprep.mubr.f32.mxu0 %v3381
        %3638 = vmatmul.mubr.f32.gmra.mrb[0].mxu0 %v3285
        %v3639 = vpop.f32.mrb[0].mxu0
        %v3640 = vadd.f32 0.0, %v3639
        %v3641 = vpop.f32.mrb[0].mxu0
        %3642 = vmatprep.mubr.f32.mxu0 %v3382
        %3643 = vmatmul.mubr.f32.gmra.mrb[0].mxu0 %v3286
        %v3644 = vpop.f32.mrb[0].mxu0
        %v3645 = vadd.f32 0.0, %v3644
        %v3646 = vpop.f32.mrb[0].mxu0
        %3647 = vmatprep.mubr.f32.mxu0 %v3383
        %3648 = vmatmul.mubr.f32.gmra.mrb[0].mxu0 %v3287
        %v3649 = vpop.f32.mrb[0].mxu0
        %v3650 = vadd.f32 0.0, %v3649
        %v3651 = vpop.f32.mrb[0].mxu0
        %3652 = vmatprep.mubr.f32.mxu0 %v3384
        %3653 = vmatmul.mubr.f32.gmra.mrb[0].mxu0 %v3288
        %v3654 = vpop.f32.mrb[0].mxu0
        %v3655 = vadd.f32 0.0, %v3654
        %v3656 = vpop.f32.mrb[0].mxu0
        %3657 = vmatprep.mubr.f32.mxu0 %v3385
        %3658 = vmatmul.mubr.f32.gmra.mrb[0].mxu0 %v3289
        %v3659 = vpop.f32.mrb[0].mxu0
        %v3660 = vadd.f32 0.0, %v3659
        %v3661 = vpop.f32.mrb[0].mxu0
        %3662 = vmatprep.mubr.f32.mxu0 %v3386
        %3663 = vmatmul.mubr.f32.gmra.mrb[0].mxu0 %v3290
        %v3664 = vpop.f32.mrb[0].mxu0
        %v3665 = vadd.f32 0.0, %v3664
        %v3666 = vpop.f32.mrb[0].mxu0
        %3667 = vmatprep.mubr.f32.mxu0 %v3387
        %3668 = vmatmul.mubr.f32.gmra.mrb[0].mxu0 %v3291
        %v3669 = vpop.f32.mrb[0].mxu0
        %v3670 = vadd.f32 0.0, %v3669
        %v3671 = vpop.f32.mrb[0].mxu0
        %3672 = vmatprep.mubr.f32.mxu0 %v3388
        %3673 = vmatmul.mubr.f32.gmra.mrb[0].mxu0 %v3292
        %v3674 = vpop.f32.mrb[0].mxu0
        %v3675 = vadd.f32 0.0, %v3674
        %v3676 = vpop.f32.mrb[0].mxu0
        %3677 = vmatprep.mubr.f32.mxu0 %v3389
        %3678 = vmatmul.mubr.f32.gmra.mrb[0].mxu0 %v3293
        %v3679 = vpop.f32.mrb[0].mxu0
        %v3680 = vadd.f32 0.0, %v3679
        %v3681 = vpop.f32.mrb[0].mxu0
        %3682 = vmatprep.mubr.f32.mxu0 %v3390
        %3683 = vmatmul.mubr.f32.gmra.mrb[0].mxu0 %v3294
        %v3684 = vpop.f32.mrb[0].mxu0
        %v3685 = vadd.f32 0.0, %v3684
        %v3686 = vpop.f32.mrb[0].mxu0
        %3687 = vmatprep.mubr.f32.mxu0 %v3391
        %3688 = vmatmul.mubr.f32.gmra.mrb[0].mxu0 %v3295
        %v3689 = vpop.f32.mrb[0].mxu0
        %v3690 = vadd.f32 0.0, %v3689
        %v3691 = vpop.f32.mrb[0].mxu0
        %3692 = vmatprep.mubr.f32.mxu0 %v3392
        %3693 = vmatmul.mubr.f32.gmra.mrb[0].mxu0 %v3296
        %v3694 = vpop.f32.mrb[0].mxu0
        %v3695 = vadd.f32 0.0, %v3694
        %v3696 = vpop.f32.mrb[0].mxu0
        %3697 = vmatprep.mubr.f32.mxu0 %v3393
        %3698 = vmatmul.mubr.f32.gmra.mrb[0].mxu0 %v3297
        %v3699 = vpop.f32.mrb[0].mxu0
        %v3700 = vadd.f32 0.0, %v3699
        %v3701 = vpop.f32.mrb[0].mxu0
        %3702 = vmatprep.mubr.f32.mxu0 %v3394
        %3703 = vmatmul.mubr.f32.gmra.mrb[0].mxu0 %v3298
        %v3704 = vpop.f32.mrb[0].mxu0
        %v3705 = vadd.f32 0.0, %v3704
        %v3706 = vpop.f32.mrb[0].mxu0
        %3707 = vmatprep.mubr.f32.mxu0 %v3395
        %3708 = vmatmul.mubr.f32.gmra.mrb[0].mxu0 %v3299
        %v3709 = vpop.f32.mrb[0].mxu0
        %v3710 = vadd.f32 0.0, %v3709
        %v3711 = vpop.f32.mrb[0].mxu0
        %3712 = vmatprep.mubr.f32.mxu0 %v3396
        %3713 = vmatmul.mubr.f32.gmra.mrb[0].mxu0 %v3300
        %v3714 = vpop.f32.mrb[0].mxu0
        %v3715 = vadd.f32 0.0, %v3714
        %v3716 = vpop.f32.mrb[0].mxu0
        %3717 = vmatprep.mubr.f32.mxu0 %v3397
        %3718 = vmatmul.mubr.f32.gmra.mrb[0].mxu0 %v3301
        %v3719 = vpop.f32.mrb[0].mxu0
        %v3720 = vadd.f32 0.0, %v3719
        %v3721 = vpop.f32.mrb[0].mxu0
        %3722 = vdwg.mxu0
        %3723 = vmatprep.subr.mxu0 0.0
        %3724 = vmatpush1.msra.mxu0 %v3430
        %3725 = vmatprep.subr.mxu0 0.0
        %3726 = vmatpush1.msra.mxu0 %v3431
        %3727 = vmatprep.subr.mxu0 0.0
        %3728 = vmatpush1.msra.mxu0 %v3432
        %3729 = vmatprep.subr.mxu0 0.0
        %3730 = vmatpush1.msra.mxu0 %v3433
        %3731 = vmatprep.subr.mxu0 0.0
        %3732 = vmatpush1.msra.mxu0 0.0
        %3733 = vmatprep.subr.mxu0 0.0
        %3734 = vmatpush1.msra.mxu0 0.0
        %3735 = vmatprep.subr.mxu0 0.0
        %3736 = vmatpush1.msra.mxu0 0.0
        %3737 = vmatprep.subr.mxu0 0.0
        %3738 = vmatpush1.msra.mxu0 0.0
        %3739 = vmatprep.subr.mxu0 0.0
        %3740 = vmatpush1.msra.mxu0 0.0
        %3741 = vmatprep.subr.mxu0 0.0
        %3742 = vmatpush1.msra.mxu0 0.0
        %3743 = vmatprep.subr.mxu0 0.0
        %3744 = vmatpush1.msra.mxu0 0.0
        %3745 = vmatprep.subr.mxu0 0.0
        %3746 = vmatpush1.msra.mxu0 0.0
        %3747 = vmatprep.subr.mxu0 0.0
        %3748 = vmatpush1.msra.mxu0 0.0
        %3749 = vmatprep.subr.mxu0 0.0
        %3750 = vmatpush1.msra.mxu0 0.0
        %3751 = vmatprep.subr.mxu0 0.0
        %3752 = vmatpush1.msra.mxu0 0.0
        %3753 = vmatprep.subr.mxu0 0.0
        %3754 = vmatpush1.msra.mxu0 0.0
        %3755 = vmatprep.subr.mxu0 0.0
        %3756 = vmatpush1.msra.mxu0 0.0
        %3757 = vmatprep.subr.mxu0 0.0
        %3758 = vmatpush1.msra.mxu0 0.0
        %3759 = vmatprep.subr.mxu0 0.0
        %3760 = vmatpush1.msra.mxu0 0.0
        %3761 = vmatprep.subr.mxu0 0.0
        %3762 = vmatpush1.msra.mxu0 0.0
        %3763 = vmatprep.subr.mxu0 0.0
        %3764 = vmatpush1.msra.mxu0 0.0
        %3765 = vmatprep.subr.mxu0 0.0
        %3766 = vmatpush1.msra.mxu0 0.0
        %3767 = vmatprep.subr.mxu0 0.0
        %3768 = vmatpush1.msra.mxu0 0.0
        %3769 = vmatprep.subr.mxu0 0.0
        %3770 = vmatpush1.msra.mxu0 0.0
        %3771 = vmatprep.subr.mxu0 0.0
        %3772 = vmatpush1.msra.mxu0 0.0
        %3773 = vmatprep.subr.mxu0 0.0
        %3774 = vmatpush1.msra.mxu0 0.0
        %3775 = vmatprep.subr.mxu0 0.0
        %3776 = vmatpush1.msra.mxu0 0.0
        %3777 = vmatprep.subr.mxu0 0.0
        %3778 = vmatpush1.msra.mxu0 0.0
        %3779 = vmatprep.subr.mxu0 0.0
        %3780 = vmatpush1.msra.mxu0 0.0
        %3781 = vmatprep.subr.mxu0 0.0
        %3782 = vmatpush1.msra.mxu0 0.0
        %3783 = vmatprep.subr.mxu0 0.0
        %3784 = vmatpush1.msra.mxu0 0.0
        %3785 = vmatprep.subr.mxu0 0.0
        %3786 = vmatpush1.msra.mxu0 0.0
        %3787 = vmatprep.mubr.f32.mxu0 0.0
        %3788 = vmatmul.mubr.f32.gmra.mrb[0].mxu0 %v3434
        %v3789 = vpop.f32.mrb[0].mxu0
        %v3790 = vadd.f32 %v3565, %v3789
        %v3791 = vpop.f32.mrb[0].mxu0
        %3792 = vmatprep.mubr.f32.mxu0 0.0
        %3793 = vmatmul.mubr.f32.gmra.mrb[0].mxu0 %v3436
        %v3794 = vpop.f32.mrb[0].mxu0
        %v3795 = vadd.f32 %v3570, %v3794
        %v3796 = vpop.f32.mrb[0].mxu0
        %3797 = vmatprep.mubr.f32.mxu0 0.0
        %3798 = vmatmul.mubr.f32.gmra.mrb[0].mxu0 %v3438
        %v3799 = vpop.f32.mrb[0].mxu0
        %v3800 = vadd.f32 %v3575, %v3799
        %v3801 = vpop.f32.mrb[0].mxu0
        %3802 = vmatprep.mubr.f32.mxu0 0.0
        %3803 = vmatmul.mubr.f32.gmra.mrb[0].mxu0 %v3440
        %v3804 = vpop.f32.mrb[0].mxu0
        %v3805 = vadd.f32 %v3580, %v3804
        %v3806 = vpop.f32.mrb[0].mxu0
        %3807 = vmatprep.mubr.f32.mxu0 0.0
        %3808 = vmatmul.mubr.f32.gmra.mrb[0].mxu0 %v3442
        %v3809 = vpop.f32.mrb[0].mxu0
        %v3810 = vadd.f32 %v3585, %v3809
        %v3811 = vpop.f32.mrb[0].mxu0
        %3812 = vmatprep.mubr.f32.mxu0 0.0
        %3813 = vmatmul.mubr.f32.gmra.mrb[0].mxu0 %v3444
        %v3814 = vpop.f32.mrb[0].mxu0
        %v3815 = vadd.f32 %v3590, %v3814
        %v3816 = vpop.f32.mrb[0].mxu0
        %3817 = vmatprep.mubr.f32.mxu0 0.0
        %3818 = vmatmul.mubr.f32.gmra.mrb[0].mxu0 %v3446
        %v3819 = vpop.f32.mrb[0].mxu0
        %v3820 = vadd.f32 %v3595, %v3819
        %v3821 = vpop.f32.mrb[0].mxu0
        %3822 = vmatprep.mubr.f32.mxu0 0.0
        %3823 = vmatmul.mubr.f32.gmra.mrb[0].mxu0 %v3448
        %v3824 = vpop.f32.mrb[0].mxu0
        %v3825 = vadd.f32 %v3600, %v3824
        %v3826 = vpop.f32.mrb[0].mxu0
        %3827 = vmatprep.mubr.f32.mxu0 0.0
        %3828 = vmatmul.mubr.f32.gmra.mrb[0].mxu0 %v3450
        %v3829 = vpop.f32.mrb[0].mxu0
        %v3830 = vadd.f32 %v3605, %v3829
        %v3831 = vpop.f32.mrb[0].mxu0
        %3832 = vmatprep.mubr.f32.mxu0 0.0
        %3833 = vmatmul.mubr.f32.gmra.mrb[0].mxu0 %v3452
        %v3834 = vpop.f32.mrb[0].mxu0
        %v3835 = vadd.f32 %v3610, %v3834
        %v3836 = vpop.f32.mrb[0].mxu0
        %3837 = vmatprep.mubr.f32.mxu0 0.0
        %3838 = vmatmul.mubr.f32.gmra.mrb[0].mxu0 %v3454
        %v3839 = vpop.f32.mrb[0].mxu0
        %v3840 = vadd.f32 %v3615, %v3839
        %v3841 = vpop.f32.mrb[0].mxu0
        %3842 = vmatprep.mubr.f32.mxu0 0.0
        %3843 = vmatmul.mubr.f32.gmra.mrb[0].mxu0 %v3456
        %v3844 = vpop.f32.mrb[0].mxu0
        %v3845 = vadd.f32 %v3620, %v3844
        %v3846 = vpop.f32.mrb[0].mxu0
        %3847 = vmatprep.mubr.f32.mxu0 0.0
        %3848 = vmatmul.mubr.f32.gmra.mrb[0].mxu0 %v3458
        %v3849 = vpop.f32.mrb[0].mxu0
        %v3850 = vadd.f32 %v3625, %v3849
        %v3851 = vpop.f32.mrb[0].mxu0
        %3852 = vmatprep.mubr.f32.mxu0 0.0
        %3853 = vmatmul.mubr.f32.gmra.mrb[0].mxu0 %v3460
        %v3854 = vpop.f32.mrb[0].mxu0
        %v3855 = vadd.f32 %v3630, %v3854
        %v3856 = vpop.f32.mrb[0].mxu0
        %3857 = vmatprep.mubr.f32.mxu0 0.0
        %3858 = vmatmul.mubr.f32.gmra.mrb[0].mxu0 %v3462
        %v3859 = vpop.f32.mrb[0].mxu0
        %v3860 = vadd.f32 %v3635, %v3859
        %v3861 = vpop.f32.mrb[0].mxu0
        %3862 = vmatprep.mubr.f32.mxu0 0.0
        %3863 = vmatmul.mubr.f32.gmra.mrb[0].mxu0 %v3464
        %v3864 = vpop.f32.mrb[0].mxu0
        %v3865 = vadd.f32 %v3640, %v3864
        %v3866 = vpop.f32.mrb[0].mxu0
        %3867 = vmatprep.mubr.f32.mxu0 0.0
        %3868 = vmatmul.mubr.f32.gmra.mrb[0].mxu0 %v3466
        %v3869 = vpop.f32.mrb[0].mxu0
        %v3870 = vadd.f32 %v3645, %v3869
        %v3871 = vpop.f32.mrb[0].mxu0
        %3872 = vmatprep.mubr.f32.mxu0 0.0
        %3873 = vmatmul.mubr.f32.gmra.mrb[0].mxu0 %v3468
        %v3874 = vpop.f32.mrb[0].mxu0
        %v3875 = vadd.f32 %v3650, %v3874
        %v3876 = vpop.f32.mrb[0].mxu0
        %3877 = vmatprep.mubr.f32.mxu0 0.0
        %3878 = vmatmul.mubr.f32.gmra.mrb[0].mxu0 %v3470
        %v3879 = vpop.f32.mrb[0].mxu0
        %v3880 = vadd.f32 %v3655, %v3879
        %v3881 = vpop.f32.mrb[0].mxu0
        %3882 = vmatprep.mubr.f32.mxu0 0.0
        %3883 = vmatmul.mubr.f32.gmra.mrb[0].mxu0 %v3472
        %v3884 = vpop.f32.mrb[0].mxu0
        %v3885 = vadd.f32 %v3660, %v3884
        %v3886 = vpop.f32.mrb[0].mxu0
        %3887 = vmatprep.mubr.f32.mxu0 0.0
        %3888 = vmatmul.mubr.f32.gmra.mrb[0].mxu0 %v3474
        %v3889 = vpop.f32.mrb[0].mxu0
        %v3890 = vadd.f32 %v3665, %v3889
        %v3891 = vpop.f32.mrb[0].mxu0
        %3892 = vmatprep.mubr.f32.mxu0 0.0
        %3893 = vmatmul.mubr.f32.gmra.mrb[0].mxu0 %v3476
        %v3894 = vpop.f32.mrb[0].mxu0
        %v3895 = vadd.f32 %v3670, %v3894
        %v3896 = vpop.f32.mrb[0].mxu0
        %3897 = vmatprep.mubr.f32.mxu0 0.0
        %3898 = vmatmul.mubr.f32.gmra.mrb[0].mxu0 %v3478
        %v3899 = vpop.f32.mrb[0].mxu0
        %v3900 = vadd.f32 %v3675, %v3899
        %v3901 = vpop.f32.mrb[0].mxu0
        %3902 = vmatprep.mubr.f32.mxu0 0.0
        %3903 = vmatmul.mubr.f32.gmra.mrb[0].mxu0 %v3480
        %v3904 = vpop.f32.mrb[0].mxu0
        %v3905 = vadd.f32 %v3680, %v3904
        %v3906 = vpop.f32.mrb[0].mxu0
        %3907 = vmatprep.mubr.f32.mxu0 0.0
        %3908 = vmatmul.mubr.f32.gmra.mrb[0].mxu0 %v3482
        %v3909 = vpop.f32.mrb[0].mxu0
        %v3910 = vadd.f32 %v3685, %v3909
        %v3911 = vpop.f32.mrb[0].mxu0
        %3912 = vmatprep.mubr.f32.mxu0 0.0
        %3913 = vmatmul.mubr.f32.gmra.mrb[0].mxu0 %v3484
        %v3914 = vpop.f32.mrb[0].mxu0
        %v3915 = vadd.f32 %v3690, %v3914
        %v3916 = vpop.f32.mrb[0].mxu0
        %3917 = vmatprep.mubr.f32.mxu0 0.0
        %3918 = vmatmul.mubr.f32.gmra.mrb[0].mxu0 %v3486
        %v3919 = vpop.f32.mrb[0].mxu0
        %v3920 = vadd.f32 %v3695, %v3919
        %v3921 = vpop.f32.mrb[0].mxu0
        %3922 = vmatprep.mubr.f32.mxu0 0.0
        %3923 = vmatmul.mubr.f32.gmra.mrb[0].mxu0 %v3488
        %v3924 = vpop.f32.mrb[0].mxu0
        %v3925 = vadd.f32 %v3700, %v3924
        %v3926 = vpop.f32.mrb[0].mxu0
        %3927 = vmatprep.mubr.f32.mxu0 0.0
        %3928 = vmatmul.mubr.f32.gmra.mrb[0].mxu0 %v3490
        %v3929 = vpop.f32.mrb[0].mxu0
        %v3930 = vadd.f32 %v3705, %v3929
        %v3931 = vpop.f32.mrb[0].mxu0
        %3932 = vmatprep.mubr.f32.mxu0 0.0
        %3933 = vmatmul.mubr.f32.gmra.mrb[0].mxu0 %v3492
        %v3934 = vpop.f32.mrb[0].mxu0
        %v3935 = vadd.f32 %v3710, %v3934
        %v3936 = vpop.f32.mrb[0].mxu0
        %3937 = vmatprep.mubr.f32.mxu0 0.0
        %3938 = vmatmul.mubr.f32.gmra.mrb[0].mxu0 %v3494
        %v3939 = vpop.f32.mrb[0].mxu0
        %v3940 = vadd.f32 %v3715, %v3939
        %v3941 = vpop.f32.mrb[0].mxu0
        %3942 = vmatprep.mubr.f32.mxu0 0.0
        %3943 = vmatmul.mubr.f32.gmra.mrb[0].mxu0 %v3496
        %v3944 = vpop.f32.mrb[0].mxu0
        %v3945 = vadd.f32 %v3720, %v3944
        %v3946 = vpop.f32.mrb[0].mxu0
        %3947 = vdwg.mxu0
        %v3948 = vmax.f32 %v3790, 0.0
        %v3949 = vmax.f32 %v3795, 0.0
        %v3950 = vmax.f32 %v3800, 0.0
        %v3951 = vmax.f32 %v3805, 0.0
        %v3952 = vmax.f32 %v3810, 0.0
        %v3953 = vmax.f32 %v3815, 0.0
        %v3954 = vmax.f32 %v3820, 0.0
        %v3955 = vmax.f32 %v3825, 0.0
        %v3956 = vmax.f32 %v3830, 0.0
        %v3957 = vmax.f32 %v3835, 0.0
        %v3958 = vmax.f32 %v3840, 0.0
        %v3959 = vmax.f32 %v3845, 0.0
        %v3960 = vmax.f32 %v3850, 0.0
        %v3961 = vmax.f32 %v3855, 0.0
        %v3962 = vmax.f32 %v3860, 0.0
        %v3963 = vmax.f32 %v3865, 0.0
        %v3964 = vmax.f32 %v3870, 0.0
        %v3965 = vmax.f32 %v3875, 0.0
        %v3966 = vmax.f32 %v3880, 0.0
        %v3967 = vmax.f32 %v3885, 0.0
        %v3968 = vmax.f32 %v3890, 0.0
        %v3969 = vmax.f32 %v3895, 0.0
        %v3970 = vmax.f32 %v3900, 0.0
        %v3971 = vmax.f32 %v3905, 0.0
        %v3972 = vmax.f32 %v3910, 0.0
        %v3973 = vmax.f32 %v3915, 0.0
        %v3974 = vmax.f32 %v3920, 0.0
        %v3975 = vmax.f32 %v3925, 0.0
        %v3976 = vmax.f32 %v3930, 0.0
        %v3977 = vmax.f32 %v3935, 0.0
        %v3978 = vmax.f32 %v3940, 0.0
        %v3979 = vmax.f32 %v3945, 0.0
        %v3980 = vld [vmem:[#allocation7] sm:$0xff]
        %v3981 = vld [vmem:[#allocation7 + $0x8] sm:$0xff]
        %v3983 = vsel %vm1663, %v3948, 0
        %v3986 = vsel %vm1663, %v3949, 0
        %v3989 = vsel %vm1663, %v3950, 0
        %v3992 = vsel %vm1663, %v3951, 0
        %v3995 = vsel %vm1663, %v3952, 0
        %v3998 = vsel %vm1663, %v3953, 0
        %v4001 = vsel %vm1663, %v3954, 0
        %v4004 = vsel %vm1663, %v3955, 0
        %v4007 = vsel %vm1663, %v3956, 0
        %v4010 = vsel %vm1663, %v3957, 0
        %v4013 = vsel %vm1663, %v3958, 0
        %v4016 = vsel %vm1663, %v3959, 0
        %v4019 = vsel %vm1663, %v3960, 0
        %v4022 = vsel %vm1663, %v3961, 0
        %v4025 = vsel %vm1663, %v3962, 0
        %v4028 = vsel %vm1663, %v3963, 0
        %v4031 = vsel %vm1663, %v3964, 0
        %v4034 = vsel %vm1663, %v3965, 0
        %v4037 = vsel %vm1663, %v3966, 0
        %v4040 = vsel %vm1663, %v3967, 0
        %v4043 = vsel %vm1663, %v3968, 0
        %v4046 = vsel %vm1663, %v3969, 0
        %v4049 = vsel %vm1663, %v3970, 0
        %v4052 = vsel %vm1663, %v3971, 0
        %v4055 = vsel %vm1663, %v3972, 0
        %v4058 = vsel %vm1663, %v3973, 0
        %v4061 = vsel %vm1663, %v3974, 0
        %v4064 = vsel %vm1663, %v3975, 0
        %v4067 = vsel %vm1663, %v3976, 0
        %v4070 = vsel %vm1663, %v3977, 0
        %v4073 = vsel %vm1663, %v3978, 0
        %v4076 = vsel %vm1663, %v3979, 0
        %4078 = vmatprep.subr.mxu0 0.0
        %4079 = vmatpush1.msra.mxu0 %v3980
        %4080 = vmatprep.subr.mxu0 0.0
        %4081 = vmatpush1.msra.mxu0 %v3981
        %4082 = vmatprep.subr.mxu0 0.0
        %4083 = vmatpush1.msra.mxu0 0.0
        %4084 = vmatprep.subr.mxu0 0.0
        %4085 = vmatpush1.msra.mxu0 0.0
        %4086 = vmatprep.subr.mxu0 0.0
        %4087 = vmatpush1.msra.mxu0 0.0
        %4088 = vmatprep.subr.mxu0 0.0
        %4089 = vmatpush1.msra.mxu0 0.0
        %4090 = vmatprep.subr.mxu0 0.0
        %4091 = vmatpush1.msra.mxu0 0.0
        %4092 = vmatprep.subr.mxu0 0.0
        %4093 = vmatpush1.msra.mxu0 0.0
        %4094 = vmatprep.subr.mxu0 0.0
        %4095 = vmatpush1.msra.mxu0 0.0
        %4096 = vmatprep.subr.mxu0 0.0
        %4097 = vmatpush1.msra.mxu0 0.0
        %4098 = vmatprep.subr.mxu0 0.0
        %4099 = vmatpush1.msra.mxu0 0.0
        %4100 = vmatprep.subr.mxu0 0.0
        %4101 = vmatpush1.msra.mxu0 0.0
        %4102 = vmatprep.subr.mxu0 0.0
        %4103 = vmatpush1.msra.mxu0 0.0
        %4104 = vmatprep.subr.mxu0 0.0
        %4105 = vmatpush1.msra.mxu0 0.0
        %4106 = vmatprep.subr.mxu0 0.0
        %4107 = vmatpush1.msra.mxu0 0.0
        %4108 = vmatprep.subr.mxu0 0.0
        %4109 = vmatpush1.msra.mxu0 0.0
        %4110 = vmatprep.subr.mxu0 0.0
        %4111 = vmatpush1.msra.mxu0 0.0
        %4112 = vmatprep.subr.mxu0 0.0
        %4113 = vmatpush1.msra.mxu0 0.0
        %4114 = vmatprep.subr.mxu0 0.0
        %4115 = vmatpush1.msra.mxu0 0.0
        %4116 = vmatprep.subr.mxu0 0.0
        %4117 = vmatpush1.msra.mxu0 0.0
        %4118 = vmatprep.subr.mxu0 0.0
        %4119 = vmatpush1.msra.mxu0 0.0
        %4120 = vmatprep.subr.mxu0 0.0
        %4121 = vmatpush1.msra.mxu0 0.0
        %4122 = vmatprep.subr.mxu0 0.0
        %4123 = vmatpush1.msra.mxu0 0.0
        %4124 = vmatprep.subr.mxu0 0.0
        %4125 = vmatpush1.msra.mxu0 0.0
        %4126 = vmatprep.subr.mxu0 0.0
        %4127 = vmatpush1.msra.mxu0 0.0
        %4128 = vmatprep.subr.mxu0 0.0
        %4129 = vmatpush1.msra.mxu0 0.0
        %4130 = vmatprep.subr.mxu0 0.0
        %4131 = vmatpush1.msra.mxu0 0.0
        %4132 = vmatprep.subr.mxu0 0.0
        %4133 = vmatpush1.msra.mxu0 0.0
        %4134 = vmatprep.subr.mxu0 0.0
        %4135 = vmatpush1.msra.mxu0 0.0
        %4136 = vmatprep.subr.mxu0 0.0
        %4137 = vmatpush1.msra.mxu0 0.0
        %4138 = vmatprep.subr.mxu0 0.0
        %4139 = vmatpush1.msra.mxu0 0.0
        %4140 = vmatprep.subr.mxu0 0.0
        %4141 = vmatpush1.msra.mxu0 0.0
        %4142 = vmatprep.mubr.f32.mxu0 0.0
        %4143 = vmatmul.mubr.f32.gmra.mrb[0].mxu0 %v3983
        %v4144 = vpop.f32.mrb[0].mxu0
        %v4145 = vadd.f32 0.0, %v4144
        %v4146 = vpop.f32.mrb[0].mxu0
        %4147 = vmatprep.mubr.f32.mxu0 0.0
        %4148 = vmatmul.mubr.f32.gmra.mrb[0].mxu0 %v3986
        %v4149 = vpop.f32.mrb[0].mxu0
        %v4150 = vadd.f32 0.0, %v4149
        %v4151 = vpop.f32.mrb[0].mxu0
        %4152 = vmatprep.mubr.f32.mxu0 0.0
        %4153 = vmatmul.mubr.f32.gmra.mrb[0].mxu0 %v3989
        %v4154 = vpop.f32.mrb[0].mxu0
        %v4155 = vadd.f32 0.0, %v4154
        %v4156 = vpop.f32.mrb[0].mxu0
        %4157 = vmatprep.mubr.f32.mxu0 0.0
        %4158 = vmatmul.mubr.f32.gmra.mrb[0].mxu0 %v3992
        %v4159 = vpop.f32.mrb[0].mxu0
        %v4160 = vadd.f32 0.0, %v4159
        %v4161 = vpop.f32.mrb[0].mxu0
        %4162 = vmatprep.mubr.f32.mxu0 0.0
        %4163 = vmatmul.mubr.f32.gmra.mrb[0].mxu0 %v3995
        %v4164 = vpop.f32.mrb[0].mxu0
        %v4165 = vadd.f32 0.0, %v4164
        %v4166 = vpop.f32.mrb[0].mxu0
        %4167 = vmatprep.mubr.f32.mxu0 0.0
        %4168 = vmatmul.mubr.f32.gmra.mrb[0].mxu0 %v3998
        %v4169 = vpop.f32.mrb[0].mxu0
        %v4170 = vadd.f32 0.0, %v4169
        %v4171 = vpop.f32.mrb[0].mxu0
        %4172 = vmatprep.mubr.f32.mxu0 0.0
        %4173 = vmatmul.mubr.f32.gmra.mrb[0].mxu0 %v4001
        %v4174 = vpop.f32.mrb[0].mxu0
        %v4175 = vadd.f32 0.0, %v4174
        %v4176 = vpop.f32.mrb[0].mxu0
        %4177 = vmatprep.mubr.f32.mxu0 0.0
        %4178 = vmatmul.mubr.f32.gmra.mrb[0].mxu0 %v4004
        %v4179 = vpop.f32.mrb[0].mxu0
        %v4180 = vadd.f32 0.0, %v4179
        %v4181 = vpop.f32.mrb[0].mxu0
        %4182 = vmatprep.mubr.f32.mxu0 0.0
        %4183 = vmatmul.mubr.f32.gmra.mrb[0].mxu0 %v4007
        %v4184 = vpop.f32.mrb[0].mxu0
        %v4185 = vadd.f32 0.0, %v4184
        %v4186 = vpop.f32.mrb[0].mxu0
        %4187 = vmatprep.mubr.f32.mxu0 0.0
        %4188 = vmatmul.mubr.f32.gmra.mrb[0].mxu0 %v4010
        %v4189 = vpop.f32.mrb[0].mxu0
        %v4190 = vadd.f32 0.0, %v4189
        %v4191 = vpop.f32.mrb[0].mxu0
        %4192 = vmatprep.mubr.f32.mxu0 0.0
        %4193 = vmatmul.mubr.f32.gmra.mrb[0].mxu0 %v4013
        %v4194 = vpop.f32.mrb[0].mxu0
        %v4195 = vadd.f32 0.0, %v4194
        %v4196 = vpop.f32.mrb[0].mxu0
        %4197 = vmatprep.mubr.f32.mxu0 0.0
        %4198 = vmatmul.mubr.f32.gmra.mrb[0].mxu0 %v4016
        %v4199 = vpop.f32.mrb[0].mxu0
        %v4200 = vadd.f32 0.0, %v4199
        %v4201 = vpop.f32.mrb[0].mxu0
        %4202 = vmatprep.mubr.f32.mxu0 0.0
        %4203 = vmatmul.mubr.f32.gmra.mrb[0].mxu0 %v4019
        %v4204 = vpop.f32.mrb[0].mxu0
        %v4205 = vadd.f32 0.0, %v4204
        %v4206 = vpop.f32.mrb[0].mxu0
        %4207 = vmatprep.mubr.f32.mxu0 0.0
        %4208 = vmatmul.mubr.f32.gmra.mrb[0].mxu0 %v4022
        %v4209 = vpop.f32.mrb[0].mxu0
        %v4210 = vadd.f32 0.0, %v4209
        %v4211 = vpop.f32.mrb[0].mxu0
        %4212 = vmatprep.mubr.f32.mxu0 0.0
        %4213 = vmatmul.mubr.f32.gmra.mrb[0].mxu0 %v4025
        %v4214 = vpop.f32.mrb[0].mxu0
        %v4215 = vadd.f32 0.0, %v4214
        %v4216 = vpop.f32.mrb[0].mxu0
        %4217 = vmatprep.mubr.f32.mxu0 0.0
        %4218 = vmatmul.mubr.f32.gmra.mrb[0].mxu0 %v4028
        %v4219 = vpop.f32.mrb[0].mxu0
        %v4220 = vadd.f32 0.0, %v4219
        %v4221 = vpop.f32.mrb[0].mxu0
        %4222 = vmatprep.mubr.f32.mxu0 0.0
        %4223 = vmatmul.mubr.f32.gmra.mrb[0].mxu0 %v4031
        %v4224 = vpop.f32.mrb[0].mxu0
        %v4225 = vadd.f32 0.0, %v4224
        %v4226 = vpop.f32.mrb[0].mxu0
        %4227 = vmatprep.mubr.f32.mxu0 0.0
        %4228 = vmatmul.mubr.f32.gmra.mrb[0].mxu0 %v4034
        %v4229 = vpop.f32.mrb[0].mxu0
        %v4230 = vadd.f32 0.0, %v4229
        %v4231 = vpop.f32.mrb[0].mxu0
        %4232 = vmatprep.mubr.f32.mxu0 0.0
        %4233 = vmatmul.mubr.f32.gmra.mrb[0].mxu0 %v4037
        %v4234 = vpop.f32.mrb[0].mxu0
        %v4235 = vadd.f32 0.0, %v4234
        %v4236 = vpop.f32.mrb[0].mxu0
        %4237 = vmatprep.mubr.f32.mxu0 0.0
        %4238 = vmatmul.mubr.f32.gmra.mrb[0].mxu0 %v4040
        %v4239 = vpop.f32.mrb[0].mxu0
        %v4240 = vadd.f32 0.0, %v4239
        %v4241 = vpop.f32.mrb[0].mxu0
        %4242 = vmatprep.mubr.f32.mxu0 0.0
        %4243 = vmatmul.mubr.f32.gmra.mrb[0].mxu0 %v4043
        %v4244 = vpop.f32.mrb[0].mxu0
        %v4245 = vadd.f32 0.0, %v4244
        %v4246 = vpop.f32.mrb[0].mxu0
        %4247 = vmatprep.mubr.f32.mxu0 0.0
        %4248 = vmatmul.mubr.f32.gmra.mrb[0].mxu0 %v4046
        %v4249 = vpop.f32.mrb[0].mxu0
        %v4250 = vadd.f32 0.0, %v4249
        %v4251 = vpop.f32.mrb[0].mxu0
        %4252 = vmatprep.mubr.f32.mxu0 0.0
        %4253 = vmatmul.mubr.f32.gmra.mrb[0].mxu0 %v4049
        %v4254 = vpop.f32.mrb[0].mxu0
        %v4255 = vadd.f32 0.0, %v4254
        %v4256 = vpop.f32.mrb[0].mxu0
        %4257 = vmatprep.mubr.f32.mxu0 0.0
        %4258 = vmatmul.mubr.f32.gmra.mrb[0].mxu0 %v4052
        %v4259 = vpop.f32.mrb[0].mxu0
        %v4260 = vadd.f32 0.0, %v4259
        %v4261 = vpop.f32.mrb[0].mxu0
        %4262 = vmatprep.mubr.f32.mxu0 0.0
        %4263 = vmatmul.mubr.f32.gmra.mrb[0].mxu0 %v4055
        %v4264 = vpop.f32.mrb[0].mxu0
        %v4265 = vadd.f32 0.0, %v4264
        %v4266 = vpop.f32.mrb[0].mxu0
        %4267 = vmatprep.mubr.f32.mxu0 0.0
        %4268 = vmatmul.mubr.f32.gmra.mrb[0].mxu0 %v4058
        %v4269 = vpop.f32.mrb[0].mxu0
        %v4270 = vadd.f32 0.0, %v4269
        %v4271 = vpop.f32.mrb[0].mxu0
        %4272 = vmatprep.mubr.f32.mxu0 0.0
        %4273 = vmatmul.mubr.f32.gmra.mrb[0].mxu0 %v4061
        %v4274 = vpop.f32.mrb[0].mxu0
        %v4275 = vadd.f32 0.0, %v4274
        %v4276 = vpop.f32.mrb[0].mxu0
        %4277 = vmatprep.mubr.f32.mxu0 0.0
        %4278 = vmatmul.mubr.f32.gmra.mrb[0].mxu0 %v4064
        %v4279 = vpop.f32.mrb[0].mxu0
        %v4280 = vadd.f32 0.0, %v4279
        %v4281 = vpop.f32.mrb[0].mxu0
        %4282 = vmatprep.mubr.f32.mxu0 0.0
        %4283 = vmatmul.mubr.f32.gmra.mrb[0].mxu0 %v4067
        %v4284 = vpop.f32.mrb[0].mxu0
        %v4285 = vadd.f32 0.0, %v4284
        %v4286 = vpop.f32.mrb[0].mxu0
        %4287 = vmatprep.mubr.f32.mxu0 0.0
        %4288 = vmatmul.mubr.f32.gmra.mrb[0].mxu0 %v4070
        %v4289 = vpop.f32.mrb[0].mxu0
        %v4290 = vadd.f32 0.0, %v4289
        %v4291 = vpop.f32.mrb[0].mxu0
        %4292 = vmatprep.mubr.f32.mxu0 0.0
        %4293 = vmatmul.mubr.f32.gmra.mrb[0].mxu0 %v4073
        %v4294 = vpop.f32.mrb[0].mxu0
        %v4295 = vadd.f32 0.0, %v4294
        %v4296 = vpop.f32.mrb[0].mxu0
        %4297 = vmatprep.mubr.f32.mxu0 0.0
        %4298 = vmatmul.mubr.f32.gmra.mrb[0].mxu0 %v4076
        %v4299 = vpop.f32.mrb[0].mxu0
        %v4300 = vadd.f32 0.0, %v4299
        %v4301 = vpop.f32.mrb[0].mxu0
        %4302 = vdwg.mxu0
        %v4351 = vrot.slane %v2257, 1
        %v4352 = vrot.slane %v2258, 1
        %v4353 = vsel %vm609, %v4351, %v4352
        %v4354 = vrot.slane %v2259, 1
        %v4355 = vsel %vm609, %v4352, %v4354
        %v4356 = vrot.slane %v2260, 1
        %v4357 = vrot.slane %v2261, 1
        %v4358 = vsel %vm609, %v4356, %v4357
        %v4359 = vrot.slane %v2262, 1
        %v4360 = vsel %vm609, %v4357, %v4359
        %v4361 = vrot.slane %v2263, 1
        %v4362 = vrot.slane %v2264, 1
        %v4363 = vsel %vm609, %v4361, %v4362
        %v4364 = vrot.slane %v2265, 1
        %v4365 = vsel %vm609, %v4362, %v4364
        %v4366 = vrot.slane %v2266, 1
        %v4367 = vrot.slane %v2267, 1
        %v4368 = vsel %vm609, %v4366, %v4367
        %v4369 = vrot.slane %v2268, 1
        %v4370 = vsel %vm609, %v4367, %v4369
        %v4371 = vrot.slane %v2269, 1
        %v4372 = vrot.slane %v2270, 1
        %v4373 = vsel %vm609, %v4371, %v4372
        %v4374 = vrot.slane %v2271, 1
        %v4375 = vsel %vm609, %v4372, %v4374
        %v4376 = vrot.slane %v2272, 1
        %v4377 = vrot.slane %v2273, 1
        %v4378 = vsel %vm609, %v4376, %v4377
        %v4379 = vrot.slane %v2274, 1
        %v4380 = vsel %vm609, %v4377, %v4379
        %v4381 = vrot.slane %v2275, 1
        %v4382 = vrot.slane %v2276, 1
        %v4383 = vsel %vm609, %v4381, %v4382
        %v4384 = vrot.slane %v2277, 1
        %v4385 = vsel %vm609, %v4382, %v4384
        %v4386 = vrot.slane %v2278, 1
        %v4387 = vrot.slane %v2279, 1
        %v4388 = vsel %vm609, %v4386, %v4387
        %v4389 = vrot.slane %v2280, 1
        %v4390 = vsel %vm609, %v4387, %v4389
        %v4391 = vrot.slane %v2281, 1
        %v4392 = vrot.slane %v2282, 1
        %v4393 = vsel %vm609, %v4391, %v4392
        %v4394 = vrot.slane %v2283, 1
        %v4395 = vsel %vm609, %v4392, %v4394
        %v4396 = vrot.slane %v2284, 1
        %v4397 = vrot.slane %v2285, 1
        %v4398 = vsel %vm609, %v4396, %v4397
        %v4399 = vrot.slane %v2286, 1
        %v4400 = vsel %vm609, %v4397, %v4399
        %v4401 = vrot.slane %v2287, 1
        %v4402 = vrot.slane %v2288, 1
        %v4403 = vsel %vm609, %v4401, %v4402
        %v4404 = vrot.slane %v2289, 1
        %v4405 = vsel %vm609, %v4402, %v4404
        %v4406 = vrot.slane %v2290, 1
        %v4407 = vrot.slane %v2291, 1
        %v4408 = vsel %vm609, %v4406, %v4407
        %v4409 = vrot.slane %v2292, 1
        %v4410 = vsel %vm609, %v4407, %v4409
        %v4411 = vrot.slane %v2293, 1
        %v4412 = vrot.slane %v2294, 1
        %v4413 = vsel %vm609, %v4411, %v4412
        %v4414 = vrot.slane %v2295, 1
        %v4415 = vsel %vm609, %v4412, %v4414
        %v4416 = vrot.slane %v2296, 1
        %v4417 = vrot.slane %v2297, 1
        %v4418 = vsel %vm609, %v4416, %v4417
        %v4419 = vrot.slane %v2298, 1
        %v4420 = vsel %vm609, %v4417, %v4419
        %v4421 = vrot.slane %v2299, 1
        %v4422 = vrot.slane %v2300, 1
        %v4423 = vsel %vm609, %v4421, %v4422
        %v4424 = vrot.slane %v2301, 1
        %v4425 = vsel %vm609, %v4422, %v4424
        %v4426 = vrot.slane %v2302, 1
        %v4427 = vrot.slane %v2303, 1
        %v4428 = vsel %vm609, %v4426, %v4427
        %v4429 = vrot.slane %v2304, 1
        %v4430 = vsel %vm609, %v4427, %v4429
        %v4463 = vadd.f32 %v4353, %v4145
        %v4464 = vadd.f32 %v4355, %v4150
        %v4465 = vadd.f32 %v4358, %v4155
        %v4466 = vadd.f32 %v4360, %v4160
        %v4467 = vadd.f32 %v4363, %v4165
        %v4468 = vadd.f32 %v4365, %v4170
        %v4469 = vadd.f32 %v4368, %v4175
        %v4470 = vadd.f32 %v4370, %v4180
        %v4471 = vadd.f32 %v4373, %v4185
        %v4472 = vadd.f32 %v4375, %v4190
        %v4473 = vadd.f32 %v4378, %v4195
        %v4474 = vadd.f32 %v4380, %v4200
        %v4475 = vadd.f32 %v4383, %v4205
        %v4476 = vadd.f32 %v4385, %v4210
        %v4477 = vadd.f32 %v4388, %v4215
        %v4478 = vadd.f32 %v4390, %v4220
        %v4479 = vadd.f32 %v4393, %v4225
        %v4480 = vadd.f32 %v4395, %v4230
        %v4481 = vadd.f32 %v4398, %v4235
        %v4482 = vadd.f32 %v4400, %v4240
        %v4483 = vadd.f32 %v4403, %v4245
        %v4484 = vadd.f32 %v4405, %v4250
        %v4485 = vadd.f32 %v4408, %v4255
        %v4486 = vadd.f32 %v4410, %v4260
        %v4487 = vadd.f32 %v4413, %v4265
        %v4488 = vadd.f32 %v4415, %v4270
        %v4489 = vadd.f32 %v4418, %v4275
        %v4490 = vadd.f32 %v4420, %v4280
        %v4491 = vadd.f32 %v4423, %v4285
        %v4492 = vadd.f32 %v4425, %v4290
        %v4493 = vadd.f32 %v4428, %v4295
        %v4494 = vadd.f32 %v4430, %v4300
        %4495 = vst.msk [vmem:[%s2221 + $0x1] sm:$0xff] %vm1795, %v4463
        %4496 = vst.msk [vmem:[%s2221 + $0x9] sm:$0xff] %vm1795, %v4464
        %4497 = vst.msk [vmem:[%s2221 + $0x19] sm:$0xff] %vm1795, %v4465
        %4498 = vst.msk [vmem:[%s2221 + $0x21] sm:$0xff] %vm1795, %v4466
        %4499 = vst.msk [vmem:[%s2221 + $0x31] sm:$0xff] %vm1795, %v4467
        %4500 = vst.msk [vmem:[%s2221 + $0x39] sm:$0xff] %vm1795, %v4468
        %4501 = vst.msk [vmem:[%s2221 + $0x49] sm:$0xff] %vm1795, %v4469
        %4502 = vst.msk [vmem:[%s2221 + $0x51] sm:$0xff] %vm1795, %v4470
        %4503 = vst.msk [vmem:[%s2221 + $0x61] sm:$0xff] %vm1795, %v4471
        %4504 = vst.msk [vmem:[%s2221 + $0x69] sm:$0xff] %vm1795, %v4472
        %4505 = vst.msk [vmem:[%s2221 + $0x79] sm:$0xff] %vm1795, %v4473
        %4506 = vst.msk [vmem:[%s2221 + $0x81] sm:$0xff] %vm1795, %v4474
        %4507 = vst.msk [vmem:[%s2221 + $0x91] sm:$0xff] %vm1795, %v4475
        %4508 = vst.msk [vmem:[%s2221 + $0x99] sm:$0xff] %vm1795, %v4476
        %4509 = vst.msk [vmem:[%s2221 + $0xa9] sm:$0xff] %vm1795, %v4477
        %4510 = vst.msk [vmem:[%s2221 + $0xb1] sm:$0xff] %vm1795, %v4478
        %4511 = vst.msk [vmem:[%s2221 + $0xc1] sm:$0xff] %vm1795, %v4479
        %4512 = vst.msk [vmem:[%s2221 + $0xc9] sm:$0xff] %vm1795, %v4480
        %4513 = vst.msk [vmem:[%s2221 + $0xd9] sm:$0xff] %vm1795, %v4481
        %4514 = vst.msk [vmem:[%s2221 + $0xe1] sm:$0xff] %vm1795, %v4482
        %4515 = vst.msk [vmem:[%s2221 + $0xf1] sm:$0xff] %vm1795, %v4483
        %4516 = vst.msk [vmem:[%s2221 + $0xf9] sm:$0xff] %vm1795, %v4484
        %4517 = vst.msk [vmem:[%s2221 + $0x109] sm:$0xff] %vm1795, %v4485
        %4518 = vst.msk [vmem:[%s2221 + $0x111] sm:$0xff] %vm1795, %v4486
        %4519 = vst.msk [vmem:[%s2221 + $0x121] sm:$0xff] %vm1795, %v4487
        %4520 = vst.msk [vmem:[%s2221 + $0x129] sm:$0xff] %vm1795, %v4488
        %4521 = vst.msk [vmem:[%s2221 + $0x139] sm:$0xff] %vm1795, %v4489
        %4522 = vst.msk [vmem:[%s2221 + $0x141] sm:$0xff] %vm1795, %v4490
        %4523 = vst.msk [vmem:[%s2221 + $0x151] sm:$0xff] %vm1795, %v4491
        %4524 = vst.msk [vmem:[%s2221 + $0x159] sm:$0xff] %vm1795, %v4492
        %4525 = vst.msk [vmem:[%s2221 + $0x169] sm:$0xff] %vm1795, %v4493
        %4526 = vst.msk [vmem:[%s2221 + $0x171] sm:$0xff] %vm1795, %v4494
        %v4527 = vld [vmem:[#allocation3] sm:$0xff]
        %v4528 = vld [vmem:[#allocation3 + $0x8] sm:$0xff]
        %v4529 = vld [vmem:[#allocation3 + $0x10] sm:$0x3]
        %v4530 = vld [vmem:[#allocation3 + $0x18] sm:$0xff]
        %v4531 = vld [vmem:[#allocation3 + $0x20] sm:$0xff]
        %v4532 = vld [vmem:[#allocation3 + $0x28] sm:$0x3]
        %v4533 = vld [vmem:[#allocation3 + $0x30] sm:$0xff]
        %v4534 = vld [vmem:[#allocation3 + $0x38] sm:$0xff]
        %v4535 = vld [vmem:[#allocation3 + $0x40] sm:$0x3]
        %v4536 = vld [vmem:[#allocation3 + $0x48] sm:$0xff]
        %v4537 = vld [vmem:[#allocation3 + $0x50] sm:$0xff]
        %v4538 = vld [vmem:[#allocation3 + $0x58] sm:$0x3]
        %v4539 = vld [vmem:[#allocation3 + $0x60] sm:$0xff]
        %v4540 = vld [vmem:[#allocation3 + $0x68] sm:$0xff]
        %v4541 = vld [vmem:[#allocation3 + $0x70] sm:$0x3]
        %v4542 = vld [vmem:[#allocation3 + $0x78] sm:$0xff]
        %v4543 = vld [vmem:[#allocation3 + $0x80] sm:$0xff]
        %v4544 = vld [vmem:[#allocation3 + $0x88] sm:$0x3]
        %v4545 = vld [vmem:[#allocation3 + $0x90] sm:$0xff]
        %v4546 = vld [vmem:[#allocation3 + $0x98] sm:$0xff]
        %v4547 = vld [vmem:[#allocation3 + $0xa0] sm:$0x3]
        %v4548 = vld [vmem:[#allocation3 + $0xa8] sm:$0xff]
        %v4549 = vld [vmem:[#allocation3 + $0xb0] sm:$0xff]
        %v4550 = vld [vmem:[#allocation3 + $0xb8] sm:$0x3]
        %v4551 = vld [vmem:[#allocation3 + $0xc0] sm:$0xff]
        %v4552 = vld [vmem:[#allocation3 + $0xc8] sm:$0xff]
        %v4553 = vld [vmem:[#allocation3 + $0xd0] sm:$0x3]
        %v4554 = vld [vmem:[#allocation3 + $0xd8] sm:$0xff]
        %v4555 = vld [vmem:[#allocation3 + $0xe0] sm:$0xff]
        %v4556 = vld [vmem:[#allocation3 + $0xe8] sm:$0x3]
        %v4557 = vld [vmem:[#allocation3 + $0xf0] sm:$0xff]
        %v4558 = vld [vmem:[#allocation3 + $0xf8] sm:$0xff]
        %v4559 = vld [vmem:[#allocation3 + $0x100] sm:$0x3]
        %v4560 = vld [vmem:[#allocation3 + $0x108] sm:$0xff]
        %v4561 = vld [vmem:[#allocation3 + $0x110] sm:$0xff]
        %v4562 = vld [vmem:[#allocation3 + $0x118] sm:$0x3]
        %v4563 = vld [vmem:[#allocation3 + $0x120] sm:$0xff]
        %v4564 = vld [vmem:[#allocation3 + $0x128] sm:$0xff]
        %v4565 = vld [vmem:[#allocation3 + $0x130] sm:$0x3]
        %v4566 = vld [vmem:[#allocation3 + $0x138] sm:$0xff]
        %v4567 = vld [vmem:[#allocation3 + $0x140] sm:$0xff]
        %v4568 = vld [vmem:[#allocation3 + $0x148] sm:$0x3]
        %v4569 = vld [vmem:[#allocation3 + $0x150] sm:$0xff]
        %v4570 = vld [vmem:[#allocation3 + $0x158] sm:$0xff]
        %v4571 = vld [vmem:[#allocation3 + $0x160] sm:$0x3]
        %v4572 = vld [vmem:[#allocation3 + $0x168] sm:$0xff]
        %v4573 = vld [vmem:[#allocation3 + $0x170] sm:$0xff]
        %v4574 = vld [vmem:[#allocation3 + $0x178] sm:$0x3]
        %v4575 = vld [vmem:[#allocation3 + $0x180] sm:$0xff]
        %v4576 = vld [vmem:[#allocation3 + $0x188] sm:$0xff]
        %v4577 = vld [vmem:[#allocation3 + $0x190] sm:$0x3]
        %v4578 = vld [vmem:[#allocation3 + $0x198] sm:$0xff]
        %v4579 = vld [vmem:[#allocation3 + $0x1a0] sm:$0xff]
        %v4580 = vld [vmem:[#allocation3 + $0x1a8] sm:$0x3]
        %v4581 = vmax.f32 %v4527, 0.0
        %v4582 = vmax.f32 %v4528, 0.0
        %v4583 = vmax.f32 %v4529, 0.0
        %v4584 = vmax.f32 %v4530, 0.0
        %v4585 = vmax.f32 %v4531, 0.0
        %v4586 = vmax.f32 %v4532, 0.0
        %v4587 = vmax.f32 %v4533, 0.0
        %v4588 = vmax.f32 %v4534, 0.0
        %v4589 = vmax.f32 %v4535, 0.0
        %v4590 = vmax.f32 %v4536, 0.0
        %v4591 = vmax.f32 %v4537, 0.0
        %v4592 = vmax.f32 %v4538, 0.0
        %v4593 = vmax.f32 %v4539, 0.0
        %v4594 = vmax.f32 %v4540, 0.0
        %v4595 = vmax.f32 %v4541, 0.0
        %v4596 = vmax.f32 %v4542, 0.0
        %v4597 = vmax.f32 %v4543, 0.0
        %v4598 = vmax.f32 %v4544, 0.0
        %v4599 = vmax.f32 %v4545, 0.0
        %v4600 = vmax.f32 %v4546, 0.0
        %v4601 = vmax.f32 %v4547, 0.0
        %v4602 = vmax.f32 %v4548, 0.0
        %v4603 = vmax.f32 %v4549, 0.0
        %v4604 = vmax.f32 %v4550, 0.0
        %v4605 = vmax.f32 %v4551, 0.0
        %v4606 = vmax.f32 %v4552, 0.0
        %v4607 = vmax.f32 %v4553, 0.0
        %v4608 = vmax.f32 %v4554, 0.0
        %v4609 = vmax.f32 %v4555, 0.0
        %v4610 = vmax.f32 %v4556, 0.0
        %v4611 = vmax.f32 %v4557, 0.0
        %v4612 = vmax.f32 %v4558, 0.0
        %v4613 = vmax.f32 %v4559, 0.0
        %v4614 = vmax.f32 %v4560, 0.0
        %v4615 = vmax.f32 %v4561, 0.0
        %v4616 = vmax.f32 %v4562, 0.0
        %v4617 = vmax.f32 %v4563, 0.0
        %v4618 = vmax.f32 %v4564, 0.0
        %v4619 = vmax.f32 %v4565, 0.0
        %v4620 = vmax.f32 %v4566, 0.0
        %v4621 = vmax.f32 %v4567, 0.0
        %v4622 = vmax.f32 %v4568, 0.0
        %v4623 = vmax.f32 %v4569, 0.0
        %v4624 = vmax.f32 %v4570, 0.0
        %v4625 = vmax.f32 %v4571, 0.0
        %v4626 = vmax.f32 %v4572, 0.0
        %v4627 = vmax.f32 %v4573, 0.0
        %v4628 = vmax.f32 %v4574, 0.0
        %v4629 = vmax.f32 %v4575, 0.0
        %v4630 = vmax.f32 %v4576, 0.0
        %v4631 = vmax.f32 %v4577, 0.0
        %v4632 = vmax.f32 %v4578, 0.0
        %v4633 = vmax.f32 %v4579, 0.0
        %v4634 = vmax.f32 %v4580, 0.0
        %v4683 = vrot.slane %v4581, 1
        %v4684 = vrot.slane %v4582, 1
        %v4685 = vsel %vm609, %v4683, %v4684
        %v4686 = vrot.slane %v4583, 1
        %v4687 = vsel %vm609, %v4684, %v4686
        %v4688 = vrot.slane %v4584, 1
        %v4689 = vrot.slane %v4585, 1
        %v4690 = vsel %vm609, %v4688, %v4689
        %v4691 = vrot.slane %v4586, 1
        %v4692 = vsel %vm609, %v4689, %v4691
        %v4693 = vrot.slane %v4587, 1
        %v4694 = vrot.slane %v4588, 1
        %v4695 = vsel %vm609, %v4693, %v4694
        %v4696 = vrot.slane %v4589, 1
        %v4697 = vsel %vm609, %v4694, %v4696
        %v4698 = vrot.slane %v4590, 1
        %v4699 = vrot.slane %v4591, 1
        %v4700 = vsel %vm609, %v4698, %v4699
        %v4701 = vrot.slane %v4592, 1
        %v4702 = vsel %vm609, %v4699, %v4701
        %v4703 = vrot.slane %v4593, 1
        %v4704 = vrot.slane %v4594, 1
        %v4705 = vsel %vm609, %v4703, %v4704
        %v4706 = vrot.slane %v4595, 1
        %v4707 = vsel %vm609, %v4704, %v4706
        %v4708 = vrot.slane %v4596, 1
        %v4709 = vrot.slane %v4597, 1
        %v4710 = vsel %vm609, %v4708, %v4709
        %v4711 = vrot.slane %v4598, 1
        %v4712 = vsel %vm609, %v4709, %v4711
        %v4713 = vrot.slane %v4599, 1
        %v4714 = vrot.slane %v4600, 1
        %v4715 = vsel %vm609, %v4713, %v4714
        %v4716 = vrot.slane %v4601, 1
        %v4717 = vsel %vm609, %v4714, %v4716
        %v4718 = vrot.slane %v4602, 1
        %v4719 = vrot.slane %v4603, 1
        %v4720 = vsel %vm609, %v4718, %v4719
        %v4721 = vrot.slane %v4604, 1
        %v4722 = vsel %vm609, %v4719, %v4721
        %v4723 = vrot.slane %v4605, 1
        %v4724 = vrot.slane %v4606, 1
        %v4725 = vsel %vm609, %v4723, %v4724
        %v4726 = vrot.slane %v4607, 1
        %v4727 = vsel %vm609, %v4724, %v4726
        %v4728 = vrot.slane %v4608, 1
        %v4729 = vrot.slane %v4609, 1
        %v4730 = vsel %vm609, %v4728, %v4729
        %v4731 = vrot.slane %v4610, 1
        %v4732 = vsel %vm609, %v4729, %v4731
        %v4733 = vrot.slane %v4611, 1
        %v4734 = vrot.slane %v4612, 1
        %v4735 = vsel %vm609, %v4733, %v4734
        %v4736 = vrot.slane %v4613, 1
        %v4737 = vsel %vm609, %v4734, %v4736
        %v4738 = vrot.slane %v4614, 1
        %v4739 = vrot.slane %v4615, 1
        %v4740 = vsel %vm609, %v4738, %v4739
        %v4741 = vrot.slane %v4616, 1
        %v4742 = vsel %vm609, %v4739, %v4741
        %v4743 = vrot.slane %v4617, 1
        %v4744 = vrot.slane %v4618, 1
        %v4745 = vsel %vm609, %v4743, %v4744
        %v4746 = vrot.slane %v4619, 1
        %v4747 = vsel %vm609, %v4744, %v4746
        %v4748 = vrot.slane %v4620, 1
        %v4749 = vrot.slane %v4621, 1
        %v4750 = vsel %vm609, %v4748, %v4749
        %v4751 = vrot.slane %v4622, 1
        %v4752 = vsel %vm609, %v4749, %v4751
        %v4753 = vrot.slane %v4623, 1
        %v4754 = vrot.slane %v4624, 1
        %v4755 = vsel %vm609, %v4753, %v4754
        %v4756 = vrot.slane %v4625, 1
        %v4757 = vsel %vm609, %v4754, %v4756
        %v4758 = vrot.slane %v4626, 1
        %v4759 = vrot.slane %v4627, 1
        %v4760 = vsel %vm609, %v4758, %v4759
        %v4761 = vrot.slane %v4628, 1
        %v4762 = vsel %vm609, %v4759, %v4761
        %4763 = vrot.lane.b32.xlu0 %v4685, 32
        %v4764 = vpop.permute.xlu0 %4763
        %4765 = vrot.lane.b32.xlu0 %v4687, 32
        %v4766 = vpop.permute.xlu0 %4765
        %4767 = vrot.lane.b32.xlu0 %v4690, 32
        %v4768 = vpop.permute.xlu0 %4767
        %4769 = vrot.lane.b32.xlu0 %v4692, 32
        %v4770 = vpop.permute.xlu0 %4769
        %4771 = vrot.lane.b32.xlu0 %v4695, 32
        %v4772 = vpop.permute.xlu0 %4771
        %4773 = vrot.lane.b32.xlu0 %v4697, 32
        %v4774 = vpop.permute.xlu0 %4773
        %4775 = vrot.lane.b32.xlu0 %v4700, 32
        %v4776 = vpop.permute.xlu0 %4775
        %4777 = vrot.lane.b32.xlu0 %v4702, 32
        %v4778 = vpop.permute.xlu0 %4777
        %4779 = vrot.lane.b32.xlu0 %v4705, 32
        %v4780 = vpop.permute.xlu0 %4779
        %4781 = vrot.lane.b32.xlu0 %v4707, 32
        %v4782 = vpop.permute.xlu0 %4781
        %4783 = vrot.lane.b32.xlu0 %v4710, 32
        %v4784 = vpop.permute.xlu0 %4783
        %4785 = vrot.lane.b32.xlu0 %v4712, 32
        %v4786 = vpop.permute.xlu0 %4785
        %4787 = vrot.lane.b32.xlu0 %v4715, 32
        %v4788 = vpop.permute.xlu0 %4787
        %4789 = vrot.lane.b32.xlu0 %v4717, 32
        %v4790 = vpop.permute.xlu0 %4789
        %4791 = vrot.lane.b32.xlu0 %v4720, 32
        %v4792 = vpop.permute.xlu0 %4791
        %4793 = vrot.lane.b32.xlu0 %v4722, 32
        %v4794 = vpop.permute.xlu0 %4793
        %4795 = vrot.lane.b32.xlu0 %v4725, 32
        %v4796 = vpop.permute.xlu0 %4795
        %4797 = vrot.lane.b32.xlu0 %v4727, 32
        %v4798 = vpop.permute.xlu0 %4797
        %4799 = vrot.lane.b32.xlu0 %v4730, 32
        %v4800 = vpop.permute.xlu0 %4799
        %4801 = vrot.lane.b32.xlu0 %v4732, 32
        %v4802 = vpop.permute.xlu0 %4801
        %4803 = vrot.lane.b32.xlu0 %v4735, 32
        %v4804 = vpop.permute.xlu0 %4803
        %4805 = vrot.lane.b32.xlu0 %v4737, 32
        %v4806 = vpop.permute.xlu0 %4805
        %4807 = vrot.lane.b32.xlu0 %v4740, 32
        %v4808 = vpop.permute.xlu0 %4807
        %4809 = vrot.lane.b32.xlu0 %v4742, 32
        %v4810 = vpop.permute.xlu0 %4809
        %4811 = vrot.lane.b32.xlu0 %v4745, 32
        %v4812 = vpop.permute.xlu0 %4811
        %4813 = vrot.lane.b32.xlu0 %v4747, 32
        %v4814 = vpop.permute.xlu0 %4813
        %4815 = vrot.lane.b32.xlu0 %v4750, 32
        %v4816 = vpop.permute.xlu0 %4815
        %4817 = vrot.lane.b32.xlu0 %v4752, 32
        %v4818 = vpop.permute.xlu0 %4817
        %4819 = vrot.lane.b32.xlu0 %v4755, 32
        %v4820 = vpop.permute.xlu0 %4819
        %4821 = vrot.lane.b32.xlu0 %v4757, 32
        %v4822 = vpop.permute.xlu0 %4821
        %4823 = vrot.lane.b32.xlu0 %v4760, 32
        %v4824 = vpop.permute.xlu0 %4823
        %4825 = vrot.lane.b32.xlu0 %v4762, 32
        %v4826 = vpop.permute.xlu0 %4825
        %v4859 = vrot.slane %v4581, 2
        %v4860 = vrot.slane %v4582, 2
        %v4861 = vsel %vm786, %v4859, %v4860
        %v4862 = vrot.slane %v4583, 2
        %v4863 = vsel %vm786, %v4860, %v4862
        %v4864 = vrot.slane %v4584, 2
        %v4865 = vrot.slane %v4585, 2
        %v4866 = vsel %vm786, %v4864, %v4865
        %v4867 = vrot.slane %v4586, 2
        %v4868 = vsel %vm786, %v4865, %v4867
        %v4869 = vrot.slane %v4587, 2
        %v4870 = vrot.slane %v4588, 2
        %v4871 = vsel %vm786, %v4869, %v4870
        %v4872 = vrot.slane %v4589, 2
        %v4873 = vsel %vm786, %v4870, %v4872
        %v4874 = vrot.slane %v4590, 2
        %v4875 = vrot.slane %v4591, 2
        %v4876 = vsel %vm786, %v4874, %v4875
        %v4877 = vrot.slane %v4592, 2
        %v4878 = vsel %vm786, %v4875, %v4877
        %v4879 = vrot.slane %v4593, 2
        %v4880 = vrot.slane %v4594, 2
        %v4881 = vsel %vm786, %v4879, %v4880
        %v4882 = vrot.slane %v4595, 2
        %v4883 = vsel %vm786, %v4880, %v4882
        %v4884 = vrot.slane %v4596, 2
        %v4885 = vrot.slane %v4597, 2
        %v4886 = vsel %vm786, %v4884, %v4885
        %v4887 = vrot.slane %v4598, 2
        %v4888 = vsel %vm786, %v4885, %v4887
        %v4889 = vrot.slane %v4599, 2
        %v4890 = vrot.slane %v4600, 2
        %v4891 = vsel %vm786, %v4889, %v4890
        %v4892 = vrot.slane %v4601, 2
        %v4893 = vsel %vm786, %v4890, %v4892
        %v4894 = vrot.slane %v4602, 2
        %v4895 = vrot.slane %v4603, 2
        %v4896 = vsel %vm786, %v4894, %v4895
        %v4897 = vrot.slane %v4604, 2
        %v4898 = vsel %vm786, %v4895, %v4897
        %v4899 = vrot.slane %v4605, 2
        %v4900 = vrot.slane %v4606, 2
        %v4901 = vsel %vm786, %v4899, %v4900
        %v4902 = vrot.slane %v4607, 2
        %v4903 = vsel %vm786, %v4900, %v4902
        %v4904 = vrot.slane %v4608, 2
        %v4905 = vrot.slane %v4609, 2
        %v4906 = vsel %vm786, %v4904, %v4905
        %v4907 = vrot.slane %v4610, 2
        %v4908 = vsel %vm786, %v4905, %v4907
        %v4909 = vrot.slane %v4611, 2
        %v4910 = vrot.slane %v4612, 2
        %v4911 = vsel %vm786, %v4909, %v4910
        %v4912 = vrot.slane %v4613, 2
        %v4913 = vsel %vm786, %v4910, %v4912
        %v4914 = vrot.slane %v4614, 2
        %v4915 = vrot.slane %v4615, 2
        %v4916 = vsel %vm786, %v4914, %v4915
        %v4917 = vrot.slane %v4616, 2
        %v4918 = vsel %vm786, %v4915, %v4917
        %v4919 = vrot.slane %v4617, 2
        %v4920 = vrot.slane %v4618, 2
        %v4921 = vsel %vm786, %v4919, %v4920
        %v4922 = vrot.slane %v4619, 2
        %v4923 = vsel %vm786, %v4920, %v4922
        %v4924 = vrot.slane %v4620, 2
        %v4925 = vrot.slane %v4621, 2
        %v4926 = vsel %vm786, %v4924, %v4925
        %v4927 = vrot.slane %v4622, 2
        %v4928 = vsel %vm786, %v4925, %v4927
        %v4929 = vrot.slane %v4623, 2
        %v4930 = vrot.slane %v4624, 2
        %v4931 = vsel %vm786, %v4929, %v4930
        %v4932 = vrot.slane %v4625, 2
        %v4933 = vsel %vm786, %v4930, %v4932
        %v4934 = vrot.slane %v4626, 2
        %v4935 = vrot.slane %v4627, 2
        %v4936 = vsel %vm786, %v4934, %v4935
        %v4937 = vrot.slane %v4628, 2
        %v4938 = vsel %vm786, %v4935, %v4937
        %4939 = vrot.lane.b32.xlu0 %v4861, 64
        %v4940 = vpop.permute.xlu0 %4939
        %4941 = vrot.lane.b32.xlu0 %v4863, 64
        %v4942 = vpop.permute.xlu0 %4941
        %4943 = vrot.lane.b32.xlu0 %v4866, 64
        %v4944 = vpop.permute.xlu0 %4943
        %4945 = vrot.lane.b32.xlu0 %v4868, 64
        %v4946 = vpop.permute.xlu0 %4945
        %4947 = vrot.lane.b32.xlu0 %v4871, 64
        %v4948 = vpop.permute.xlu0 %4947
        %4949 = vrot.lane.b32.xlu0 %v4873, 64
        %v4950 = vpop.permute.xlu0 %4949
        %4951 = vrot.lane.b32.xlu0 %v4876, 64
        %v4952 = vpop.permute.xlu0 %4951
        %4953 = vrot.lane.b32.xlu0 %v4878, 64
        %v4954 = vpop.permute.xlu0 %4953
        %4955 = vrot.lane.b32.xlu0 %v4881, 64
        %v4956 = vpop.permute.xlu0 %4955
        %4957 = vrot.lane.b32.xlu0 %v4883, 64
        %v4958 = vpop.permute.xlu0 %4957
        %4959 = vrot.lane.b32.xlu0 %v4886, 64
        %v4960 = vpop.permute.xlu0 %4959
        %4961 = vrot.lane.b32.xlu0 %v4888, 64
        %v4962 = vpop.permute.xlu0 %4961
        %4963 = vrot.lane.b32.xlu0 %v4891, 64
        %v4964 = vpop.permute.xlu0 %4963
        %4965 = vrot.lane.b32.xlu0 %v4893, 64
        %v4966 = vpop.permute.xlu0 %4965
        %4967 = vrot.lane.b32.xlu0 %v4896, 64
        %v4968 = vpop.permute.xlu0 %4967
        %4969 = vrot.lane.b32.xlu0 %v4898, 64
        %v4970 = vpop.permute.xlu0 %4969
        %4971 = vrot.lane.b32.xlu0 %v4901, 64
        %v4972 = vpop.permute.xlu0 %4971
        %4973 = vrot.lane.b32.xlu0 %v4903, 64
        %v4974 = vpop.permute.xlu0 %4973
        %4975 = vrot.lane.b32.xlu0 %v4906, 64
        %v4976 = vpop.permute.xlu0 %4975
        %4977 = vrot.lane.b32.xlu0 %v4908, 64
        %v4978 = vpop.permute.xlu0 %4977
        %4979 = vrot.lane.b32.xlu0 %v4911, 64
        %v4980 = vpop.permute.xlu0 %4979
        %4981 = vrot.lane.b32.xlu0 %v4913, 64
        %v4982 = vpop.permute.xlu0 %4981
        %4983 = vrot.lane.b32.xlu0 %v4916, 64
        %v4984 = vpop.permute.xlu0 %4983
        %4985 = vrot.lane.b32.xlu0 %v4918, 64
        %v4986 = vpop.permute.xlu0 %4985
        %4987 = vrot.lane.b32.xlu0 %v4921, 64
        %v4988 = vpop.permute.xlu0 %4987
        %4989 = vrot.lane.b32.xlu0 %v4923, 64
        %v4990 = vpop.permute.xlu0 %4989
        %4991 = vrot.lane.b32.xlu0 %v4926, 64
        %v4992 = vpop.permute.xlu0 %4991
        %4993 = vrot.lane.b32.xlu0 %v4928, 64
        %v4994 = vpop.permute.xlu0 %4993
        %4995 = vrot.lane.b32.xlu0 %v4931, 64
        %v4996 = vpop.permute.xlu0 %4995
        %4997 = vrot.lane.b32.xlu0 %v4933, 64
        %v4998 = vpop.permute.xlu0 %4997
        %4999 = vrot.lane.b32.xlu0 %v4936, 64
        %v5000 = vpop.permute.xlu0 %4999
        %5001 = vrot.lane.b32.xlu0 %v4938, 64
        %v5002 = vpop.permute.xlu0 %5001
        %5037 = vrot.lane.b32.xlu0 %v4584, 96
        %v5038 = vpop.permute.xlu0 %5037
        %5039 = vrot.lane.b32.xlu0 %v4585, 96
        %v5040 = vpop.permute.xlu0 %5039
        %5041 = vrot.lane.b32.xlu0 %v4587, 96
        %v5042 = vpop.permute.xlu0 %5041
        %5043 = vrot.lane.b32.xlu0 %v4588, 96
        %v5044 = vpop.permute.xlu0 %5043
        %5045 = vrot.lane.b32.xlu0 %v4590, 96
        %v5046 = vpop.permute.xlu0 %5045
        %5047 = vrot.lane.b32.xlu0 %v4591, 96
        %v5048 = vpop.permute.xlu0 %5047
        %5049 = vrot.lane.b32.xlu0 %v4593, 96
        %v5050 = vpop.permute.xlu0 %5049
        %5051 = vrot.lane.b32.xlu0 %v4594, 96
        %v5052 = vpop.permute.xlu0 %5051
        %5053 = vrot.lane.b32.xlu0 %v4596, 96
        %v5054 = vpop.permute.xlu0 %5053
        %5055 = vrot.lane.b32.xlu0 %v4597, 96
        %v5056 = vpop.permute.xlu0 %5055
        %5057 = vrot.lane.b32.xlu0 %v4599, 96
        %v5058 = vpop.permute.xlu0 %5057
        %5059 = vrot.lane.b32.xlu0 %v4600, 96
        %v5060 = vpop.permute.xlu0 %5059
        %5061 = vrot.lane.b32.xlu0 %v4602, 96
        %v5062 = vpop.permute.xlu0 %5061
        %5063 = vrot.lane.b32.xlu0 %v4603, 96
        %v5064 = vpop.permute.xlu0 %5063
        %5065 = vrot.lane.b32.xlu0 %v4605, 96
        %v5066 = vpop.permute.xlu0 %5065
        %5067 = vrot.lane.b32.xlu0 %v4606, 96
        %v5068 = vpop.permute.xlu0 %5067
        %5069 = vrot.lane.b32.xlu0 %v4608, 96
        %v5070 = vpop.permute.xlu0 %5069
        %5071 = vrot.lane.b32.xlu0 %v4609, 96
        %v5072 = vpop.permute.xlu0 %5071
        %5073 = vrot.lane.b32.xlu0 %v4611, 96
        %v5074 = vpop.permute.xlu0 %5073
        %5075 = vrot.lane.b32.xlu0 %v4612, 96
        %v5076 = vpop.permute.xlu0 %5075
        %5077 = vrot.lane.b32.xlu0 %v4614, 96
        %v5078 = vpop.permute.xlu0 %5077
        %5079 = vrot.lane.b32.xlu0 %v4615, 96
        %v5080 = vpop.permute.xlu0 %5079
        %5081 = vrot.lane.b32.xlu0 %v4617, 96
        %v5082 = vpop.permute.xlu0 %5081
        %5083 = vrot.lane.b32.xlu0 %v4618, 96
        %v5084 = vpop.permute.xlu0 %5083
        %5085 = vrot.lane.b32.xlu0 %v4620, 96
        %v5086 = vpop.permute.xlu0 %5085
        %5087 = vrot.lane.b32.xlu0 %v4621, 96
        %v5088 = vpop.permute.xlu0 %5087
        %5089 = vrot.lane.b32.xlu0 %v4623, 96
        %v5090 = vpop.permute.xlu0 %5089
        %5091 = vrot.lane.b32.xlu0 %v4624, 96
        %v5092 = vpop.permute.xlu0 %5091
        %5093 = vrot.lane.b32.xlu0 %v4626, 96
        %v5094 = vpop.permute.xlu0 %5093
        %5095 = vrot.lane.b32.xlu0 %v4627, 96
        %v5096 = vpop.permute.xlu0 %5095
        %5097 = vrot.lane.b32.xlu0 %v4629, 96
        %v5098 = vpop.permute.xlu0 %5097
        %5099 = vrot.lane.b32.xlu0 %v4630, 96
        %v5100 = vpop.permute.xlu0 %5099
        %v5134 = vrot.slane %v4629, 1
        %v5135 = vrot.slane %v4630, 1
        %v5136 = vsel %vm609, %v5134, %v5135
        %v5137 = vrot.slane %v4631, 1
        %v5138 = vsel %vm609, %v5135, %v5137
        %v5171 = vrot.slane %v4629, 2
        %v5172 = vrot.slane %v4630, 2
        %v5173 = vsel %vm786, %v5171, %v5172
        %v5174 = vrot.slane %v4631, 2
        %v5175 = vsel %vm786, %v5172, %v5174
        %5176 = vrot.lane.b32.xlu0 %v4866, 32
        %v5177 = vpop.permute.xlu0 %5176
        %5178 = vrot.lane.b32.xlu0 %v4868, 32
        %v5179 = vpop.permute.xlu0 %5178
        %5180 = vrot.lane.b32.xlu0 %v4871, 32
        %v5181 = vpop.permute.xlu0 %5180
        %5182 = vrot.lane.b32.xlu0 %v4873, 32
        %v5183 = vpop.permute.xlu0 %5182
        %5184 = vrot.lane.b32.xlu0 %v4876, 32
        %v5185 = vpop.permute.xlu0 %5184
        %5186 = vrot.lane.b32.xlu0 %v4878, 32
        %v5187 = vpop.permute.xlu0 %5186
        %5188 = vrot.lane.b32.xlu0 %v4881, 32
        %v5189 = vpop.permute.xlu0 %5188
        %5190 = vrot.lane.b32.xlu0 %v4883, 32
        %v5191 = vpop.permute.xlu0 %5190
        %5192 = vrot.lane.b32.xlu0 %v4886, 32
        %v5193 = vpop.permute.xlu0 %5192
        %5194 = vrot.lane.b32.xlu0 %v4888, 32
        %v5195 = vpop.permute.xlu0 %5194
        %5196 = vrot.lane.b32.xlu0 %v4891, 32
        %v5197 = vpop.permute.xlu0 %5196
        %5198 = vrot.lane.b32.xlu0 %v4893, 32
        %v5199 = vpop.permute.xlu0 %5198
        %5200 = vrot.lane.b32.xlu0 %v4896, 32
        %v5201 = vpop.permute.xlu0 %5200
        %5202 = vrot.lane.b32.xlu0 %v4898, 32
        %v5203 = vpop.permute.xlu0 %5202
        %5204 = vrot.lane.b32.xlu0 %v4901, 32
        %v5205 = vpop.permute.xlu0 %5204
        %5206 = vrot.lane.b32.xlu0 %v4903, 32
        %v5207 = vpop.permute.xlu0 %5206
        %5208 = vrot.lane.b32.xlu0 %v4906, 32
        %v5209 = vpop.permute.xlu0 %5208
        %5210 = vrot.lane.b32.xlu0 %v4908, 32
        %v5211 = vpop.permute.xlu0 %5210
        %5212 = vrot.lane.b32.xlu0 %v4911, 32
        %v5213 = vpop.permute.xlu0 %5212
        %5214 = vrot.lane.b32.xlu0 %v4913, 32
        %v5215 = vpop.permute.xlu0 %5214
        %5216 = vrot.lane.b32.xlu0 %v4916, 32
        %v5217 = vpop.permute.xlu0 %5216
        %5218 = vrot.lane.b32.xlu0 %v4918, 32
        %v5219 = vpop.permute.xlu0 %5218
        %5220 = vrot.lane.b32.xlu0 %v4921, 32
        %v5221 = vpop.permute.xlu0 %5220
        %5222 = vrot.lane.b32.xlu0 %v4923, 32
        %v5223 = vpop.permute.xlu0 %5222
        %5224 = vrot.lane.b32.xlu0 %v4926, 32
        %v5225 = vpop.permute.xlu0 %5224
        %5226 = vrot.lane.b32.xlu0 %v4928, 32
        %v5227 = vpop.permute.xlu0 %5226
        %5228 = vrot.lane.b32.xlu0 %v4931, 32
        %v5229 = vpop.permute.xlu0 %5228
        %5230 = vrot.lane.b32.xlu0 %v4933, 32
        %v5231 = vpop.permute.xlu0 %5230
        %5232 = vrot.lane.b32.xlu0 %v4936, 32
        %v5233 = vpop.permute.xlu0 %5232
        %5234 = vrot.lane.b32.xlu0 %v4938, 32
        %v5235 = vpop.permute.xlu0 %5234
        %5236 = vrot.lane.b32.xlu0 %v5173, 32
        %v5237 = vpop.permute.xlu0 %5236
        %5238 = vrot.lane.b32.xlu0 %v5175, 32
        %v5239 = vpop.permute.xlu0 %5238
        %5274 = vrot.lane.b32.xlu0 %v4587, 64
        %v5275 = vpop.permute.xlu0 %5274
        %5276 = vrot.lane.b32.xlu0 %v4588, 64
        %v5277 = vpop.permute.xlu0 %5276
        %5278 = vrot.lane.b32.xlu0 %v4590, 64
        %v5279 = vpop.permute.xlu0 %5278
        %5280 = vrot.lane.b32.xlu0 %v4591, 64
        %v5281 = vpop.permute.xlu0 %5280
        %5282 = vrot.lane.b32.xlu0 %v4593, 64
        %v5283 = vpop.permute.xlu0 %5282
        %5284 = vrot.lane.b32.xlu0 %v4594, 64
        %v5285 = vpop.permute.xlu0 %5284
        %5286 = vrot.lane.b32.xlu0 %v4596, 64
        %v5287 = vpop.permute.xlu0 %5286
        %5288 = vrot.lane.b32.xlu0 %v4597, 64
        %v5289 = vpop.permute.xlu0 %5288
        %5290 = vrot.lane.b32.xlu0 %v4599, 64
        %v5291 = vpop.permute.xlu0 %5290
        %5292 = vrot.lane.b32.xlu0 %v4600, 64
        %v5293 = vpop.permute.xlu0 %5292
        %5294 = vrot.lane.b32.xlu0 %v4602, 64
        %v5295 = vpop.permute.xlu0 %5294
        %5296 = vrot.lane.b32.xlu0 %v4603, 64
        %v5297 = vpop.permute.xlu0 %5296
        %5298 = vrot.lane.b32.xlu0 %v4605, 64
        %v5299 = vpop.permute.xlu0 %5298
        %5300 = vrot.lane.b32.xlu0 %v4606, 64
        %v5301 = vpop.permute.xlu0 %5300
        %5302 = vrot.lane.b32.xlu0 %v4608, 64
        %v5303 = vpop.permute.xlu0 %5302
        %5304 = vrot.lane.b32.xlu0 %v4609, 64
        %v5305 = vpop.permute.xlu0 %5304
        %5306 = vrot.lane.b32.xlu0 %v4611, 64
        %v5307 = vpop.permute.xlu0 %5306
        %5308 = vrot.lane.b32.xlu0 %v4612, 64
        %v5309 = vpop.permute.xlu0 %5308
        %5310 = vrot.lane.b32.xlu0 %v4614, 64
        %v5311 = vpop.permute.xlu0 %5310
        %5312 = vrot.lane.b32.xlu0 %v4615, 64
        %v5313 = vpop.permute.xlu0 %5312
        %5314 = vrot.lane.b32.xlu0 %v4617, 64
        %v5315 = vpop.permute.xlu0 %5314
        %5316 = vrot.lane.b32.xlu0 %v4618, 64
        %v5317 = vpop.permute.xlu0 %5316
        %5318 = vrot.lane.b32.xlu0 %v4620, 64
        %v5319 = vpop.permute.xlu0 %5318
        %5320 = vrot.lane.b32.xlu0 %v4621, 64
        %v5321 = vpop.permute.xlu0 %5320
        %5322 = vrot.lane.b32.xlu0 %v4623, 64
        %v5323 = vpop.permute.xlu0 %5322
        %5324 = vrot.lane.b32.xlu0 %v4624, 64
        %v5325 = vpop.permute.xlu0 %5324
        %5326 = vrot.lane.b32.xlu0 %v4626, 64
        %v5327 = vpop.permute.xlu0 %5326
        %5328 = vrot.lane.b32.xlu0 %v4627, 64
        %v5329 = vpop.permute.xlu0 %5328
        %5330 = vrot.lane.b32.xlu0 %v4629, 64
        %v5331 = vpop.permute.xlu0 %5330
        %5332 = vrot.lane.b32.xlu0 %v4630, 64
        %v5333 = vpop.permute.xlu0 %5332
        %5334 = vrot.lane.b32.xlu0 %v4632, 64
        %v5335 = vpop.permute.xlu0 %5334
        %5336 = vrot.lane.b32.xlu0 %v4633, 64
        %v5337 = vpop.permute.xlu0 %5336
        %v5371 = vrot.slane %v4632, 1
        %v5372 = vrot.slane %v4633, 1
        %v5373 = vsel %vm609, %v5371, %v5372
        %v5374 = vrot.slane %v4634, 1
        %v5375 = vsel %vm609, %v5372, %v5374
        %5376 = vrot.lane.b32.xlu0 %v4695, 96
        %v5377 = vpop.permute.xlu0 %5376
        %5378 = vrot.lane.b32.xlu0 %v4697, 96
        %v5379 = vpop.permute.xlu0 %5378
        %5380 = vrot.lane.b32.xlu0 %v4700, 96
        %v5381 = vpop.permute.xlu0 %5380
        %5382 = vrot.lane.b32.xlu0 %v4702, 96
        %v5383 = vpop.permute.xlu0 %5382
        %5384 = vrot.lane.b32.xlu0 %v4705, 96
        %v5385 = vpop.permute.xlu0 %5384
        %5386 = vrot.lane.b32.xlu0 %v4707, 96
        %v5387 = vpop.permute.xlu0 %5386
        %5388 = vrot.lane.b32.xlu0 %v4710, 96
        %v5389 = vpop.permute.xlu0 %5388
        %5390 = vrot.lane.b32.xlu0 %v4712, 96
        %v5391 = vpop.permute.xlu0 %5390
        %5392 = vrot.lane.b32.xlu0 %v4715, 96
        %v5393 = vpop.permute.xlu0 %5392
        %5394 = vrot.lane.b32.xlu0 %v4717, 96
        %v5395 = vpop.permute.xlu0 %5394
        %5396 = vrot.lane.b32.xlu0 %v4720, 96
        %v5397 = vpop.permute.xlu0 %5396
        %5398 = vrot.lane.b32.xlu0 %v4722, 96
        %v5399 = vpop.permute.xlu0 %5398
        %5400 = vrot.lane.b32.xlu0 %v4725, 96
        %v5401 = vpop.permute.xlu0 %5400
        %5402 = vrot.lane.b32.xlu0 %v4727, 96
        %v5403 = vpop.permute.xlu0 %5402
        %5404 = vrot.lane.b32.xlu0 %v4730, 96
        %v5405 = vpop.permute.xlu0 %5404
        %5406 = vrot.lane.b32.xlu0 %v4732, 96
        %v5407 = vpop.permute.xlu0 %5406
        %5408 = vrot.lane.b32.xlu0 %v4735, 96
        %v5409 = vpop.permute.xlu0 %5408
        %5410 = vrot.lane.b32.xlu0 %v4737, 96
        %v5411 = vpop.permute.xlu0 %5410
        %5412 = vrot.lane.b32.xlu0 %v4740, 96
        %v5413 = vpop.permute.xlu0 %5412
        %5414 = vrot.lane.b32.xlu0 %v4742, 96
        %v5415 = vpop.permute.xlu0 %5414
        %5416 = vrot.lane.b32.xlu0 %v4745, 96
        %v5417 = vpop.permute.xlu0 %5416
        %5418 = vrot.lane.b32.xlu0 %v4747, 96
        %v5419 = vpop.permute.xlu0 %5418
        %5420 = vrot.lane.b32.xlu0 %v4750, 96
        %v5421 = vpop.permute.xlu0 %5420
        %5422 = vrot.lane.b32.xlu0 %v4752, 96
        %v5423 = vpop.permute.xlu0 %5422
        %5424 = vrot.lane.b32.xlu0 %v4755, 96
        %v5425 = vpop.permute.xlu0 %5424
        %5426 = vrot.lane.b32.xlu0 %v4757, 96
        %v5427 = vpop.permute.xlu0 %5426
        %5428 = vrot.lane.b32.xlu0 %v4760, 96
        %v5429 = vpop.permute.xlu0 %5428
        %5430 = vrot.lane.b32.xlu0 %v4762, 96
        %v5431 = vpop.permute.xlu0 %5430
        %5432 = vrot.lane.b32.xlu0 %v5136, 96
        %v5433 = vpop.permute.xlu0 %5432
        %5434 = vrot.lane.b32.xlu0 %v5138, 96
        %v5435 = vpop.permute.xlu0 %5434
        %5436 = vrot.lane.b32.xlu0 %v5373, 96
        %v5437 = vpop.permute.xlu0 %5436
        %5438 = vrot.lane.b32.xlu0 %v5375, 96
        %v5439 = vpop.permute.xlu0 %5438
        %v5472 = vrot.slane %v4632, 2
        %v5473 = vrot.slane %v4633, 2
        %v5474 = vsel %vm786, %v5472, %v5473
        %v5475 = vrot.slane %v4634, 2
        %v5476 = vsel %vm786, %v5473, %v5475
        %v5477 = vsel %vm1795, %v4581, %v4764
        %v5478 = vsel %vm1795, %v4582, %v4766
        %v5479 = vsel %vm1795, %v4584, %v4768
        %v5480 = vsel %vm1795, %v4585, %v4770
        %v5481 = vsel %vm1795, %v4587, %v4772
        %v5482 = vsel %vm1795, %v4588, %v4774
        %v5483 = vsel %vm1795, %v4590, %v4776
        %v5484 = vsel %vm1795, %v4591, %v4778
        %v5485 = vsel %vm1795, %v4593, %v4780
        %v5486 = vsel %vm1795, %v4594, %v4782
        %v5487 = vsel %vm1795, %v4596, %v4784
        %v5488 = vsel %vm1795, %v4597, %v4786
        %v5489 = vsel %vm1795, %v4599, %v4788
        %v5490 = vsel %vm1795, %v4600, %v4790
        %v5491 = vsel %vm1795, %v4602, %v4792
        %v5492 = vsel %vm1795, %v4603, %v4794
        %v5493 = vsel %vm1795, %v4605, %v4796
        %v5494 = vsel %vm1795, %v4606, %v4798
        %v5495 = vsel %vm1795, %v4608, %v4800
        %v5496 = vsel %vm1795, %v4609, %v4802
        %v5497 = vsel %vm1795, %v4611, %v4804
        %v5498 = vsel %vm1795, %v4612, %v4806
        %v5499 = vsel %vm1795, %v4614, %v4808
        %v5500 = vsel %vm1795, %v4615, %v4810
        %v5501 = vsel %vm1795, %v4617, %v4812
        %v5502 = vsel %vm1795, %v4618, %v4814
        %v5503 = vsel %vm1795, %v4620, %v4816
        %v5504 = vsel %vm1795, %v4621, %v4818
        %v5505 = vsel %vm1795, %v4623, %v4820
        %v5506 = vsel %vm1795, %v4624, %v4822
        %v5507 = vsel %vm1795, %v4626, %v4824
        %v5508 = vsel %vm1795, %v4627, %v4826
        %v5509 = vsel %vm3236, %v5477, %v4940
        %v5510 = vsel %vm3236, %v5478, %v4942
        %v5511 = vsel %vm3236, %v5479, %v4944
        %v5512 = vsel %vm3236, %v5480, %v4946
        %v5513 = vsel %vm3236, %v5481, %v4948
        %v5514 = vsel %vm3236, %v5482, %v4950
        %v5515 = vsel %vm3236, %v5483, %v4952
        %v5516 = vsel %vm3236, %v5484, %v4954
        %v5517 = vsel %vm3236, %v5485, %v4956
        %v5518 = vsel %vm3236, %v5486, %v4958
        %v5519 = vsel %vm3236, %v5487, %v4960
        %v5520 = vsel %vm3236, %v5488, %v4962
        %v5521 = vsel %vm3236, %v5489, %v4964
        %v5522 = vsel %vm3236, %v5490, %v4966
        %v5523 = vsel %vm3236, %v5491, %v4968
        %v5524 = vsel %vm3236, %v5492, %v4970
        %v5525 = vsel %vm3236, %v5493, %v4972
        %v5526 = vsel %vm3236, %v5494, %v4974
        %v5527 = vsel %vm3236, %v5495, %v4976
        %v5528 = vsel %vm3236, %v5496, %v4978
        %v5529 = vsel %vm3236, %v5497, %v4980
        %v5530 = vsel %vm3236, %v5498, %v4982
        %v5531 = vsel %vm3236, %v5499, %v4984
        %v5532 = vsel %vm3236, %v5500, %v4986
        %v5533 = vsel %vm3236, %v5501, %v4988
        %v5534 = vsel %vm3236, %v5502, %v4990
        %v5535 = vsel %vm3236, %v5503, %v4992
        %v5536 = vsel %vm3236, %v5504, %v4994
        %v5537 = vsel %vm3236, %v5505, %v4996
        %v5538 = vsel %vm3236, %v5506, %v4998
        %v5539 = vsel %vm3236, %v5507, %v5000
        %v5540 = vsel %vm3236, %v5508, %v5002
        %v5541 = vsel %vm3269, %v5509, %v5038
        %v5542 = vsel %vm3269, %v5510, %v5040
        %v5543 = vsel %vm3269, %v5511, %v5042
        %v5544 = vsel %vm3269, %v5512, %v5044
        %v5545 = vsel %vm3269, %v5513, %v5046
        %v5546 = vsel %vm3269, %v5514, %v5048
        %v5547 = vsel %vm3269, %v5515, %v5050
        %v5548 = vsel %vm3269, %v5516, %v5052
        %v5549 = vsel %vm3269, %v5517, %v5054
        %v5550 = vsel %vm3269, %v5518, %v5056
        %v5551 = vsel %vm3269, %v5519, %v5058
        %v5552 = vsel %vm3269, %v5520, %v5060
        %v5553 = vsel %vm3269, %v5521, %v5062
        %v5554 = vsel %vm3269, %v5522, %v5064
        %v5555 = vsel %vm3269, %v5523, %v5066
        %v5556 = vsel %vm3269, %v5524, %v5068
        %v5557 = vsel %vm3269, %v5525, %v5070
        %v5558 = vsel %vm3269, %v5526, %v5072
        %v5559 = vsel %vm3269, %v5527, %v5074
        %v5560 = vsel %vm3269, %v5528, %v5076
        %v5561 = vsel %vm3269, %v5529, %v5078
        %v5562 = vsel %vm3269, %v5530, %v5080
        %v5563 = vsel %vm3269, %v5531, %v5082
        %v5564 = vsel %vm3269, %v5532, %v5084
        %v5565 = vsel %vm3269, %v5533, %v5086
        %v5566 = vsel %vm3269, %v5534, %v5088
        %v5567 = vsel %vm3269, %v5535, %v5090
        %v5568 = vsel %vm3269, %v5536, %v5092
        %v5569 = vsel %vm3269, %v5537, %v5094
        %v5570 = vsel %vm3269, %v5538, %v5096
        %v5571 = vsel %vm3269, %v5539, %v5098
        %v5572 = vsel %vm3269, %v5540, %v5100
        %v5573 = vsel %vm1795, %v4690, %v5177
        %v5574 = vsel %vm1795, %v4692, %v5179
        %v5575 = vsel %vm1795, %v4695, %v5181
        %v5576 = vsel %vm1795, %v4697, %v5183
        %v5577 = vsel %vm1795, %v4700, %v5185
        %v5578 = vsel %vm1795, %v4702, %v5187
        %v5579 = vsel %vm1795, %v4705, %v5189
        %v5580 = vsel %vm1795, %v4707, %v5191
        %v5581 = vsel %vm1795, %v4710, %v5193
        %v5582 = vsel %vm1795, %v4712, %v5195
        %v5583 = vsel %vm1795, %v4715, %v5197
        %v5584 = vsel %vm1795, %v4717, %v5199
        %v5585 = vsel %vm1795, %v4720, %v5201
        %v5586 = vsel %vm1795, %v4722, %v5203
        %v5587 = vsel %vm1795, %v4725, %v5205
        %v5588 = vsel %vm1795, %v4727, %v5207
        %v5589 = vsel %vm1795, %v4730, %v5209
        %v5590 = vsel %vm1795, %v4732, %v5211
        %v5591 = vsel %vm1795, %v4735, %v5213
        %v5592 = vsel %vm1795, %v4737, %v5215
        %v5593 = vsel %vm1795, %v4740, %v5217
        %v5594 = vsel %vm1795, %v4742, %v5219
        %v5595 = vsel %vm1795, %v4745, %v5221
        %v5596 = vsel %vm1795, %v4747, %v5223
        %v5597 = vsel %vm1795, %v4750, %v5225
        %v5598 = vsel %vm1795, %v4752, %v5227
        %v5599 = vsel %vm1795, %v4755, %v5229
        %v5600 = vsel %vm1795, %v4757, %v5231
        %v5601 = vsel %vm1795, %v4760, %v5233
        %v5602 = vsel %vm1795, %v4762, %v5235
        %v5603 = vsel %vm1795, %v5136, %v5237
        %v5604 = vsel %vm1795, %v5138, %v5239
        %v5605 = vsel %vm3236, %v5573, %v5275
        %v5606 = vsel %vm3236, %v5574, %v5277
        %v5607 = vsel %vm3236, %v5575, %v5279
        %v5608 = vsel %vm3236, %v5576, %v5281
        %v5609 = vsel %vm3236, %v5577, %v5283
        %v5610 = vsel %vm3236, %v5578, %v5285
        %v5611 = vsel %vm3236, %v5579, %v5287
        %v5612 = vsel %vm3236, %v5580, %v5289
        %v5613 = vsel %vm3236, %v5581, %v5291
        %v5614 = vsel %vm3236, %v5582, %v5293
        %v5615 = vsel %vm3236, %v5583, %v5295
        %v5616 = vsel %vm3236, %v5584, %v5297
        %v5617 = vsel %vm3236, %v5585, %v5299
        %v5618 = vsel %vm3236, %v5586, %v5301
        %v5619 = vsel %vm3236, %v5587, %v5303
        %v5620 = vsel %vm3236, %v5588, %v5305
        %v5621 = vsel %vm3236, %v5589, %v5307
        %v5622 = vsel %vm3236, %v5590, %v5309
        %v5623 = vsel %vm3236, %v5591, %v5311
        %v5624 = vsel %vm3236, %v5592, %v5313
        %v5625 = vsel %vm3236, %v5593, %v5315
        %v5626 = vsel %vm3236, %v5594, %v5317
        %v5627 = vsel %vm3236, %v5595, %v5319
        %v5628 = vsel %vm3236, %v5596, %v5321
        %v5629 = vsel %vm3236, %v5597, %v5323
        %v5630 = vsel %vm3236, %v5598, %v5325
        %v5631 = vsel %vm3236, %v5599, %v5327
        %v5632 = vsel %vm3236, %v5600, %v5329
        %v5633 = vsel %vm3236, %v5601, %v5331
        %v5634 = vsel %vm3236, %v5602, %v5333
        %v5635 = vsel %vm3236, %v5603, %v5335
        %v5636 = vsel %vm3236, %v5604, %v5337
        %v5637 = vsel %vm3269, %v5605, %v5377
        %v5638 = vsel %vm3269, %v5606, %v5379
        %v5639 = vsel %vm3269, %v5607, %v5381
        %v5640 = vsel %vm3269, %v5608, %v5383
        %v5641 = vsel %vm3269, %v5609, %v5385
        %v5642 = vsel %vm3269, %v5610, %v5387
        %v5643 = vsel %vm3269, %v5611, %v5389
        %v5644 = vsel %vm3269, %v5612, %v5391
        %v5645 = vsel %vm3269, %v5613, %v5393
        %v5646 = vsel %vm3269, %v5614, %v5395
        %v5647 = vsel %vm3269, %v5615, %v5397
        %v5648 = vsel %vm3269, %v5616, %v5399
        %v5649 = vsel %vm3269, %v5617, %v5401
        %v5650 = vsel %vm3269, %v5618, %v5403
        %v5651 = vsel %vm3269, %v5619, %v5405
        %v5652 = vsel %vm3269, %v5620, %v5407
        %v5653 = vsel %vm3269, %v5621, %v5409
        %v5654 = vsel %vm3269, %v5622, %v5411
        %v5655 = vsel %vm3269, %v5623, %v5413
        %v5656 = vsel %vm3269, %v5624, %v5415
        %v5657 = vsel %vm3269, %v5625, %v5417
        %v5658 = vsel %vm3269, %v5626, %v5419
        %v5659 = vsel %vm3269, %v5627, %v5421
        %v5660 = vsel %vm3269, %v5628, %v5423
        %v5661 = vsel %vm3269, %v5629, %v5425
        %v5662 = vsel %vm3269, %v5630, %v5427
        %v5663 = vsel %vm3269, %v5631, %v5429
        %v5664 = vsel %vm3269, %v5632, %v5431
        %v5665 = vsel %vm3269, %v5633, %v5433
        %v5666 = vsel %vm3269, %v5634, %v5435
        %v5667 = vsel %vm3269, %v5635, %v5437
        %v5668 = vsel %vm3269, %v5636, %v5439
        %v5669 = vld [vmem:[%s3] sm:$0xff]
        %v5670 = vld [vmem:[%s3 + $0x8] sm:$0xff]
        %v5671 = vld [vmem:[%s3 + $0x10] sm:$0xff]
        %v5672 = vld [vmem:[%s3 + $0x18] sm:$0xff]
        %v5673 = vld [vmem:[%s3 + $0x20] sm:$0xff]
        %v5674 = vld [vmem:[%s3 + $0x28] sm:$0xff]
        %v5675 = vld [vmem:[%s3 + $0x30] sm:$0xff]
        %v5676 = vld [vmem:[%s3 + $0x38] sm:$0xff]
        %v5677 = vld [vmem:[%s3 + $0x40] sm:$0xff]
        %v5678 = vld [vmem:[%s3 + $0x48] sm:$0xff]
        %v5679 = vld [vmem:[%s3 + $0x50] sm:$0xff]
        %v5680 = vld [vmem:[%s3 + $0x58] sm:$0xff]
        %v5681 = vld [vmem:[%s3 + $0x60] sm:$0xff]
        %v5682 = vld [vmem:[%s3 + $0x68] sm:$0xff]
        %v5683 = vld [vmem:[%s3 + $0x70] sm:$0xff]
        %v5684 = vld [vmem:[%s3 + $0x78] sm:$0xff]
        %v5685 = vld [vmem:[%s3 + $0x80] sm:$0xff]
        %v5686 = vld [vmem:[%s3 + $0x88] sm:$0xff]
        %v5687 = vld [vmem:[%s3 + $0x90] sm:$0xff]
        %v5688 = vld [vmem:[%s3 + $0x98] sm:$0xff]
        %v5689 = vld [vmem:[%s3 + $0xa0] sm:$0xff]
        %v5690 = vld [vmem:[%s3 + $0xa8] sm:$0xff]
        %v5691 = vld [vmem:[%s3 + $0xb0] sm:$0xff]
        %v5692 = vld [vmem:[%s3 + $0xb8] sm:$0xff]
        %v5693 = vld [vmem:[%s3 + $0xc0] sm:$0xff]
        %v5694 = vld [vmem:[%s3 + $0xc8] sm:$0xff]
        %v5695 = vld [vmem:[%s3 + $0xd0] sm:$0xff]
        %v5696 = vld [vmem:[%s3 + $0xd8] sm:$0xff]
        %v5697 = vld [vmem:[%s3 + $0xe0] sm:$0xff]
        %v5698 = vld [vmem:[%s3 + $0xe8] sm:$0xff]
        %v5699 = vld [vmem:[%s3 + $0xf0] sm:$0xff]
        %v5700 = vld [vmem:[%s3 + $0xf8] sm:$0xff]
        %v5701 = vld [vmem:[%s3 + $0x100] sm:$0xff]
        %v5702 = vld [vmem:[%s3 + $0x108] sm:$0xff]
        %v5703 = vld [vmem:[%s3 + $0x110] sm:$0xff]
        %v5704 = vld [vmem:[%s3 + $0x118] sm:$0xff]
        %v5705 = vsel %vm1795, %v4871, 0
        %v5707 = vsel %vm1795, %v4873, 0
        %v5709 = vsel %vm1795, %v4876, 0
        %v5711 = vsel %vm1795, %v4878, 0
        %v5713 = vsel %vm1795, %v4881, 0
        %v5715 = vsel %vm1795, %v4883, 0
        %v5717 = vsel %vm1795, %v4886, 0
        %v5719 = vsel %vm1795, %v4888, 0
        %v5721 = vsel %vm1795, %v4891, 0
        %v5723 = vsel %vm1795, %v4893, 0
        %v5725 = vsel %vm1795, %v4896, 0
        %v5727 = vsel %vm1795, %v4898, 0
        %v5729 = vsel %vm1795, %v4901, 0
        %v5731 = vsel %vm1795, %v4903, 0
        %v5733 = vsel %vm1795, %v4906, 0
        %v5735 = vsel %vm1795, %v4908, 0
        %v5737 = vsel %vm1795, %v4911, 0
        %v5739 = vsel %vm1795, %v4913, 0
        %v5741 = vsel %vm1795, %v4916, 0
        %v5743 = vsel %vm1795, %v4918, 0
        %v5745 = vsel %vm1795, %v4921, 0
        %v5747 = vsel %vm1795, %v4923, 0
        %v5749 = vsel %vm1795, %v4926, 0
        %v5751 = vsel %vm1795, %v4928, 0
        %v5753 = vsel %vm1795, %v4931, 0
        %v5755 = vsel %vm1795, %v4933, 0
        %v5757 = vsel %vm1795, %v4936, 0
        %v5759 = vsel %vm1795, %v4938, 0
        %v5761 = vsel %vm1795, %v5173, 0
        %v5763 = vsel %vm1795, %v5175, 0
        %v5765 = vsel %vm1795, %v5474, 0
        %v5767 = vsel %vm1795, %v5476, 0
        %5769 = vmatprep.subr.mxu0 0.0
        %5770 = vmatpush1.msra.mxu0 %v5669
        %5771 = vmatprep.subr.mxu0 0.0
        %5772 = vmatpush1.msra.mxu0 %v5670
        %5773 = vmatprep.subr.mxu0 0.0
        %5774 = vmatpush1.msra.mxu0 %v5671
        %5775 = vmatprep.subr.mxu0 0.0
        %5776 = vmatpush1.msra.mxu0 %v5672
        %5777 = vmatprep.subr.mxu0 0.0
        %5778 = vmatpush1.msra.mxu0 %v5673
        %5779 = vmatprep.subr.mxu0 0.0
        %5780 = vmatpush1.msra.mxu0 %v5674
        %5781 = vmatprep.subr.mxu0 0.0
        %5782 = vmatpush1.msra.mxu0 %v5675
        %5783 = vmatprep.subr.mxu0 0.0
        %5784 = vmatpush1.msra.mxu0 %v5676
        %5785 = vmatprep.subr.mxu0 0.0
        %5786 = vmatpush1.msra.mxu0 %v5677
        %5787 = vmatprep.subr.mxu0 0.0
        %5788 = vmatpush1.msra.mxu0 %v5678
        %5789 = vmatprep.subr.mxu0 0.0
        %5790 = vmatpush1.msra.mxu0 %v5679
        %5791 = vmatprep.subr.mxu0 0.0
        %5792 = vmatpush1.msra.mxu0 %v5680
        %5793 = vmatprep.subr.mxu0 0.0
        %5794 = vmatpush1.msra.mxu0 %v5681
        %5795 = vmatprep.subr.mxu0 0.0
        %5796 = vmatpush1.msra.mxu0 %v5682
        %5797 = vmatprep.subr.mxu0 0.0
        %5798 = vmatpush1.msra.mxu0 %v5683
        %5799 = vmatprep.subr.mxu0 0.0
        %5800 = vmatpush1.msra.mxu0 %v5684
        %5801 = vmatprep.subr.mxu0 0.0
        %5802 = vmatpush1.msra.mxu0 %v5685
        %5803 = vmatprep.subr.mxu0 0.0
        %5804 = vmatpush1.msra.mxu0 %v5686
        %5805 = vmatprep.subr.mxu0 0.0
        %5806 = vmatpush1.msra.mxu0 %v5687
        %5807 = vmatprep.subr.mxu0 0.0
        %5808 = vmatpush1.msra.mxu0 %v5688
        %5809 = vmatprep.subr.mxu0 0.0
        %5810 = vmatpush1.msra.mxu0 %v5689
        %5811 = vmatprep.subr.mxu0 0.0
        %5812 = vmatpush1.msra.mxu0 %v5690
        %5813 = vmatprep.subr.mxu0 0.0
        %5814 = vmatpush1.msra.mxu0 %v5691
        %5815 = vmatprep.subr.mxu0 0.0
        %5816 = vmatpush1.msra.mxu0 %v5692
        %5817 = vmatprep.subr.mxu0 0.0
        %5818 = vmatpush1.msra.mxu0 %v5693
        %5819 = vmatprep.subr.mxu0 0.0
        %5820 = vmatpush1.msra.mxu0 %v5694
        %5821 = vmatprep.subr.mxu0 0.0
        %5822 = vmatpush1.msra.mxu0 %v5695
        %5823 = vmatprep.subr.mxu0 0.0
        %5824 = vmatpush1.msra.mxu0 %v5696
        %5825 = vmatprep.subr.mxu0 0.0
        %5826 = vmatpush1.msra.mxu0 %v5697
        %5827 = vmatprep.subr.mxu0 0.0
        %5828 = vmatpush1.msra.mxu0 %v5698
        %5829 = vmatprep.subr.mxu0 0.0
        %5830 = vmatpush1.msra.mxu0 %v5699
        %5831 = vmatprep.subr.mxu0 0.0
        %5832 = vmatpush1.msra.mxu0 %v5700
        %5833 = vmatprep.mubr.f32.mxu0 %v5637
        %5834 = vmatmul.mubr.f32.gmra.mrb[0].mxu0 %v5541
        %v5835 = vpop.f32.mrb[0].mxu0
        %v5836 = vadd.f32 0.0, %v5835
        %v5837 = vpop.f32.mrb[0].mxu0
        %5838 = vmatprep.mubr.f32.mxu0 %v5638
        %5839 = vmatmul.mubr.f32.gmra.mrb[0].mxu0 %v5542
        %v5840 = vpop.f32.mrb[0].mxu0
        %v5841 = vadd.f32 0.0, %v5840
        %v5842 = vpop.f32.mrb[0].mxu0
        %5843 = vmatprep.mubr.f32.mxu0 %v5639
        %5844 = vmatmul.mubr.f32.gmra.mrb[0].mxu0 %v5543
        %v5845 = vpop.f32.mrb[0].mxu0
        %v5846 = vadd.f32 0.0, %v5845
        %v5847 = vpop.f32.mrb[0].mxu0
        %5848 = vmatprep.mubr.f32.mxu0 %v5640
        %5849 = vmatmul.mubr.f32.gmra.mrb[0].mxu0 %v5544
        %v5850 = vpop.f32.mrb[0].mxu0
        %v5851 = vadd.f32 0.0, %v5850
        %v5852 = vpop.f32.mrb[0].mxu0
        %5853 = vmatprep.mubr.f32.mxu0 %v5641
        %5854 = vmatmul.mubr.f32.gmra.mrb[0].mxu0 %v5545
        %v5855 = vpop.f32.mrb[0].mxu0
        %v5856 = vadd.f32 0.0, %v5855
        %v5857 = vpop.f32.mrb[0].mxu0
        %5858 = vmatprep.mubr.f32.mxu0 %v5642
        %5859 = vmatmul.mubr.f32.gmra.mrb[0].mxu0 %v5546
        %v5860 = vpop.f32.mrb[0].mxu0
        %v5861 = vadd.f32 0.0, %v5860
        %v5862 = vpop.f32.mrb[0].mxu0
        %5863 = vmatprep.mubr.f32.mxu0 %v5643
        %5864 = vmatmul.mubr.f32.gmra.mrb[0].mxu0 %v5547
        %v5865 = vpop.f32.mrb[0].mxu0
        %v5866 = vadd.f32 0.0, %v5865
        %v5867 = vpop.f32.mrb[0].mxu0
        %5868 = vmatprep.mubr.f32.mxu0 %v5644
        %5869 = vmatmul.mubr.f32.gmra.mrb[0].mxu0 %v5548
        %v5870 = vpop.f32.mrb[0].mxu0
        %v5871 = vadd.f32 0.0, %v5870
        %v5872 = vpop.f32.mrb[0].mxu0
        %5873 = vmatprep.mubr.f32.mxu0 %v5645
        %5874 = vmatmul.mubr.f32.gmra.mrb[0].mxu0 %v5549
        %v5875 = vpop.f32.mrb[0].mxu0
        %v5876 = vadd.f32 0.0, %v5875
        %v5877 = vpop.f32.mrb[0].mxu0
        %5878 = vmatprep.mubr.f32.mxu0 %v5646
        %5879 = vmatmul.mubr.f32.gmra.mrb[0].mxu0 %v5550
        %v5880 = vpop.f32.mrb[0].mxu0
        %v5881 = vadd.f32 0.0, %v5880
        %v5882 = vpop.f32.mrb[0].mxu0
        %5883 = vmatprep.mubr.f32.mxu0 %v5647
        %5884 = vmatmul.mubr.f32.gmra.mrb[0].mxu0 %v5551
        %v5885 = vpop.f32.mrb[0].mxu0
        %v5886 = vadd.f32 0.0, %v5885
        %v5887 = vpop.f32.mrb[0].mxu0
        %5888 = vmatprep.mubr.f32.mxu0 %v5648
        %5889 = vmatmul.mubr.f32.gmra.mrb[0].mxu0 %v5552
        %v5890 = vpop.f32.mrb[0].mxu0
        %v5891 = vadd.f32 0.0, %v5890
        %v5892 = vpop.f32.mrb[0].mxu0
        %5893 = vmatprep.mubr.f32.mxu0 %v5649
        %5894 = vmatmul.mubr.f32.gmra.mrb[0].mxu0 %v5553
        %v5895 = vpop.f32.mrb[0].mxu0
        %v5896 = vadd.f32 0.0, %v5895
        %v5897 = vpop.f32.mrb[0].mxu0
        %5898 = vmatprep.mubr.f32.mxu0 %v5650
        %5899 = vmatmul.mubr.f32.gmra.mrb[0].mxu0 %v5554
        %v5900 = vpop.f32.mrb[0].mxu0
        %v5901 = vadd.f32 0.0, %v5900
        %v5902 = vpop.f32.mrb[0].mxu0
        %5903 = vmatprep.mubr.f32.mxu0 %v5651
        %5904 = vmatmul.mubr.f32.gmra.mrb[0].mxu0 %v5555
        %v5905 = vpop.f32.mrb[0].mxu0
        %v5906 = vadd.f32 0.0, %v5905
        %v5907 = vpop.f32.mrb[0].mxu0
        %5908 = vmatprep.mubr.f32.mxu0 %v5652
        %5909 = vmatmul.mubr.f32.gmra.mrb[0].mxu0 %v5556
        %v5910 = vpop.f32.mrb[0].mxu0
        %v5911 = vadd.f32 0.0, %v5910
        %v5912 = vpop.f32.mrb[0].mxu0
        %5913 = vmatprep.mubr.f32.mxu0 %v5653
        %5914 = vmatmul.mubr.f32.gmra.mrb[0].mxu0 %v5557
        %v5915 = vpop.f32.mrb[0].mxu0
        %v5916 = vadd.f32 0.0, %v5915
        %v5917 = vpop.f32.mrb[0].mxu0
        %5918 = vmatprep.mubr.f32.mxu0 %v5654
        %5919 = vmatmul.mubr.f32.gmra.mrb[0].mxu0 %v5558
        %v5920 = vpop.f32.mrb[0].mxu0
        %v5921 = vadd.f32 0.0, %v5920
        %v5922 = vpop.f32.mrb[0].mxu0
        %5923 = vmatprep.mubr.f32.mxu0 %v5655
        %5924 = vmatmul.mubr.f32.gmra.mrb[0].mxu0 %v5559
        %v5925 = vpop.f32.mrb[0].mxu0
        %v5926 = vadd.f32 0.0, %v5925
        %v5927 = vpop.f32.mrb[0].mxu0
        %5928 = vmatprep.mubr.f32.mxu0 %v5656
        %5929 = vmatmul.mubr.f32.gmra.mrb[0].mxu0 %v5560
        %v5930 = vpop.f32.mrb[0].mxu0
        %v5931 = vadd.f32 0.0, %v5930
        %v5932 = vpop.f32.mrb[0].mxu0
        %5933 = vmatprep.mubr.f32.mxu0 %v5657
        %5934 = vmatmul.mubr.f32.gmra.mrb[0].mxu0 %v5561
        %v5935 = vpop.f32.mrb[0].mxu0
        %v5936 = vadd.f32 0.0, %v5935
        %v5937 = vpop.f32.mrb[0].mxu0
        %5938 = vmatprep.mubr.f32.mxu0 %v5658
        %5939 = vmatmul.mubr.f32.gmra.mrb[0].mxu0 %v5562
        %v5940 = vpop.f32.mrb[0].mxu0
        %v5941 = vadd.f32 0.0, %v5940
        %v5942 = vpop.f32.mrb[0].mxu0
        %5943 = vmatprep.mubr.f32.mxu0 %v5659
        %5944 = vmatmul.mubr.f32.gmra.mrb[0].mxu0 %v5563
        %v5945 = vpop.f32.mrb[0].mxu0
        %v5946 = vadd.f32 0.0, %v5945
        %v5947 = vpop.f32.mrb[0].mxu0
        %5948 = vmatprep.mubr.f32.mxu0 %v5660
        %5949 = vmatmul.mubr.f32.gmra.mrb[0].mxu0 %v5564
        %v5950 = vpop.f32.mrb[0].mxu0
        %v5951 = vadd.f32 0.0, %v5950
        %v5952 = vpop.f32.mrb[0].mxu0
        %5953 = vmatprep.mubr.f32.mxu0 %v5661
        %5954 = vmatmul.mubr.f32.gmra.mrb[0].mxu0 %v5565
        %v5955 = vpop.f32.mrb[0].mxu0
        %v5956 = vadd.f32 0.0, %v5955
        %v5957 = vpop.f32.mrb[0].mxu0
        %5958 = vmatprep.mubr.f32.mxu0 %v5662
        %5959 = vmatmul.mubr.f32.gmra.mrb[0].mxu0 %v5566
        %v5960 = vpop.f32.mrb[0].mxu0
        %v5961 = vadd.f32 0.0, %v5960
        %v5962 = vpop.f32.mrb[0].mxu0
        %5963 = vmatprep.mubr.f32.mxu0 %v5663
        %5964 = vmatmul.mubr.f32.gmra.mrb[0].mxu0 %v5567
        %v5965 = vpop.f32.mrb[0].mxu0
        %v5966 = vadd.f32 0.0, %v5965
        %v5967 = vpop.f32.mrb[0].mxu0
        %5968 = vmatprep.mubr.f32.mxu0 %v5664
        %5969 = vmatmul.mubr.f32.gmra.mrb[0].mxu0 %v5568
        %v5970 = vpop.f32.mrb[0].mxu0
        %v5971 = vadd.f32 0.0, %v5970
        %v5972 = vpop.f32.mrb[0].mxu0
        %5973 = vmatprep.mubr.f32.mxu0 %v5665
        %5974 = vmatmul.mubr.f32.gmra.mrb[0].mxu0 %v5569
        %v5975 = vpop.f32.mrb[0].mxu0
        %v5976 = vadd.f32 0.0, %v5975
        %v5977 = vpop.f32.mrb[0].mxu0
        %5978 = vmatprep.mubr.f32.mxu0 %v5666
        %5979 = vmatmul.mubr.f32.gmra.mrb[0].mxu0 %v5570
        %v5980 = vpop.f32.mrb[0].mxu0
        %v5981 = vadd.f32 0.0, %v5980
        %v5982 = vpop.f32.mrb[0].mxu0
        %5983 = vmatprep.mubr.f32.mxu0 %v5667
        %5984 = vmatmul.mubr.f32.gmra.mrb[0].mxu0 %v5571
        %v5985 = vpop.f32.mrb[0].mxu0
        %v5986 = vadd.f32 0.0, %v5985
        %v5987 = vpop.f32.mrb[0].mxu0
        %5988 = vmatprep.mubr.f32.mxu0 %v5668
        %5989 = vmatmul.mubr.f32.gmra.mrb[0].mxu0 %v5572
        %v5990 = vpop.f32.mrb[0].mxu0
        %v5991 = vadd.f32 0.0, %v5990
        %v5992 = vpop.f32.mrb[0].mxu0
        %5993 = vdwg.mxu0
        %5994 = vmatprep.subr.mxu0 0.0
        %5995 = vmatpush1.msra.mxu0 %v5701
        %5996 = vmatprep.subr.mxu0 0.0
        %5997 = vmatpush1.msra.mxu0 %v5702
        %5998 = vmatprep.subr.mxu0 0.0
        %5999 = vmatpush1.msra.mxu0 %v5703
        %6000 = vmatprep.subr.mxu0 0.0
        %6001 = vmatpush1.msra.mxu0 %v5704
        %6002 = vmatprep.subr.mxu0 0.0
        %6003 = vmatpush1.msra.mxu0 0.0
        %6004 = vmatprep.subr.mxu0 0.0
        %6005 = vmatpush1.msra.mxu0 0.0
        %6006 = vmatprep.subr.mxu0 0.0
        %6007 = vmatpush1.msra.mxu0 0.0
        %6008 = vmatprep.subr.mxu0 0.0
        %6009 = vmatpush1.msra.mxu0 0.0
        %6010 = vmatprep.subr.mxu0 0.0
        %6011 = vmatpush1.msra.mxu0 0.0
        %6012 = vmatprep.subr.mxu0 0.0
        %6013 = vmatpush1.msra.mxu0 0.0
        %6014 = vmatprep.subr.mxu0 0.0
        %6015 = vmatpush1.msra.mxu0 0.0
        %6016 = vmatprep.subr.mxu0 0.0
        %6017 = vmatpush1.msra.mxu0 0.0
        %6018 = vmatprep.subr.mxu0 0.0
        %6019 = vmatpush1.msra.mxu0 0.0
        %6020 = vmatprep.subr.mxu0 0.0
        %6021 = vmatpush1.msra.mxu0 0.0
        %6022 = vmatprep.subr.mxu0 0.0
        %6023 = vmatpush1.msra.mxu0 0.0
        %6024 = vmatprep.subr.mxu0 0.0
        %6025 = vmatpush1.msra.mxu0 0.0
        %6026 = vmatprep.subr.mxu0 0.0
        %6027 = vmatpush1.msra.mxu0 0.0
        %6028 = vmatprep.subr.mxu0 0.0
        %6029 = vmatpush1.msra.mxu0 0.0
        %6030 = vmatprep.subr.mxu0 0.0
        %6031 = vmatpush1.msra.mxu0 0.0
        %6032 = vmatprep.subr.mxu0 0.0
        %6033 = vmatpush1.msra.mxu0 0.0
        %6034 = vmatprep.subr.mxu0 0.0
        %6035 = vmatpush1.msra.mxu0 0.0
        %6036 = vmatprep.subr.mxu0 0.0
        %6037 = vmatpush1.msra.mxu0 0.0
        %6038 = vmatprep.subr.mxu0 0.0
        %6039 = vmatpush1.msra.mxu0 0.0
        %6040 = vmatprep.subr.mxu0 0.0
        %6041 = vmatpush1.msra.mxu0 0.0
        %6042 = vmatprep.subr.mxu0 0.0
        %6043 = vmatpush1.msra.mxu0 0.0
        %6044 = vmatprep.subr.mxu0 0.0
        %6045 = vmatpush1.msra.mxu0 0.0
        %6046 = vmatprep.subr.mxu0 0.0
        %6047 = vmatpush1.msra.mxu0 0.0
        %6048 = vmatprep.subr.mxu0 0.0
        %6049 = vmatpush1.msra.mxu0 0.0
        %6050 = vmatprep.subr.mxu0 0.0
        %6051 = vmatpush1.msra.mxu0 0.0
        %6052 = vmatprep.subr.mxu0 0.0
        %6053 = vmatpush1.msra.mxu0 0.0
        %6054 = vmatprep.subr.mxu0 0.0
        %6055 = vmatpush1.msra.mxu0 0.0
        %6056 = vmatprep.subr.mxu0 0.0
        %6057 = vmatpush1.msra.mxu0 0.0
        %6058 = vmatprep.mubr.f32.mxu0 0.0
        %6059 = vmatmul.mubr.f32.gmra.mrb[0].mxu0 %v5705
        %v6060 = vpop.f32.mrb[0].mxu0
        %v6061 = vadd.f32 %v5836, %v6060
        %v6062 = vpop.f32.mrb[0].mxu0
        %6063 = vmatprep.mubr.f32.mxu0 0.0
        %6064 = vmatmul.mubr.f32.gmra.mrb[0].mxu0 %v5707
        %v6065 = vpop.f32.mrb[0].mxu0
        %v6066 = vadd.f32 %v5841, %v6065
        %v6067 = vpop.f32.mrb[0].mxu0
        %6068 = vmatprep.mubr.f32.mxu0 0.0
        %6069 = vmatmul.mubr.f32.gmra.mrb[0].mxu0 %v5709
        %v6070 = vpop.f32.mrb[0].mxu0
        %v6071 = vadd.f32 %v5846, %v6070
        %v6072 = vpop.f32.mrb[0].mxu0
        %6073 = vmatprep.mubr.f32.mxu0 0.0
        %6074 = vmatmul.mubr.f32.gmra.mrb[0].mxu0 %v5711
        %v6075 = vpop.f32.mrb[0].mxu0
        %v6076 = vadd.f32 %v5851, %v6075
        %v6077 = vpop.f32.mrb[0].mxu0
        %6078 = vmatprep.mubr.f32.mxu0 0.0
        %6079 = vmatmul.mubr.f32.gmra.mrb[0].mxu0 %v5713
        %v6080 = vpop.f32.mrb[0].mxu0
        %v6081 = vadd.f32 %v5856, %v6080
        %v6082 = vpop.f32.mrb[0].mxu0
        %6083 = vmatprep.mubr.f32.mxu0 0.0
        %6084 = vmatmul.mubr.f32.gmra.mrb[0].mxu0 %v5715
        %v6085 = vpop.f32.mrb[0].mxu0
        %v6086 = vadd.f32 %v5861, %v6085
        %v6087 = vpop.f32.mrb[0].mxu0
        %6088 = vmatprep.mubr.f32.mxu0 0.0
        %6089 = vmatmul.mubr.f32.gmra.mrb[0].mxu0 %v5717
        %v6090 = vpop.f32.mrb[0].mxu0
        %v6091 = vadd.f32 %v5866, %v6090
        %v6092 = vpop.f32.mrb[0].mxu0
        %6093 = vmatprep.mubr.f32.mxu0 0.0
        %6094 = vmatmul.mubr.f32.gmra.mrb[0].mxu0 %v5719
        %v6095 = vpop.f32.mrb[0].mxu0
        %v6096 = vadd.f32 %v5871, %v6095
        %v6097 = vpop.f32.mrb[0].mxu0
        %6098 = vmatprep.mubr.f32.mxu0 0.0
        %6099 = vmatmul.mubr.f32.gmra.mrb[0].mxu0 %v5721
        %v6100 = vpop.f32.mrb[0].mxu0
        %v6101 = vadd.f32 %v5876, %v6100
        %v6102 = vpop.f32.mrb[0].mxu0
        %6103 = vmatprep.mubr.f32.mxu0 0.0
        %6104 = vmatmul.mubr.f32.gmra.mrb[0].mxu0 %v5723
        %v6105 = vpop.f32.mrb[0].mxu0
        %v6106 = vadd.f32 %v5881, %v6105
        %v6107 = vpop.f32.mrb[0].mxu0
        %6108 = vmatprep.mubr.f32.mxu0 0.0
        %6109 = vmatmul.mubr.f32.gmra.mrb[0].mxu0 %v5725
        %v6110 = vpop.f32.mrb[0].mxu0
        %v6111 = vadd.f32 %v5886, %v6110
        %v6112 = vpop.f32.mrb[0].mxu0
        %6113 = vmatprep.mubr.f32.mxu0 0.0
        %6114 = vmatmul.mubr.f32.gmra.mrb[0].mxu0 %v5727
        %v6115 = vpop.f32.mrb[0].mxu0
        %v6116 = vadd.f32 %v5891, %v6115
        %v6117 = vpop.f32.mrb[0].mxu0
        %6118 = vmatprep.mubr.f32.mxu0 0.0
        %6119 = vmatmul.mubr.f32.gmra.mrb[0].mxu0 %v5729
        %v6120 = vpop.f32.mrb[0].mxu0
        %v6121 = vadd.f32 %v5896, %v6120
        %v6122 = vpop.f32.mrb[0].mxu0
        %6123 = vmatprep.mubr.f32.mxu0 0.0
        %6124 = vmatmul.mubr.f32.gmra.mrb[0].mxu0 %v5731
        %v6125 = vpop.f32.mrb[0].mxu0
        %v6126 = vadd.f32 %v5901, %v6125
        %v6127 = vpop.f32.mrb[0].mxu0
        %6128 = vmatprep.mubr.f32.mxu0 0.0
        %6129 = vmatmul.mubr.f32.gmra.mrb[0].mxu0 %v5733
        %v6130 = vpop.f32.mrb[0].mxu0
        %v6131 = vadd.f32 %v5906, %v6130
        %v6132 = vpop.f32.mrb[0].mxu0
        %6133 = vmatprep.mubr.f32.mxu0 0.0
        %6134 = vmatmul.mubr.f32.gmra.mrb[0].mxu0 %v5735
        %v6135 = vpop.f32.mrb[0].mxu0
        %v6136 = vadd.f32 %v5911, %v6135
        %v6137 = vpop.f32.mrb[0].mxu0
        %6138 = vmatprep.mubr.f32.mxu0 0.0
        %6139 = vmatmul.mubr.f32.gmra.mrb[0].mxu0 %v5737
        %v6140 = vpop.f32.mrb[0].mxu0
        %v6141 = vadd.f32 %v5916, %v6140
        %v6142 = vpop.f32.mrb[0].mxu0
        %6143 = vmatprep.mubr.f32.mxu0 0.0
        %6144 = vmatmul.mubr.f32.gmra.mrb[0].mxu0 %v5739
        %v6145 = vpop.f32.mrb[0].mxu0
        %v6146 = vadd.f32 %v5921, %v6145
        %v6147 = vpop.f32.mrb[0].mxu0
        %6148 = vmatprep.mubr.f32.mxu0 0.0
        %6149 = vmatmul.mubr.f32.gmra.mrb[0].mxu0 %v5741
        %v6150 = vpop.f32.mrb[0].mxu0
        %v6151 = vadd.f32 %v5926, %v6150
        %v6152 = vpop.f32.mrb[0].mxu0
        %6153 = vmatprep.mubr.f32.mxu0 0.0
        %6154 = vmatmul.mubr.f32.gmra.mrb[0].mxu0 %v5743
        %v6155 = vpop.f32.mrb[0].mxu0
        %v6156 = vadd.f32 %v5931, %v6155
        %v6157 = vpop.f32.mrb[0].mxu0
        %6158 = vmatprep.mubr.f32.mxu0 0.0
        %6159 = vmatmul.mubr.f32.gmra.mrb[0].mxu0 %v5745
        %v6160 = vpop.f32.mrb[0].mxu0
        %v6161 = vadd.f32 %v5936, %v6160
        %v6162 = vpop.f32.mrb[0].mxu0
        %6163 = vmatprep.mubr.f32.mxu0 0.0
        %6164 = vmatmul.mubr.f32.gmra.mrb[0].mxu0 %v5747
        %v6165 = vpop.f32.mrb[0].mxu0
        %v6166 = vadd.f32 %v5941, %v6165
        %v6167 = vpop.f32.mrb[0].mxu0
        %6168 = vmatprep.mubr.f32.mxu0 0.0
        %6169 = vmatmul.mubr.f32.gmra.mrb[0].mxu0 %v5749
        %v6170 = vpop.f32.mrb[0].mxu0
        %v6171 = vadd.f32 %v5946, %v6170
        %v6172 = vpop.f32.mrb[0].mxu0
        %6173 = vmatprep.mubr.f32.mxu0 0.0
        %6174 = vmatmul.mubr.f32.gmra.mrb[0].mxu0 %v5751
        %v6175 = vpop.f32.mrb[0].mxu0
        %v6176 = vadd.f32 %v5951, %v6175
        %v6177 = vpop.f32.mrb[0].mxu0
        %6178 = vmatprep.mubr.f32.mxu0 0.0
        %6179 = vmatmul.mubr.f32.gmra.mrb[0].mxu0 %v5753
        %v6180 = vpop.f32.mrb[0].mxu0
        %v6181 = vadd.f32 %v5956, %v6180
        %v6182 = vpop.f32.mrb[0].mxu0
        %6183 = vmatprep.mubr.f32.mxu0 0.0
        %6184 = vmatmul.mubr.f32.gmra.mrb[0].mxu0 %v5755
        %v6185 = vpop.f32.mrb[0].mxu0
        %v6186 = vadd.f32 %v5961, %v6185
        %v6187 = vpop.f32.mrb[0].mxu0
        %6188 = vmatprep.mubr.f32.mxu0 0.0
        %6189 = vmatmul.mubr.f32.gmra.mrb[0].mxu0 %v5757
        %v6190 = vpop.f32.mrb[0].mxu0
        %v6191 = vadd.f32 %v5966, %v6190
        %v6192 = vpop.f32.mrb[0].mxu0
        %6193 = vmatprep.mubr.f32.mxu0 0.0
        %6194 = vmatmul.mubr.f32.gmra.mrb[0].mxu0 %v5759
        %v6195 = vpop.f32.mrb[0].mxu0
        %v6196 = vadd.f32 %v5971, %v6195
        %v6197 = vpop.f32.mrb[0].mxu0
        %6198 = vmatprep.mubr.f32.mxu0 0.0
        %6199 = vmatmul.mubr.f32.gmra.mrb[0].mxu0 %v5761
        %v6200 = vpop.f32.mrb[0].mxu0
        %v6201 = vadd.f32 %v5976, %v6200
        %v6202 = vpop.f32.mrb[0].mxu0
        %6203 = vmatprep.mubr.f32.mxu0 0.0
        %6204 = vmatmul.mubr.f32.gmra.mrb[0].mxu0 %v5763
        %v6205 = vpop.f32.mrb[0].mxu0
        %v6206 = vadd.f32 %v5981, %v6205
        %v6207 = vpop.f32.mrb[0].mxu0
        %6208 = vmatprep.mubr.f32.mxu0 0.0
        %6209 = vmatmul.mubr.f32.gmra.mrb[0].mxu0 %v5765
        %v6210 = vpop.f32.mrb[0].mxu0
        %v6211 = vadd.f32 %v5986, %v6210
        %v6212 = vpop.f32.mrb[0].mxu0
        %6213 = vmatprep.mubr.f32.mxu0 0.0
        %6214 = vmatmul.mubr.f32.gmra.mrb[0].mxu0 %v5767
        %v6215 = vpop.f32.mrb[0].mxu0
        %v6216 = vadd.f32 %v5991, %v6215
        %v6217 = vpop.f32.mrb[0].mxu0
        %6218 = vdwg.mxu0
        %v6219 = vmax.f32 %v6061, 0.0
        %v6220 = vmax.f32 %v6066, 0.0
        %v6221 = vmax.f32 %v6071, 0.0
        %v6222 = vmax.f32 %v6076, 0.0
        %v6223 = vmax.f32 %v6081, 0.0
        %v6224 = vmax.f32 %v6086, 0.0
        %v6225 = vmax.f32 %v6091, 0.0
        %v6226 = vmax.f32 %v6096, 0.0
        %v6227 = vmax.f32 %v6101, 0.0
        %v6228 = vmax.f32 %v6106, 0.0
        %v6229 = vmax.f32 %v6111, 0.0
        %v6230 = vmax.f32 %v6116, 0.0
        %v6231 = vmax.f32 %v6121, 0.0
        %v6232 = vmax.f32 %v6126, 0.0
        %v6233 = vmax.f32 %v6131, 0.0
        %v6234 = vmax.f32 %v6136, 0.0
        %v6235 = vmax.f32 %v6141, 0.0
        %v6236 = vmax.f32 %v6146, 0.0
        %v6237 = vmax.f32 %v6151, 0.0
        %v6238 = vmax.f32 %v6156, 0.0
        %v6239 = vmax.f32 %v6161, 0.0
        %v6240 = vmax.f32 %v6166, 0.0
        %v6241 = vmax.f32 %v6171, 0.0
        %v6242 = vmax.f32 %v6176, 0.0
        %v6243 = vmax.f32 %v6181, 0.0
        %v6244 = vmax.f32 %v6186, 0.0
        %v6245 = vmax.f32 %v6191, 0.0
        %v6246 = vmax.f32 %v6196, 0.0
        %v6247 = vmax.f32 %v6201, 0.0
        %v6248 = vmax.f32 %v6206, 0.0
        %v6249 = vmax.f32 %v6211, 0.0
        %v6250 = vmax.f32 %v6216, 0.0
        %v6251 = vld [vmem:[#allocation7] sm:$0xff]
        %v6252 = vld [vmem:[#allocation7 + $0x8] sm:$0xff]
        %v6254 = vsel %vm1663, %v6219, 0
        %v6257 = vsel %vm1663, %v6220, 0
        %v6260 = vsel %vm1663, %v6221, 0
        %v6263 = vsel %vm1663, %v6222, 0
        %v6266 = vsel %vm1663, %v6223, 0
        %v6269 = vsel %vm1663, %v6224, 0
        %v6272 = vsel %vm1663, %v6225, 0
        %v6275 = vsel %vm1663, %v6226, 0
        %v6278 = vsel %vm1663, %v6227, 0
        %v6281 = vsel %vm1663, %v6228, 0
        %v6284 = vsel %vm1663, %v6229, 0
        %v6287 = vsel %vm1663, %v6230, 0
        %v6290 = vsel %vm1663, %v6231, 0
        %v6293 = vsel %vm1663, %v6232, 0
        %v6296 = vsel %vm1663, %v6233, 0
        %v6299 = vsel %vm1663, %v6234, 0
        %v6302 = vsel %vm1663, %v6235, 0
        %v6305 = vsel %vm1663, %v6236, 0
        %v6308 = vsel %vm1663, %v6237, 0
        %v6311 = vsel %vm1663, %v6238, 0
        %v6314 = vsel %vm1663, %v6239, 0
        %v6317 = vsel %vm1663, %v6240, 0
        %v6320 = vsel %vm1663, %v6241, 0
        %v6323 = vsel %vm1663, %v6242, 0
        %v6326 = vsel %vm1663, %v6243, 0
        %v6329 = vsel %vm1663, %v6244, 0
        %v6332 = vsel %vm1663, %v6245, 0
        %v6335 = vsel %vm1663, %v6246, 0
        %v6338 = vsel %vm1663, %v6247, 0
        %v6341 = vsel %vm1663, %v6248, 0
        %v6344 = vsel %vm1663, %v6249, 0
        %v6347 = vsel %vm1663, %v6250, 0
        %6349 = vmatprep.subr.mxu0 0.0
        %6350 = vmatpush1.msra.mxu0 %v6251
        %6351 = vmatprep.subr.mxu0 0.0
        %6352 = vmatpush1.msra.mxu0 %v6252
        %6353 = vmatprep.subr.mxu0 0.0
        %6354 = vmatpush1.msra.mxu0 0.0
        %6355 = vmatprep.subr.mxu0 0.0
        %6356 = vmatpush1.msra.mxu0 0.0
        %6357 = vmatprep.subr.mxu0 0.0
        %6358 = vmatpush1.msra.mxu0 0.0
        %6359 = vmatprep.subr.mxu0 0.0
        %6360 = vmatpush1.msra.mxu0 0.0
        %6361 = vmatprep.subr.mxu0 0.0
        %6362 = vmatpush1.msra.mxu0 0.0
        %6363 = vmatprep.subr.mxu0 0.0
        %6364 = vmatpush1.msra.mxu0 0.0
        %6365 = vmatprep.subr.mxu0 0.0
        %6366 = vmatpush1.msra.mxu0 0.0
        %6367 = vmatprep.subr.mxu0 0.0
        %6368 = vmatpush1.msra.mxu0 0.0
        %6369 = vmatprep.subr.mxu0 0.0
        %6370 = vmatpush1.msra.mxu0 0.0
        %6371 = vmatprep.subr.mxu0 0.0
        %6372 = vmatpush1.msra.mxu0 0.0
        %6373 = vmatprep.subr.mxu0 0.0
        %6374 = vmatpush1.msra.mxu0 0.0
        %6375 = vmatprep.subr.mxu0 0.0
        %6376 = vmatpush1.msra.mxu0 0.0
        %6377 = vmatprep.subr.mxu0 0.0
        %6378 = vmatpush1.msra.mxu0 0.0
        %6379 = vmatprep.subr.mxu0 0.0
        %6380 = vmatpush1.msra.mxu0 0.0
        %6381 = vmatprep.subr.mxu0 0.0
        %6382 = vmatpush1.msra.mxu0 0.0
        %6383 = vmatprep.subr.mxu0 0.0
        %6384 = vmatpush1.msra.mxu0 0.0
        %6385 = vmatprep.subr.mxu0 0.0
        %6386 = vmatpush1.msra.mxu0 0.0
        %6387 = vmatprep.subr.mxu0 0.0
        %6388 = vmatpush1.msra.mxu0 0.0
        %6389 = vmatprep.subr.mxu0 0.0
        %6390 = vmatpush1.msra.mxu0 0.0
        %6391 = vmatprep.subr.mxu0 0.0
        %6392 = vmatpush1.msra.mxu0 0.0
        %6393 = vmatprep.subr.mxu0 0.0
        %6394 = vmatpush1.msra.mxu0 0.0
        %6395 = vmatprep.subr.mxu0 0.0
        %6396 = vmatpush1.msra.mxu0 0.0
        %6397 = vmatprep.subr.mxu0 0.0
        %6398 = vmatpush1.msra.mxu0 0.0
        %6399 = vmatprep.subr.mxu0 0.0
        %6400 = vmatpush1.msra.mxu0 0.0
        %6401 = vmatprep.subr.mxu0 0.0
        %6402 = vmatpush1.msra.mxu0 0.0
        %6403 = vmatprep.subr.mxu0 0.0
        %6404 = vmatpush1.msra.mxu0 0.0
        %6405 = vmatprep.subr.mxu0 0.0
        %6406 = vmatpush1.msra.mxu0 0.0
        %6407 = vmatprep.subr.mxu0 0.0
        %6408 = vmatpush1.msra.mxu0 0.0
        %6409 = vmatprep.subr.mxu0 0.0
        %6410 = vmatpush1.msra.mxu0 0.0
        %6411 = vmatprep.subr.mxu0 0.0
        %6412 = vmatpush1.msra.mxu0 0.0
        %6413 = vmatprep.mubr.f32.mxu0 0.0
        %6414 = vmatmul.mubr.f32.gmra.mrb[0].mxu0 %v6254
        %v6415 = vpop.f32.mrb[0].mxu0
        %v6416 = vadd.f32 0.0, %v6415
        %v6417 = vpop.f32.mrb[0].mxu0
        %6418 = vmatprep.mubr.f32.mxu0 0.0
        %6419 = vmatmul.mubr.f32.gmra.mrb[0].mxu0 %v6257
        %v6420 = vpop.f32.mrb[0].mxu0
        %v6421 = vadd.f32 0.0, %v6420
        %v6422 = vpop.f32.mrb[0].mxu0
        %6423 = vmatprep.mubr.f32.mxu0 0.0
        %6424 = vmatmul.mubr.f32.gmra.mrb[0].mxu0 %v6260
        %v6425 = vpop.f32.mrb[0].mxu0
        %v6426 = vadd.f32 0.0, %v6425
        %v6427 = vpop.f32.mrb[0].mxu0
        %6428 = vmatprep.mubr.f32.mxu0 0.0
        %6429 = vmatmul.mubr.f32.gmra.mrb[0].mxu0 %v6263
        %v6430 = vpop.f32.mrb[0].mxu0
        %v6431 = vadd.f32 0.0, %v6430
        %v6432 = vpop.f32.mrb[0].mxu0
        %6433 = vmatprep.mubr.f32.mxu0 0.0
        %6434 = vmatmul.mubr.f32.gmra.mrb[0].mxu0 %v6266
        %v6435 = vpop.f32.mrb[0].mxu0
        %v6436 = vadd.f32 0.0, %v6435
        %v6437 = vpop.f32.mrb[0].mxu0
        %6438 = vmatprep.mubr.f32.mxu0 0.0
        %6439 = vmatmul.mubr.f32.gmra.mrb[0].mxu0 %v6269
        %v6440 = vpop.f32.mrb[0].mxu0
        %v6441 = vadd.f32 0.0, %v6440
        %v6442 = vpop.f32.mrb[0].mxu0
        %6443 = vmatprep.mubr.f32.mxu0 0.0
        %6444 = vmatmul.mubr.f32.gmra.mrb[0].mxu0 %v6272
        %v6445 = vpop.f32.mrb[0].mxu0
        %v6446 = vadd.f32 0.0, %v6445
        %v6447 = vpop.f32.mrb[0].mxu0
        %6448 = vmatprep.mubr.f32.mxu0 0.0
        %6449 = vmatmul.mubr.f32.gmra.mrb[0].mxu0 %v6275
        %v6450 = vpop.f32.mrb[0].mxu0
        %v6451 = vadd.f32 0.0, %v6450
        %v6452 = vpop.f32.mrb[0].mxu0
        %6453 = vmatprep.mubr.f32.mxu0 0.0
        %6454 = vmatmul.mubr.f32.gmra.mrb[0].mxu0 %v6278
        %v6455 = vpop.f32.mrb[0].mxu0
        %v6456 = vadd.f32 0.0, %v6455
        %v6457 = vpop.f32.mrb[0].mxu0
        %6458 = vmatprep.mubr.f32.mxu0 0.0
        %6459 = vmatmul.mubr.f32.gmra.mrb[0].mxu0 %v6281
        %v6460 = vpop.f32.mrb[0].mxu0
        %v6461 = vadd.f32 0.0, %v6460
        %v6462 = vpop.f32.mrb[0].mxu0
        %6463 = vmatprep.mubr.f32.mxu0 0.0
        %6464 = vmatmul.mubr.f32.gmra.mrb[0].mxu0 %v6284
        %v6465 = vpop.f32.mrb[0].mxu0
        %v6466 = vadd.f32 0.0, %v6465
        %v6467 = vpop.f32.mrb[0].mxu0
        %6468 = vmatprep.mubr.f32.mxu0 0.0
        %6469 = vmatmul.mubr.f32.gmra.mrb[0].mxu0 %v6287
        %v6470 = vpop.f32.mrb[0].mxu0
        %v6471 = vadd.f32 0.0, %v6470
        %v6472 = vpop.f32.mrb[0].mxu0
        %6473 = vmatprep.mubr.f32.mxu0 0.0
        %6474 = vmatmul.mubr.f32.gmra.mrb[0].mxu0 %v6290
        %v6475 = vpop.f32.mrb[0].mxu0
        %v6476 = vadd.f32 0.0, %v6475
        %v6477 = vpop.f32.mrb[0].mxu0
        %6478 = vmatprep.mubr.f32.mxu0 0.0
        %6479 = vmatmul.mubr.f32.gmra.mrb[0].mxu0 %v6293
        %v6480 = vpop.f32.mrb[0].mxu0
        %v6481 = vadd.f32 0.0, %v6480
        %v6482 = vpop.f32.mrb[0].mxu0
        %6483 = vmatprep.mubr.f32.mxu0 0.0
        %6484 = vmatmul.mubr.f32.gmra.mrb[0].mxu0 %v6296
        %v6485 = vpop.f32.mrb[0].mxu0
        %v6486 = vadd.f32 0.0, %v6485
        %v6487 = vpop.f32.mrb[0].mxu0
        %6488 = vmatprep.mubr.f32.mxu0 0.0
        %6489 = vmatmul.mubr.f32.gmra.mrb[0].mxu0 %v6299
        %v6490 = vpop.f32.mrb[0].mxu0
        %v6491 = vadd.f32 0.0, %v6490
        %v6492 = vpop.f32.mrb[0].mxu0
        %6493 = vmatprep.mubr.f32.mxu0 0.0
        %6494 = vmatmul.mubr.f32.gmra.mrb[0].mxu0 %v6302
        %v6495 = vpop.f32.mrb[0].mxu0
        %v6496 = vadd.f32 0.0, %v6495
        %v6497 = vpop.f32.mrb[0].mxu0
        %6498 = vmatprep.mubr.f32.mxu0 0.0
        %6499 = vmatmul.mubr.f32.gmra.mrb[0].mxu0 %v6305
        %v6500 = vpop.f32.mrb[0].mxu0
        %v6501 = vadd.f32 0.0, %v6500
        %v6502 = vpop.f32.mrb[0].mxu0
        %6503 = vmatprep.mubr.f32.mxu0 0.0
        %6504 = vmatmul.mubr.f32.gmra.mrb[0].mxu0 %v6308
        %v6505 = vpop.f32.mrb[0].mxu0
        %v6506 = vadd.f32 0.0, %v6505
        %v6507 = vpop.f32.mrb[0].mxu0
        %6508 = vmatprep.mubr.f32.mxu0 0.0
        %6509 = vmatmul.mubr.f32.gmra.mrb[0].mxu0 %v6311
        %v6510 = vpop.f32.mrb[0].mxu0
        %v6511 = vadd.f32 0.0, %v6510
        %v6512 = vpop.f32.mrb[0].mxu0
        %6513 = vmatprep.mubr.f32.mxu0 0.0
        %6514 = vmatmul.mubr.f32.gmra.mrb[0].mxu0 %v6314
        %v6515 = vpop.f32.mrb[0].mxu0
        %v6516 = vadd.f32 0.0, %v6515
        %v6517 = vpop.f32.mrb[0].mxu0
        %6518 = vmatprep.mubr.f32.mxu0 0.0
        %6519 = vmatmul.mubr.f32.gmra.mrb[0].mxu0 %v6317
        %v6520 = vpop.f32.mrb[0].mxu0
        %v6521 = vadd.f32 0.0, %v6520
        %v6522 = vpop.f32.mrb[0].mxu0
        %6523 = vmatprep.mubr.f32.mxu0 0.0
        %6524 = vmatmul.mubr.f32.gmra.mrb[0].mxu0 %v6320
        %v6525 = vpop.f32.mrb[0].mxu0
        %v6526 = vadd.f32 0.0, %v6525
        %v6527 = vpop.f32.mrb[0].mxu0
        %6528 = vmatprep.mubr.f32.mxu0 0.0
        %6529 = vmatmul.mubr.f32.gmra.mrb[0].mxu0 %v6323
        %v6530 = vpop.f32.mrb[0].mxu0
        %v6531 = vadd.f32 0.0, %v6530
        %v6532 = vpop.f32.mrb[0].mxu0
        %6533 = vmatprep.mubr.f32.mxu0 0.0
        %6534 = vmatmul.mubr.f32.gmra.mrb[0].mxu0 %v6326
        %v6535 = vpop.f32.mrb[0].mxu0
        %v6536 = vadd.f32 0.0, %v6535
        %v6537 = vpop.f32.mrb[0].mxu0
        %6538 = vmatprep.mubr.f32.mxu0 0.0
        %6539 = vmatmul.mubr.f32.gmra.mrb[0].mxu0 %v6329
        %v6540 = vpop.f32.mrb[0].mxu0
        %v6541 = vadd.f32 0.0, %v6540
        %v6542 = vpop.f32.mrb[0].mxu0
        %6543 = vmatprep.mubr.f32.mxu0 0.0
        %6544 = vmatmul.mubr.f32.gmra.mrb[0].mxu0 %v6332
        %v6545 = vpop.f32.mrb[0].mxu0
        %v6546 = vadd.f32 0.0, %v6545
        %v6547 = vpop.f32.mrb[0].mxu0
        %6548 = vmatprep.mubr.f32.mxu0 0.0
        %6549 = vmatmul.mubr.f32.gmra.mrb[0].mxu0 %v6335
        %v6550 = vpop.f32.mrb[0].mxu0
        %v6551 = vadd.f32 0.0, %v6550
        %v6552 = vpop.f32.mrb[0].mxu0
        %6553 = vmatprep.mubr.f32.mxu0 0.0
        %6554 = vmatmul.mubr.f32.gmra.mrb[0].mxu0 %v6338
        %v6555 = vpop.f32.mrb[0].mxu0
        %v6556 = vadd.f32 0.0, %v6555
        %v6557 = vpop.f32.mrb[0].mxu0
        %6558 = vmatprep.mubr.f32.mxu0 0.0
        %6559 = vmatmul.mubr.f32.gmra.mrb[0].mxu0 %v6341
        %v6560 = vpop.f32.mrb[0].mxu0
        %v6561 = vadd.f32 0.0, %v6560
        %v6562 = vpop.f32.mrb[0].mxu0
        %6563 = vmatprep.mubr.f32.mxu0 0.0
        %6564 = vmatmul.mubr.f32.gmra.mrb[0].mxu0 %v6344
        %v6565 = vpop.f32.mrb[0].mxu0
        %v6566 = vadd.f32 0.0, %v6565
        %v6567 = vpop.f32.mrb[0].mxu0
        %6568 = vmatprep.mubr.f32.mxu0 0.0
        %6569 = vmatmul.mubr.f32.gmra.mrb[0].mxu0 %v6347
        %v6570 = vpop.f32.mrb[0].mxu0
        %v6571 = vadd.f32 0.0, %v6570
        %v6572 = vpop.f32.mrb[0].mxu0
        %6573 = vdwg.mxu0
        %v6622 = vrot.slane %v4530, 1
        %v6623 = vrot.slane %v4531, 1
        %v6624 = vsel %vm609, %v6622, %v6623
        %v6625 = vrot.slane %v4532, 1
        %v6626 = vsel %vm609, %v6623, %v6625
        %v6627 = vrot.slane %v4533, 1
        %v6628 = vrot.slane %v4534, 1
        %v6629 = vsel %vm609, %v6627, %v6628
        %v6630 = vrot.slane %v4535, 1
        %v6631 = vsel %vm609, %v6628, %v6630
        %v6632 = vrot.slane %v4536, 1
        %v6633 = vrot.slane %v4537, 1
        %v6634 = vsel %vm609, %v6632, %v6633
        %v6635 = vrot.slane %v4538, 1
        %v6636 = vsel %vm609, %v6633, %v6635
        %v6637 = vrot.slane %v4539, 1
        %v6638 = vrot.slane %v4540, 1
        %v6639 = vsel %vm609, %v6637, %v6638
        %v6640 = vrot.slane %v4541, 1
        %v6641 = vsel %vm609, %v6638, %v6640
        %v6642 = vrot.slane %v4542, 1
        %v6643 = vrot.slane %v4543, 1
        %v6644 = vsel %vm609, %v6642, %v6643
        %v6645 = vrot.slane %v4544, 1
        %v6646 = vsel %vm609, %v6643, %v6645
        %v6647 = vrot.slane %v4545, 1
        %v6648 = vrot.slane %v4546, 1
        %v6649 = vsel %vm609, %v6647, %v6648
        %v6650 = vrot.slane %v4547, 1
        %v6651 = vsel %vm609, %v6648, %v6650
        %v6652 = vrot.slane %v4548, 1
        %v6653 = vrot.slane %v4549, 1
        %v6654 = vsel %vm609, %v6652, %v6653
        %v6655 = vrot.slane %v4550, 1
        %v6656 = vsel %vm609, %v6653, %v6655
        %v6657 = vrot.slane %v4551, 1
        %v6658 = vrot.slane %v4552, 1
        %v6659 = vsel %vm609, %v6657, %v6658
        %v6660 = vrot.slane %v4553, 1
        %v6661 = vsel %vm609, %v6658, %v6660
        %v6662 = vrot.slane %v4554, 1
        %v6663 = vrot.slane %v4555, 1
        %v6664 = vsel %vm609, %v6662, %v6663
        %v6665 = vrot.slane %v4556, 1
        %v6666 = vsel %vm609, %v6663, %v6665
        %v6667 = vrot.slane %v4557, 1
        %v6668 = vrot.slane %v4558, 1
        %v6669 = vsel %vm609, %v6667, %v6668
        %v6670 = vrot.slane %v4559, 1
        %v6671 = vsel %vm609, %v6668, %v6670
        %v6672 = vrot.slane %v4560, 1
        %v6673 = vrot.slane %v4561, 1
        %v6674 = vsel %vm609, %v6672, %v6673
        %v6675 = vrot.slane %v4562, 1
        %v6676 = vsel %vm609, %v6673, %v6675
        %v6677 = vrot.slane %v4563, 1
        %v6678 = vrot.slane %v4564, 1
        %v6679 = vsel %vm609, %v6677, %v6678
        %v6680 = vrot.slane %v4565, 1
        %v6681 = vsel %vm609, %v6678, %v6680
        %v6682 = vrot.slane %v4566, 1
        %v6683 = vrot.slane %v4567, 1
        %v6684 = vsel %vm609, %v6682, %v6683
        %v6685 = vrot.slane %v4568, 1
        %v6686 = vsel %vm609, %v6683, %v6685
        %v6687 = vrot.slane %v4569, 1
        %v6688 = vrot.slane %v4570, 1
        %v6689 = vsel %vm609, %v6687, %v6688
        %v6690 = vrot.slane %v4571, 1
        %v6691 = vsel %vm609, %v6688, %v6690
        %v6692 = vrot.slane %v4572, 1
        %v6693 = vrot.slane %v4573, 1
        %v6694 = vsel %vm609, %v6692, %v6693
        %v6695 = vrot.slane %v4574, 1
        %v6696 = vsel %vm609, %v6693, %v6695
        %v6697 = vrot.slane %v4575, 1
        %v6698 = vrot.slane %v4576, 1
        %v6699 = vsel %vm609, %v6697, %v6698
        %v6700 = vrot.slane %v4577, 1
        %v6701 = vsel %vm609, %v6698, %v6700
        %v6734 = vadd.f32 %v6624, %v6416
        %v6735 = vadd.f32 %v6626, %v6421
        %v6736 = vadd.f32 %v6629, %v6426
        %v6737 = vadd.f32 %v6631, %v6431
        %v6738 = vadd.f32 %v6634, %v6436
        %v6739 = vadd.f32 %v6636, %v6441
        %v6740 = vadd.f32 %v6639, %v6446
        %v6741 = vadd.f32 %v6641, %v6451
        %v6742 = vadd.f32 %v6644, %v6456
        %v6743 = vadd.f32 %v6646, %v6461
        %v6744 = vadd.f32 %v6649, %v6466
        %v6745 = vadd.f32 %v6651, %v6471
        %v6746 = vadd.f32 %v6654, %v6476
        %v6747 = vadd.f32 %v6656, %v6481
        %v6748 = vadd.f32 %v6659, %v6486
        %v6749 = vadd.f32 %v6661, %v6491
        %v6750 = vadd.f32 %v6664, %v6496
        %v6751 = vadd.f32 %v6666, %v6501
        %v6752 = vadd.f32 %v6669, %v6506
        %v6753 = vadd.f32 %v6671, %v6511
        %v6754 = vadd.f32 %v6674, %v6516
        %v6755 = vadd.f32 %v6676, %v6521
        %v6756 = vadd.f32 %v6679, %v6526
        %v6757 = vadd.f32 %v6681, %v6531
        %v6758 = vadd.f32 %v6684, %v6536
        %v6759 = vadd.f32 %v6686, %v6541
        %v6760 = vadd.f32 %v6689, %v6546
        %v6761 = vadd.f32 %v6691, %v6551
        %v6762 = vadd.f32 %v6694, %v6556
        %v6763 = vadd.f32 %v6696, %v6561
        %v6764 = vadd.f32 %v6699, %v6566
        %v6765 = vadd.f32 %v6701, %v6571
        %v6766 = vmax.f32 %v6734, 0.0
        %v6767 = vmax.f32 %v6735, 0.0
        %v6768 = vmax.f32 %v6736, 0.0
        %v6769 = vmax.f32 %v6737, 0.0
        %v6770 = vmax.f32 %v6738, 0.0
        %v6771 = vmax.f32 %v6739, 0.0
        %v6772 = vmax.f32 %v6740, 0.0
        %v6773 = vmax.f32 %v6741, 0.0
        %v6774 = vmax.f32 %v6742, 0.0
        %v6775 = vmax.f32 %v6743, 0.0
        %v6776 = vmax.f32 %v6744, 0.0
        %v6777 = vmax.f32 %v6745, 0.0
        %v6778 = vmax.f32 %v6746, 0.0
        %v6779 = vmax.f32 %v6747, 0.0
        %v6780 = vmax.f32 %v6748, 0.0
        %v6781 = vmax.f32 %v6749, 0.0
        %v6782 = vmax.f32 %v6750, 0.0
        %v6783 = vmax.f32 %v6751, 0.0
        %v6784 = vmax.f32 %v6752, 0.0
        %v6785 = vmax.f32 %v6753, 0.0
        %v6786 = vmax.f32 %v6754, 0.0
        %v6787 = vmax.f32 %v6755, 0.0
        %v6788 = vmax.f32 %v6756, 0.0
        %v6789 = vmax.f32 %v6757, 0.0
        %v6790 = vmax.f32 %v6758, 0.0
        %v6791 = vmax.f32 %v6759, 0.0
        %v6792 = vmax.f32 %v6760, 0.0
        %v6793 = vmax.f32 %v6761, 0.0
        %v6794 = vmax.f32 %v6762, 0.0
        %v6795 = vmax.f32 %v6763, 0.0
        %v6796 = vmax.f32 %v6764, 0.0
        %v6797 = vmax.f32 %v6765, 0.0
        %6798 = vst.msk [vmem:[%s2221 + $0x1] sm:$0xff] %vm1795, %v6766
        %6799 = vst.msk [vmem:[%s2221 + $0x9] sm:$0xff] %vm1795, %v6767
        %6800 = vst.msk [vmem:[%s2221 + $0x19] sm:$0xff] %vm1795, %v6768
        %6801 = vst.msk [vmem:[%s2221 + $0x21] sm:$0xff] %vm1795, %v6769
        %6802 = vst.msk [vmem:[%s2221 + $0x31] sm:$0xff] %vm1795, %v6770
        %6803 = vst.msk [vmem:[%s2221 + $0x39] sm:$0xff] %vm1795, %v6771
        %6804 = vst.msk [vmem:[%s2221 + $0x49] sm:$0xff] %vm1795, %v6772
        %6805 = vst.msk [vmem:[%s2221 + $0x51] sm:$0xff] %vm1795, %v6773
        %6806 = vst.msk [vmem:[%s2221 + $0x61] sm:$0xff] %vm1795, %v6774
        %6807 = vst.msk [vmem:[%s2221 + $0x69] sm:$0xff] %vm1795, %v6775
        %6808 = vst.msk [vmem:[%s2221 + $0x79] sm:$0xff] %vm1795, %v6776
        %6809 = vst.msk [vmem:[%s2221 + $0x81] sm:$0xff] %vm1795, %v6777
        %6810 = vst.msk [vmem:[%s2221 + $0x91] sm:$0xff] %vm1795, %v6778
        %6811 = vst.msk [vmem:[%s2221 + $0x99] sm:$0xff] %vm1795, %v6779
        %6812 = vst.msk [vmem:[%s2221 + $0xa9] sm:$0xff] %vm1795, %v6780
        %6813 = vst.msk [vmem:[%s2221 + $0xb1] sm:$0xff] %vm1795, %v6781
        %6814 = vst.msk [vmem:[%s2221 + $0xc1] sm:$0xff] %vm1795, %v6782
        %6815 = vst.msk [vmem:[%s2221 + $0xc9] sm:$0xff] %vm1795, %v6783
        %6816 = vst.msk [vmem:[%s2221 + $0xd9] sm:$0xff] %vm1795, %v6784
        %6817 = vst.msk [vmem:[%s2221 + $0xe1] sm:$0xff] %vm1795, %v6785
        %6818 = vst.msk [vmem:[%s2221 + $0xf1] sm:$0xff] %vm1795, %v6786
        %6819 = vst.msk [vmem:[%s2221 + $0xf9] sm:$0xff] %vm1795, %v6787
        %6820 = vst.msk [vmem:[%s2221 + $0x109] sm:$0xff] %vm1795, %v6788
        %6821 = vst.msk [vmem:[%s2221 + $0x111] sm:$0xff] %vm1795, %v6789
        %6822 = vst.msk [vmem:[%s2221 + $0x121] sm:$0xff] %vm1795, %v6790
        %6823 = vst.msk [vmem:[%s2221 + $0x129] sm:$0xff] %vm1795, %v6791
        %6824 = vst.msk [vmem:[%s2221 + $0x139] sm:$0xff] %vm1795, %v6792
        %6825 = vst.msk [vmem:[%s2221 + $0x141] sm:$0xff] %vm1795, %v6793
        %6826 = vst.msk [vmem:[%s2221 + $0x151] sm:$0xff] %vm1795, %v6794
        %6827 = vst.msk [vmem:[%s2221 + $0x159] sm:$0xff] %vm1795, %v6795
        %6828 = vst.msk [vmem:[%s2221 + $0x169] sm:$0xff] %vm1795, %v6796
        %6829 = vst.msk [vmem:[%s2221 + $0x171] sm:$0xff] %vm1795, %v6797
        %v6830 = vld [vmem:[#allocation3] sm:$0xff]
        %v6831 = vld [vmem:[#allocation3 + $0x8] sm:$0xff]
        %v6832 = vld [vmem:[#allocation3 + $0x10] sm:$0x3]
        %v6833 = vld [vmem:[#allocation3 + $0x18] sm:$0xff]
        %v6834 = vld [vmem:[#allocation3 + $0x20] sm:$0xff]
        %v6835 = vld [vmem:[#allocation3 + $0x28] sm:$0x3]
        %v6836 = vld [vmem:[#allocation3 + $0x30] sm:$0xff]
        %v6837 = vld [vmem:[#allocation3 + $0x38] sm:$0xff]
        %v6838 = vld [vmem:[#allocation3 + $0x40] sm:$0x3]
        %v6839 = vld [vmem:[#allocation3 + $0x48] sm:$0xff]
        %v6840 = vld [vmem:[#allocation3 + $0x50] sm:$0xff]
        %v6841 = vld [vmem:[#allocation3 + $0x58] sm:$0x3]
        %v6842 = vld [vmem:[#allocation3 + $0x60] sm:$0xff]
        %v6843 = vld [vmem:[#allocation3 + $0x68] sm:$0xff]
        %v6844 = vld [vmem:[#allocation3 + $0x70] sm:$0x3]
        %v6845 = vld [vmem:[#allocation3 + $0x78] sm:$0xff]
        %v6846 = vld [vmem:[#allocation3 + $0x80] sm:$0xff]
        %v6847 = vld [vmem:[#allocation3 + $0x88] sm:$0x3]
        %v6848 = vld [vmem:[#allocation3 + $0x90] sm:$0xff]
        %v6849 = vld [vmem:[#allocation3 + $0x98] sm:$0xff]
        %v6850 = vld [vmem:[#allocation3 + $0xa0] sm:$0x3]
        %v6851 = vld [vmem:[#allocation3 + $0xa8] sm:$0xff]
        %v6852 = vld [vmem:[#allocation3 + $0xb0] sm:$0xff]
        %v6853 = vld [vmem:[#allocation3 + $0xb8] sm:$0x3]
        %v6854 = vld [vmem:[#allocation3 + $0xc0] sm:$0xff]
        %v6855 = vld [vmem:[#allocation3 + $0xc8] sm:$0xff]
        %v6856 = vld [vmem:[#allocation3 + $0xd0] sm:$0x3]
        %v6857 = vld [vmem:[#allocation3 + $0xd8] sm:$0xff]
        %v6858 = vld [vmem:[#allocation3 + $0xe0] sm:$0xff]
        %v6859 = vld [vmem:[#allocation3 + $0xe8] sm:$0x3]
        %v6860 = vld [vmem:[#allocation3 + $0xf0] sm:$0xff]
        %v6861 = vld [vmem:[#allocation3 + $0xf8] sm:$0xff]
        %v6862 = vld [vmem:[#allocation3 + $0x100] sm:$0x3]
        %v6863 = vld [vmem:[#allocation3 + $0x108] sm:$0xff]
        %v6864 = vld [vmem:[#allocation3 + $0x110] sm:$0xff]
        %v6865 = vld [vmem:[#allocation3 + $0x118] sm:$0x3]
        %v6866 = vld [vmem:[#allocation3 + $0x120] sm:$0xff]
        %v6867 = vld [vmem:[#allocation3 + $0x128] sm:$0xff]
        %v6868 = vld [vmem:[#allocation3 + $0x130] sm:$0x3]
        %v6869 = vld [vmem:[#allocation3 + $0x138] sm:$0xff]
        %v6870 = vld [vmem:[#allocation3 + $0x140] sm:$0xff]
        %v6871 = vld [vmem:[#allocation3 + $0x148] sm:$0x3]
        %v6872 = vld [vmem:[#allocation3 + $0x150] sm:$0xff]
        %v6873 = vld [vmem:[#allocation3 + $0x158] sm:$0xff]
        %v6874 = vld [vmem:[#allocation3 + $0x160] sm:$0x3]
        %v6875 = vld [vmem:[#allocation3 + $0x168] sm:$0xff]
        %v6876 = vld [vmem:[#allocation3 + $0x170] sm:$0xff]
        %v6877 = vld [vmem:[#allocation3 + $0x178] sm:$0x3]
        %v6878 = vld [vmem:[#allocation3 + $0x180] sm:$0xff]
        %v6879 = vld [vmem:[#allocation3 + $0x188] sm:$0xff]
        %v6880 = vld [vmem:[#allocation3 + $0x190] sm:$0x3]
        %v6881 = vld [vmem:[#allocation3 + $0x198] sm:$0xff]
        %v6882 = vld [vmem:[#allocation3 + $0x1a0] sm:$0xff]
        %v6883 = vld [vmem:[#allocation3 + $0x1a8] sm:$0x3]
        %v6932 = vrot.slane %v6830, 1
        %v6933 = vrot.slane %v6831, 1
        %v6934 = vsel %vm609, %v6932, %v6933
        %v6935 = vrot.slane %v6832, 1
        %v6936 = vsel %vm609, %v6933, %v6935
        %v6937 = vrot.slane %v6833, 1
        %v6938 = vrot.slane %v6834, 1
        %v6939 = vsel %vm609, %v6937, %v6938
        %v6940 = vrot.slane %v6835, 1
        %v6941 = vsel %vm609, %v6938, %v6940
        %v6942 = vrot.slane %v6836, 1
        %v6943 = vrot.slane %v6837, 1
        %v6944 = vsel %vm609, %v6942, %v6943
        %v6945 = vrot.slane %v6838, 1
        %v6946 = vsel %vm609, %v6943, %v6945
        %v6947 = vrot.slane %v6839, 1
        %v6948 = vrot.slane %v6840, 1
        %v6949 = vsel %vm609, %v6947, %v6948
        %v6950 = vrot.slane %v6841, 1
        %v6951 = vsel %vm609, %v6948, %v6950
        %v6952 = vrot.slane %v6842, 1
        %v6953 = vrot.slane %v6843, 1
        %v6954 = vsel %vm609, %v6952, %v6953
        %v6955 = vrot.slane %v6844, 1
        %v6956 = vsel %vm609, %v6953, %v6955
        %v6957 = vrot.slane %v6845, 1
        %v6958 = vrot.slane %v6846, 1
        %v6959 = vsel %vm609, %v6957, %v6958
        %v6960 = vrot.slane %v6847, 1
        %v6961 = vsel %vm609, %v6958, %v6960
        %v6962 = vrot.slane %v6848, 1
        %v6963 = vrot.slane %v6849, 1
        %v6964 = vsel %vm609, %v6962, %v6963
        %v6965 = vrot.slane %v6850, 1
        %v6966 = vsel %vm609, %v6963, %v6965
        %v6967 = vrot.slane %v6851, 1
        %v6968 = vrot.slane %v6852, 1
        %v6969 = vsel %vm609, %v6967, %v6968
        %v6970 = vrot.slane %v6853, 1
        %v6971 = vsel %vm609, %v6968, %v6970
        %v6972 = vrot.slane %v6854, 1
        %v6973 = vrot.slane %v6855, 1
        %v6974 = vsel %vm609, %v6972, %v6973
        %v6975 = vrot.slane %v6856, 1
        %v6976 = vsel %vm609, %v6973, %v6975
        %v6977 = vrot.slane %v6857, 1
        %v6978 = vrot.slane %v6858, 1
        %v6979 = vsel %vm609, %v6977, %v6978
        %v6980 = vrot.slane %v6859, 1
        %v6981 = vsel %vm609, %v6978, %v6980
        %v6982 = vrot.slane %v6860, 1
        %v6983 = vrot.slane %v6861, 1
        %v6984 = vsel %vm609, %v6982, %v6983
        %v6985 = vrot.slane %v6862, 1
        %v6986 = vsel %vm609, %v6983, %v6985
        %v6987 = vrot.slane %v6863, 1
        %v6988 = vrot.slane %v6864, 1
        %v6989 = vsel %vm609, %v6987, %v6988
        %v6990 = vrot.slane %v6865, 1
        %v6991 = vsel %vm609, %v6988, %v6990
        %v6992 = vrot.slane %v6866, 1
        %v6993 = vrot.slane %v6867, 1
        %v6994 = vsel %vm609, %v6992, %v6993
        %v6995 = vrot.slane %v6868, 1
        %v6996 = vsel %vm609, %v6993, %v6995
        %v6997 = vrot.slane %v6869, 1
        %v6998 = vrot.slane %v6870, 1
        %v6999 = vsel %vm609, %v6997, %v6998
        %v7000 = vrot.slane %v6871, 1
        %v7001 = vsel %vm609, %v6998, %v7000
        %v7002 = vrot.slane %v6872, 1
        %v7003 = vrot.slane %v6873, 1
        %v7004 = vsel %vm609, %v7002, %v7003
        %v7005 = vrot.slane %v6874, 1
        %v7006 = vsel %vm609, %v7003, %v7005
        %v7007 = vrot.slane %v6875, 1
        %v7008 = vrot.slane %v6876, 1
        %v7009 = vsel %vm609, %v7007, %v7008
        %v7010 = vrot.slane %v6877, 1
        %v7011 = vsel %vm609, %v7008, %v7010
        %7012 = vrot.lane.b32.xlu0 %v6934, 32
        %v7013 = vpop.permute.xlu0 %7012
        %7014 = vrot.lane.b32.xlu0 %v6936, 32
        %v7015 = vpop.permute.xlu0 %7014
        %7016 = vrot.lane.b32.xlu0 %v6939, 32
        %v7017 = vpop.permute.xlu0 %7016
        %7018 = vrot.lane.b32.xlu0 %v6941, 32
        %v7019 = vpop.permute.xlu0 %7018
        %7020 = vrot.lane.b32.xlu0 %v6944, 32
        %v7021 = vpop.permute.xlu0 %7020
        %7022 = vrot.lane.b32.xlu0 %v6946, 32
        %v7023 = vpop.permute.xlu0 %7022
        %7024 = vrot.lane.b32.xlu0 %v6949, 32
        %v7025 = vpop.permute.xlu0 %7024
        %7026 = vrot.lane.b32.xlu0 %v6951, 32
        %v7027 = vpop.permute.xlu0 %7026
        %7028 = vrot.lane.b32.xlu0 %v6954, 32
        %v7029 = vpop.permute.xlu0 %7028
        %7030 = vrot.lane.b32.xlu0 %v6956, 32
        %v7031 = vpop.permute.xlu0 %7030
        %7032 = vrot.lane.b32.xlu0 %v6959, 32
        %v7033 = vpop.permute.xlu0 %7032
        %7034 = vrot.lane.b32.xlu0 %v6961, 32
        %v7035 = vpop.permute.xlu0 %7034
        %7036 = vrot.lane.b32.xlu0 %v6964, 32
        %v7037 = vpop.permute.xlu0 %7036
        %7038 = vrot.lane.b32.xlu0 %v6966, 32
        %v7039 = vpop.permute.xlu0 %7038
        %7040 = vrot.lane.b32.xlu0 %v6969, 32
        %v7041 = vpop.permute.xlu0 %7040
        %7042 = vrot.lane.b32.xlu0 %v6971, 32
        %v7043 = vpop.permute.xlu0 %7042
        %7044 = vrot.lane.b32.xlu0 %v6974, 32
        %v7045 = vpop.permute.xlu0 %7044
        %7046 = vrot.lane.b32.xlu0 %v6976, 32
        %v7047 = vpop.permute.xlu0 %7046
        %7048 = vrot.lane.b32.xlu0 %v6979, 32
        %v7049 = vpop.permute.xlu0 %7048
        %7050 = vrot.lane.b32.xlu0 %v6981, 32
        %v7051 = vpop.permute.xlu0 %7050
        %7052 = vrot.lane.b32.xlu0 %v6984, 32
        %v7053 = vpop.permute.xlu0 %7052
        %7054 = vrot.lane.b32.xlu0 %v6986, 32
        %v7055 = vpop.permute.xlu0 %7054
        %7056 = vrot.lane.b32.xlu0 %v6989, 32
        %v7057 = vpop.permute.xlu0 %7056
        %7058 = vrot.lane.b32.xlu0 %v6991, 32
        %v7059 = vpop.permute.xlu0 %7058
        %7060 = vrot.lane.b32.xlu0 %v6994, 32
        %v7061 = vpop.permute.xlu0 %7060
        %7062 = vrot.lane.b32.xlu0 %v6996, 32
        %v7063 = vpop.permute.xlu0 %7062
        %7064 = vrot.lane.b32.xlu0 %v6999, 32
        %v7065 = vpop.permute.xlu0 %7064
        %7066 = vrot.lane.b32.xlu0 %v7001, 32
        %v7067 = vpop.permute.xlu0 %7066
        %7068 = vrot.lane.b32.xlu0 %v7004, 32
        %v7069 = vpop.permute.xlu0 %7068
        %7070 = vrot.lane.b32.xlu0 %v7006, 32
        %v7071 = vpop.permute.xlu0 %7070
        %7072 = vrot.lane.b32.xlu0 %v7009, 32
        %v7073 = vpop.permute.xlu0 %7072
        %7074 = vrot.lane.b32.xlu0 %v7011, 32
        %v7075 = vpop.permute.xlu0 %7074
        %v7108 = vrot.slane %v6830, 2
        %v7109 = vrot.slane %v6831, 2
        %v7110 = vsel %vm786, %v7108, %v7109
        %v7111 = vrot.slane %v6832, 2
        %v7112 = vsel %vm786, %v7109, %v7111
        %v7113 = vrot.slane %v6833, 2
        %v7114 = vrot.slane %v6834, 2
        %v7115 = vsel %vm786, %v7113, %v7114
        %v7116 = vrot.slane %v6835, 2
        %v7117 = vsel %vm786, %v7114, %v7116
        %v7118 = vrot.slane %v6836, 2
        %v7119 = vrot.slane %v6837, 2
        %v7120 = vsel %vm786, %v7118, %v7119
        %v7121 = vrot.slane %v6838, 2
        %v7122 = vsel %vm786, %v7119, %v7121
        %v7123 = vrot.slane %v6839, 2
        %v7124 = vrot.slane %v6840, 2
        %v7125 = vsel %vm786, %v7123, %v7124
        %v7126 = vrot.slane %v6841, 2
        %v7127 = vsel %vm786, %v7124, %v7126
        %v7128 = vrot.slane %v6842, 2
        %v7129 = vrot.slane %v6843, 2
        %v7130 = vsel %vm786, %v7128, %v7129
        %v7131 = vrot.slane %v6844, 2
        %v7132 = vsel %vm786, %v7129, %v7131
        %v7133 = vrot.slane %v6845, 2
        %v7134 = vrot.slane %v6846, 2
        %v7135 = vsel %vm786, %v7133, %v7134
        %v7136 = vrot.slane %v6847, 2
        %v7137 = vsel %vm786, %v7134, %v7136
        %v7138 = vrot.slane %v6848, 2
        %v7139 = vrot.slane %v6849, 2
        %v7140 = vsel %vm786, %v7138, %v7139
        %v7141 = vrot.slane %v6850, 2
        %v7142 = vsel %vm786, %v7139, %v7141
        %v7143 = vrot.slane %v6851, 2
        %v7144 = vrot.slane %v6852, 2
        %v7145 = vsel %vm786, %v7143, %v7144
        %v7146 = vrot.slane %v6853, 2
        %v7147 = vsel %vm786, %v7144, %v7146
        %v7148 = vrot.slane %v6854, 2
        %v7149 = vrot.slane %v6855, 2
        %v7150 = vsel %vm786, %v7148, %v7149
        %v7151 = vrot.slane %v6856, 2
        %v7152 = vsel %vm786, %v7149, %v7151
        %v7153 = vrot.slane %v6857, 2
        %v7154 = vrot.slane %v6858, 2
        %v7155 = vsel %vm786, %v7153, %v7154
        %v7156 = vrot.slane %v6859, 2
        %v7157 = vsel %vm786, %v7154, %v7156
        %v7158 = vrot.slane %v6860, 2
        %v7159 = vrot.slane %v6861, 2
        %v7160 = vsel %vm786, %v7158, %v7159
        %v7161 = vrot.slane %v6862, 2
        %v7162 = vsel %vm786, %v7159, %v7161
        %v7163 = vrot.slane %v6863, 2
        %v7164 = vrot.slane %v6864, 2
        %v7165 = vsel %vm786, %v7163, %v7164
        %v7166 = vrot.slane %v6865, 2
        %v7167 = vsel %vm786, %v7164, %v7166
        %v7168 = vrot.slane %v6866, 2
        %v7169 = vrot.slane %v6867, 2
        %v7170 = vsel %vm786, %v7168, %v7169
        %v7171 = vrot.slane %v6868, 2
        %v7172 = vsel %vm786, %v7169, %v7171
        %v7173 = vrot.slane %v6869, 2
        %v7174 = vrot.slane %v6870, 2
        %v7175 = vsel %vm786, %v7173, %v7174
        %v7176 = vrot.slane %v6871, 2
        %v7177 = vsel %vm786, %v7174, %v7176
        %v7178 = vrot.slane %v6872, 2
        %v7179 = vrot.slane %v6873, 2
        %v7180 = vsel %vm786, %v7178, %v7179
        %v7181 = vrot.slane %v6874, 2
        %v7182 = vsel %vm786, %v7179, %v7181
        %v7183 = vrot.slane %v6875, 2
        %v7184 = vrot.slane %v6876, 2
        %v7185 = vsel %vm786, %v7183, %v7184
        %v7186 = vrot.slane %v6877, 2
        %v7187 = vsel %vm786, %v7184, %v7186
        %7188 = vrot.lane.b32.xlu0 %v7110, 64
        %v7189 = vpop.permute.xlu0 %7188
        %7190 = vrot.lane.b32.xlu0 %v7112, 64
        %v7191 = vpop.permute.xlu0 %7190
        %7192 = vrot.lane.b32.xlu0 %v7115, 64
        %v7193 = vpop.permute.xlu0 %7192
        %7194 = vrot.lane.b32.xlu0 %v7117, 64
        %v7195 = vpop.permute.xlu0 %7194
        %7196 = vrot.lane.b32.xlu0 %v7120, 64
        %v7197 = vpop.permute.xlu0 %7196
        %7198 = vrot.lane.b32.xlu0 %v7122, 64
        %v7199 = vpop.permute.xlu0 %7198
        %7200 = vrot.lane.b32.xlu0 %v7125, 64
        %v7201 = vpop.permute.xlu0 %7200
        %7202 = vrot.lane.b32.xlu0 %v7127, 64
        %v7203 = vpop.permute.xlu0 %7202
        %7204 = vrot.lane.b32.xlu0 %v7130, 64
        %v7205 = vpop.permute.xlu0 %7204
        %7206 = vrot.lane.b32.xlu0 %v7132, 64
        %v7207 = vpop.permute.xlu0 %7206
        %7208 = vrot.lane.b32.xlu0 %v7135, 64
        %v7209 = vpop.permute.xlu0 %7208
        %7210 = vrot.lane.b32.xlu0 %v7137, 64
        %v7211 = vpop.permute.xlu0 %7210
        %7212 = vrot.lane.b32.xlu0 %v7140, 64
        %v7213 = vpop.permute.xlu0 %7212
        %7214 = vrot.lane.b32.xlu0 %v7142, 64
        %v7215 = vpop.permute.xlu0 %7214
        %7216 = vrot.lane.b32.xlu0 %v7145, 64
        %v7217 = vpop.permute.xlu0 %7216
        %7218 = vrot.lane.b32.xlu0 %v7147, 64
        %v7219 = vpop.permute.xlu0 %7218
        %7220 = vrot.lane.b32.xlu0 %v7150, 64
        %v7221 = vpop.permute.xlu0 %7220
        %7222 = vrot.lane.b32.xlu0 %v7152, 64
        %v7223 = vpop.permute.xlu0 %7222
        %7224 = vrot.lane.b32.xlu0 %v7155, 64
        %v7225 = vpop.permute.xlu0 %7224
        %7226 = vrot.lane.b32.xlu0 %v7157, 64
        %v7227 = vpop.permute.xlu0 %7226
        %7228 = vrot.lane.b32.xlu0 %v7160, 64
        %v7229 = vpop.permute.xlu0 %7228
        %7230 = vrot.lane.b32.xlu0 %v7162, 64
        %v7231 = vpop.permute.xlu0 %7230
        %7232 = vrot.lane.b32.xlu0 %v7165, 64
        %v7233 = vpop.permute.xlu0 %7232
        %7234 = vrot.lane.b32.xlu0 %v7167, 64
        %v7235 = vpop.permute.xlu0 %7234
        %7236 = vrot.lane.b32.xlu0 %v7170, 64
        %v7237 = vpop.permute.xlu0 %7236
        %7238 = vrot.lane.b32.xlu0 %v7172, 64
        %v7239 = vpop.permute.xlu0 %7238
        %7240 = vrot.lane.b32.xlu0 %v7175, 64
        %v7241 = vpop.permute.xlu0 %7240
        %7242 = vrot.lane.b32.xlu0 %v7177, 64
        %v7243 = vpop.permute.xlu0 %7242
        %7244 = vrot.lane.b32.xlu0 %v7180, 64
        %v7245 = vpop.permute.xlu0 %7244
        %7246 = vrot.lane.b32.xlu0 %v7182, 64
        %v7247 = vpop.permute.xlu0 %7246
        %7248 = vrot.lane.b32.xlu0 %v7185, 64
        %v7249 = vpop.permute.xlu0 %7248
        %7250 = vrot.lane.b32.xlu0 %v7187, 64
        %v7251 = vpop.permute.xlu0 %7250
        %7286 = vrot.lane.b32.xlu0 %v6833, 96
        %v7287 = vpop.permute.xlu0 %7286
        %7288 = vrot.lane.b32.xlu0 %v6834, 96
        %v7289 = vpop.permute.xlu0 %7288
        %7290 = vrot.lane.b32.xlu0 %v6836, 96
        %v7291 = vpop.permute.xlu0 %7290
        %7292 = vrot.lane.b32.xlu0 %v6837, 96
        %v7293 = vpop.permute.xlu0 %7292
        %7294 = vrot.lane.b32.xlu0 %v6839, 96
        %v7295 = vpop.permute.xlu0 %7294
        %7296 = vrot.lane.b32.xlu0 %v6840, 96
        %v7297 = vpop.permute.xlu0 %7296
        %7298 = vrot.lane.b32.xlu0 %v6842, 96
        %v7299 = vpop.permute.xlu0 %7298
        %7300 = vrot.lane.b32.xlu0 %v6843, 96
        %v7301 = vpop.permute.xlu0 %7300
        %7302 = vrot.lane.b32.xlu0 %v6845, 96
        %v7303 = vpop.permute.xlu0 %7302
        %7304 = vrot.lane.b32.xlu0 %v6846, 96
        %v7305 = vpop.permute.xlu0 %7304
        %7306 = vrot.lane.b32.xlu0 %v6848, 96
        %v7307 = vpop.permute.xlu0 %7306
        %7308 = vrot.lane.b32.xlu0 %v6849, 96
        %v7309 = vpop.permute.xlu0 %7308
        %7310 = vrot.lane.b32.xlu0 %v6851, 96
        %v7311 = vpop.permute.xlu0 %7310
        %7312 = vrot.lane.b32.xlu0 %v6852, 96
        %v7313 = vpop.permute.xlu0 %7312
        %7314 = vrot.lane.b32.xlu0 %v6854, 96
        %v7315 = vpop.permute.xlu0 %7314
        %7316 = vrot.lane.b32.xlu0 %v6855, 96
        %v7317 = vpop.permute.xlu0 %7316
        %7318 = vrot.lane.b32.xlu0 %v6857, 96
        %v7319 = vpop.permute.xlu0 %7318
        %7320 = vrot.lane.b32.xlu0 %v6858, 96
        %v7321 = vpop.permute.xlu0 %7320
        %7322 = vrot.lane.b32.xlu0 %v6860, 96
        %v7323 = vpop.permute.xlu0 %7322
        %7324 = vrot.lane.b32.xlu0 %v6861, 96
        %v7325 = vpop.permute.xlu0 %7324
        %7326 = vrot.lane.b32.xlu0 %v6863, 96
        %v7327 = vpop.permute.xlu0 %7326
        %7328 = vrot.lane.b32.xlu0 %v6864, 96
        %v7329 = vpop.permute.xlu0 %7328
        %7330 = vrot.lane.b32.xlu0 %v6866, 96
        %v7331 = vpop.permute.xlu0 %7330
        %7332 = vrot.lane.b32.xlu0 %v6867, 96
        %v7333 = vpop.permute.xlu0 %7332
        %7334 = vrot.lane.b32.xlu0 %v6869, 96
        %v7335 = vpop.permute.xlu0 %7334
        %7336 = vrot.lane.b32.xlu0 %v6870, 96
        %v7337 = vpop.permute.xlu0 %7336
        %7338 = vrot.lane.b32.xlu0 %v6872, 96
        %v7339 = vpop.permute.xlu0 %7338
        %7340 = vrot.lane.b32.xlu0 %v6873, 96
        %v7341 = vpop.permute.xlu0 %7340
        %7342 = vrot.lane.b32.xlu0 %v6875, 96
        %v7343 = vpop.permute.xlu0 %7342
        %7344 = vrot.lane.b32.xlu0 %v6876, 96
        %v7345 = vpop.permute.xlu0 %7344
        %7346 = vrot.lane.b32.xlu0 %v6878, 96
        %v7347 = vpop.permute.xlu0 %7346
        %7348 = vrot.lane.b32.xlu0 %v6879, 96
        %v7349 = vpop.permute.xlu0 %7348
        %v7383 = vrot.slane %v6878, 1
        %v7384 = vrot.slane %v6879, 1
        %v7385 = vsel %vm609, %v7383, %v7384
        %v7386 = vrot.slane %v6880, 1
        %v7387 = vsel %vm609, %v7384, %v7386
        %v7420 = vrot.slane %v6878, 2
        %v7421 = vrot.slane %v6879, 2
        %v7422 = vsel %vm786, %v7420, %v7421
        %v7423 = vrot.slane %v6880, 2
        %v7424 = vsel %vm786, %v7421, %v7423
        %7425 = vrot.lane.b32.xlu0 %v7115, 32
        %v7426 = vpop.permute.xlu0 %7425
        %7427 = vrot.lane.b32.xlu0 %v7117, 32
        %v7428 = vpop.permute.xlu0 %7427
        %7429 = vrot.lane.b32.xlu0 %v7120, 32
        %v7430 = vpop.permute.xlu0 %7429
        %7431 = vrot.lane.b32.xlu0 %v7122, 32
        %v7432 = vpop.permute.xlu0 %7431
        %7433 = vrot.lane.b32.xlu0 %v7125, 32
        %v7434 = vpop.permute.xlu0 %7433
        %7435 = vrot.lane.b32.xlu0 %v7127, 32
        %v7436 = vpop.permute.xlu0 %7435
        %7437 = vrot.lane.b32.xlu0 %v7130, 32
        %v7438 = vpop.permute.xlu0 %7437
        %7439 = vrot.lane.b32.xlu0 %v7132, 32
        %v7440 = vpop.permute.xlu0 %7439
        %7441 = vrot.lane.b32.xlu0 %v7135, 32
        %v7442 = vpop.permute.xlu0 %7441
        %7443 = vrot.lane.b32.xlu0 %v7137, 32
        %v7444 = vpop.permute.xlu0 %7443
        %7445 = vrot.lane.b32.xlu0 %v7140, 32
        %v7446 = vpop.permute.xlu0 %7445
        %7447 = vrot.lane.b32.xlu0 %v7142, 32
        %v7448 = vpop.permute.xlu0 %7447
        %7449 = vrot.lane.b32.xlu0 %v7145, 32
        %v7450 = vpop.permute.xlu0 %7449
        %7451 = vrot.lane.b32.xlu0 %v7147, 32
        %v7452 = vpop.permute.xlu0 %7451
        %7453 = vrot.lane.b32.xlu0 %v7150, 32
        %v7454 = vpop.permute.xlu0 %7453
        %7455 = vrot.lane.b32.xlu0 %v7152, 32
        %v7456 = vpop.permute.xlu0 %7455
        %7457 = vrot.lane.b32.xlu0 %v7155, 32
        %v7458 = vpop.permute.xlu0 %7457
        %7459 = vrot.lane.b32.xlu0 %v7157, 32
        %v7460 = vpop.permute.xlu0 %7459
        %7461 = vrot.lane.b32.xlu0 %v7160, 32
        %v7462 = vpop.permute.xlu0 %7461
        %7463 = vrot.lane.b32.xlu0 %v7162, 32
        %v7464 = vpop.permute.xlu0 %7463
        %7465 = vrot.lane.b32.xlu0 %v7165, 32
        %v7466 = vpop.permute.xlu0 %7465
        %7467 = vrot.lane.b32.xlu0 %v7167, 32
        %v7468 = vpop.permute.xlu0 %7467
        %7469 = vrot.lane.b32.xlu0 %v7170, 32
        %v7470 = vpop.permute.xlu0 %7469
        %7471 = vrot.lane.b32.xlu0 %v7172, 32
        %v7472 = vpop.permute.xlu0 %7471
        %7473 = vrot.lane.b32.xlu0 %v7175, 32
        %v7474 = vpop.permute.xlu0 %7473
        %7475 = vrot.lane.b32.xlu0 %v7177, 32
        %v7476 = vpop.permute.xlu0 %7475
        %7477 = vrot.lane.b32.xlu0 %v7180, 32
        %v7478 = vpop.permute.xlu0 %7477
        %7479 = vrot.lane.b32.xlu0 %v7182, 32
        %v7480 = vpop.permute.xlu0 %7479
        %7481 = vrot.lane.b32.xlu0 %v7185, 32
        %v7482 = vpop.permute.xlu0 %7481
        %7483 = vrot.lane.b32.xlu0 %v7187, 32
        %v7484 = vpop.permute.xlu0 %7483
        %7485 = vrot.lane.b32.xlu0 %v7422, 32
        %v7486 = vpop.permute.xlu0 %7485
        %7487 = vrot.lane.b32.xlu0 %v7424, 32
        %v7488 = vpop.permute.xlu0 %7487
        %7523 = vrot.lane.b32.xlu0 %v6836, 64
        %v7524 = vpop.permute.xlu0 %7523
        %7525 = vrot.lane.b32.xlu0 %v6837, 64
        %v7526 = vpop.permute.xlu0 %7525
        %7527 = vrot.lane.b32.xlu0 %v6839, 64
        %v7528 = vpop.permute.xlu0 %7527
        %7529 = vrot.lane.b32.xlu0 %v6840, 64
        %v7530 = vpop.permute.xlu0 %7529
        %7531 = vrot.lane.b32.xlu0 %v6842, 64
        %v7532 = vpop.permute.xlu0 %7531
        %7533 = vrot.lane.b32.xlu0 %v6843, 64
        %v7534 = vpop.permute.xlu0 %7533
        %7535 = vrot.lane.b32.xlu0 %v6845, 64
        %v7536 = vpop.permute.xlu0 %7535
        %7537 = vrot.lane.b32.xlu0 %v6846, 64
        %v7538 = vpop.permute.xlu0 %7537
        %7539 = vrot.lane.b32.xlu0 %v6848, 64
        %v7540 = vpop.permute.xlu0 %7539
        %7541 = vrot.lane.b32.xlu0 %v6849, 64
        %v7542 = vpop.permute.xlu0 %7541
        %7543 = vrot.lane.b32.xlu0 %v6851, 64
        %v7544 = vpop.permute.xlu0 %7543
        %7545 = vrot.lane.b32.xlu0 %v6852, 64
        %v7546 = vpop.permute.xlu0 %7545
        %7547 = vrot.lane.b32.xlu0 %v6854, 64
        %v7548 = vpop.permute.xlu0 %7547
        %7549 = vrot.lane.b32.xlu0 %v6855, 64
        %v7550 = vpop.permute.xlu0 %7549
        %7551 = vrot.lane.b32.xlu0 %v6857, 64
        %v7552 = vpop.permute.xlu0 %7551
        %7553 = vrot.lane.b32.xlu0 %v6858, 64
        %v7554 = vpop.permute.xlu0 %7553
        %7555 = vrot.lane.b32.xlu0 %v6860, 64
        %v7556 = vpop.permute.xlu0 %7555
        %7557 = vrot.lane.b32.xlu0 %v6861, 64
        %v7558 = vpop.permute.xlu0 %7557
        %7559 = vrot.lane.b32.xlu0 %v6863, 64
        %v7560 = vpop.permute.xlu0 %7559
        %7561 = vrot.lane.b32.xlu0 %v6864, 64
        %v7562 = vpop.permute.xlu0 %7561
        %7563 = vrot.lane.b32.xlu0 %v6866, 64
        %v7564 = vpop.permute.xlu0 %7563
        %7565 = vrot.lane.b32.xlu0 %v6867, 64
        %v7566 = vpop.permute.xlu0 %7565
        %7567 = vrot.lane.b32.xlu0 %v6869, 64
        %v7568 = vpop.permute.xlu0 %7567
        %7569 = vrot.lane.b32.xlu0 %v6870, 64
        %v7570 = vpop.permute.xlu0 %7569
        %7571 = vrot.lane.b32.xlu0 %v6872, 64
        %v7572 = vpop.permute.xlu0 %7571
        %7573 = vrot.lane.b32.xlu0 %v6873, 64
        %v7574 = vpop.permute.xlu0 %7573
        %7575 = vrot.lane.b32.xlu0 %v6875, 64
        %v7576 = vpop.permute.xlu0 %7575
        %7577 = vrot.lane.b32.xlu0 %v6876, 64
        %v7578 = vpop.permute.xlu0 %7577
        %7579 = vrot.lane.b32.xlu0 %v6878, 64
        %v7580 = vpop.permute.xlu0 %7579
        %7581 = vrot.lane.b32.xlu0 %v6879, 64
        %v7582 = vpop.permute.xlu0 %7581
        %7583 = vrot.lane.b32.xlu0 %v6881, 64
        %v7584 = vpop.permute.xlu0 %7583
        %7585 = vrot.lane.b32.xlu0 %v6882, 64
        %v7586 = vpop.permute.xlu0 %7585
        %v7620 = vrot.slane %v6881, 1
        %v7621 = vrot.slane %v6882, 1
        %v7622 = vsel %vm609, %v7620, %v7621
        %v7623 = vrot.slane %v6883, 1
        %v7624 = vsel %vm609, %v7621, %v7623
        %7625 = vrot.lane.b32.xlu0 %v6944, 96
        %v7626 = vpop.permute.xlu0 %7625
        %7627 = vrot.lane.b32.xlu0 %v6946, 96
        %v7628 = vpop.permute.xlu0 %7627
        %7629 = vrot.lane.b32.xlu0 %v6949, 96
        %v7630 = vpop.permute.xlu0 %7629
        %7631 = vrot.lane.b32.xlu0 %v6951, 96
        %v7632 = vpop.permute.xlu0 %7631
        %7633 = vrot.lane.b32.xlu0 %v6954, 96
        %v7634 = vpop.permute.xlu0 %7633
        %7635 = vrot.lane.b32.xlu0 %v6956, 96
        %v7636 = vpop.permute.xlu0 %7635
        %7637 = vrot.lane.b32.xlu0 %v6959, 96
        %v7638 = vpop.permute.xlu0 %7637
        %7639 = vrot.lane.b32.xlu0 %v6961, 96
        %v7640 = vpop.permute.xlu0 %7639
        %7641 = vrot.lane.b32.xlu0 %v6964, 96
        %v7642 = vpop.permute.xlu0 %7641
        %7643 = vrot.lane.b32.xlu0 %v6966, 96
        %v7644 = vpop.permute.xlu0 %7643
        %7645 = vrot.lane.b32.xlu0 %v6969, 96
        %v7646 = vpop.permute.xlu0 %7645
        %7647 = vrot.lane.b32.xlu0 %v6971, 96
        %v7648 = vpop.permute.xlu0 %7647
        %7649 = vrot.lane.b32.xlu0 %v6974, 96
        %v7650 = vpop.permute.xlu0 %7649
        %7651 = vrot.lane.b32.xlu0 %v6976, 96
        %v7652 = vpop.permute.xlu0 %7651
        %7653 = vrot.lane.b32.xlu0 %v6979, 96
        %v7654 = vpop.permute.xlu0 %7653
        %7655 = vrot.lane.b32.xlu0 %v6981, 96
        %v7656 = vpop.permute.xlu0 %7655
        %7657 = vrot.lane.b32.xlu0 %v6984, 96
        %v7658 = vpop.permute.xlu0 %7657
        %7659 = vrot.lane.b32.xlu0 %v6986, 96
        %v7660 = vpop.permute.xlu0 %7659
        %7661 = vrot.lane.b32.xlu0 %v6989, 96
        %v7662 = vpop.permute.xlu0 %7661
        %7663 = vrot.lane.b32.xlu0 %v6991, 96
        %v7664 = vpop.permute.xlu0 %7663
        %7665 = vrot.lane.b32.xlu0 %v6994, 96
        %v7666 = vpop.permute.xlu0 %7665
        %7667 = vrot.lane.b32.xlu0 %v6996, 96
        %v7668 = vpop.permute.xlu0 %7667
        %7669 = vrot.lane.b32.xlu0 %v6999, 96
        %v7670 = vpop.permute.xlu0 %7669
        %7671 = vrot.lane.b32.xlu0 %v7001, 96
        %v7672 = vpop.permute.xlu0 %7671
        %7673 = vrot.lane.b32.xlu0 %v7004, 96
        %v7674 = vpop.permute.xlu0 %7673
        %7675 = vrot.lane.b32.xlu0 %v7006, 96
        %v7676 = vpop.permute.xlu0 %7675
        %7677 = vrot.lane.b32.xlu0 %v7009, 96
        %v7678 = vpop.permute.xlu0 %7677
        %7679 = vrot.lane.b32.xlu0 %v7011, 96
        %v7680 = vpop.permute.xlu0 %7679
        %7681 = vrot.lane.b32.xlu0 %v7385, 96
        %v7682 = vpop.permute.xlu0 %7681
        %7683 = vrot.lane.b32.xlu0 %v7387, 96
        %v7684 = vpop.permute.xlu0 %7683
        %7685 = vrot.lane.b32.xlu0 %v7622, 96
        %v7686 = vpop.permute.xlu0 %7685
        %7687 = vrot.lane.b32.xlu0 %v7624, 96
        %v7688 = vpop.permute.xlu0 %7687
        %v7721 = vrot.slane %v6881, 2
        %v7722 = vrot.slane %v6882, 2
        %v7723 = vsel %vm786, %v7721, %v7722
        %v7724 = vrot.slane %v6883, 2
        %v7725 = vsel %vm786, %v7722, %v7724
        %v7726 = vsel %vm1795, %v6830, %v7013
        %v7727 = vsel %vm1795, %v6831, %v7015
        %v7728 = vsel %vm1795, %v6833, %v7017
        %v7729 = vsel %vm1795, %v6834, %v7019
        %v7730 = vsel %vm1795, %v6836, %v7021
        %v7731 = vsel %vm1795, %v6837, %v7023
        %v7732 = vsel %vm1795, %v6839, %v7025
        %v7733 = vsel %vm1795, %v6840, %v7027
        %v7734 = vsel %vm1795, %v6842, %v7029
        %v7735 = vsel %vm1795, %v6843, %v7031
        %v7736 = vsel %vm1795, %v6845, %v7033
        %v7737 = vsel %vm1795, %v6846, %v7035
        %v7738 = vsel %vm1795, %v6848, %v7037
        %v7739 = vsel %vm1795, %v6849, %v7039
        %v7740 = vsel %vm1795, %v6851, %v7041
        %v7741 = vsel %vm1795, %v6852, %v7043
        %v7742 = vsel %vm1795, %v6854, %v7045
        %v7743 = vsel %vm1795, %v6855, %v7047
        %v7744 = vsel %vm1795, %v6857, %v7049
        %v7745 = vsel %vm1795, %v6858, %v7051
        %v7746 = vsel %vm1795, %v6860, %v7053
        %v7747 = vsel %vm1795, %v6861, %v7055
        %v7748 = vsel %vm1795, %v6863, %v7057
        %v7749 = vsel %vm1795, %v6864, %v7059
        %v7750 = vsel %vm1795, %v6866, %v7061
        %v7751 = vsel %vm1795, %v6867, %v7063
        %v7752 = vsel %vm1795, %v6869, %v7065
        %v7753 = vsel %vm1795, %v6870, %v7067
        %v7754 = vsel %vm1795, %v6872, %v7069
        %v7755 = vsel %vm1795, %v6873, %v7071
        %v7756 = vsel %vm1795, %v6875, %v7073
        %v7757 = vsel %vm1795, %v6876, %v7075
        %v7758 = vsel %vm3236, %v7726, %v7189
        %v7759 = vsel %vm3236, %v7727, %v7191
        %v7760 = vsel %vm3236, %v7728, %v7193
        %v7761 = vsel %vm3236, %v7729, %v7195
        %v7762 = vsel %vm3236, %v7730, %v7197
        %v7763 = vsel %vm3236, %v7731, %v7199
        %v7764 = vsel %vm3236, %v7732, %v7201
        %v7765 = vsel %vm3236, %v7733, %v7203
        %v7766 = vsel %vm3236, %v7734, %v7205
        %v7767 = vsel %vm3236, %v7735, %v7207
        %v7768 = vsel %vm3236, %v7736, %v7209
        %v7769 = vsel %vm3236, %v7737, %v7211
        %v7770 = vsel %vm3236, %v7738, %v7213
        %v7771 = vsel %vm3236, %v7739, %v7215
        %v7772 = vsel %vm3236, %v7740, %v7217
        %v7773 = vsel %vm3236, %v7741, %v7219
        %v7774 = vsel %vm3236, %v7742, %v7221
        %v7775 = vsel %vm3236, %v7743, %v7223
        %v7776 = vsel %vm3236, %v7744, %v7225
        %v7777 = vsel %vm3236, %v7745, %v7227
        %v7778 = vsel %vm3236, %v7746, %v7229
        %v7779 = vsel %vm3236, %v7747, %v7231
        %v7780 = vsel %vm3236, %v7748, %v7233
        %v7781 = vsel %vm3236, %v7749, %v7235
        %v7782 = vsel %vm3236, %v7750, %v7237
        %v7783 = vsel %vm3236, %v7751, %v7239
        %v7784 = vsel %vm3236, %v7752, %v7241
        %v7785 = vsel %vm3236, %v7753, %v7243
        %v7786 = vsel %vm3236, %v7754, %v7245
        %v7787 = vsel %vm3236, %v7755, %v7247
        %v7788 = vsel %vm3236, %v7756, %v7249
        %v7789 = vsel %vm3236, %v7757, %v7251
        %v7790 = vsel %vm3269, %v7758, %v7287
        %v7791 = vsel %vm3269, %v7759, %v7289
        %v7792 = vsel %vm3269, %v7760, %v7291
        %v7793 = vsel %vm3269, %v7761, %v7293
        %v7794 = vsel %vm3269, %v7762, %v7295
        %v7795 = vsel %vm3269, %v7763, %v7297
        %v7796 = vsel %vm3269, %v7764, %v7299
        %v7797 = vsel %vm3269, %v7765, %v7301
        %v7798 = vsel %vm3269, %v7766, %v7303
        %v7799 = vsel %vm3269, %v7767, %v7305
        %v7800 = vsel %vm3269, %v7768, %v7307
        %v7801 = vsel %vm3269, %v7769, %v7309
        %v7802 = vsel %vm3269, %v7770, %v7311
        %v7803 = vsel %vm3269, %v7771, %v7313
        %v7804 = vsel %vm3269, %v7772, %v7315
        %v7805 = vsel %vm3269, %v7773, %v7317
        %v7806 = vsel %vm3269, %v7774, %v7319
        %v7807 = vsel %vm3269, %v7775, %v7321
        %v7808 = vsel %vm3269, %v7776, %v7323
        %v7809 = vsel %vm3269, %v7777, %v7325
        %v7810 = vsel %vm3269, %v7778, %v7327
        %v7811 = vsel %vm3269, %v7779, %v7329
        %v7812 = vsel %vm3269, %v7780, %v7331
        %v7813 = vsel %vm3269, %v7781, %v7333
        %v7814 = vsel %vm3269, %v7782, %v7335
        %v7815 = vsel %vm3269, %v7783, %v7337
        %v7816 = vsel %vm3269, %v7784, %v7339
        %v7817 = vsel %vm3269, %v7785, %v7341
        %v7818 = vsel %vm3269, %v7786, %v7343
        %v7819 = vsel %vm3269, %v7787, %v7345
        %v7820 = vsel %vm3269, %v7788, %v7347
        %v7821 = vsel %vm3269, %v7789, %v7349
        %v7822 = vsel %vm1795, %v6939, %v7426
        %v7823 = vsel %vm1795, %v6941, %v7428
        %v7824 = vsel %vm1795, %v6944, %v7430
        %v7825 = vsel %vm1795, %v6946, %v7432
        %v7826 = vsel %vm1795, %v6949, %v7434
        %v7827 = vsel %vm1795, %v6951, %v7436
        %v7828 = vsel %vm1795, %v6954, %v7438
        %v7829 = vsel %vm1795, %v6956, %v7440
        %v7830 = vsel %vm1795, %v6959, %v7442
        %v7831 = vsel %vm1795, %v6961, %v7444
        %v7832 = vsel %vm1795, %v6964, %v7446
        %v7833 = vsel %vm1795, %v6966, %v7448
        %v7834 = vsel %vm1795, %v6969, %v7450
        %v7835 = vsel %vm1795, %v6971, %v7452
        %v7836 = vsel %vm1795, %v6974, %v7454
        %v7837 = vsel %vm1795, %v6976, %v7456
        %v7838 = vsel %vm1795, %v6979, %v7458
        %v7839 = vsel %vm1795, %v6981, %v7460
        %v7840 = vsel %vm1795, %v6984, %v7462
        %v7841 = vsel %vm1795, %v6986, %v7464
        %v7842 = vsel %vm1795, %v6989, %v7466
        %v7843 = vsel %vm1795, %v6991, %v7468
        %v7844 = vsel %vm1795, %v6994, %v7470
        %v7845 = vsel %vm1795, %v6996, %v7472
        %v7846 = vsel %vm1795, %v6999, %v7474
        %v7847 = vsel %vm1795, %v7001, %v7476
        %v7848 = vsel %vm1795, %v7004, %v7478
        %v7849 = vsel %vm1795, %v7006, %v7480
        %v7850 = vsel %vm1795, %v7009, %v7482
        %v7851 = vsel %vm1795, %v7011, %v7484
        %v7852 = vsel %vm1795, %v7385, %v7486
        %v7853 = vsel %vm1795, %v7387, %v7488
        %v7854 = vsel %vm3236, %v7822, %v7524
        %v7855 = vsel %vm3236, %v7823, %v7526
        %v7856 = vsel %vm3236, %v7824, %v7528
        %v7857 = vsel %vm3236, %v7825, %v7530
        %v7858 = vsel %vm3236, %v7826, %v7532
        %v7859 = vsel %vm3236, %v7827, %v7534
        %v7860 = vsel %vm3236, %v7828, %v7536
        %v7861 = vsel %vm3236, %v7829, %v7538
        %v7862 = vsel %vm3236, %v7830, %v7540
        %v7863 = vsel %vm3236, %v7831, %v7542
        %v7864 = vsel %vm3236, %v7832, %v7544
        %v7865 = vsel %vm3236, %v7833, %v7546
        %v7866 = vsel %vm3236, %v7834, %v7548
        %v7867 = vsel %vm3236, %v7835, %v7550
        %v7868 = vsel %vm3236, %v7836, %v7552
        %v7869 = vsel %vm3236, %v7837, %v7554
        %v7870 = vsel %vm3236, %v7838, %v7556
        %v7871 = vsel %vm3236, %v7839, %v7558
        %v7872 = vsel %vm3236, %v7840, %v7560
        %v7873 = vsel %vm3236, %v7841, %v7562
        %v7874 = vsel %vm3236, %v7842, %v7564
        %v7875 = vsel %vm3236, %v7843, %v7566
        %v7876 = vsel %vm3236, %v7844, %v7568
        %v7877 = vsel %vm3236, %v7845, %v7570
        %v7878 = vsel %vm3236, %v7846, %v7572
        %v7879 = vsel %vm3236, %v7847, %v7574
        %v7880 = vsel %vm3236, %v7848, %v7576
        %v7881 = vsel %vm3236, %v7849, %v7578
        %v7882 = vsel %vm3236, %v7850, %v7580
        %v7883 = vsel %vm3236, %v7851, %v7582
        %v7884 = vsel %vm3236, %v7852, %v7584
        %v7885 = vsel %vm3236, %v7853, %v7586
        %v7886 = vsel %vm3269, %v7854, %v7626
        %v7887 = vsel %vm3269, %v7855, %v7628
        %v7888 = vsel %vm3269, %v7856, %v7630
        %v7889 = vsel %vm3269, %v7857, %v7632
        %v7890 = vsel %vm3269, %v7858, %v7634
        %v7891 = vsel %vm3269, %v7859, %v7636
        %v7892 = vsel %vm3269, %v7860, %v7638
        %v7893 = vsel %vm3269, %v7861, %v7640
        %v7894 = vsel %vm3269, %v7862, %v7642
        %v7895 = vsel %vm3269, %v7863, %v7644
        %v7896 = vsel %vm3269, %v7864, %v7646
        %v7897 = vsel %vm3269, %v7865, %v7648
        %v7898 = vsel %vm3269, %v7866, %v7650
        %v7899 = vsel %vm3269, %v7867, %v7652
        %v7900 = vsel %vm3269, %v7868, %v7654
        %v7901 = vsel %vm3269, %v7869, %v7656
        %v7902 = vsel %vm3269, %v7870, %v7658
        %v7903 = vsel %vm3269, %v7871, %v7660
        %v7904 = vsel %vm3269, %v7872, %v7662
        %v7905 = vsel %vm3269, %v7873, %v7664
        %v7906 = vsel %vm3269, %v7874, %v7666
        %v7907 = vsel %vm3269, %v7875, %v7668
        %v7908 = vsel %vm3269, %v7876, %v7670
        %v7909 = vsel %vm3269, %v7877, %v7672
        %v7910 = vsel %vm3269, %v7878, %v7674
        %v7911 = vsel %vm3269, %v7879, %v7676
        %v7912 = vsel %vm3269, %v7880, %v7678
        %v7913 = vsel %vm3269, %v7881, %v7680
        %v7914 = vsel %vm3269, %v7882, %v7682
        %v7915 = vsel %vm3269, %v7883, %v7684
        %v7916 = vsel %vm3269, %v7884, %v7686
        %v7917 = vsel %vm3269, %v7885, %v7688
        %v7918 = vld [vmem:[%s5] sm:$0xff]
        %v7919 = vld [vmem:[%s5 + $0x8] sm:$0xff]
        %v7920 = vld [vmem:[%s5 + $0x10] sm:$0xff]
        %v7921 = vld [vmem:[%s5 + $0x18] sm:$0xff]
        %v7922 = vld [vmem:[%s5 + $0x20] sm:$0xff]
        %v7923 = vld [vmem:[%s5 + $0x28] sm:$0xff]
        %v7924 = vld [vmem:[%s5 + $0x30] sm:$0xff]
        %v7925 = vld [vmem:[%s5 + $0x38] sm:$0xff]
        %v7926 = vld [vmem:[%s5 + $0x40] sm:$0xff]
        %v7927 = vld [vmem:[%s5 + $0x48] sm:$0xff]
        %v7928 = vld [vmem:[%s5 + $0x50] sm:$0xff]
        %v7929 = vld [vmem:[%s5 + $0x58] sm:$0xff]
        %v7930 = vld [vmem:[%s5 + $0x60] sm:$0xff]
        %v7931 = vld [vmem:[%s5 + $0x68] sm:$0xff]
        %v7932 = vld [vmem:[%s5 + $0x70] sm:$0xff]
        %v7933 = vld [vmem:[%s5 + $0x78] sm:$0xff]
        %v7934 = vld [vmem:[%s5 + $0x80] sm:$0xff]
        %v7935 = vld [vmem:[%s5 + $0x88] sm:$0xff]
        %v7936 = vld [vmem:[%s5 + $0x90] sm:$0xff]
        %v7937 = vld [vmem:[%s5 + $0x98] sm:$0xff]
        %v7938 = vld [vmem:[%s5 + $0xa0] sm:$0xff]
        %v7939 = vld [vmem:[%s5 + $0xa8] sm:$0xff]
        %v7940 = vld [vmem:[%s5 + $0xb0] sm:$0xff]
        %v7941 = vld [vmem:[%s5 + $0xb8] sm:$0xff]
        %v7942 = vld [vmem:[%s5 + $0xc0] sm:$0xff]
        %v7943 = vld [vmem:[%s5 + $0xc8] sm:$0xff]
        %v7944 = vld [vmem:[%s5 + $0xd0] sm:$0xff]
        %v7945 = vld [vmem:[%s5 + $0xd8] sm:$0xff]
        %v7946 = vld [vmem:[%s5 + $0xe0] sm:$0xff]
        %v7947 = vld [vmem:[%s5 + $0xe8] sm:$0xff]
        %v7948 = vld [vmem:[%s5 + $0xf0] sm:$0xff]
        %v7949 = vld [vmem:[%s5 + $0xf8] sm:$0xff]
        %v7950 = vld [vmem:[%s5 + $0x100] sm:$0xff]
        %v7951 = vld [vmem:[%s5 + $0x108] sm:$0xff]
        %v7952 = vld [vmem:[%s5 + $0x110] sm:$0xff]
        %v7953 = vld [vmem:[%s5 + $0x118] sm:$0xff]
        %v7954 = vld [vmem:[#allocation9] sm:$0x1]
        %v7956 = vlaneseq
        %v7957 = vshrl.u32 %v7956, 7
        %v7958 = vsub.s32 0, %v7957
        %v7959 = vrot.slane %v7954, %v7958
        %v7961 = vsel %vm1795, %v7120, 0
        %v7963 = vsel %vm1795, %v7122, 0
        %v7965 = vsel %vm1795, %v7125, 0
        %v7967 = vsel %vm1795, %v7127, 0
        %v7969 = vsel %vm1795, %v7130, 0
        %v7971 = vsel %vm1795, %v7132, 0
        %v7973 = vsel %vm1795, %v7135, 0
        %v7975 = vsel %vm1795, %v7137, 0
        %v7977 = vsel %vm1795, %v7140, 0
        %v7979 = vsel %vm1795, %v7142, 0
        %v7981 = vsel %vm1795, %v7145, 0
        %v7983 = vsel %vm1795, %v7147, 0
        %v7985 = vsel %vm1795, %v7150, 0
        %v7987 = vsel %vm1795, %v7152, 0
        %v7989 = vsel %vm1795, %v7155, 0
        %v7991 = vsel %vm1795, %v7157, 0
        %v7993 = vsel %vm1795, %v7160, 0
        %v7995 = vsel %vm1795, %v7162, 0
        %v7997 = vsel %vm1795, %v7165, 0
        %v7999 = vsel %vm1795, %v7167, 0
        %v8001 = vsel %vm1795, %v7170, 0
        %v8003 = vsel %vm1795, %v7172, 0
        %v8005 = vsel %vm1795, %v7175, 0
        %v8007 = vsel %vm1795, %v7177, 0
        %v8009 = vsel %vm1795, %v7180, 0
        %v8011 = vsel %vm1795, %v7182, 0
        %v8013 = vsel %vm1795, %v7185, 0
        %v8015 = vsel %vm1795, %v7187, 0
        %v8017 = vsel %vm1795, %v7422, 0
        %v8019 = vsel %vm1795, %v7424, 0
        %v8021 = vsel %vm1795, %v7723, 0
        %v8023 = vsel %vm1795, %v7725, 0
        %8025 = vmatprep.subr.mxu0 0.0
        %8026 = vmatpush1.msra.mxu0 %v7918
        %8027 = vmatprep.subr.mxu0 0.0
        %8028 = vmatpush1.msra.mxu0 %v7919
        %8029 = vmatprep.subr.mxu0 0.0
        %8030 = vmatpush1.msra.mxu0 %v7920
        %8031 = vmatprep.subr.mxu0 0.0
        %8032 = vmatpush1.msra.mxu0 %v7921
        %8033 = vmatprep.subr.mxu0 0.0
        %8034 = vmatpush1.msra.mxu0 %v7922
        %8035 = vmatprep.subr.mxu0 0.0
        %8036 = vmatpush1.msra.mxu0 %v7923
        %8037 = vmatprep.subr.mxu0 0.0
        %8038 = vmatpush1.msra.mxu0 %v7924
        %8039 = vmatprep.subr.mxu0 0.0
        %8040 = vmatpush1.msra.mxu0 %v7925
        %8041 = vmatprep.subr.mxu0 0.0
        %8042 = vmatpush1.msra.mxu0 %v7926
        %8043 = vmatprep.subr.mxu0 0.0
        %8044 = vmatpush1.msra.mxu0 %v7927
        %8045 = vmatprep.subr.mxu0 0.0
        %8046 = vmatpush1.msra.mxu0 %v7928
        %8047 = vmatprep.subr.mxu0 0.0
        %8048 = vmatpush1.msra.mxu0 %v7929
        %8049 = vmatprep.subr.mxu0 0.0
        %8050 = vmatpush1.msra.mxu0 %v7930
        %8051 = vmatprep.subr.mxu0 0.0
        %8052 = vmatpush1.msra.mxu0 %v7931
        %8053 = vmatprep.subr.mxu0 0.0
        %8054 = vmatpush1.msra.mxu0 %v7932
        %8055 = vmatprep.subr.mxu0 0.0
        %8056 = vmatpush1.msra.mxu0 %v7933
        %8057 = vmatprep.subr.mxu0 0.0
        %8058 = vmatpush1.msra.mxu0 %v7934
        %8059 = vmatprep.subr.mxu0 0.0
        %8060 = vmatpush1.msra.mxu0 %v7935
        %8061 = vmatprep.subr.mxu0 0.0
        %8062 = vmatpush1.msra.mxu0 %v7936
        %8063 = vmatprep.subr.mxu0 0.0
        %8064 = vmatpush1.msra.mxu0 %v7937
        %8065 = vmatprep.subr.mxu0 0.0
        %8066 = vmatpush1.msra.mxu0 %v7938
        %8067 = vmatprep.subr.mxu0 0.0
        %8068 = vmatpush1.msra.mxu0 %v7939
        %8069 = vmatprep.subr.mxu0 0.0
        %8070 = vmatpush1.msra.mxu0 %v7940
        %8071 = vmatprep.subr.mxu0 0.0
        %8072 = vmatpush1.msra.mxu0 %v7941
        %8073 = vmatprep.subr.mxu0 0.0
        %8074 = vmatpush1.msra.mxu0 %v7942
        %8075 = vmatprep.subr.mxu0 0.0
        %8076 = vmatpush1.msra.mxu0 %v7943
        %8077 = vmatprep.subr.mxu0 0.0
        %8078 = vmatpush1.msra.mxu0 %v7944
        %8079 = vmatprep.subr.mxu0 0.0
        %8080 = vmatpush1.msra.mxu0 %v7945
        %8081 = vmatprep.subr.mxu0 0.0
        %8082 = vmatpush1.msra.mxu0 %v7946
        %8083 = vmatprep.subr.mxu0 0.0
        %8084 = vmatpush1.msra.mxu0 %v7947
        %8085 = vmatprep.subr.mxu0 0.0
        %8086 = vmatpush1.msra.mxu0 %v7948
        %8087 = vmatprep.subr.mxu0 0.0
        %8088 = vmatpush1.msra.mxu0 %v7949
        %8089 = vmatprep.mubr.f32.mxu0 %v7886
        %8090 = vmatmul.mubr.f32.gmra.mrb[0].mxu0 %v7790
        %v8091 = vpop.f32.mrb[0].mxu0
        %v8092 = vadd.f32 %v7959, %v8091
        %v8093 = vpop.f32.mrb[0].mxu0
        %8094 = vmatprep.mubr.f32.mxu0 %v7887
        %8095 = vmatmul.mubr.f32.gmra.mrb[0].mxu0 %v7791
        %v8096 = vpop.f32.mrb[0].mxu0
        %v8097 = vadd.f32 %v7959, %v8096
        %v8098 = vpop.f32.mrb[0].mxu0
        %8099 = vmatprep.mubr.f32.mxu0 %v7888
        %8100 = vmatmul.mubr.f32.gmra.mrb[0].mxu0 %v7792
        %v8101 = vpop.f32.mrb[0].mxu0
        %v8102 = vadd.f32 %v7959, %v8101
        %v8103 = vpop.f32.mrb[0].mxu0
        %8104 = vmatprep.mubr.f32.mxu0 %v7889
        %8105 = vmatmul.mubr.f32.gmra.mrb[0].mxu0 %v7793
        %v8106 = vpop.f32.mrb[0].mxu0
        %v8107 = vadd.f32 %v7959, %v8106
        %v8108 = vpop.f32.mrb[0].mxu0
        %8109 = vmatprep.mubr.f32.mxu0 %v7890
        %8110 = vmatmul.mubr.f32.gmra.mrb[0].mxu0 %v7794
        %v8111 = vpop.f32.mrb[0].mxu0
        %v8112 = vadd.f32 %v7959, %v8111
        %v8113 = vpop.f32.mrb[0].mxu0
        %8114 = vmatprep.mubr.f32.mxu0 %v7891
        %8115 = vmatmul.mubr.f32.gmra.mrb[0].mxu0 %v7795
        %v8116 = vpop.f32.mrb[0].mxu0
        %v8117 = vadd.f32 %v7959, %v8116
        %v8118 = vpop.f32.mrb[0].mxu0
        %8119 = vmatprep.mubr.f32.mxu0 %v7892
        %8120 = vmatmul.mubr.f32.gmra.mrb[0].mxu0 %v7796
        %v8121 = vpop.f32.mrb[0].mxu0
        %v8122 = vadd.f32 %v7959, %v8121
        %v8123 = vpop.f32.mrb[0].mxu0
        %8124 = vmatprep.mubr.f32.mxu0 %v7893
        %8125 = vmatmul.mubr.f32.gmra.mrb[0].mxu0 %v7797
        %v8126 = vpop.f32.mrb[0].mxu0
        %v8127 = vadd.f32 %v7959, %v8126
        %v8128 = vpop.f32.mrb[0].mxu0
        %8129 = vmatprep.mubr.f32.mxu0 %v7894
        %8130 = vmatmul.mubr.f32.gmra.mrb[0].mxu0 %v7798
        %v8131 = vpop.f32.mrb[0].mxu0
        %v8132 = vadd.f32 %v7959, %v8131
        %v8133 = vpop.f32.mrb[0].mxu0
        %8134 = vmatprep.mubr.f32.mxu0 %v7895
        %8135 = vmatmul.mubr.f32.gmra.mrb[0].mxu0 %v7799
        %v8136 = vpop.f32.mrb[0].mxu0
        %v8137 = vadd.f32 %v7959, %v8136
        %v8138 = vpop.f32.mrb[0].mxu0
        %8139 = vmatprep.mubr.f32.mxu0 %v7896
        %8140 = vmatmul.mubr.f32.gmra.mrb[0].mxu0 %v7800
        %v8141 = vpop.f32.mrb[0].mxu0
        %v8142 = vadd.f32 %v7959, %v8141
        %v8143 = vpop.f32.mrb[0].mxu0
        %8144 = vmatprep.mubr.f32.mxu0 %v7897
        %8145 = vmatmul.mubr.f32.gmra.mrb[0].mxu0 %v7801
        %v8146 = vpop.f32.mrb[0].mxu0
        %v8147 = vadd.f32 %v7959, %v8146
        %v8148 = vpop.f32.mrb[0].mxu0
        %8149 = vmatprep.mubr.f32.mxu0 %v7898
        %8150 = vmatmul.mubr.f32.gmra.mrb[0].mxu0 %v7802
        %v8151 = vpop.f32.mrb[0].mxu0
        %v8152 = vadd.f32 %v7959, %v8151
        %v8153 = vpop.f32.mrb[0].mxu0
        %8154 = vmatprep.mubr.f32.mxu0 %v7899
        %8155 = vmatmul.mubr.f32.gmra.mrb[0].mxu0 %v7803
        %v8156 = vpop.f32.mrb[0].mxu0
        %v8157 = vadd.f32 %v7959, %v8156
        %v8158 = vpop.f32.mrb[0].mxu0
        %8159 = vmatprep.mubr.f32.mxu0 %v7900
        %8160 = vmatmul.mubr.f32.gmra.mrb[0].mxu0 %v7804
        %v8161 = vpop.f32.mrb[0].mxu0
        %v8162 = vadd.f32 %v7959, %v8161
        %v8163 = vpop.f32.mrb[0].mxu0
        %8164 = vmatprep.mubr.f32.mxu0 %v7901
        %8165 = vmatmul.mubr.f32.gmra.mrb[0].mxu0 %v7805
        %v8166 = vpop.f32.mrb[0].mxu0
        %v8167 = vadd.f32 %v7959, %v8166
        %v8168 = vpop.f32.mrb[0].mxu0
        %8169 = vmatprep.mubr.f32.mxu0 %v7902
        %8170 = vmatmul.mubr.f32.gmra.mrb[0].mxu0 %v7806
        %v8171 = vpop.f32.mrb[0].mxu0
        %v8172 = vadd.f32 %v7959, %v8171
        %v8173 = vpop.f32.mrb[0].mxu0
        %8174 = vmatprep.mubr.f32.mxu0 %v7903
        %8175 = vmatmul.mubr.f32.gmra.mrb[0].mxu0 %v7807
        %v8176 = vpop.f32.mrb[0].mxu0
        %v8177 = vadd.f32 %v7959, %v8176
        %v8178 = vpop.f32.mrb[0].mxu0
        %8179 = vmatprep.mubr.f32.mxu0 %v7904
        %8180 = vmatmul.mubr.f32.gmra.mrb[0].mxu0 %v7808
        %v8181 = vpop.f32.mrb[0].mxu0
        %v8182 = vadd.f32 %v7959, %v8181
        %v8183 = vpop.f32.mrb[0].mxu0
        %8184 = vmatprep.mubr.f32.mxu0 %v7905
        %8185 = vmatmul.mubr.f32.gmra.mrb[0].mxu0 %v7809
        %v8186 = vpop.f32.mrb[0].mxu0
        %v8187 = vadd.f32 %v7959, %v8186
        %v8188 = vpop.f32.mrb[0].mxu0
        %8189 = vmatprep.mubr.f32.mxu0 %v7906
        %8190 = vmatmul.mubr.f32.gmra.mrb[0].mxu0 %v7810
        %v8191 = vpop.f32.mrb[0].mxu0
        %v8192 = vadd.f32 %v7959, %v8191
        %v8193 = vpop.f32.mrb[0].mxu0
        %8194 = vmatprep.mubr.f32.mxu0 %v7907
        %8195 = vmatmul.mubr.f32.gmra.mrb[0].mxu0 %v7811
        %v8196 = vpop.f32.mrb[0].mxu0
        %v8197 = vadd.f32 %v7959, %v8196
        %v8198 = vpop.f32.mrb[0].mxu0
        %8199 = vmatprep.mubr.f32.mxu0 %v7908
        %8200 = vmatmul.mubr.f32.gmra.mrb[0].mxu0 %v7812
        %v8201 = vpop.f32.mrb[0].mxu0
        %v8202 = vadd.f32 %v7959, %v8201
        %v8203 = vpop.f32.mrb[0].mxu0
        %8204 = vmatprep.mubr.f32.mxu0 %v7909
        %8205 = vmatmul.mubr.f32.gmra.mrb[0].mxu0 %v7813
        %v8206 = vpop.f32.mrb[0].mxu0
        %v8207 = vadd.f32 %v7959, %v8206
        %v8208 = vpop.f32.mrb[0].mxu0
        %8209 = vmatprep.mubr.f32.mxu0 %v7910
        %8210 = vmatmul.mubr.f32.gmra.mrb[0].mxu0 %v7814
        %v8211 = vpop.f32.mrb[0].mxu0
        %v8212 = vadd.f32 %v7959, %v8211
        %v8213 = vpop.f32.mrb[0].mxu0
        %8214 = vmatprep.mubr.f32.mxu0 %v7911
        %8215 = vmatmul.mubr.f32.gmra.mrb[0].mxu0 %v7815
        %v8216 = vpop.f32.mrb[0].mxu0
        %v8217 = vadd.f32 %v7959, %v8216
        %v8218 = vpop.f32.mrb[0].mxu0
        %8219 = vmatprep.mubr.f32.mxu0 %v7912
        %8220 = vmatmul.mubr.f32.gmra.mrb[0].mxu0 %v7816
        %v8221 = vpop.f32.mrb[0].mxu0
        %v8222 = vadd.f32 %v7959, %v8221
        %v8223 = vpop.f32.mrb[0].mxu0
        %8224 = vmatprep.mubr.f32.mxu0 %v7913
        %8225 = vmatmul.mubr.f32.gmra.mrb[0].mxu0 %v7817
        %v8226 = vpop.f32.mrb[0].mxu0
        %v8227 = vadd.f32 %v7959, %v8226
        %v8228 = vpop.f32.mrb[0].mxu0
        %8229 = vmatprep.mubr.f32.mxu0 %v7914
        %8230 = vmatmul.mubr.f32.gmra.mrb[0].mxu0 %v7818
        %v8231 = vpop.f32.mrb[0].mxu0
        %v8232 = vadd.f32 %v7959, %v8231
        %v8233 = vpop.f32.mrb[0].mxu0
        %8234 = vmatprep.mubr.f32.mxu0 %v7915
        %8235 = vmatmul.mubr.f32.gmra.mrb[0].mxu0 %v7819
        %v8236 = vpop.f32.mrb[0].mxu0
        %v8237 = vadd.f32 %v7959, %v8236
        %v8238 = vpop.f32.mrb[0].mxu0
        %8239 = vmatprep.mubr.f32.mxu0 %v7916
        %8240 = vmatmul.mubr.f32.gmra.mrb[0].mxu0 %v7820
        %v8241 = vpop.f32.mrb[0].mxu0
        %v8242 = vadd.f32 %v7959, %v8241
        %v8243 = vpop.f32.mrb[0].mxu0
        %8244 = vmatprep.mubr.f32.mxu0 %v7917
        %8245 = vmatmul.mubr.f32.gmra.mrb[0].mxu0 %v7821
        %v8246 = vpop.f32.mrb[0].mxu0
        %v8247 = vadd.f32 %v7959, %v8246
        %v8248 = vpop.f32.mrb[0].mxu0
        %8249 = vdwg.mxu0
        %8250 = vmatprep.subr.mxu0 0.0
        %8251 = vmatpush1.msra.mxu0 %v7950
        %8252 = vmatprep.subr.mxu0 0.0
        %8253 = vmatpush1.msra.mxu0 %v7951
        %8254 = vmatprep.subr.mxu0 0.0
        %8255 = vmatpush1.msra.mxu0 %v7952
        %8256 = vmatprep.subr.mxu0 0.0
        %8257 = vmatpush1.msra.mxu0 %v7953
        %8258 = vmatprep.subr.mxu0 0.0
        %8259 = vmatpush1.msra.mxu0 0.0
        %8260 = vmatprep.subr.mxu0 0.0
        %8261 = vmatpush1.msra.mxu0 0.0
        %8262 = vmatprep.subr.mxu0 0.0
        %8263 = vmatpush1.msra.mxu0 0.0
        %8264 = vmatprep.subr.mxu0 0.0
        %8265 = vmatpush1.msra.mxu0 0.0
        %8266 = vmatprep.subr.mxu0 0.0
        %8267 = vmatpush1.msra.mxu0 0.0
        %8268 = vmatprep.subr.mxu0 0.0
        %8269 = vmatpush1.msra.mxu0 0.0
        %8270 = vmatprep.subr.mxu0 0.0
        %8271 = vmatpush1.msra.mxu0 0.0
        %8272 = vmatprep.subr.mxu0 0.0
        %8273 = vmatpush1.msra.mxu0 0.0
        %8274 = vmatprep.subr.mxu0 0.0
        %8275 = vmatpush1.msra.mxu0 0.0
        %8276 = vmatprep.subr.mxu0 0.0
        %8277 = vmatpush1.msra.mxu0 0.0
        %8278 = vmatprep.subr.mxu0 0.0
        %8279 = vmatpush1.msra.mxu0 0.0
        %8280 = vmatprep.subr.mxu0 0.0
        %8281 = vmatpush1.msra.mxu0 0.0
        %8282 = vmatprep.subr.mxu0 0.0
        %8283 = vmatpush1.msra.mxu0 0.0
        %8284 = vmatprep.subr.mxu0 0.0
        %8285 = vmatpush1.msra.mxu0 0.0
        %8286 = vmatprep.subr.mxu0 0.0
        %8287 = vmatpush1.msra.mxu0 0.0
        %8288 = vmatprep.subr.mxu0 0.0
        %8289 = vmatpush1.msra.mxu0 0.0
        %8290 = vmatprep.subr.mxu0 0.0
        %8291 = vmatpush1.msra.mxu0 0.0
        %8292 = vmatprep.subr.mxu0 0.0
        %8293 = vmatpush1.msra.mxu0 0.0
        %8294 = vmatprep.subr.mxu0 0.0
        %8295 = vmatpush1.msra.mxu0 0.0
        %8296 = vmatprep.subr.mxu0 0.0
        %8297 = vmatpush1.msra.mxu0 0.0
        %8298 = vmatprep.subr.mxu0 0.0
        %8299 = vmatpush1.msra.mxu0 0.0
        %8300 = vmatprep.subr.mxu0 0.0
        %8301 = vmatpush1.msra.mxu0 0.0
        %8302 = vmatprep.subr.mxu0 0.0
        %8303 = vmatpush1.msra.mxu0 0.0
        %8304 = vmatprep.subr.mxu0 0.0
        %8305 = vmatpush1.msra.mxu0 0.0
        %8306 = vmatprep.subr.mxu0 0.0
        %8307 = vmatpush1.msra.mxu0 0.0
        %8308 = vmatprep.subr.mxu0 0.0
        %8309 = vmatpush1.msra.mxu0 0.0
        %8310 = vmatprep.subr.mxu0 0.0
        %8311 = vmatpush1.msra.mxu0 0.0
        %8312 = vmatprep.subr.mxu0 0.0
        %8313 = vmatpush1.msra.mxu0 0.0
        %8314 = vmatprep.mubr.f32.mxu0 0.0
        %8315 = vmatmul.mubr.f32.gmra.mrb[0].mxu0 %v7961
        %v8316 = vpop.f32.mrb[0].mxu0
        %v8317 = vadd.f32 %v8092, %v8316
        %v8318 = vpop.f32.mrb[0].mxu0
        %8319 = vmatprep.mubr.f32.mxu0 0.0
        %8320 = vmatmul.mubr.f32.gmra.mrb[0].mxu0 %v7963
        %v8321 = vpop.f32.mrb[0].mxu0
        %v8322 = vadd.f32 %v8097, %v8321
        %v8323 = vpop.f32.mrb[0].mxu0
        %8324 = vmatprep.mubr.f32.mxu0 0.0
        %8325 = vmatmul.mubr.f32.gmra.mrb[0].mxu0 %v7965
        %v8326 = vpop.f32.mrb[0].mxu0
        %v8327 = vadd.f32 %v8102, %v8326
        %v8328 = vpop.f32.mrb[0].mxu0
        %8329 = vmatprep.mubr.f32.mxu0 0.0
        %8330 = vmatmul.mubr.f32.gmra.mrb[0].mxu0 %v7967
        %v8331 = vpop.f32.mrb[0].mxu0
        %v8332 = vadd.f32 %v8107, %v8331
        %v8333 = vpop.f32.mrb[0].mxu0
        %8334 = vmatprep.mubr.f32.mxu0 0.0
        %8335 = vmatmul.mubr.f32.gmra.mrb[0].mxu0 %v7969
        %v8336 = vpop.f32.mrb[0].mxu0
        %v8337 = vadd.f32 %v8112, %v8336
        %v8338 = vpop.f32.mrb[0].mxu0
        %8339 = vmatprep.mubr.f32.mxu0 0.0
        %8340 = vmatmul.mubr.f32.gmra.mrb[0].mxu0 %v7971
        %v8341 = vpop.f32.mrb[0].mxu0
        %v8342 = vadd.f32 %v8117, %v8341
        %v8343 = vpop.f32.mrb[0].mxu0
        %8344 = vmatprep.mubr.f32.mxu0 0.0
        %8345 = vmatmul.mubr.f32.gmra.mrb[0].mxu0 %v7973
        %v8346 = vpop.f32.mrb[0].mxu0
        %v8347 = vadd.f32 %v8122, %v8346
        %v8348 = vpop.f32.mrb[0].mxu0
        %8349 = vmatprep.mubr.f32.mxu0 0.0
        %8350 = vmatmul.mubr.f32.gmra.mrb[0].mxu0 %v7975
        %v8351 = vpop.f32.mrb[0].mxu0
        %v8352 = vadd.f32 %v8127, %v8351
        %v8353 = vpop.f32.mrb[0].mxu0
        %8354 = vmatprep.mubr.f32.mxu0 0.0
        %8355 = vmatmul.mubr.f32.gmra.mrb[0].mxu0 %v7977
        %v8356 = vpop.f32.mrb[0].mxu0
        %v8357 = vadd.f32 %v8132, %v8356
        %v8358 = vpop.f32.mrb[0].mxu0
        %8359 = vmatprep.mubr.f32.mxu0 0.0
        %8360 = vmatmul.mubr.f32.gmra.mrb[0].mxu0 %v7979
        %v8361 = vpop.f32.mrb[0].mxu0
        %v8362 = vadd.f32 %v8137, %v8361
        %v8363 = vpop.f32.mrb[0].mxu0
        %8364 = vmatprep.mubr.f32.mxu0 0.0
        %8365 = vmatmul.mubr.f32.gmra.mrb[0].mxu0 %v7981
        %v8366 = vpop.f32.mrb[0].mxu0
        %v8367 = vadd.f32 %v8142, %v8366
        %v8368 = vpop.f32.mrb[0].mxu0
        %8369 = vmatprep.mubr.f32.mxu0 0.0
        %8370 = vmatmul.mubr.f32.gmra.mrb[0].mxu0 %v7983
        %v8371 = vpop.f32.mrb[0].mxu0
        %v8372 = vadd.f32 %v8147, %v8371
        %v8373 = vpop.f32.mrb[0].mxu0
        %8374 = vmatprep.mubr.f32.mxu0 0.0
        %8375 = vmatmul.mubr.f32.gmra.mrb[0].mxu0 %v7985
        %v8376 = vpop.f32.mrb[0].mxu0
        %v8377 = vadd.f32 %v8152, %v8376
        %v8378 = vpop.f32.mrb[0].mxu0
        %8379 = vmatprep.mubr.f32.mxu0 0.0
        %8380 = vmatmul.mubr.f32.gmra.mrb[0].mxu0 %v7987
        %v8381 = vpop.f32.mrb[0].mxu0
        %v8382 = vadd.f32 %v8157, %v8381
        %v8383 = vpop.f32.mrb[0].mxu0
        %8384 = vmatprep.mubr.f32.mxu0 0.0
        %8385 = vmatmul.mubr.f32.gmra.mrb[0].mxu0 %v7989
        %v8386 = vpop.f32.mrb[0].mxu0
        %v8387 = vadd.f32 %v8162, %v8386
        %v8388 = vpop.f32.mrb[0].mxu0
        %8389 = vmatprep.mubr.f32.mxu0 0.0
        %8390 = vmatmul.mubr.f32.gmra.mrb[0].mxu0 %v7991
        %v8391 = vpop.f32.mrb[0].mxu0
        %v8392 = vadd.f32 %v8167, %v8391
        %v8393 = vpop.f32.mrb[0].mxu0
        %8394 = vmatprep.mubr.f32.mxu0 0.0
        %8395 = vmatmul.mubr.f32.gmra.mrb[0].mxu0 %v7993
        %v8396 = vpop.f32.mrb[0].mxu0
        %v8397 = vadd.f32 %v8172, %v8396
        %v8398 = vpop.f32.mrb[0].mxu0
        %8399 = vmatprep.mubr.f32.mxu0 0.0
        %8400 = vmatmul.mubr.f32.gmra.mrb[0].mxu0 %v7995
        %v8401 = vpop.f32.mrb[0].mxu0
        %v8402 = vadd.f32 %v8177, %v8401
        %v8403 = vpop.f32.mrb[0].mxu0
        %8404 = vmatprep.mubr.f32.mxu0 0.0
        %8405 = vmatmul.mubr.f32.gmra.mrb[0].mxu0 %v7997
        %v8406 = vpop.f32.mrb[0].mxu0
        %v8407 = vadd.f32 %v8182, %v8406
        %v8408 = vpop.f32.mrb[0].mxu0
        %8409 = vmatprep.mubr.f32.mxu0 0.0
        %8410 = vmatmul.mubr.f32.gmra.mrb[0].mxu0 %v7999
        %v8411 = vpop.f32.mrb[0].mxu0
        %v8412 = vadd.f32 %v8187, %v8411
        %v8413 = vpop.f32.mrb[0].mxu0
        %8414 = vmatprep.mubr.f32.mxu0 0.0
        %8415 = vmatmul.mubr.f32.gmra.mrb[0].mxu0 %v8001
        %v8416 = vpop.f32.mrb[0].mxu0
        %v8417 = vadd.f32 %v8192, %v8416
        %v8418 = vpop.f32.mrb[0].mxu0
        %8419 = vmatprep.mubr.f32.mxu0 0.0
        %8420 = vmatmul.mubr.f32.gmra.mrb[0].mxu0 %v8003
        %v8421 = vpop.f32.mrb[0].mxu0
        %v8422 = vadd.f32 %v8197, %v8421
        %v8423 = vpop.f32.mrb[0].mxu0
        %8424 = vmatprep.mubr.f32.mxu0 0.0
        %8425 = vmatmul.mubr.f32.gmra.mrb[0].mxu0 %v8005
        %v8426 = vpop.f32.mrb[0].mxu0
        %v8427 = vadd.f32 %v8202, %v8426
        %v8428 = vpop.f32.mrb[0].mxu0
        %8429 = vmatprep.mubr.f32.mxu0 0.0
        %8430 = vmatmul.mubr.f32.gmra.mrb[0].mxu0 %v8007
        %v8431 = vpop.f32.mrb[0].mxu0
        %v8432 = vadd.f32 %v8207, %v8431
        %v8433 = vpop.f32.mrb[0].mxu0
        %8434 = vmatprep.mubr.f32.mxu0 0.0
        %8435 = vmatmul.mubr.f32.gmra.mrb[0].mxu0 %v8009
        %v8436 = vpop.f32.mrb[0].mxu0
        %v8437 = vadd.f32 %v8212, %v8436
        %v8438 = vpop.f32.mrb[0].mxu0
        %8439 = vmatprep.mubr.f32.mxu0 0.0
        %8440 = vmatmul.mubr.f32.gmra.mrb[0].mxu0 %v8011
        %v8441 = vpop.f32.mrb[0].mxu0
        %v8442 = vadd.f32 %v8217, %v8441
        %v8443 = vpop.f32.mrb[0].mxu0
        %8444 = vmatprep.mubr.f32.mxu0 0.0
        %8445 = vmatmul.mubr.f32.gmra.mrb[0].mxu0 %v8013
        %v8446 = vpop.f32.mrb[0].mxu0
        %v8447 = vadd.f32 %v8222, %v8446
        %v8448 = vpop.f32.mrb[0].mxu0
        %8449 = vmatprep.mubr.f32.mxu0 0.0
        %8450 = vmatmul.mubr.f32.gmra.mrb[0].mxu0 %v8015
        %v8451 = vpop.f32.mrb[0].mxu0
        %v8452 = vadd.f32 %v8227, %v8451
        %v8453 = vpop.f32.mrb[0].mxu0
        %8454 = vmatprep.mubr.f32.mxu0 0.0
        %8455 = vmatmul.mubr.f32.gmra.mrb[0].mxu0 %v8017
        %v8456 = vpop.f32.mrb[0].mxu0
        %v8457 = vadd.f32 %v8232, %v8456
        %v8458 = vpop.f32.mrb[0].mxu0
        %8459 = vmatprep.mubr.f32.mxu0 0.0
        %8460 = vmatmul.mubr.f32.gmra.mrb[0].mxu0 %v8019
        %v8461 = vpop.f32.mrb[0].mxu0
        %v8462 = vadd.f32 %v8237, %v8461
        %v8463 = vpop.f32.mrb[0].mxu0
        %8464 = vmatprep.mubr.f32.mxu0 0.0
        %8465 = vmatmul.mubr.f32.gmra.mrb[0].mxu0 %v8021
        %v8466 = vpop.f32.mrb[0].mxu0
        %v8467 = vadd.f32 %v8242, %v8466
        %v8468 = vpop.f32.mrb[0].mxu0
        %8469 = vmatprep.mubr.f32.mxu0 0.0
        %8470 = vmatmul.mubr.f32.gmra.mrb[0].mxu0 %v8023
        %v8471 = vpop.f32.mrb[0].mxu0
        %v8472 = vadd.f32 %v8247, %v8471
        %v8473 = vpop.f32.mrb[0].mxu0
        %8474 = vdwg.mxu0
        %v8475 = vmax.f32 %v8317, 0.0
        %v8476 = vmax.f32 %v8322, 0.0
        %v8477 = vmax.f32 %v8327, 0.0
        %v8478 = vmax.f32 %v8332, 0.0
        %v8479 = vmax.f32 %v8337, 0.0
        %v8480 = vmax.f32 %v8342, 0.0
        %v8481 = vmax.f32 %v8347, 0.0
        %v8482 = vmax.f32 %v8352, 0.0
        %v8483 = vmax.f32 %v8357, 0.0
        %v8484 = vmax.f32 %v8362, 0.0
        %v8485 = vmax.f32 %v8367, 0.0
        %v8486 = vmax.f32 %v8372, 0.0
        %v8487 = vmax.f32 %v8377, 0.0
        %v8488 = vmax.f32 %v8382, 0.0
        %v8489 = vmax.f32 %v8387, 0.0
        %v8490 = vmax.f32 %v8392, 0.0
        %v8491 = vmax.f32 %v8397, 0.0
        %v8492 = vmax.f32 %v8402, 0.0
        %v8493 = vmax.f32 %v8407, 0.0
        %v8494 = vmax.f32 %v8412, 0.0
        %v8495 = vmax.f32 %v8417, 0.0
        %v8496 = vmax.f32 %v8422, 0.0
        %v8497 = vmax.f32 %v8427, 0.0
        %v8498 = vmax.f32 %v8432, 0.0
        %v8499 = vmax.f32 %v8437, 0.0
        %v8500 = vmax.f32 %v8442, 0.0
        %v8501 = vmax.f32 %v8447, 0.0
        %v8502 = vmax.f32 %v8452, 0.0
        %v8503 = vmax.f32 %v8457, 0.0
        %v8504 = vmax.f32 %v8462, 0.0
        %v8505 = vmax.f32 %v8467, 0.0
        %v8506 = vmax.f32 %v8472, 0.0
        %8507 = vst.msk [vmem:[#allocation4] sm:$0xff] %vm3236, 0.0
        %8508 = vst.msk [vmem:[#allocation4 + $0x8] sm:$0xff] %vm3236, 0.0
        %vm8509 = vcmask 517120
        %8510 = vst.msk [vmem:[#allocation4 + $0x10] sm:$0x3] %vm8509, 0.0
        %8511 = vst.msk [vmem:[#allocation4 + $0x18] sm:$0xff] %vm3236, 0.0
        %8512 = vst.msk [vmem:[#allocation4 + $0x20] sm:$0xff] %vm3236, 0.0
        %8513 = vst.msk [vmem:[#allocation4 + $0x28] sm:$0x3] %vm8509, 0.0
        %8514 = vst.msk [vmem:[#allocation4 + $0x30] sm:$0xff] %vm3236, 0.0
        %8515 = vst.msk [vmem:[#allocation4 + $0x38] sm:$0xff] %vm3236, 0.0
        %8516 = vst.msk [vmem:[#allocation4 + $0x40] sm:$0x3] %vm8509, 0.0
        %8517 = vst.msk [vmem:[#allocation4 + $0x48] sm:$0xff] %vm3236, 0.0
        %8518 = vst.msk [vmem:[#allocation4 + $0x50] sm:$0xff] %vm3236, 0.0
        %8519 = vst.msk [vmem:[#allocation4 + $0x58] sm:$0x3] %vm8509, 0.0
        %8520 = vst.msk [vmem:[#allocation4 + $0x60] sm:$0xff] %vm3236, 0.0
        %8521 = vst.msk [vmem:[#allocation4 + $0x68] sm:$0xff] %vm3236, 0.0
        %8522 = vst.msk [vmem:[#allocation4 + $0x70] sm:$0x3] %vm8509, 0.0
        %8523 = vst.msk [vmem:[#allocation4 + $0x78] sm:$0xff] %vm3236, 0.0
        %8524 = vst.msk [vmem:[#allocation4 + $0x80] sm:$0xff] %vm3236, 0.0
        %8525 = vst.msk [vmem:[#allocation4 + $0x88] sm:$0x3] %vm8509, 0.0
        %8526 = vst.msk [vmem:[#allocation4 + $0x90] sm:$0xff] %vm3236, 0.0
        %8527 = vst.msk [vmem:[#allocation4 + $0x98] sm:$0xff] %vm3236, 0.0
        %8528 = vst.msk [vmem:[#allocation4 + $0xa0] sm:$0x3] %vm8509, 0.0
        %8529 = vst.msk [vmem:[#allocation4 + $0xa8] sm:$0xff] %vm3236, 0.0
        %8530 = vst.msk [vmem:[#allocation4 + $0xb0] sm:$0xff] %vm3236, 0.0
        %8531 = vst.msk [vmem:[#allocation4 + $0xb8] sm:$0x3] %vm8509, 0.0
        %8532 = vst.msk [vmem:[#allocation4 + $0xc0] sm:$0xff] %vm3236, 0.0
        %8533 = vst.msk [vmem:[#allocation4 + $0xc8] sm:$0xff] %vm3236, 0.0
        %8534 = vst.msk [vmem:[#allocation4 + $0xd0] sm:$0x3] %vm8509, 0.0
        %8535 = vst.msk [vmem:[#allocation4 + $0xd8] sm:$0xff] %vm3236, 0.0
        %8536 = vst.msk [vmem:[#allocation4 + $0xe0] sm:$0xff] %vm3236, 0.0
        %8537 = vst.msk [vmem:[#allocation4 + $0xe8] sm:$0x3] %vm8509, 0.0
        %8538 = vst.msk [vmem:[#allocation4 + $0xf0] sm:$0xff] %vm3236, 0.0
        %8539 = vst.msk [vmem:[#allocation4 + $0xf8] sm:$0xff] %vm3236, 0.0
        %8540 = vst.msk [vmem:[#allocation4 + $0x100] sm:$0x3] %vm8509, 0.0
        %8541 = vst.msk [vmem:[#allocation4 + $0x108] sm:$0xff] %vm3236, 0.0
        %8542 = vst.msk [vmem:[#allocation4 + $0x110] sm:$0xff] %vm3236, 0.0
        %8543 = vst.msk [vmem:[#allocation4 + $0x118] sm:$0x3] %vm8509, 0.0
        %8544 = vst.msk [vmem:[#allocation4 + $0x120] sm:$0xff] %vm3236, 0.0
        %8545 = vst.msk [vmem:[#allocation4 + $0x128] sm:$0xff] %vm3236, 0.0
        %8546 = vst.msk [vmem:[#allocation4 + $0x130] sm:$0x3] %vm8509, 0.0
        %8547 = vst.msk [vmem:[#allocation4 + $0x138] sm:$0xff] %vm3236, 0.0
        %8548 = vst.msk [vmem:[#allocation4 + $0x140] sm:$0xff] %vm3236, 0.0
        %8549 = vst.msk [vmem:[#allocation4 + $0x148] sm:$0x3] %vm8509, 0.0
        %8550 = vst.msk [vmem:[#allocation4 + $0x150] sm:$0xff] %vm3236, 0.0
        %8551 = vst.msk [vmem:[#allocation4 + $0x158] sm:$0xff] %vm3236, 0.0
        %8552 = vst.msk [vmem:[#allocation4 + $0x160] sm:$0x3] %vm8509, 0.0
        %8553 = vst.msk [vmem:[#allocation4 + $0x168] sm:$0xff] %vm3236, 0.0
        %8554 = vst.msk [vmem:[#allocation4 + $0x170] sm:$0xff] %vm3236, 0.0
        %8555 = vst.msk [vmem:[#allocation4 + $0x178] sm:$0x3] %vm8509, 0.0
        %8556 = vst.msk [vmem:[#allocation4 + $0x180] sm:$0xff] %vm3236, 0.0
        %8557 = vst.msk [vmem:[#allocation4 + $0x188] sm:$0xff] %vm3236, 0.0
        %8558 = vst.msk [vmem:[#allocation4 + $0x190] sm:$0x3] %vm8509, 0.0
        %8559 = vst.msk [vmem:[#allocation4 + $0x198] sm:$0xff] %vm3236, 0.0
        %8560 = vst.msk [vmem:[#allocation4 + $0x1a0] sm:$0xff] %vm3236, 0.0
        %8561 = vst.msk [vmem:[#allocation4 + $0x1a8] sm:$0x3] %vm8509, 0.0
        %s8562 = scalar_lea.vmem [#allocation4], 24
        %8563 = vst.msk [vmem:[%s8562 + $0x1] sm:$0xff] %vm3236, %v8475
        %8564 = vst.msk [vmem:[%s8562 + $0x9] sm:$0xff] %vm3236, %v8476
        %8565 = vst.msk [vmem:[%s8562 + $0x19] sm:$0xff] %vm3236, %v8477
        %8566 = vst.msk [vmem:[%s8562 + $0x21] sm:$0xff] %vm3236, %v8478
        %8567 = vst.msk [vmem:[%s8562 + $0x31] sm:$0xff] %vm3236, %v8479
        %8568 = vst.msk [vmem:[%s8562 + $0x39] sm:$0xff] %vm3236, %v8480
        %8569 = vst.msk [vmem:[%s8562 + $0x49] sm:$0xff] %vm3236, %v8481
        %8570 = vst.msk [vmem:[%s8562 + $0x51] sm:$0xff] %vm3236, %v8482
        %8571 = vst.msk [vmem:[%s8562 + $0x61] sm:$0xff] %vm3236, %v8483
        %8572 = vst.msk [vmem:[%s8562 + $0x69] sm:$0xff] %vm3236, %v8484
        %8573 = vst.msk [vmem:[%s8562 + $0x79] sm:$0xff] %vm3236, %v8485
        %8574 = vst.msk [vmem:[%s8562 + $0x81] sm:$0xff] %vm3236, %v8486
        %8575 = vst.msk [vmem:[%s8562 + $0x91] sm:$0xff] %vm3236, %v8487
        %8576 = vst.msk [vmem:[%s8562 + $0x99] sm:$0xff] %vm3236, %v8488
        %8577 = vst.msk [vmem:[%s8562 + $0xa9] sm:$0xff] %vm3236, %v8489
        %8578 = vst.msk [vmem:[%s8562 + $0xb1] sm:$0xff] %vm3236, %v8490
        %8579 = vst.msk [vmem:[%s8562 + $0xc1] sm:$0xff] %vm3236, %v8491
        %8580 = vst.msk [vmem:[%s8562 + $0xc9] sm:$0xff] %vm3236, %v8492
        %8581 = vst.msk [vmem:[%s8562 + $0xd9] sm:$0xff] %vm3236, %v8493
        %8582 = vst.msk [vmem:[%s8562 + $0xe1] sm:$0xff] %vm3236, %v8494
        %8583 = vst.msk [vmem:[%s8562 + $0xf1] sm:$0xff] %vm3236, %v8495
        %8584 = vst.msk [vmem:[%s8562 + $0xf9] sm:$0xff] %vm3236, %v8496
        %8585 = vst.msk [vmem:[%s8562 + $0x109] sm:$0xff] %vm3236, %v8497
        %8586 = vst.msk [vmem:[%s8562 + $0x111] sm:$0xff] %vm3236, %v8498
        %8587 = vst.msk [vmem:[%s8562 + $0x121] sm:$0xff] %vm3236, %v8499
        %8588 = vst.msk [vmem:[%s8562 + $0x129] sm:$0xff] %vm3236, %v8500
        %8589 = vst.msk [vmem:[%s8562 + $0x139] sm:$0xff] %vm3236, %v8501
        %8590 = vst.msk [vmem:[%s8562 + $0x141] sm:$0xff] %vm3236, %v8502
        %8591 = vst.msk [vmem:[%s8562 + $0x151] sm:$0xff] %vm3236, %v8503
        %8592 = vst.msk [vmem:[%s8562 + $0x159] sm:$0xff] %vm3236, %v8504
        %8593 = vst.msk [vmem:[%s8562 + $0x169] sm:$0xff] %vm3236, %v8505
        %8594 = vst.msk [vmem:[%s8562 + $0x171] sm:$0xff] %vm3236, %v8506
        %v8595 = vld [vmem:[#allocation4] sm:$0xff]
        %v8596 = vld [vmem:[#allocation4 + $0x8] sm:$0xff]
        %v8597 = vld [vmem:[#allocation4 + $0x10] sm:$0x3]
        %v8598 = vld [vmem:[#allocation4 + $0x18] sm:$0xff]
        %v8599 = vld [vmem:[#allocation4 + $0x20] sm:$0xff]
        %v8600 = vld [vmem:[#allocation4 + $0x28] sm:$0x3]
        %v8601 = vld [vmem:[#allocation4 + $0x30] sm:$0xff]
        %v8602 = vld [vmem:[#allocation4 + $0x38] sm:$0xff]
        %v8603 = vld [vmem:[#allocation4 + $0x40] sm:$0x3]
        %v8604 = vld [vmem:[#allocation4 + $0x48] sm:$0xff]
        %v8605 = vld [vmem:[#allocation4 + $0x50] sm:$0xff]
        %v8606 = vld [vmem:[#allocation4 + $0x58] sm:$0x3]
        %v8607 = vld [vmem:[#allocation4 + $0x60] sm:$0xff]
        %v8608 = vld [vmem:[#allocation4 + $0x68] sm:$0xff]
        %v8609 = vld [vmem:[#allocation4 + $0x70] sm:$0x3]
        %v8610 = vld [vmem:[#allocation4 + $0x78] sm:$0xff]
        %v8611 = vld [vmem:[#allocation4 + $0x80] sm:$0xff]
        %v8612 = vld [vmem:[#allocation4 + $0x88] sm:$0x3]
        %v8613 = vld [vmem:[#allocation4 + $0x90] sm:$0xff]
        %v8614 = vld [vmem:[#allocation4 + $0x98] sm:$0xff]
        %v8615 = vld [vmem:[#allocation4 + $0xa0] sm:$0x3]
        %v8616 = vld [vmem:[#allocation4 + $0xa8] sm:$0xff]
        %v8617 = vld [vmem:[#allocation4 + $0xb0] sm:$0xff]
        %v8618 = vld [vmem:[#allocation4 + $0xb8] sm:$0x3]
        %v8619 = vld [vmem:[#allocation4 + $0xc0] sm:$0xff]
        %v8620 = vld [vmem:[#allocation4 + $0xc8] sm:$0xff]
        %v8621 = vld [vmem:[#allocation4 + $0xd0] sm:$0x3]
        %v8622 = vld [vmem:[#allocation4 + $0xd8] sm:$0xff]
        %v8623 = vld [vmem:[#allocation4 + $0xe0] sm:$0xff]
        %v8624 = vld [vmem:[#allocation4 + $0xe8] sm:$0x3]
        %v8625 = vld [vmem:[#allocation4 + $0xf0] sm:$0xff]
        %v8626 = vld [vmem:[#allocation4 + $0xf8] sm:$0xff]
        %v8627 = vld [vmem:[#allocation4 + $0x100] sm:$0x3]
        %v8628 = vld [vmem:[#allocation4 + $0x108] sm:$0xff]
        %v8629 = vld [vmem:[#allocation4 + $0x110] sm:$0xff]
        %v8630 = vld [vmem:[#allocation4 + $0x118] sm:$0x3]
        %v8631 = vld [vmem:[#allocation4 + $0x120] sm:$0xff]
        %v8632 = vld [vmem:[#allocation4 + $0x128] sm:$0xff]
        %v8633 = vld [vmem:[#allocation4 + $0x130] sm:$0x3]
        %v8634 = vld [vmem:[#allocation4 + $0x138] sm:$0xff]
        %v8635 = vld [vmem:[#allocation4 + $0x140] sm:$0xff]
        %v8636 = vld [vmem:[#allocation4 + $0x148] sm:$0x3]
        %v8637 = vld [vmem:[#allocation4 + $0x150] sm:$0xff]
        %v8638 = vld [vmem:[#allocation4 + $0x158] sm:$0xff]
        %v8639 = vld [vmem:[#allocation4 + $0x160] sm:$0x3]
        %v8640 = vld [vmem:[#allocation4 + $0x168] sm:$0xff]
        %v8641 = vld [vmem:[#allocation4 + $0x170] sm:$0xff]
        %v8642 = vld [vmem:[#allocation4 + $0x178] sm:$0x3]
        %v8643 = vld [vmem:[#allocation4 + $0x180] sm:$0xff]
        %v8644 = vld [vmem:[#allocation4 + $0x188] sm:$0xff]
        %v8645 = vld [vmem:[#allocation4 + $0x190] sm:$0x3]
        %v8646 = vld [vmem:[#allocation4 + $0x198] sm:$0xff]
        %v8647 = vld [vmem:[#allocation4 + $0x1a0] sm:$0xff]
        %v8648 = vld [vmem:[#allocation4 + $0x1a8] sm:$0x3]
        %v8697 = vrot.slane %v8595, 1
        %v8698 = vrot.slane %v8596, 1
        %v8699 = vsel %vm609, %v8697, %v8698
        %v8700 = vrot.slane %v8597, 1
        %v8701 = vsel %vm609, %v8698, %v8700
        %v8702 = vrot.slane %v8598, 1
        %v8703 = vrot.slane %v8599, 1
        %v8704 = vsel %vm609, %v8702, %v8703
        %v8705 = vrot.slane %v8600, 1
        %v8706 = vsel %vm609, %v8703, %v8705
        %v8707 = vrot.slane %v8601, 1
        %v8708 = vrot.slane %v8602, 1
        %v8709 = vsel %vm609, %v8707, %v8708
        %v8710 = vrot.slane %v8603, 1
        %v8711 = vsel %vm609, %v8708, %v8710
        %v8712 = vrot.slane %v8604, 1
        %v8713 = vrot.slane %v8605, 1
        %v8714 = vsel %vm609, %v8712, %v8713
        %v8715 = vrot.slane %v8606, 1
        %v8716 = vsel %vm609, %v8713, %v8715
        %v8717 = vrot.slane %v8607, 1
        %v8718 = vrot.slane %v8608, 1
        %v8719 = vsel %vm609, %v8717, %v8718
        %v8720 = vrot.slane %v8609, 1
        %v8721 = vsel %vm609, %v8718, %v8720
        %v8722 = vrot.slane %v8610, 1
        %v8723 = vrot.slane %v8611, 1
        %v8724 = vsel %vm609, %v8722, %v8723
        %v8725 = vrot.slane %v8612, 1
        %v8726 = vsel %vm609, %v8723, %v8725
        %v8727 = vrot.slane %v8613, 1
        %v8728 = vrot.slane %v8614, 1
        %v8729 = vsel %vm609, %v8727, %v8728
        %v8730 = vrot.slane %v8615, 1
        %v8731 = vsel %vm609, %v8728, %v8730
        %v8732 = vrot.slane %v8616, 1
        %v8733 = vrot.slane %v8617, 1
        %v8734 = vsel %vm609, %v8732, %v8733
        %v8735 = vrot.slane %v8618, 1
        %v8736 = vsel %vm609, %v8733, %v8735
        %v8737 = vrot.slane %v8619, 1
        %v8738 = vrot.slane %v8620, 1
        %v8739 = vsel %vm609, %v8737, %v8738
        %v8740 = vrot.slane %v8621, 1
        %v8741 = vsel %vm609, %v8738, %v8740
        %v8742 = vrot.slane %v8622, 1
        %v8743 = vrot.slane %v8623, 1
        %v8744 = vsel %vm609, %v8742, %v8743
        %v8745 = vrot.slane %v8624, 1
        %v8746 = vsel %vm609, %v8743, %v8745
        %v8747 = vrot.slane %v8625, 1
        %v8748 = vrot.slane %v8626, 1
        %v8749 = vsel %vm609, %v8747, %v8748
        %v8750 = vrot.slane %v8627, 1
        %v8751 = vsel %vm609, %v8748, %v8750
        %v8752 = vrot.slane %v8628, 1
        %v8753 = vrot.slane %v8629, 1
        %v8754 = vsel %vm609, %v8752, %v8753
        %v8755 = vrot.slane %v8630, 1
        %v8756 = vsel %vm609, %v8753, %v8755
        %v8757 = vrot.slane %v8631, 1
        %v8758 = vrot.slane %v8632, 1
        %v8759 = vsel %vm609, %v8757, %v8758
        %v8760 = vrot.slane %v8633, 1
        %v8761 = vsel %vm609, %v8758, %v8760
        %v8762 = vrot.slane %v8634, 1
        %v8763 = vrot.slane %v8635, 1
        %v8764 = vsel %vm609, %v8762, %v8763
        %v8765 = vrot.slane %v8636, 1
        %v8766 = vsel %vm609, %v8763, %v8765
        %v8767 = vrot.slane %v8637, 1
        %v8768 = vrot.slane %v8638, 1
        %v8769 = vsel %vm609, %v8767, %v8768
        %v8770 = vrot.slane %v8639, 1
        %v8771 = vsel %vm609, %v8768, %v8770
        %v8772 = vrot.slane %v8640, 1
        %v8773 = vrot.slane %v8641, 1
        %v8774 = vsel %vm609, %v8772, %v8773
        %v8775 = vrot.slane %v8642, 1
        %v8776 = vsel %vm609, %v8773, %v8775
        %8777 = vrot.lane.b32.xlu0 %v8699, 64
        %v8778 = vpop.permute.xlu0 %8777
        %8779 = vrot.lane.b32.xlu0 %v8701, 64
        %v8780 = vpop.permute.xlu0 %8779
        %8781 = vrot.lane.b32.xlu0 %v8704, 64
        %v8782 = vpop.permute.xlu0 %8781
        %8783 = vrot.lane.b32.xlu0 %v8706, 64
        %v8784 = vpop.permute.xlu0 %8783
        %8785 = vrot.lane.b32.xlu0 %v8709, 64
        %v8786 = vpop.permute.xlu0 %8785
        %8787 = vrot.lane.b32.xlu0 %v8711, 64
        %v8788 = vpop.permute.xlu0 %8787
        %8789 = vrot.lane.b32.xlu0 %v8714, 64
        %v8790 = vpop.permute.xlu0 %8789
        %8791 = vrot.lane.b32.xlu0 %v8716, 64
        %v8792 = vpop.permute.xlu0 %8791
        %8793 = vrot.lane.b32.xlu0 %v8719, 64
        %v8794 = vpop.permute.xlu0 %8793
        %8795 = vrot.lane.b32.xlu0 %v8721, 64
        %v8796 = vpop.permute.xlu0 %8795
        %8797 = vrot.lane.b32.xlu0 %v8724, 64
        %v8798 = vpop.permute.xlu0 %8797
        %8799 = vrot.lane.b32.xlu0 %v8726, 64
        %v8800 = vpop.permute.xlu0 %8799
        %8801 = vrot.lane.b32.xlu0 %v8729, 64
        %v8802 = vpop.permute.xlu0 %8801
        %8803 = vrot.lane.b32.xlu0 %v8731, 64
        %v8804 = vpop.permute.xlu0 %8803
        %8805 = vrot.lane.b32.xlu0 %v8734, 64
        %v8806 = vpop.permute.xlu0 %8805
        %8807 = vrot.lane.b32.xlu0 %v8736, 64
        %v8808 = vpop.permute.xlu0 %8807
        %8809 = vrot.lane.b32.xlu0 %v8739, 64
        %v8810 = vpop.permute.xlu0 %8809
        %8811 = vrot.lane.b32.xlu0 %v8741, 64
        %v8812 = vpop.permute.xlu0 %8811
        %8813 = vrot.lane.b32.xlu0 %v8744, 64
        %v8814 = vpop.permute.xlu0 %8813
        %8815 = vrot.lane.b32.xlu0 %v8746, 64
        %v8816 = vpop.permute.xlu0 %8815
        %8817 = vrot.lane.b32.xlu0 %v8749, 64
        %v8818 = vpop.permute.xlu0 %8817
        %8819 = vrot.lane.b32.xlu0 %v8751, 64
        %v8820 = vpop.permute.xlu0 %8819
        %8821 = vrot.lane.b32.xlu0 %v8754, 64
        %v8822 = vpop.permute.xlu0 %8821
        %8823 = vrot.lane.b32.xlu0 %v8756, 64
        %v8824 = vpop.permute.xlu0 %8823
        %8825 = vrot.lane.b32.xlu0 %v8759, 64
        %v8826 = vpop.permute.xlu0 %8825
        %8827 = vrot.lane.b32.xlu0 %v8761, 64
        %v8828 = vpop.permute.xlu0 %8827
        %8829 = vrot.lane.b32.xlu0 %v8764, 64
        %v8830 = vpop.permute.xlu0 %8829
        %8831 = vrot.lane.b32.xlu0 %v8766, 64
        %v8832 = vpop.permute.xlu0 %8831
        %8833 = vrot.lane.b32.xlu0 %v8769, 64
        %v8834 = vpop.permute.xlu0 %8833
        %8835 = vrot.lane.b32.xlu0 %v8771, 64
        %v8836 = vpop.permute.xlu0 %8835
        %8837 = vrot.lane.b32.xlu0 %v8774, 64
        %v8838 = vpop.permute.xlu0 %8837
        %8839 = vrot.lane.b32.xlu0 %v8776, 64
        %v8840 = vpop.permute.xlu0 %8839
        %v8873 = vrot.slane %v8595, 2
        %v8874 = vrot.slane %v8596, 2
        %v8875 = vsel %vm786, %v8873, %v8874
        %v8876 = vrot.slane %v8597, 2
        %v8877 = vsel %vm786, %v8874, %v8876
        %v8878 = vrot.slane %v8598, 2
        %v8879 = vrot.slane %v8599, 2
        %v8880 = vsel %vm786, %v8878, %v8879
        %v8881 = vrot.slane %v8600, 2
        %v8882 = vsel %vm786, %v8879, %v8881
        %v8883 = vrot.slane %v8601, 2
        %v8884 = vrot.slane %v8602, 2
        %v8885 = vsel %vm786, %v8883, %v8884
        %v8886 = vrot.slane %v8603, 2
        %v8887 = vsel %vm786, %v8884, %v8886
        %v8888 = vrot.slane %v8604, 2
        %v8889 = vrot.slane %v8605, 2
        %v8890 = vsel %vm786, %v8888, %v8889
        %v8891 = vrot.slane %v8606, 2
        %v8892 = vsel %vm786, %v8889, %v8891
        %v8893 = vrot.slane %v8607, 2
        %v8894 = vrot.slane %v8608, 2
        %v8895 = vsel %vm786, %v8893, %v8894
        %v8896 = vrot.slane %v8609, 2
        %v8897 = vsel %vm786, %v8894, %v8896
        %v8898 = vrot.slane %v8610, 2
        %v8899 = vrot.slane %v8611, 2
        %v8900 = vsel %vm786, %v8898, %v8899
        %v8901 = vrot.slane %v8612, 2
        %v8902 = vsel %vm786, %v8899, %v8901
        %v8903 = vrot.slane %v8613, 2
        %v8904 = vrot.slane %v8614, 2
        %v8905 = vsel %vm786, %v8903, %v8904
        %v8906 = vrot.slane %v8615, 2
        %v8907 = vsel %vm786, %v8904, %v8906
        %v8908 = vrot.slane %v8616, 2
        %v8909 = vrot.slane %v8617, 2
        %v8910 = vsel %vm786, %v8908, %v8909
        %v8911 = vrot.slane %v8618, 2
        %v8912 = vsel %vm786, %v8909, %v8911
        %v8913 = vrot.slane %v8619, 2
        %v8914 = vrot.slane %v8620, 2
        %v8915 = vsel %vm786, %v8913, %v8914
        %v8916 = vrot.slane %v8621, 2
        %v8917 = vsel %vm786, %v8914, %v8916
        %v8918 = vrot.slane %v8622, 2
        %v8919 = vrot.slane %v8623, 2
        %v8920 = vsel %vm786, %v8918, %v8919
        %v8921 = vrot.slane %v8624, 2
        %v8922 = vsel %vm786, %v8919, %v8921
        %v8923 = vrot.slane %v8625, 2
        %v8924 = vrot.slane %v8626, 2
        %v8925 = vsel %vm786, %v8923, %v8924
        %v8926 = vrot.slane %v8627, 2
        %v8927 = vsel %vm786, %v8924, %v8926
        %v8928 = vrot.slane %v8628, 2
        %v8929 = vrot.slane %v8629, 2
        %v8930 = vsel %vm786, %v8928, %v8929
        %v8931 = vrot.slane %v8630, 2
        %v8932 = vsel %vm786, %v8929, %v8931
        %v8933 = vrot.slane %v8631, 2
        %v8934 = vrot.slane %v8632, 2
        %v8935 = vsel %vm786, %v8933, %v8934
        %v8936 = vrot.slane %v8633, 2
        %v8937 = vsel %vm786, %v8934, %v8936
        %v8938 = vrot.slane %v8634, 2
        %v8939 = vrot.slane %v8635, 2
        %v8940 = vsel %vm786, %v8938, %v8939
        %v8941 = vrot.slane %v8636, 2
        %v8942 = vsel %vm786, %v8939, %v8941
        %v8943 = vrot.slane %v8637, 2
        %v8944 = vrot.slane %v8638, 2
        %v8945 = vsel %vm786, %v8943, %v8944
        %v8946 = vrot.slane %v8639, 2
        %v8947 = vsel %vm786, %v8944, %v8946
        %v8948 = vrot.slane %v8640, 2
        %v8949 = vrot.slane %v8641, 2
        %v8950 = vsel %vm786, %v8948, %v8949
        %v8951 = vrot.slane %v8642, 2
        %v8952 = vsel %vm786, %v8949, %v8951
        %8987 = vrot.lane.b32.xlu0 %v8598, 64
        %v8988 = vpop.permute.xlu0 %8987
        %8989 = vrot.lane.b32.xlu0 %v8599, 64
        %v8990 = vpop.permute.xlu0 %8989
        %8991 = vrot.lane.b32.xlu0 %v8601, 64
        %v8992 = vpop.permute.xlu0 %8991
        %8993 = vrot.lane.b32.xlu0 %v8602, 64
        %v8994 = vpop.permute.xlu0 %8993
        %8995 = vrot.lane.b32.xlu0 %v8604, 64
        %v8996 = vpop.permute.xlu0 %8995
        %8997 = vrot.lane.b32.xlu0 %v8605, 64
        %v8998 = vpop.permute.xlu0 %8997
        %8999 = vrot.lane.b32.xlu0 %v8607, 64
        %v9000 = vpop.permute.xlu0 %8999
        %9001 = vrot.lane.b32.xlu0 %v8608, 64
        %v9002 = vpop.permute.xlu0 %9001
        %9003 = vrot.lane.b32.xlu0 %v8610, 64
        %v9004 = vpop.permute.xlu0 %9003
        %9005 = vrot.lane.b32.xlu0 %v8611, 64
        %v9006 = vpop.permute.xlu0 %9005
        %9007 = vrot.lane.b32.xlu0 %v8613, 64
        %v9008 = vpop.permute.xlu0 %9007
        %9009 = vrot.lane.b32.xlu0 %v8614, 64
        %v9010 = vpop.permute.xlu0 %9009
        %9011 = vrot.lane.b32.xlu0 %v8616, 64
        %v9012 = vpop.permute.xlu0 %9011
        %9013 = vrot.lane.b32.xlu0 %v8617, 64
        %v9014 = vpop.permute.xlu0 %9013
        %9015 = vrot.lane.b32.xlu0 %v8619, 64
        %v9016 = vpop.permute.xlu0 %9015
        %9017 = vrot.lane.b32.xlu0 %v8620, 64
        %v9018 = vpop.permute.xlu0 %9017
        %9019 = vrot.lane.b32.xlu0 %v8622, 64
        %v9020 = vpop.permute.xlu0 %9019
        %9021 = vrot.lane.b32.xlu0 %v8623, 64
        %v9022 = vpop.permute.xlu0 %9021
        %9023 = vrot.lane.b32.xlu0 %v8625, 64
        %v9024 = vpop.permute.xlu0 %9023
        %9025 = vrot.lane.b32.xlu0 %v8626, 64
        %v9026 = vpop.permute.xlu0 %9025
        %9027 = vrot.lane.b32.xlu0 %v8628, 64
        %v9028 = vpop.permute.xlu0 %9027
        %9029 = vrot.lane.b32.xlu0 %v8629, 64
        %v9030 = vpop.permute.xlu0 %9029
        %9031 = vrot.lane.b32.xlu0 %v8631, 64
        %v9032 = vpop.permute.xlu0 %9031
        %9033 = vrot.lane.b32.xlu0 %v8632, 64
        %v9034 = vpop.permute.xlu0 %9033
        %9035 = vrot.lane.b32.xlu0 %v8634, 64
        %v9036 = vpop.permute.xlu0 %9035
        %9037 = vrot.lane.b32.xlu0 %v8635, 64
        %v9038 = vpop.permute.xlu0 %9037
        %9039 = vrot.lane.b32.xlu0 %v8637, 64
        %v9040 = vpop.permute.xlu0 %9039
        %9041 = vrot.lane.b32.xlu0 %v8638, 64
        %v9042 = vpop.permute.xlu0 %9041
        %9043 = vrot.lane.b32.xlu0 %v8640, 64
        %v9044 = vpop.permute.xlu0 %9043
        %9045 = vrot.lane.b32.xlu0 %v8641, 64
        %v9046 = vpop.permute.xlu0 %9045
        %9047 = vrot.lane.b32.xlu0 %v8643, 64
        %v9048 = vpop.permute.xlu0 %9047
        %9049 = vrot.lane.b32.xlu0 %v8644, 64
        %v9050 = vpop.permute.xlu0 %9049
        %v9084 = vrot.slane %v8643, 1
        %v9085 = vrot.slane %v8644, 1
        %v9086 = vsel %vm609, %v9084, %v9085
        %v9087 = vrot.slane %v8645, 1
        %v9088 = vsel %vm609, %v9085, %v9087
        %v9121 = vrot.slane %v8643, 2
        %v9122 = vrot.slane %v8644, 2
        %v9123 = vsel %vm786, %v9121, %v9122
        %v9124 = vrot.slane %v8645, 2
        %v9125 = vsel %vm786, %v9122, %v9124
        %9126 = vrot.lane.b32.xlu0 %v8880, 64
        %v9127 = vpop.permute.xlu0 %9126
        %9128 = vrot.lane.b32.xlu0 %v8882, 64
        %v9129 = vpop.permute.xlu0 %9128
        %9130 = vrot.lane.b32.xlu0 %v8885, 64
        %v9131 = vpop.permute.xlu0 %9130
        %9132 = vrot.lane.b32.xlu0 %v8887, 64
        %v9133 = vpop.permute.xlu0 %9132
        %9134 = vrot.lane.b32.xlu0 %v8890, 64
        %v9135 = vpop.permute.xlu0 %9134
        %9136 = vrot.lane.b32.xlu0 %v8892, 64
        %v9137 = vpop.permute.xlu0 %9136
        %9138 = vrot.lane.b32.xlu0 %v8895, 64
        %v9139 = vpop.permute.xlu0 %9138
        %9140 = vrot.lane.b32.xlu0 %v8897, 64
        %v9141 = vpop.permute.xlu0 %9140
        %9142 = vrot.lane.b32.xlu0 %v8900, 64
        %v9143 = vpop.permute.xlu0 %9142
        %9144 = vrot.lane.b32.xlu0 %v8902, 64
        %v9145 = vpop.permute.xlu0 %9144
        %9146 = vrot.lane.b32.xlu0 %v8905, 64
        %v9147 = vpop.permute.xlu0 %9146
        %9148 = vrot.lane.b32.xlu0 %v8907, 64
        %v9149 = vpop.permute.xlu0 %9148
        %9150 = vrot.lane.b32.xlu0 %v8910, 64
        %v9151 = vpop.permute.xlu0 %9150
        %9152 = vrot.lane.b32.xlu0 %v8912, 64
        %v9153 = vpop.permute.xlu0 %9152
        %9154 = vrot.lane.b32.xlu0 %v8915, 64
        %v9155 = vpop.permute.xlu0 %9154
        %9156 = vrot.lane.b32.xlu0 %v8917, 64
        %v9157 = vpop.permute.xlu0 %9156
        %9158 = vrot.lane.b32.xlu0 %v8920, 64
        %v9159 = vpop.permute.xlu0 %9158
        %9160 = vrot.lane.b32.xlu0 %v8922, 64
        %v9161 = vpop.permute.xlu0 %9160
        %9162 = vrot.lane.b32.xlu0 %v8925, 64
        %v9163 = vpop.permute.xlu0 %9162
        %9164 = vrot.lane.b32.xlu0 %v8927, 64
        %v9165 = vpop.permute.xlu0 %9164
        %9166 = vrot.lane.b32.xlu0 %v8930, 64
        %v9167 = vpop.permute.xlu0 %9166
        %9168 = vrot.lane.b32.xlu0 %v8932, 64
        %v9169 = vpop.permute.xlu0 %9168
        %9170 = vrot.lane.b32.xlu0 %v8935, 64
        %v9171 = vpop.permute.xlu0 %9170
        %9172 = vrot.lane.b32.xlu0 %v8937, 64
        %v9173 = vpop.permute.xlu0 %9172
        %9174 = vrot.lane.b32.xlu0 %v8940, 64
        %v9175 = vpop.permute.xlu0 %9174
        %9176 = vrot.lane.b32.xlu0 %v8942, 64
        %v9177 = vpop.permute.xlu0 %9176
        %9178 = vrot.lane.b32.xlu0 %v8945, 64
        %v9179 = vpop.permute.xlu0 %9178
        %9180 = vrot.lane.b32.xlu0 %v8947, 64
        %v9181 = vpop.permute.xlu0 %9180
        %9182 = vrot.lane.b32.xlu0 %v8950, 64
        %v9183 = vpop.permute.xlu0 %9182
        %9184 = vrot.lane.b32.xlu0 %v8952, 64
        %v9185 = vpop.permute.xlu0 %9184
        %9186 = vrot.lane.b32.xlu0 %v9123, 64
        %v9187 = vpop.permute.xlu0 %9186
        %9188 = vrot.lane.b32.xlu0 %v9125, 64
        %v9189 = vpop.permute.xlu0 %9188
        %v9225 = vrot.slane %v8646, 1
        %v9226 = vrot.slane %v8647, 1
        %v9227 = vsel %vm609, %v9225, %v9226
        %v9228 = vrot.slane %v8648, 1
        %v9229 = vsel %vm609, %v9226, %v9228
        %9230 = vrot.lane.b32.xlu0 %v9086, 64
        %v9231 = vpop.permute.xlu0 %9230
        %9232 = vrot.lane.b32.xlu0 %v9088, 64
        %v9233 = vpop.permute.xlu0 %9232
        %9234 = vrot.lane.b32.xlu0 %v9227, 64
        %v9235 = vpop.permute.xlu0 %9234
        %9236 = vrot.lane.b32.xlu0 %v9229, 64
        %v9237 = vpop.permute.xlu0 %9236
        %v9242 = vrot.slane %v8646, 2
        %v9243 = vrot.slane %v8647, 2
        %v9244 = vsel %vm786, %v9242, %v9243
        %v9245 = vrot.slane %v8648, 2
        %v9246 = vsel %vm786, %v9243, %v9245
        %v9247 = vsel %vm3236, %v8595, %v8778
        %v9248 = vsel %vm3236, %v8596, %v8780
        %v9249 = vsel %vm3236, %v8598, %v8782
        %v9250 = vsel %vm3236, %v8599, %v8784
        %v9251 = vsel %vm3236, %v8601, %v8786
        %v9252 = vsel %vm3236, %v8602, %v8788
        %v9253 = vsel %vm3236, %v8604, %v8790
        %v9254 = vsel %vm3236, %v8605, %v8792
        %v9255 = vsel %vm3236, %v8607, %v8794
        %v9256 = vsel %vm3236, %v8608, %v8796
        %v9257 = vsel %vm3236, %v8610, %v8798
        %v9258 = vsel %vm3236, %v8611, %v8800
        %v9259 = vsel %vm3236, %v8613, %v8802
        %v9260 = vsel %vm3236, %v8614, %v8804
        %v9261 = vsel %vm3236, %v8616, %v8806
        %v9262 = vsel %vm3236, %v8617, %v8808
        %v9263 = vsel %vm3236, %v8619, %v8810
        %v9264 = vsel %vm3236, %v8620, %v8812
        %v9265 = vsel %vm3236, %v8622, %v8814
        %v9266 = vsel %vm3236, %v8623, %v8816
        %v9267 = vsel %vm3236, %v8625, %v8818
        %v9268 = vsel %vm3236, %v8626, %v8820
        %v9269 = vsel %vm3236, %v8628, %v8822
        %v9270 = vsel %vm3236, %v8629, %v8824
        %v9271 = vsel %vm3236, %v8631, %v8826
        %v9272 = vsel %vm3236, %v8632, %v8828
        %v9273 = vsel %vm3236, %v8634, %v8830
        %v9274 = vsel %vm3236, %v8635, %v8832
        %v9275 = vsel %vm3236, %v8637, %v8834
        %v9276 = vsel %vm3236, %v8638, %v8836
        %v9277 = vsel %vm3236, %v8640, %v8838
        %v9278 = vsel %vm3236, %v8641, %v8840
        %v9279 = vsel %vm3236, %v8875, %v8988
        %v9280 = vsel %vm3236, %v8877, %v8990
        %v9281 = vsel %vm3236, %v8880, %v8992
        %v9282 = vsel %vm3236, %v8882, %v8994
        %v9283 = vsel %vm3236, %v8885, %v8996
        %v9284 = vsel %vm3236, %v8887, %v8998
        %v9285 = vsel %vm3236, %v8890, %v9000
        %v9286 = vsel %vm3236, %v8892, %v9002
        %v9287 = vsel %vm3236, %v8895, %v9004
        %v9288 = vsel %vm3236, %v8897, %v9006
        %v9289 = vsel %vm3236, %v8900, %v9008
        %v9290 = vsel %vm3236, %v8902, %v9010
        %v9291 = vsel %vm3236, %v8905, %v9012
        %v9292 = vsel %vm3236, %v8907, %v9014
        %v9293 = vsel %vm3236, %v8910, %v9016
        %v9294 = vsel %vm3236, %v8912, %v9018
        %v9295 = vsel %vm3236, %v8915, %v9020
        %v9296 = vsel %vm3236, %v8917, %v9022
        %v9297 = vsel %vm3236, %v8920, %v9024
        %v9298 = vsel %vm3236, %v8922, %v9026
        %v9299 = vsel %vm3236, %v8925, %v9028
        %v9300 = vsel %vm3236, %v8927, %v9030
        %v9301 = vsel %vm3236, %v8930, %v9032
        %v9302 = vsel %vm3236, %v8932, %v9034
        %v9303 = vsel %vm3236, %v8935, %v9036
        %v9304 = vsel %vm3236, %v8937, %v9038
        %v9305 = vsel %vm3236, %v8940, %v9040
        %v9306 = vsel %vm3236, %v8942, %v9042
        %v9307 = vsel %vm3236, %v8945, %v9044
        %v9308 = vsel %vm3236, %v8947, %v9046
        %v9309 = vsel %vm3236, %v8950, %v9048
        %v9310 = vsel %vm3236, %v8952, %v9050
        %v9311 = vsel %vm3236, %v8704, %v9127
        %v9312 = vsel %vm3236, %v8706, %v9129
        %v9313 = vsel %vm3236, %v8709, %v9131
        %v9314 = vsel %vm3236, %v8711, %v9133
        %v9315 = vsel %vm3236, %v8714, %v9135
        %v9316 = vsel %vm3236, %v8716, %v9137
        %v9317 = vsel %vm3236, %v8719, %v9139
        %v9318 = vsel %vm3236, %v8721, %v9141
        %v9319 = vsel %vm3236, %v8724, %v9143
        %v9320 = vsel %vm3236, %v8726, %v9145
        %v9321 = vsel %vm3236, %v8729, %v9147
        %v9322 = vsel %vm3236, %v8731, %v9149
        %v9323 = vsel %vm3236, %v8734, %v9151
        %v9324 = vsel %vm3236, %v8736, %v9153
        %v9325 = vsel %vm3236, %v8739, %v9155
        %v9326 = vsel %vm3236, %v8741, %v9157
        %v9327 = vsel %vm3236, %v8744, %v9159
        %v9328 = vsel %vm3236, %v8746, %v9161
        %v9329 = vsel %vm3236, %v8749, %v9163
        %v9330 = vsel %vm3236, %v8751, %v9165
        %v9331 = vsel %vm3236, %v8754, %v9167
        %v9332 = vsel %vm3236, %v8756, %v9169
        %v9333 = vsel %vm3236, %v8759, %v9171
        %v9334 = vsel %vm3236, %v8761, %v9173
        %v9335 = vsel %vm3236, %v8764, %v9175
        %v9336 = vsel %vm3236, %v8766, %v9177
        %v9337 = vsel %vm3236, %v8769, %v9179
        %v9338 = vsel %vm3236, %v8771, %v9181
        %v9339 = vsel %vm3236, %v8774, %v9183
        %v9340 = vsel %vm3236, %v8776, %v9185
        %v9341 = vsel %vm3236, %v9086, %v9187
        %v9342 = vsel %vm3236, %v9088, %v9189
        %v9343 = vsel %vm3236, %v8643, %v9231
        %v9344 = vsel %vm3236, %v8644, %v9233
        %v9345 = vsel %vm3236, %v8646, %v9235
        %v9346 = vsel %vm3236, %v8647, %v9237
        %v9347 = vld [vmem:[%s7] sm:$0xff]
        %v9348 = vld [vmem:[%s7 + $0x8] sm:$0xff]
        %v9349 = vld [vmem:[%s7 + $0x10] sm:$0xff]
        %v9350 = vld [vmem:[%s7 + $0x18] sm:$0xff]
        %v9351 = vld [vmem:[%s7 + $0x20] sm:$0xff]
        %v9352 = vld [vmem:[%s7 + $0x28] sm:$0xff]
        %v9353 = vld [vmem:[%s7 + $0x30] sm:$0xff]
        %v9354 = vld [vmem:[%s7 + $0x38] sm:$0xff]
        %v9355 = vld [vmem:[%s7 + $0x40] sm:$0xff]
        %v9356 = vld [vmem:[%s7 + $0x48] sm:$0xff]
        %v9357 = vld [vmem:[%s7 + $0x50] sm:$0xff]
        %v9358 = vld [vmem:[%s7 + $0x58] sm:$0xff]
        %v9359 = vld [vmem:[%s7 + $0x60] sm:$0xff]
        %v9360 = vld [vmem:[%s7 + $0x68] sm:$0xff]
        %v9361 = vld [vmem:[%s7 + $0x70] sm:$0xff]
        %v9362 = vld [vmem:[%s7 + $0x78] sm:$0xff]
        %v9363 = vld [vmem:[%s7 + $0x80] sm:$0xff]
        %v9364 = vld [vmem:[%s7 + $0x88] sm:$0xff]
        %v9365 = vld [vmem:[%s7 + $0x90] sm:$0xff]
        %v9366 = vld [vmem:[%s7 + $0x98] sm:$0xff]
        %v9367 = vld [vmem:[%s7 + $0xa0] sm:$0xff]
        %v9368 = vld [vmem:[%s7 + $0xa8] sm:$0xff]
        %v9369 = vld [vmem:[%s7 + $0xb0] sm:$0xff]
        %v9370 = vld [vmem:[%s7 + $0xb8] sm:$0xff]
        %v9371 = vld [vmem:[%s7 + $0xc0] sm:$0xff]
        %v9372 = vld [vmem:[%s7 + $0xc8] sm:$0xff]
        %v9373 = vld [vmem:[%s7 + $0xd0] sm:$0xff]
        %v9374 = vld [vmem:[%s7 + $0xd8] sm:$0xff]
        %v9375 = vld [vmem:[%s7 + $0xe0] sm:$0xff]
        %v9376 = vld [vmem:[%s7 + $0xe8] sm:$0xff]
        %v9377 = vld [vmem:[%s7 + $0xf0] sm:$0xff]
        %v9378 = vld [vmem:[%s7 + $0xf8] sm:$0xff]
        %v9379 = vld [vmem:[%s7 + $0x100] sm:$0xff]
        %v9380 = vld [vmem:[%s7 + $0x108] sm:$0xff]
        %v9381 = vld [vmem:[%s7 + $0x110] sm:$0xff]
        %v9382 = vld [vmem:[%s7 + $0x118] sm:$0xff]
        %v9383 = vld [vmem:[%s7 + $0x120] sm:$0xff]
        %v9384 = vld [vmem:[%s7 + $0x128] sm:$0xff]
        %v9385 = vld [vmem:[%s7 + $0x130] sm:$0xff]
        %v9386 = vld [vmem:[%s7 + $0x138] sm:$0xff]
        %v9387 = vld [vmem:[%s7 + $0x140] sm:$0xff]
        %v9388 = vld [vmem:[%s7 + $0x148] sm:$0xff]
        %v9389 = vld [vmem:[%s7 + $0x150] sm:$0xff]
        %v9390 = vld [vmem:[%s7 + $0x158] sm:$0xff]
        %v9391 = vld [vmem:[%s7 + $0x160] sm:$0xff]
        %v9392 = vld [vmem:[%s7 + $0x168] sm:$0xff]
        %v9393 = vld [vmem:[%s7 + $0x170] sm:$0xff]
        %v9394 = vld [vmem:[%s7 + $0x178] sm:$0xff]
        %v9395 = vld [vmem:[%s7 + $0x180] sm:$0xff]
        %v9396 = vld [vmem:[%s7 + $0x188] sm:$0xff]
        %v9397 = vld [vmem:[%s7 + $0x190] sm:$0xff]
        %v9398 = vld [vmem:[%s7 + $0x198] sm:$0xff]
        %v9399 = vld [vmem:[%s7 + $0x1a0] sm:$0xff]
        %v9400 = vld [vmem:[%s7 + $0x1a8] sm:$0xff]
        %v9401 = vld [vmem:[%s7 + $0x1b0] sm:$0xff]
        %v9402 = vld [vmem:[%s7 + $0x1b8] sm:$0xff]
        %v9403 = vld [vmem:[%s7 + $0x1c0] sm:$0xff]
        %v9404 = vld [vmem:[%s7 + $0x1c8] sm:$0xff]
        %v9405 = vld [vmem:[%s7 + $0x1d0] sm:$0xff]
        %v9406 = vld [vmem:[%s7 + $0x1d8] sm:$0xff]
        %v9407 = vld [vmem:[%s7 + $0x1e0] sm:$0xff]
        %v9408 = vld [vmem:[%s7 + $0x1e8] sm:$0xff]
        %v9409 = vld [vmem:[%s7 + $0x1f0] sm:$0xff]
        %v9410 = vld [vmem:[%s7 + $0x1f8] sm:$0xff]
        %v9411 = vld [vmem:[%s7 + $0x200] sm:$0xff]
        %v9412 = vld [vmem:[%s7 + $0x208] sm:$0xff]
        %v9413 = vld [vmem:[%s7 + $0x210] sm:$0xff]
        %v9414 = vld [vmem:[%s7 + $0x218] sm:$0xff]
        %v9415 = vld [vmem:[%s7 + $0x220] sm:$0xff]
        %v9416 = vld [vmem:[%s7 + $0x228] sm:$0xff]
        %v9417 = vld [vmem:[%s7 + $0x230] sm:$0xff]
        %v9418 = vld [vmem:[%s7 + $0x238] sm:$0xff]
        %v9419 = vld [vmem:[#allocation10] sm:$0x1]
        %v9421 = vlaneseq
        %v9422 = vshrl.u32 %v9421, 7
        %v9423 = vsub.s32 0, %v9422
        %v9424 = vrot.slane %v9419, %v9423
        %v9426 = vsel %vm3236, %v8885, 0
        %v9428 = vsel %vm3236, %v8887, 0
        %v9430 = vsel %vm3236, %v8890, 0
        %v9432 = vsel %vm3236, %v8892, 0
        %v9434 = vsel %vm3236, %v8895, 0
        %v9436 = vsel %vm3236, %v8897, 0
        %v9438 = vsel %vm3236, %v8900, 0
        %v9440 = vsel %vm3236, %v8902, 0
        %v9442 = vsel %vm3236, %v8905, 0
        %v9444 = vsel %vm3236, %v8907, 0
        %v9446 = vsel %vm3236, %v8910, 0
        %v9448 = vsel %vm3236, %v8912, 0
        %v9450 = vsel %vm3236, %v8915, 0
        %v9452 = vsel %vm3236, %v8917, 0
        %v9454 = vsel %vm3236, %v8920, 0
        %v9456 = vsel %vm3236, %v8922, 0
        %v9458 = vsel %vm3236, %v8925, 0
        %v9460 = vsel %vm3236, %v8927, 0
        %v9462 = vsel %vm3236, %v8930, 0
        %v9464 = vsel %vm3236, %v8932, 0
        %v9466 = vsel %vm3236, %v8935, 0
        %v9468 = vsel %vm3236, %v8937, 0
        %v9470 = vsel %vm3236, %v8940, 0
        %v9472 = vsel %vm3236, %v8942, 0
        %v9474 = vsel %vm3236, %v8945, 0
        %v9476 = vsel %vm3236, %v8947, 0
        %v9478 = vsel %vm3236, %v8950, 0
        %v9480 = vsel %vm3236, %v8952, 0
        %v9482 = vsel %vm3236, %v9123, 0
        %v9484 = vsel %vm3236, %v9125, 0
        %v9486 = vsel %vm3236, %v9244, 0
        %v9488 = vsel %vm3236, %v9246, 0
        %9490 = vmatprep.subr.mxu0 0.0
        %9491 = vmatpush1.msra.mxu0 %v9347
        %9492 = vmatprep.subr.mxu0 0.0
        %9493 = vmatpush1.msra.mxu0 %v9348
        %9494 = vmatprep.subr.mxu0 0.0
        %9495 = vmatpush1.msra.mxu0 %v9349
        %9496 = vmatprep.subr.mxu0 0.0
        %9497 = vmatpush1.msra.mxu0 %v9350
        %9498 = vmatprep.subr.mxu0 0.0
        %9499 = vmatpush1.msra.mxu0 %v9351
        %9500 = vmatprep.subr.mxu0 0.0
        %9501 = vmatpush1.msra.mxu0 %v9352
        %9502 = vmatprep.subr.mxu0 0.0
        %9503 = vmatpush1.msra.mxu0 %v9353
        %9504 = vmatprep.subr.mxu0 0.0
        %9505 = vmatpush1.msra.mxu0 %v9354
        %9506 = vmatprep.subr.mxu0 0.0
        %9507 = vmatpush1.msra.mxu0 %v9355
        %9508 = vmatprep.subr.mxu0 0.0
        %9509 = vmatpush1.msra.mxu0 %v9356
        %9510 = vmatprep.subr.mxu0 0.0
        %9511 = vmatpush1.msra.mxu0 %v9357
        %9512 = vmatprep.subr.mxu0 0.0
        %9513 = vmatpush1.msra.mxu0 %v9358
        %9514 = vmatprep.subr.mxu0 0.0
        %9515 = vmatpush1.msra.mxu0 %v9359
        %9516 = vmatprep.subr.mxu0 0.0
        %9517 = vmatpush1.msra.mxu0 %v9360
        %9518 = vmatprep.subr.mxu0 0.0
        %9519 = vmatpush1.msra.mxu0 %v9361
        %9520 = vmatprep.subr.mxu0 0.0
        %9521 = vmatpush1.msra.mxu0 %v9362
        %9522 = vmatprep.subr.mxu0 0.0
        %9523 = vmatpush1.msra.mxu0 %v9363
        %9524 = vmatprep.subr.mxu0 0.0
        %9525 = vmatpush1.msra.mxu0 %v9364
        %9526 = vmatprep.subr.mxu0 0.0
        %9527 = vmatpush1.msra.mxu0 %v9365
        %9528 = vmatprep.subr.mxu0 0.0
        %9529 = vmatpush1.msra.mxu0 %v9366
        %9530 = vmatprep.subr.mxu0 0.0
        %9531 = vmatpush1.msra.mxu0 %v9367
        %9532 = vmatprep.subr.mxu0 0.0
        %9533 = vmatpush1.msra.mxu0 %v9368
        %9534 = vmatprep.subr.mxu0 0.0
        %9535 = vmatpush1.msra.mxu0 %v9369
        %9536 = vmatprep.subr.mxu0 0.0
        %9537 = vmatpush1.msra.mxu0 %v9370
        %9538 = vmatprep.subr.mxu0 0.0
        %9539 = vmatpush1.msra.mxu0 %v9371
        %9540 = vmatprep.subr.mxu0 0.0
        %9541 = vmatpush1.msra.mxu0 %v9372
        %9542 = vmatprep.subr.mxu0 0.0
        %9543 = vmatpush1.msra.mxu0 %v9373
        %9544 = vmatprep.subr.mxu0 0.0
        %9545 = vmatpush1.msra.mxu0 %v9374
        %9546 = vmatprep.subr.mxu0 0.0
        %9547 = vmatpush1.msra.mxu0 %v9375
        %9548 = vmatprep.subr.mxu0 0.0
        %9549 = vmatpush1.msra.mxu0 %v9376
        %9550 = vmatprep.subr.mxu0 0.0
        %9551 = vmatpush1.msra.mxu0 %v9377
        %9552 = vmatprep.subr.mxu0 0.0
        %9553 = vmatpush1.msra.mxu0 %v9378
        %9554 = vmatprep.mubr.f32.mxu0 %v9279
        %9555 = vmatmul.mubr.f32.gmra.mrb[0].mxu0 %v9247
        %v9556 = vpop.f32.mrb[0].mxu0
        %v9557 = vadd.f32 %v9424, %v9556
        %v9558 = vpop.f32.mrb[0].mxu0
        %9559 = vmatprep.mubr.f32.mxu0 %v9280
        %9560 = vmatmul.mubr.f32.gmra.mrb[0].mxu0 %v9248
        %v9561 = vpop.f32.mrb[0].mxu0
        %v9562 = vadd.f32 %v9424, %v9561
        %v9563 = vpop.f32.mrb[0].mxu0
        %9564 = vmatprep.mubr.f32.mxu0 %v9281
        %9565 = vmatmul.mubr.f32.gmra.mrb[0].mxu0 %v9249
        %v9566 = vpop.f32.mrb[0].mxu0
        %v9567 = vadd.f32 %v9424, %v9566
        %v9568 = vpop.f32.mrb[0].mxu0
        %9569 = vmatprep.mubr.f32.mxu0 %v9282
        %9570 = vmatmul.mubr.f32.gmra.mrb[0].mxu0 %v9250
        %v9571 = vpop.f32.mrb[0].mxu0
        %v9572 = vadd.f32 %v9424, %v9571
        %v9573 = vpop.f32.mrb[0].mxu0
        %9574 = vmatprep.mubr.f32.mxu0 %v9283
        %9575 = vmatmul.mubr.f32.gmra.mrb[0].mxu0 %v9251
        %v9576 = vpop.f32.mrb[0].mxu0
        %v9577 = vadd.f32 %v9424, %v9576
        %v9578 = vpop.f32.mrb[0].mxu0
        %9579 = vmatprep.mubr.f32.mxu0 %v9284
        %9580 = vmatmul.mubr.f32.gmra.mrb[0].mxu0 %v9252
        %v9581 = vpop.f32.mrb[0].mxu0
        %v9582 = vadd.f32 %v9424, %v9581
        %v9583 = vpop.f32.mrb[0].mxu0
        %9584 = vmatprep.mubr.f32.mxu0 %v9285
        %9585 = vmatmul.mubr.f32.gmra.mrb[0].mxu0 %v9253
        %v9586 = vpop.f32.mrb[0].mxu0
        %v9587 = vadd.f32 %v9424, %v9586
        %v9588 = vpop.f32.mrb[0].mxu0
        %9589 = vmatprep.mubr.f32.mxu0 %v9286
        %9590 = vmatmul.mubr.f32.gmra.mrb[0].mxu0 %v9254
        %v9591 = vpop.f32.mrb[0].mxu0
        %v9592 = vadd.f32 %v9424, %v9591
        %v9593 = vpop.f32.mrb[0].mxu0
        %9594 = vmatprep.mubr.f32.mxu0 %v9287
        %9595 = vmatmul.mubr.f32.gmra.mrb[0].mxu0 %v9255
        %v9596 = vpop.f32.mrb[0].mxu0
        %v9597 = vadd.f32 %v9424, %v9596
        %v9598 = vpop.f32.mrb[0].mxu0
        %9599 = vmatprep.mubr.f32.mxu0 %v9288
        %9600 = vmatmul.mubr.f32.gmra.mrb[0].mxu0 %v9256
        %v9601 = vpop.f32.mrb[0].mxu0
        %v9602 = vadd.f32 %v9424, %v9601
        %v9603 = vpop.f32.mrb[0].mxu0
        %9604 = vmatprep.mubr.f32.mxu0 %v9289
        %9605 = vmatmul.mubr.f32.gmra.mrb[0].mxu0 %v9257
        %v9606 = vpop.f32.mrb[0].mxu0
        %v9607 = vadd.f32 %v9424, %v9606
        %v9608 = vpop.f32.mrb[0].mxu0
        %9609 = vmatprep.mubr.f32.mxu0 %v9290
        %9610 = vmatmul.mubr.f32.gmra.mrb[0].mxu0 %v9258
        %v9611 = vpop.f32.mrb[0].mxu0
        %v9612 = vadd.f32 %v9424, %v9611
        %v9613 = vpop.f32.mrb[0].mxu0
        %9614 = vmatprep.mubr.f32.mxu0 %v9291
        %9615 = vmatmul.mubr.f32.gmra.mrb[0].mxu0 %v9259
        %v9616 = vpop.f32.mrb[0].mxu0
        %v9617 = vadd.f32 %v9424, %v9616
        %v9618 = vpop.f32.mrb[0].mxu0
        %9619 = vmatprep.mubr.f32.mxu0 %v9292
        %9620 = vmatmul.mubr.f32.gmra.mrb[0].mxu0 %v9260
        %v9621 = vpop.f32.mrb[0].mxu0
        %v9622 = vadd.f32 %v9424, %v9621
        %v9623 = vpop.f32.mrb[0].mxu0
        %9624 = vmatprep.mubr.f32.mxu0 %v9293
        %9625 = vmatmul.mubr.f32.gmra.mrb[0].mxu0 %v9261
        %v9626 = vpop.f32.mrb[0].mxu0
        %v9627 = vadd.f32 %v9424, %v9626
        %v9628 = vpop.f32.mrb[0].mxu0
        %9629 = vmatprep.mubr.f32.mxu0 %v9294
        %9630 = vmatmul.mubr.f32.gmra.mrb[0].mxu0 %v9262
        %v9631 = vpop.f32.mrb[0].mxu0
        %v9632 = vadd.f32 %v9424, %v9631
        %v9633 = vpop.f32.mrb[0].mxu0
        %9634 = vmatprep.mubr.f32.mxu0 %v9295
        %9635 = vmatmul.mubr.f32.gmra.mrb[0].mxu0 %v9263
        %v9636 = vpop.f32.mrb[0].mxu0
        %v9637 = vadd.f32 %v9424, %v9636
        %v9638 = vpop.f32.mrb[0].mxu0
        %9639 = vmatprep.mubr.f32.mxu0 %v9296
        %9640 = vmatmul.mubr.f32.gmra.mrb[0].mxu0 %v9264
        %v9641 = vpop.f32.mrb[0].mxu0
        %v9642 = vadd.f32 %v9424, %v9641
        %v9643 = vpop.f32.mrb[0].mxu0
        %9644 = vmatprep.mubr.f32.mxu0 %v9297
        %9645 = vmatmul.mubr.f32.gmra.mrb[0].mxu0 %v9265
        %v9646 = vpop.f32.mrb[0].mxu0
        %v9647 = vadd.f32 %v9424, %v9646
        %v9648 = vpop.f32.mrb[0].mxu0
        %9649 = vmatprep.mubr.f32.mxu0 %v9298
        %9650 = vmatmul.mubr.f32.gmra.mrb[0].mxu0 %v9266
        %v9651 = vpop.f32.mrb[0].mxu0
        %v9652 = vadd.f32 %v9424, %v9651
        %v9653 = vpop.f32.mrb[0].mxu0
        %9654 = vmatprep.mubr.f32.mxu0 %v9299
        %9655 = vmatmul.mubr.f32.gmra.mrb[0].mxu0 %v9267
        %v9656 = vpop.f32.mrb[0].mxu0
        %v9657 = vadd.f32 %v9424, %v9656
        %v9658 = vpop.f32.mrb[0].mxu0
        %9659 = vmatprep.mubr.f32.mxu0 %v9300
        %9660 = vmatmul.mubr.f32.gmra.mrb[0].mxu0 %v9268
        %v9661 = vpop.f32.mrb[0].mxu0
        %v9662 = vadd.f32 %v9424, %v9661
        %v9663 = vpop.f32.mrb[0].mxu0
        %9664 = vmatprep.mubr.f32.mxu0 %v9301
        %9665 = vmatmul.mubr.f32.gmra.mrb[0].mxu0 %v9269
        %v9666 = vpop.f32.mrb[0].mxu0
        %v9667 = vadd.f32 %v9424, %v9666
        %v9668 = vpop.f32.mrb[0].mxu0
        %9669 = vmatprep.mubr.f32.mxu0 %v9302
        %9670 = vmatmul.mubr.f32.gmra.mrb[0].mxu0 %v9270
        %v9671 = vpop.f32.mrb[0].mxu0
        %v9672 = vadd.f32 %v9424, %v9671
        %v9673 = vpop.f32.mrb[0].mxu0
        %9674 = vmatprep.mubr.f32.mxu0 %v9303
        %9675 = vmatmul.mubr.f32.gmra.mrb[0].mxu0 %v9271
        %v9676 = vpop.f32.mrb[0].mxu0
        %v9677 = vadd.f32 %v9424, %v9676
        %v9678 = vpop.f32.mrb[0].mxu0
        %9679 = vmatprep.mubr.f32.mxu0 %v9304
        %9680 = vmatmul.mubr.f32.gmra.mrb[0].mxu0 %v9272
        %v9681 = vpop.f32.mrb[0].mxu0
        %v9682 = vadd.f32 %v9424, %v9681
        %v9683 = vpop.f32.mrb[0].mxu0
        %9684 = vmatprep.mubr.f32.mxu0 %v9305
        %9685 = vmatmul.mubr.f32.gmra.mrb[0].mxu0 %v9273
        %v9686 = vpop.f32.mrb[0].mxu0
        %v9687 = vadd.f32 %v9424, %v9686
        %v9688 = vpop.f32.mrb[0].mxu0
        %9689 = vmatprep.mubr.f32.mxu0 %v9306
        %9690 = vmatmul.mubr.f32.gmra.mrb[0].mxu0 %v9274
        %v9691 = vpop.f32.mrb[0].mxu0
        %v9692 = vadd.f32 %v9424, %v9691
        %v9693 = vpop.f32.mrb[0].mxu0
        %9694 = vmatprep.mubr.f32.mxu0 %v9307
        %9695 = vmatmul.mubr.f32.gmra.mrb[0].mxu0 %v9275
        %v9696 = vpop.f32.mrb[0].mxu0
        %v9697 = vadd.f32 %v9424, %v9696
        %v9698 = vpop.f32.mrb[0].mxu0
        %9699 = vmatprep.mubr.f32.mxu0 %v9308
        %9700 = vmatmul.mubr.f32.gmra.mrb[0].mxu0 %v9276
        %v9701 = vpop.f32.mrb[0].mxu0
        %v9702 = vadd.f32 %v9424, %v9701
        %v9703 = vpop.f32.mrb[0].mxu0
        %9704 = vmatprep.mubr.f32.mxu0 %v9309
        %9705 = vmatmul.mubr.f32.gmra.mrb[0].mxu0 %v9277
        %v9706 = vpop.f32.mrb[0].mxu0
        %v9707 = vadd.f32 %v9424, %v9706
        %v9708 = vpop.f32.mrb[0].mxu0
        %9709 = vmatprep.mubr.f32.mxu0 %v9310
        %9710 = vmatmul.mubr.f32.gmra.mrb[0].mxu0 %v9278
        %v9711 = vpop.f32.mrb[0].mxu0
        %v9712 = vadd.f32 %v9424, %v9711
        %v9713 = vpop.f32.mrb[0].mxu0
        %9714 = vdwg.mxu0
        %9715 = vmatprep.subr.mxu0 0.0
        %9716 = vmatpush1.msra.mxu0 %v9379
        %9717 = vmatprep.subr.mxu0 0.0
        %9718 = vmatpush1.msra.mxu0 %v9380
        %9719 = vmatprep.subr.mxu0 0.0
        %9720 = vmatpush1.msra.mxu0 %v9381
        %9721 = vmatprep.subr.mxu0 0.0
        %9722 = vmatpush1.msra.mxu0 %v9382
        %9723 = vmatprep.subr.mxu0 0.0
        %9724 = vmatpush1.msra.mxu0 %v9383
        %9725 = vmatprep.subr.mxu0 0.0
        %9726 = vmatpush1.msra.mxu0 %v9384
        %9727 = vmatprep.subr.mxu0 0.0
        %9728 = vmatpush1.msra.mxu0 %v9385
        %9729 = vmatprep.subr.mxu0 0.0
        %9730 = vmatpush1.msra.mxu0 %v9386
        %9731 = vmatprep.subr.mxu0 0.0
        %9732 = vmatpush1.msra.mxu0 %v9387
        %9733 = vmatprep.subr.mxu0 0.0
        %9734 = vmatpush1.msra.mxu0 %v9388
        %9735 = vmatprep.subr.mxu0 0.0
        %9736 = vmatpush1.msra.mxu0 %v9389
        %9737 = vmatprep.subr.mxu0 0.0
        %9738 = vmatpush1.msra.mxu0 %v9390
        %9739 = vmatprep.subr.mxu0 0.0
        %9740 = vmatpush1.msra.mxu0 %v9391
        %9741 = vmatprep.subr.mxu0 0.0
        %9742 = vmatpush1.msra.mxu0 %v9392
        %9743 = vmatprep.subr.mxu0 0.0
        %9744 = vmatpush1.msra.mxu0 %v9393
        %9745 = vmatprep.subr.mxu0 0.0
        %9746 = vmatpush1.msra.mxu0 %v9394
        %9747 = vmatprep.subr.mxu0 0.0
        %9748 = vmatpush1.msra.mxu0 %v9395
        %9749 = vmatprep.subr.mxu0 0.0
        %9750 = vmatpush1.msra.mxu0 %v9396
        %9751 = vmatprep.subr.mxu0 0.0
        %9752 = vmatpush1.msra.mxu0 %v9397
        %9753 = vmatprep.subr.mxu0 0.0
        %9754 = vmatpush1.msra.mxu0 %v9398
        %9755 = vmatprep.subr.mxu0 0.0
        %9756 = vmatpush1.msra.mxu0 %v9399
        %9757 = vmatprep.subr.mxu0 0.0
        %9758 = vmatpush1.msra.mxu0 %v9400
        %9759 = vmatprep.subr.mxu0 0.0
        %9760 = vmatpush1.msra.mxu0 %v9401
        %9761 = vmatprep.subr.mxu0 0.0
        %9762 = vmatpush1.msra.mxu0 %v9402
        %9763 = vmatprep.subr.mxu0 0.0
        %9764 = vmatpush1.msra.mxu0 %v9403
        %9765 = vmatprep.subr.mxu0 0.0
        %9766 = vmatpush1.msra.mxu0 %v9404
        %9767 = vmatprep.subr.mxu0 0.0
        %9768 = vmatpush1.msra.mxu0 %v9405
        %9769 = vmatprep.subr.mxu0 0.0
        %9770 = vmatpush1.msra.mxu0 %v9406
        %9771 = vmatprep.subr.mxu0 0.0
        %9772 = vmatpush1.msra.mxu0 %v9407
        %9773 = vmatprep.subr.mxu0 0.0
        %9774 = vmatpush1.msra.mxu0 %v9408
        %9775 = vmatprep.subr.mxu0 0.0
        %9776 = vmatpush1.msra.mxu0 %v9409
        %9777 = vmatprep.subr.mxu0 0.0
        %9778 = vmatpush1.msra.mxu0 %v9410
        %9779 = vmatprep.mubr.f32.mxu0 %v9251
        %9780 = vmatmul.mubr.f32.gmra.mrb[0].mxu0 %v9311
        %v9781 = vpop.f32.mrb[0].mxu0
        %v9782 = vadd.f32 %v9557, %v9781
        %v9783 = vpop.f32.mrb[0].mxu0
        %9784 = vmatprep.mubr.f32.mxu0 %v9252
        %9785 = vmatmul.mubr.f32.gmra.mrb[0].mxu0 %v9312
        %v9786 = vpop.f32.mrb[0].mxu0
        %v9787 = vadd.f32 %v9562, %v9786
        %v9788 = vpop.f32.mrb[0].mxu0
        %9789 = vmatprep.mubr.f32.mxu0 %v9253
        %9790 = vmatmul.mubr.f32.gmra.mrb[0].mxu0 %v9313
        %v9791 = vpop.f32.mrb[0].mxu0
        %v9792 = vadd.f32 %v9567, %v9791
        %v9793 = vpop.f32.mrb[0].mxu0
        %9794 = vmatprep.mubr.f32.mxu0 %v9254
        %9795 = vmatmul.mubr.f32.gmra.mrb[0].mxu0 %v9314
        %v9796 = vpop.f32.mrb[0].mxu0
        %v9797 = vadd.f32 %v9572, %v9796
        %v9798 = vpop.f32.mrb[0].mxu0
        %9799 = vmatprep.mubr.f32.mxu0 %v9255
        %9800 = vmatmul.mubr.f32.gmra.mrb[0].mxu0 %v9315
        %v9801 = vpop.f32.mrb[0].mxu0
        %v9802 = vadd.f32 %v9577, %v9801
        %v9803 = vpop.f32.mrb[0].mxu0
        %9804 = vmatprep.mubr.f32.mxu0 %v9256
        %9805 = vmatmul.mubr.f32.gmra.mrb[0].mxu0 %v9316
        %v9806 = vpop.f32.mrb[0].mxu0
        %v9807 = vadd.f32 %v9582, %v9806
        %v9808 = vpop.f32.mrb[0].mxu0
        %9809 = vmatprep.mubr.f32.mxu0 %v9257
        %9810 = vmatmul.mubr.f32.gmra.mrb[0].mxu0 %v9317
        %v9811 = vpop.f32.mrb[0].mxu0
        %v9812 = vadd.f32 %v9587, %v9811
        %v9813 = vpop.f32.mrb[0].mxu0
        %9814 = vmatprep.mubr.f32.mxu0 %v9258
        %9815 = vmatmul.mubr.f32.gmra.mrb[0].mxu0 %v9318
        %v9816 = vpop.f32.mrb[0].mxu0
        %v9817 = vadd.f32 %v9592, %v9816
        %v9818 = vpop.f32.mrb[0].mxu0
        %9819 = vmatprep.mubr.f32.mxu0 %v9259
        %9820 = vmatmul.mubr.f32.gmra.mrb[0].mxu0 %v9319
        %v9821 = vpop.f32.mrb[0].mxu0
        %v9822 = vadd.f32 %v9597, %v9821
        %v9823 = vpop.f32.mrb[0].mxu0
        %9824 = vmatprep.mubr.f32.mxu0 %v9260
        %9825 = vmatmul.mubr.f32.gmra.mrb[0].mxu0 %v9320
        %v9826 = vpop.f32.mrb[0].mxu0
        %v9827 = vadd.f32 %v9602, %v9826
        %v9828 = vpop.f32.mrb[0].mxu0
        %9829 = vmatprep.mubr.f32.mxu0 %v9261
        %9830 = vmatmul.mubr.f32.gmra.mrb[0].mxu0 %v9321
        %v9831 = vpop.f32.mrb[0].mxu0
        %v9832 = vadd.f32 %v9607, %v9831
        %v9833 = vpop.f32.mrb[0].mxu0
        %9834 = vmatprep.mubr.f32.mxu0 %v9262
        %9835 = vmatmul.mubr.f32.gmra.mrb[0].mxu0 %v9322
        %v9836 = vpop.f32.mrb[0].mxu0
        %v9837 = vadd.f32 %v9612, %v9836
        %v9838 = vpop.f32.mrb[0].mxu0
        %9839 = vmatprep.mubr.f32.mxu0 %v9263
        %9840 = vmatmul.mubr.f32.gmra.mrb[0].mxu0 %v9323
        %v9841 = vpop.f32.mrb[0].mxu0
        %v9842 = vadd.f32 %v9617, %v9841
        %v9843 = vpop.f32.mrb[0].mxu0
        %9844 = vmatprep.mubr.f32.mxu0 %v9264
        %9845 = vmatmul.mubr.f32.gmra.mrb[0].mxu0 %v9324
        %v9846 = vpop.f32.mrb[0].mxu0
        %v9847 = vadd.f32 %v9622, %v9846
        %v9848 = vpop.f32.mrb[0].mxu0
        %9849 = vmatprep.mubr.f32.mxu0 %v9265
        %9850 = vmatmul.mubr.f32.gmra.mrb[0].mxu0 %v9325
        %v9851 = vpop.f32.mrb[0].mxu0
        %v9852 = vadd.f32 %v9627, %v9851
        %v9853 = vpop.f32.mrb[0].mxu0
        %9854 = vmatprep.mubr.f32.mxu0 %v9266
        %9855 = vmatmul.mubr.f32.gmra.mrb[0].mxu0 %v9326
        %v9856 = vpop.f32.mrb[0].mxu0
        %v9857 = vadd.f32 %v9632, %v9856
        %v9858 = vpop.f32.mrb[0].mxu0
        %9859 = vmatprep.mubr.f32.mxu0 %v9267
        %9860 = vmatmul.mubr.f32.gmra.mrb[0].mxu0 %v9327
        %v9861 = vpop.f32.mrb[0].mxu0
        %v9862 = vadd.f32 %v9637, %v9861
        %v9863 = vpop.f32.mrb[0].mxu0
        %9864 = vmatprep.mubr.f32.mxu0 %v9268
        %9865 = vmatmul.mubr.f32.gmra.mrb[0].mxu0 %v9328
        %v9866 = vpop.f32.mrb[0].mxu0
        %v9867 = vadd.f32 %v9642, %v9866
        %v9868 = vpop.f32.mrb[0].mxu0
        %9869 = vmatprep.mubr.f32.mxu0 %v9269
        %9870 = vmatmul.mubr.f32.gmra.mrb[0].mxu0 %v9329
        %v9871 = vpop.f32.mrb[0].mxu0
        %v9872 = vadd.f32 %v9647, %v9871
        %v9873 = vpop.f32.mrb[0].mxu0
        %9874 = vmatprep.mubr.f32.mxu0 %v9270
        %9875 = vmatmul.mubr.f32.gmra.mrb[0].mxu0 %v9330
        %v9876 = vpop.f32.mrb[0].mxu0
        %v9877 = vadd.f32 %v9652, %v9876
        %v9878 = vpop.f32.mrb[0].mxu0
        %9879 = vmatprep.mubr.f32.mxu0 %v9271
        %9880 = vmatmul.mubr.f32.gmra.mrb[0].mxu0 %v9331
        %v9881 = vpop.f32.mrb[0].mxu0
        %v9882 = vadd.f32 %v9657, %v9881
        %v9883 = vpop.f32.mrb[0].mxu0
        %9884 = vmatprep.mubr.f32.mxu0 %v9272
        %9885 = vmatmul.mubr.f32.gmra.mrb[0].mxu0 %v9332
        %v9886 = vpop.f32.mrb[0].mxu0
        %v9887 = vadd.f32 %v9662, %v9886
        %v9888 = vpop.f32.mrb[0].mxu0
        %9889 = vmatprep.mubr.f32.mxu0 %v9273
        %9890 = vmatmul.mubr.f32.gmra.mrb[0].mxu0 %v9333
        %v9891 = vpop.f32.mrb[0].mxu0
        %v9892 = vadd.f32 %v9667, %v9891
        %v9893 = vpop.f32.mrb[0].mxu0
        %9894 = vmatprep.mubr.f32.mxu0 %v9274
        %9895 = vmatmul.mubr.f32.gmra.mrb[0].mxu0 %v9334
        %v9896 = vpop.f32.mrb[0].mxu0
        %v9897 = vadd.f32 %v9672, %v9896
        %v9898 = vpop.f32.mrb[0].mxu0
        %9899 = vmatprep.mubr.f32.mxu0 %v9275
        %9900 = vmatmul.mubr.f32.gmra.mrb[0].mxu0 %v9335
        %v9901 = vpop.f32.mrb[0].mxu0
        %v9902 = vadd.f32 %v9677, %v9901
        %v9903 = vpop.f32.mrb[0].mxu0
        %9904 = vmatprep.mubr.f32.mxu0 %v9276
        %9905 = vmatmul.mubr.f32.gmra.mrb[0].mxu0 %v9336
        %v9906 = vpop.f32.mrb[0].mxu0
        %v9907 = vadd.f32 %v9682, %v9906
        %v9908 = vpop.f32.mrb[0].mxu0
        %9909 = vmatprep.mubr.f32.mxu0 %v9277
        %9910 = vmatmul.mubr.f32.gmra.mrb[0].mxu0 %v9337
        %v9911 = vpop.f32.mrb[0].mxu0
        %v9912 = vadd.f32 %v9687, %v9911
        %v9913 = vpop.f32.mrb[0].mxu0
        %9914 = vmatprep.mubr.f32.mxu0 %v9278
        %9915 = vmatmul.mubr.f32.gmra.mrb[0].mxu0 %v9338
        %v9916 = vpop.f32.mrb[0].mxu0
        %v9917 = vadd.f32 %v9692, %v9916
        %v9918 = vpop.f32.mrb[0].mxu0
        %9919 = vmatprep.mubr.f32.mxu0 %v9343
        %9920 = vmatmul.mubr.f32.gmra.mrb[0].mxu0 %v9339
        %v9921 = vpop.f32.mrb[0].mxu0
        %v9922 = vadd.f32 %v9697, %v9921
        %v9923 = vpop.f32.mrb[0].mxu0
        %9924 = vmatprep.mubr.f32.mxu0 %v9344
        %9925 = vmatmul.mubr.f32.gmra.mrb[0].mxu0 %v9340
        %v9926 = vpop.f32.mrb[0].mxu0
        %v9927 = vadd.f32 %v9702, %v9926
        %v9928 = vpop.f32.mrb[0].mxu0
        %9929 = vmatprep.mubr.f32.mxu0 %v9345
        %9930 = vmatmul.mubr.f32.gmra.mrb[0].mxu0 %v9341
        %v9931 = vpop.f32.mrb[0].mxu0
        %v9932 = vadd.f32 %v9707, %v9931
        %v9933 = vpop.f32.mrb[0].mxu0
        %9934 = vmatprep.mubr.f32.mxu0 %v9346
        %9935 = vmatmul.mubr.f32.gmra.mrb[0].mxu0 %v9342
        %v9936 = vpop.f32.mrb[0].mxu0
        %v9937 = vadd.f32 %v9712, %v9936
        %v9938 = vpop.f32.mrb[0].mxu0
        %9939 = vdwg.mxu0
        %9940 = vmatprep.subr.mxu0 0.0
        %9941 = vmatpush1.msra.mxu0 %v9411
        %9942 = vmatprep.subr.mxu0 0.0
        %9943 = vmatpush1.msra.mxu0 %v9412
        %9944 = vmatprep.subr.mxu0 0.0
        %9945 = vmatpush1.msra.mxu0 %v9413
        %9946 = vmatprep.subr.mxu0 0.0
        %9947 = vmatpush1.msra.mxu0 %v9414
        %9948 = vmatprep.subr.mxu0 0.0
        %9949 = vmatpush1.msra.mxu0 %v9415
        %9950 = vmatprep.subr.mxu0 0.0
        %9951 = vmatpush1.msra.mxu0 %v9416
        %9952 = vmatprep.subr.mxu0 0.0
        %9953 = vmatpush1.msra.mxu0 %v9417
        %9954 = vmatprep.subr.mxu0 0.0
        %9955 = vmatpush1.msra.mxu0 %v9418
        %9956 = vmatprep.subr.mxu0 0.0
        %9957 = vmatpush1.msra.mxu0 0.0
        %9958 = vmatprep.subr.mxu0 0.0
        %9959 = vmatpush1.msra.mxu0 0.0
        %9960 = vmatprep.subr.mxu0 0.0
        %9961 = vmatpush1.msra.mxu0 0.0
        %9962 = vmatprep.subr.mxu0 0.0
        %9963 = vmatpush1.msra.mxu0 0.0
        %9964 = vmatprep.subr.mxu0 0.0
        %9965 = vmatpush1.msra.mxu0 0.0
        %9966 = vmatprep.subr.mxu0 0.0
        %9967 = vmatpush1.msra.mxu0 0.0
        %9968 = vmatprep.subr.mxu0 0.0
        %9969 = vmatpush1.msra.mxu0 0.0
        %9970 = vmatprep.subr.mxu0 0.0
        %9971 = vmatpush1.msra.mxu0 0.0
        %9972 = vmatprep.subr.mxu0 0.0
        %9973 = vmatpush1.msra.mxu0 0.0
        %9974 = vmatprep.subr.mxu0 0.0
        %9975 = vmatpush1.msra.mxu0 0.0
        %9976 = vmatprep.subr.mxu0 0.0
        %9977 = vmatpush1.msra.mxu0 0.0
        %9978 = vmatprep.subr.mxu0 0.0
        %9979 = vmatpush1.msra.mxu0 0.0
        %9980 = vmatprep.subr.mxu0 0.0
        %9981 = vmatpush1.msra.mxu0 0.0
        %9982 = vmatprep.subr.mxu0 0.0
        %9983 = vmatpush1.msra.mxu0 0.0
        %9984 = vmatprep.subr.mxu0 0.0
        %9985 = vmatpush1.msra.mxu0 0.0
        %9986 = vmatprep.subr.mxu0 0.0
        %9987 = vmatpush1.msra.mxu0 0.0
        %9988 = vmatprep.subr.mxu0 0.0
        %9989 = vmatpush1.msra.mxu0 0.0
        %9990 = vmatprep.subr.mxu0 0.0
        %9991 = vmatpush1.msra.mxu0 0.0
        %9992 = vmatprep.subr.mxu0 0.0
        %9993 = vmatpush1.msra.mxu0 0.0
        %9994 = vmatprep.subr.mxu0 0.0
        %9995 = vmatpush1.msra.mxu0 0.0
        %9996 = vmatprep.subr.mxu0 0.0
        %9997 = vmatpush1.msra.mxu0 0.0
        %9998 = vmatprep.subr.mxu0 0.0
        %9999 = vmatpush1.msra.mxu0 0.0
        %10000 = vmatprep.subr.mxu0 0.0
        %10001 = vmatpush1.msra.mxu0 0.0
        %10002 = vmatprep.subr.mxu0 0.0
        %10003 = vmatpush1.msra.mxu0 0.0
        %10004 = vmatprep.mubr.f32.mxu0 0.0
        %10005 = vmatmul.mubr.f32.gmra.mrb[0].mxu0 %v9426
        %v10006 = vpop.f32.mrb[0].mxu0
        %v10007 = vadd.f32 %v9782, %v10006
        %v10008 = vpop.f32.mrb[0].mxu0
        %10009 = vmatprep.mubr.f32.mxu0 0.0
        %10010 = vmatmul.mubr.f32.gmra.mrb[0].mxu0 %v9428
        %v10011 = vpop.f32.mrb[0].mxu0
        %v10012 = vadd.f32 %v9787, %v10011
        %v10013 = vpop.f32.mrb[0].mxu0
        %10014 = vmatprep.mubr.f32.mxu0 0.0
        %10015 = vmatmul.mubr.f32.gmra.mrb[0].mxu0 %v9430
        %v10016 = vpop.f32.mrb[0].mxu0
        %v10017 = vadd.f32 %v9792, %v10016
        %v10018 = vpop.f32.mrb[0].mxu0
        %10019 = vmatprep.mubr.f32.mxu0 0.0
        %10020 = vmatmul.mubr.f32.gmra.mrb[0].mxu0 %v9432
        %v10021 = vpop.f32.mrb[0].mxu0
        %v10022 = vadd.f32 %v9797, %v10021
        %v10023 = vpop.f32.mrb[0].mxu0
        %10024 = vmatprep.mubr.f32.mxu0 0.0
        %10025 = vmatmul.mubr.f32.gmra.mrb[0].mxu0 %v9434
        %v10026 = vpop.f32.mrb[0].mxu0
        %v10027 = vadd.f32 %v9802, %v10026
        %v10028 = vpop.f32.mrb[0].mxu0
        %10029 = vmatprep.mubr.f32.mxu0 0.0
        %10030 = vmatmul.mubr.f32.gmra.mrb[0].mxu0 %v9436
        %v10031 = vpop.f32.mrb[0].mxu0
        %v10032 = vadd.f32 %v9807, %v10031
        %v10033 = vpop.f32.mrb[0].mxu0
        %10034 = vmatprep.mubr.f32.mxu0 0.0
        %10035 = vmatmul.mubr.f32.gmra.mrb[0].mxu0 %v9438
        %v10036 = vpop.f32.mrb[0].mxu0
        %v10037 = vadd.f32 %v9812, %v10036
        %v10038 = vpop.f32.mrb[0].mxu0
        %10039 = vmatprep.mubr.f32.mxu0 0.0
        %10040 = vmatmul.mubr.f32.gmra.mrb[0].mxu0 %v9440
        %v10041 = vpop.f32.mrb[0].mxu0
        %v10042 = vadd.f32 %v9817, %v10041
        %v10043 = vpop.f32.mrb[0].mxu0
        %10044 = vmatprep.mubr.f32.mxu0 0.0
        %10045 = vmatmul.mubr.f32.gmra.mrb[0].mxu0 %v9442
        %v10046 = vpop.f32.mrb[0].mxu0
        %v10047 = vadd.f32 %v9822, %v10046
        %v10048 = vpop.f32.mrb[0].mxu0
        %10049 = vmatprep.mubr.f32.mxu0 0.0
        %10050 = vmatmul.mubr.f32.gmra.mrb[0].mxu0 %v9444
        %v10051 = vpop.f32.mrb[0].mxu0
        %v10052 = vadd.f32 %v9827, %v10051
        %v10053 = vpop.f32.mrb[0].mxu0
        %10054 = vmatprep.mubr.f32.mxu0 0.0
        %10055 = vmatmul.mubr.f32.gmra.mrb[0].mxu0 %v9446
        %v10056 = vpop.f32.mrb[0].mxu0
        %v10057 = vadd.f32 %v9832, %v10056
        %v10058 = vpop.f32.mrb[0].mxu0
        %10059 = vmatprep.mubr.f32.mxu0 0.0
        %10060 = vmatmul.mubr.f32.gmra.mrb[0].mxu0 %v9448
        %v10061 = vpop.f32.mrb[0].mxu0
        %v10062 = vadd.f32 %v9837, %v10061
        %v10063 = vpop.f32.mrb[0].mxu0
        %10064 = vmatprep.mubr.f32.mxu0 0.0
        %10065 = vmatmul.mubr.f32.gmra.mrb[0].mxu0 %v9450
        %v10066 = vpop.f32.mrb[0].mxu0
        %v10067 = vadd.f32 %v9842, %v10066
        %v10068 = vpop.f32.mrb[0].mxu0
        %10069 = vmatprep.mubr.f32.mxu0 0.0
        %10070 = vmatmul.mubr.f32.gmra.mrb[0].mxu0 %v9452
        %v10071 = vpop.f32.mrb[0].mxu0
        %v10072 = vadd.f32 %v9847, %v10071
        %v10073 = vpop.f32.mrb[0].mxu0
        %10074 = vmatprep.mubr.f32.mxu0 0.0
        %10075 = vmatmul.mubr.f32.gmra.mrb[0].mxu0 %v9454
        %v10076 = vpop.f32.mrb[0].mxu0
        %v10077 = vadd.f32 %v9852, %v10076
        %v10078 = vpop.f32.mrb[0].mxu0
        %10079 = vmatprep.mubr.f32.mxu0 0.0
        %10080 = vmatmul.mubr.f32.gmra.mrb[0].mxu0 %v9456
        %v10081 = vpop.f32.mrb[0].mxu0
        %v10082 = vadd.f32 %v9857, %v10081
        %v10083 = vpop.f32.mrb[0].mxu0
        %10084 = vmatprep.mubr.f32.mxu0 0.0
        %10085 = vmatmul.mubr.f32.gmra.mrb[0].mxu0 %v9458
        %v10086 = vpop.f32.mrb[0].mxu0
        %v10087 = vadd.f32 %v9862, %v10086
        %v10088 = vpop.f32.mrb[0].mxu0
        %10089 = vmatprep.mubr.f32.mxu0 0.0
        %10090 = vmatmul.mubr.f32.gmra.mrb[0].mxu0 %v9460
        %v10091 = vpop.f32.mrb[0].mxu0
        %v10092 = vadd.f32 %v9867, %v10091
        %v10093 = vpop.f32.mrb[0].mxu0
        %10094 = vmatprep.mubr.f32.mxu0 0.0
        %10095 = vmatmul.mubr.f32.gmra.mrb[0].mxu0 %v9462
        %v10096 = vpop.f32.mrb[0].mxu0
        %v10097 = vadd.f32 %v9872, %v10096
        %v10098 = vpop.f32.mrb[0].mxu0
        %10099 = vmatprep.mubr.f32.mxu0 0.0
        %10100 = vmatmul.mubr.f32.gmra.mrb[0].mxu0 %v9464
        %v10101 = vpop.f32.mrb[0].mxu0
        %v10102 = vadd.f32 %v9877, %v10101
        %v10103 = vpop.f32.mrb[0].mxu0
        %10104 = vmatprep.mubr.f32.mxu0 0.0
        %10105 = vmatmul.mubr.f32.gmra.mrb[0].mxu0 %v9466
        %v10106 = vpop.f32.mrb[0].mxu0
        %v10107 = vadd.f32 %v9882, %v10106
        %v10108 = vpop.f32.mrb[0].mxu0
        %10109 = vmatprep.mubr.f32.mxu0 0.0
        %10110 = vmatmul.mubr.f32.gmra.mrb[0].mxu0 %v9468
        %v10111 = vpop.f32.mrb[0].mxu0
        %v10112 = vadd.f32 %v9887, %v10111
        %v10113 = vpop.f32.mrb[0].mxu0
        %10114 = vmatprep.mubr.f32.mxu0 0.0
        %10115 = vmatmul.mubr.f32.gmra.mrb[0].mxu0 %v9470
        %v10116 = vpop.f32.mrb[0].mxu0
        %v10117 = vadd.f32 %v9892, %v10116
        %v10118 = vpop.f32.mrb[0].mxu0
        %10119 = vmatprep.mubr.f32.mxu0 0.0
        %10120 = vmatmul.mubr.f32.gmra.mrb[0].mxu0 %v9472
        %v10121 = vpop.f32.mrb[0].mxu0
        %v10122 = vadd.f32 %v9897, %v10121
        %v10123 = vpop.f32.mrb[0].mxu0
        %10124 = vmatprep.mubr.f32.mxu0 0.0
        %10125 = vmatmul.mubr.f32.gmra.mrb[0].mxu0 %v9474
        %v10126 = vpop.f32.mrb[0].mxu0
        %v10127 = vadd.f32 %v9902, %v10126
        %v10128 = vpop.f32.mrb[0].mxu0
        %10129 = vmatprep.mubr.f32.mxu0 0.0
        %10130 = vmatmul.mubr.f32.gmra.mrb[0].mxu0 %v9476
        %v10131 = vpop.f32.mrb[0].mxu0
        %v10132 = vadd.f32 %v9907, %v10131
        %v10133 = vpop.f32.mrb[0].mxu0
        %10134 = vmatprep.mubr.f32.mxu0 0.0
        %10135 = vmatmul.mubr.f32.gmra.mrb[0].mxu0 %v9478
        %v10136 = vpop.f32.mrb[0].mxu0
        %v10137 = vadd.f32 %v9912, %v10136
        %v10138 = vpop.f32.mrb[0].mxu0
        %10139 = vmatprep.mubr.f32.mxu0 0.0
        %10140 = vmatmul.mubr.f32.gmra.mrb[0].mxu0 %v9480
        %v10141 = vpop.f32.mrb[0].mxu0
        %v10142 = vadd.f32 %v9917, %v10141
        %v10143 = vpop.f32.mrb[0].mxu0
        %10144 = vmatprep.mubr.f32.mxu0 0.0
        %10145 = vmatmul.mubr.f32.gmra.mrb[0].mxu0 %v9482
        %v10146 = vpop.f32.mrb[0].mxu0
        %v10147 = vadd.f32 %v9922, %v10146
        %v10148 = vpop.f32.mrb[0].mxu0
        %10149 = vmatprep.mubr.f32.mxu0 0.0
        %10150 = vmatmul.mubr.f32.gmra.mrb[0].mxu0 %v9484
        %v10151 = vpop.f32.mrb[0].mxu0
        %v10152 = vadd.f32 %v9927, %v10151
        %v10153 = vpop.f32.mrb[0].mxu0
        %10154 = vmatprep.mubr.f32.mxu0 0.0
        %10155 = vmatmul.mubr.f32.gmra.mrb[0].mxu0 %v9486
        %v10156 = vpop.f32.mrb[0].mxu0
        %v10157 = vadd.f32 %v9932, %v10156
        %v10158 = vpop.f32.mrb[0].mxu0
        %10159 = vmatprep.mubr.f32.mxu0 0.0
        %10160 = vmatmul.mubr.f32.gmra.mrb[0].mxu0 %v9488
        %v10161 = vpop.f32.mrb[0].mxu0
        %v10162 = vadd.f32 %v9937, %v10161
        %v10163 = vpop.f32.mrb[0].mxu0
        %10164 = vdwg.mxu0
        %vm10165 = vcmask 392192
        %10166 = vst.msk [vmem:[%s385] sm:$0xff] %vm10165, %v10007
        %10167 = vst.msk [vmem:[%s385 + $0x8] sm:$0xff] %vm10165, %v10012
        %10168 = vst.msk [vmem:[%s385 + $0x10] sm:$0xff] %vm10165, %v10017
        %10169 = vst.msk [vmem:[%s385 + $0x18] sm:$0xff] %vm10165, %v10022
        %10170 = vst.msk [vmem:[%s385 + $0x20] sm:$0xff] %vm10165, %v10027
        %10171 = vst.msk [vmem:[%s385 + $0x28] sm:$0xff] %vm10165, %v10032
        %10172 = vst.msk [vmem:[%s385 + $0x30] sm:$0xff] %vm10165, %v10037
        %10173 = vst.msk [vmem:[%s385 + $0x38] sm:$0xff] %vm10165, %v10042
        %10174 = vst.msk [vmem:[%s385 + $0x40] sm:$0xff] %vm10165, %v10047
        %10175 = vst.msk [vmem:[%s385 + $0x48] sm:$0xff] %vm10165, %v10052
        %10176 = vst.msk [vmem:[%s385 + $0x50] sm:$0xff] %vm10165, %v10057
        %10177 = vst.msk [vmem:[%s385 + $0x58] sm:$0xff] %vm10165, %v10062
        %10178 = vst.msk [vmem:[%s385 + $0x60] sm:$0xff] %vm10165, %v10067
        %10179 = vst.msk [vmem:[%s385 + $0x68] sm:$0xff] %vm10165, %v10072
        %10180 = vst.msk [vmem:[%s385 + $0x70] sm:$0xff] %vm10165, %v10077
        %10181 = vst.msk [vmem:[%s385 + $0x78] sm:$0xff] %vm10165, %v10082
        %10182 = vst.msk [vmem:[%s385 + $0x80] sm:$0xff] %vm10165, %v10087
        %10183 = vst.msk [vmem:[%s385 + $0x88] sm:$0xff] %vm10165, %v10092
        %10184 = vst.msk [vmem:[%s385 + $0x90] sm:$0xff] %vm10165, %v10097
        %10185 = vst.msk [vmem:[%s385 + $0x98] sm:$0xff] %vm10165, %v10102
        %10186 = vst.msk [vmem:[%s385 + $0xa0] sm:$0xff] %vm10165, %v10107
        %10187 = vst.msk [vmem:[%s385 + $0xa8] sm:$0xff] %vm10165, %v10112
        %10188 = vst.msk [vmem:[%s385 + $0xb0] sm:$0xff] %vm10165, %v10117
        %10189 = vst.msk [vmem:[%s385 + $0xb8] sm:$0xff] %vm10165, %v10122
        %10190 = vst.msk [vmem:[%s385 + $0xc0] sm:$0xff] %vm10165, %v10127
        %10191 = vst.msk [vmem:[%s385 + $0xc8] sm:$0xff] %vm10165, %v10132
        %10192 = vst.msk [vmem:[%s385 + $0xd0] sm:$0xff] %vm10165, %v10137
        %10193 = vst.msk [vmem:[%s385 + $0xd8] sm:$0xff] %vm10165, %v10142
        %10194 = vst.msk [vmem:[%s385 + $0xe0] sm:$0xff] %vm10165, %v10147
        %10195 = vst.msk [vmem:[%s385 + $0xe8] sm:$0xff] %vm10165, %v10152
        %10196 = vst.msk [vmem:[%s385 + $0xf0] sm:$0xff] %vm10165, %v10157
        %10197 = vst.msk [vmem:[%s385 + $0xf8] sm:$0xff] %vm10165, %v10162
        %p10198 = scmp.lt.s32.totalorder %s23, 1
        %s10199 = scalar_select %p10198, %s23, 1
        %s10200 = smul.addr %s10199, 32
        %s10201 = smul.addr %s10200, 8
        %s10202 = scalar_lea.vmem %s9, %s10201
        // Predicated region
        $region73: #{decoder_forward.1} parent=55 // pred_check
          %p10203 = pneg %p235
        $region74: #{decoder_forward.1} parent=55 // pred_check_branch
          %10205 = sbr.rel (%p10203) target = $region76
        $region75: #{decoder_forward.1} parent=55 // pred_region
          _
        $region76: #{decoder_forward.1} parent=55 // pred_fallthru
          _
      $region56: #{decoder_forward.1} parent=5 // pred_fallthru
        _
      %p10206 = scmp.le.s32.totalorder 2, %s18
      // Predicated region
      $region77: #{decoder_forward.1} parent=5 // pred_check
        %p10207 = pneg %p10206
      $region78: #{decoder_forward.1} parent=5 // pred_check_branch
        %10209 = sbr.rel (%p10207) target = $region80
      $region79: #{decoder_forward.1} parent=5 // pred_region
        %s10210 = ssub.s32 %s18, 2
        // Predicated region
        $region81: #{decoder_forward.1} parent=79 // pred_check
          %p10211 = pneg %p241
        $region82: #{decoder_forward.1} parent=79 // pred_check_branch
          %10213 = sbr.rel (%p10211) target = $region84
        $region83: #{decoder_forward.1} parent=79 // pred_region
          %p10214 = scmp.lt.s32.totalorder %s24, 1
          %s10215 = scalar_select %p10214, %s24, 1
          %s10216 = smul.addr %s10215, 32
          %s10217 = smul.addr %s10216, 8
          %s10218 = scalar_lea.vmem %s9, %s10217
        $region84: #{decoder_forward.1} parent=79 // pred_fallthru
          _
      $region80: #{decoder_forward.1} parent=5 // pred_fallthru
        _
    $region6: #{decoder_forward.1} parent=1 // loop_footer
      %s22 = sadd.s32 1, %s18
    $region7: #{decoder_forward.1} parent=1 // loop_footer_branch
      %17 = sbr.rel target = $region3
    $region8: #{decoder_forward.1} parent=1 // loop_exit
      _
    %10219 = vsyncpa [#allocation6], 1
    %s10220 = scalar_lea.sflag [#allocation6], 1
    %10221 = vsyncpa %s10220, 1
    %10222 = vsyncpa [#allocation8], 1
    %10223 = vsyncpa [#allocation11], 1

</llo_original>
